<compile_context>
chip_gen: v7x
topology: tpu7x:2x2x1
jax: 0.10.0
libtpu: 0.0.40
codegen_flags: <defaults>
</compile_context>

<pallas_src>
import functools
import math

import jax
import jax.numpy as jnp
import numpy as np
from jax import lax
from jax.experimental import pallas as pl
from jax.experimental.pallas import tpu as pltpu

NUM_LAYERS = 2
NHEAD = 4
FFN_DIM = 2048          # nn.TransformerEncoderLayer default dim_feedforward
LN_EPS = 1e-5           # nn.LayerNorm default eps
LANE = 128
FUSED_MAX_ROWS = 512    # use the single fused kernel when the whole sequence fits

LKEYS = ("q_w", "q_b", "kv_w", "kv_b", "out_w", "out_b",
         "ff1_w", "ff1_b", "ff2_w", "ff2_b",
         "n1_w", "n1_b", "n2_w", "n2_b")
ENC_KEYS = ("q_w", "q_b", "out_w", "out_b",
            "ff1_w", "ff1_b", "ff2_w", "ff2_b",
            "n1_w", "n1_b", "n2_w", "n2_b")


def _round_up(x, m):
    return ((x + m - 1) // m) * m


def _vmem_capacity_bytes():
    try:
        return int(pltpu.get_tpu_info().vmem_capacity_bytes)
    except Exception:
        return 64 << 20      # conservative default: v7x per-TensorCore VMEM


def _vmem_limit(need_bytes):
    cap = _vmem_capacity_bytes()
    need = max(int(need_bytes) + (8 << 20), 32 << 20)   # pipeline/internal headroom
    return int(min(need, cap - (8 << 20)))


def _row_tile():
    # v5e: 4x128x128 MXU -> 128-row tiles; v6e/v7x: 2x256x256 MXU -> 256-row tiles.
    try:
        kind = jax.devices()[0].device_kind.lower()
    except Exception:
        kind = ""
    return 128 if "v5" in kind else 256


def _const_index_map(nd):
    return lambda i: (0,) * nd


def _const_spec(shape):
    # Constant-index block (same tile at every grid step): single-buffer it.
    return pl.BlockSpec(shape, _const_index_map(len(shape)),
                        pipeline_mode=pl.Buffered(1))


# ----------------------------------------------------------- in-kernel building blocks
def _sigmoid_exact(z):
    # Numerically stable sigmoid with an exact divide (final model output).
    neg = jnp.exp(-jnp.abs(z))
    inv = 1.0 / (1.0 + neg)
    return jnp.where(z >= 0, inv, neg * inv)


def _encoder_block(h, kv, wd, *, e_real, e_pad, hd_pad, s_real, s_pad):
    """One post-norm TransformerEncoderLayer applied to a block of rows.

    h  : (TQ, e_pad) float32 query / residual rows.
    kv : (s_pad, 2*NHEAD*hd_pad) bfloat16 pre-projected keys|values (per-head layout).
    NOTE: padded lanes of h must be exactly zero (zero-padded weights keep them zero);
    LayerNorm additionally masks them so the statistics only see e_real channels.
    """
    f32, bf16 = jnp.float32, jnp.bfloat16
    lane_mask = lax.broadcasted_iota(jnp.int32, (1, e_pad), 1) < e_real
    inv_e = 1.0 / float(e_real)

    def layer_norm(z, w, b):
        mu = jnp.sum(z, axis=-1, keepdims=True) * inv_e
        cz = jnp.where(lane_mask, z - mu, 0.0)
        var = jnp.sum(cz * cz, axis=-1, keepdims=True) * inv_e
        return cz * lax.rsqrt(var + LN_EPS) * w + b

    hh = NHEAD * hd_pad
    # The 1/sqrt(head_dim) attention scale is pre-folded into q_w / q_b at prep time.
    q_all = jnp.dot(h.astype(bf16), wd["q_w"], preferred_element_type=f32) + wd["q_b"]

    heads = []
    for hi in range(NHEAD):            # static unroll; every slice is 128-lane aligned
        q = q_all[:, hi * hd_pad:(hi + 1) * hd_pad].astype(bf16)
        k = kv[:, hi * hd_pad:(hi + 1) * hd_pad]
        v = kv[:, hh + hi * hd_pad:hh + (hi + 1) * hd_pad]
        # TODO(synk): flash-style online-softmax key blocking for very long sequences
        # so resident VMEM is O(tq * key_block) instead of O(S).
        s = lax.dot_general(q, k, (((1,), (1,)), ((), ())),
                            preferred_element_type=f32)               # (TQ, s_pad)
        if s_pad > s_real:             # ignore padded sequence rows as keys
            kmask = lax.broadcasted_iota(jnp.int32, (1, s_pad), 1) < s_real
            s = jnp.where(kmask, s, -1e30)
        m = jnp.max(s, axis=-1, keepdims=True)
        p = jnp.exp(s - m)
        p = p * pl.reciprocal(jnp.sum(p, axis=-1, keepdims=True), approx=True)
        heads.append(jnp.dot(p.astype(bf16), v, preferred_element_type=f32))
    concat = jnp.concatenate(heads, axis=-1)                           # (TQ, NHEAD*hd_pad)
    sa = jnp.dot(concat.astype(bf16), wd["out_w"],
                 preferred_element_type=f32) + wd["out_b"]
    # TODO(synk): dropout layers are identity (eval-mode semantics).
    h1 = layer_norm(h + sa, wd["n1_w"], wd["n1_b"])

    ff = jnp.dot(h1.astype(bf16), wd["ff1_w"], preferred_element_type=f32) + wd["ff1_b"]
    ff = jnp.maximum(ff, 0.0)
    ff = jnp.dot(ff.astype(bf16), wd["ff2_w"], preferred_element_type=f32) + wd["ff2_b"]
    return layer_norm(h1 + ff, wd["n2_w"], wd["n2_b"])


# -------------------------------------------------------------------- fused small-S path
def _fused_kernel(x_ref, emb_w_ref, emb_b_ref, *rest,
                  e_real, e_pad, hd_pad, s_real, s_pad):
    f32, bf16 = jnp.float32, jnp.bfloat16
    nl = len(LKEYS)
    layer_refs = dict(zip(LKEYS, rest[:nl]))
    fc_w_ref, fc_b_ref, o_ref = rest[nl], rest[nl + 1], rest[nl + 2]

    h = jnp.dot(x_ref[...], emb_w_ref[...], preferred_element_type=f32) + emb_b_ref[...]
    for l in range(NUM_LAYERS):        # static unroll over the 2 encoder layers
        kv = (jnp.dot(h.astype(bf16), layer_refs["kv_w"][l],
                      preferred_element_type=f32) + layer_refs["kv_b"][l]).astype(bf16)
        wd = {k: layer_refs[k][l] for k in ENC_KEYS}
        h = _encoder_block(h, kv, wd, e_real=e_real, e_pad=e_pad, hd_pad=hd_pad,
                           s_real=s_real, s_pad=s_pad)
    z = jnp.dot(h.astype(bf16), fc_w_ref[...], preferred_element_type=f32) + fc_b_ref[...]
    o_ref[...] = _sigmoid_exact(z)


def _fused_call(x_pad, prepped, dims, *, s_real, e_real):
    s_pad, _ = x_pad.shape
    e_p, hd_p, c_p = dims["e_p"], dims["hd_p"], dims["c_p"]
    stacked = {k: jnp.stack([lw[k] for lw in prepped["layers"]]) for k in LKEYS}
    args = ([x_pad, prepped["emb_w"], prepped["emb_b"]]
            + [stacked[k] for k in LKEYS]
            + [prepped["fc_w"], prepped["fc_b"]])

    hh = NHEAD * hd_p
    f_p = stacked["ff1_w"].shape[-1]
    need = sum(a.size * a.dtype.itemsize for a in args) + s_pad * c_p * 4
    # in-kernel intermediates: h, q_all, kv, per-head scores/outputs, concat, FFN hidden
    need += 4 * s_pad * (4 * e_p + 5 * hh + 2 * s_pad + f_p)

    return pl.pallas_call(
        functools.partial(_fused_kernel, e_real=e_real, e_pad=e_p, hd_pad=hd_p,
                          s_real=s_real, s_pad=s_pad),
        out_shape=jax.ShapeDtypeStruct((s_pad, c_p), jnp.float32),
        grid=(1,),
        in_specs=[pl.BlockSpec(a.shape, _const_index_map(a.ndim)) for a in args],
        out_specs=pl.BlockSpec((s_pad, c_p), lambda i: (0, 0)),
        compiler_params=pltpu.CompilerParams(
            dimension_semantics=("arbitrary",),
            vmem_limit_bytes=_vmem_limit(need)),
    )(*args)


# ------------------------------------------------------------------- tiled large-S path
def _linear_kernel(x_ref, w_ref, b_ref, o_ref, *, apply_sigmoid):
    z = jnp.dot(x_ref[...].astype(jnp.bfloat16), w_ref[...],
                preferred_element_type=jnp.float32) + b_ref[...]
    if apply_sigmoid:
        z = _sigmoid_exact(z)
    o_ref[...] = z


def _linear_call(x, w, b, *, tq, apply_sigmoid):
    S, d_in = x.shape
    d_out = w.shape[1]
    need = (2 * tq * d_in * x.dtype.itemsize + 2 * tq * d_out * 4
            + w.size * w.dtype.itemsize + b.size * 4 + 4 * tq * d_out)
    return pl.pallas_call(
        functools.partial(_linear_kernel, apply_sigmoid=apply_sigmoid),
        out_shape=jax.ShapeDtypeStruct((S, d_out), jnp.float32),
        grid=(S // tq,),
        in_specs=[pl.BlockSpec((tq, d_in), lambda i: (i, 0)),
                  _const_spec(w.shape), _const_spec(b.shape)],
        out_specs=pl.BlockSpec((tq, d_out), lambda i: (i, 0)),
        compiler_params=pltpu.CompilerParams(
            dimension_semantics=("parallel",),
            vmem_limit_bytes=_vmem_limit(need)),
    )(x, w, b)


def _kv_kernel(h_ref, w_ref, b_ref, o_ref):
    o_ref[...] = (jnp.dot(h_ref[...].astype(jnp.bfloat16), w_ref[...],
                          preferred_element_type=jnp.float32)
                  + b_ref[...]).astype(jnp.bfloat16)


def _kv_call(h, kv_w, kv_b, *, tq):
    # K/V projection hoisted out of the encoder grid: computed ONCE per layer
    # (not per row block) and stored bf16 to halve the full-sequence HBM read.
    S, e_p = h.shape
    d_out = kv_w.shape[1]
    need = (2 * tq * e_p * 4 + 2 * tq * d_out * 2
            + kv_w.size * 2 + kv_b.size * 4 + 4 * tq * d_out)
    return pl.pallas_call(
        _kv_kernel,
        out_shape=jax.ShapeDtypeStruct((S, d_out), jnp.bfloat16),
        grid=(S // tq,),
        in_specs=[pl.BlockSpec((tq, e_p), lambda i: (i, 0)),
                  _const_spec(kv_w.shape), _const_spec(kv_b.shape)],
        out_specs=pl.BlockSpec((tq, d_out), lambda i: (i, 0)),
        compiler_params=pltpu.CompilerParams(
            dimension_semantics=("parallel",),
            vmem_limit_bytes=_vmem_limit(need)),
    )(h, kv_w, kv_b)


def _encoder_kernel(hq_ref, kv_ref, *rest, e_real, e_pad, hd_pad, s_real, s_pad):
    w_refs, o_ref = rest[:-1], rest[-1]
    wd = {k: r[...] for k, r in zip(ENC_KEYS, w_refs)}
    o_ref[...] = _encoder_block(hq_ref[...], kv_ref[...], wd,
                                e_real=e_real, e_pad=e_pad, hd_pad=hd_pad,
                                s_real=s_real, s_pad=s_pad)


def _encoder_call(h, kv, lw, *, tq, e_real, e_pad, hd_pad, s_real):
    S = h.shape[0]
    weights = [lw[k] for k in ENC_KEYS]
    hh = kv.shape[1] // 2
    f_p = lw["ff1_w"].shape[1]
    need = (4 * tq * e_pad * 4                        # row-tiled in/out, double-buffered
            + kv.size * kv.dtype.itemsize             # full KV slab, single-buffered
            + sum(a.size * a.dtype.itemsize for a in weights)
            + 4 * tq * (2 * hh + 2 * S + f_p + 4 * e_pad))   # scores, FFN, LN temps
    in_specs = ([pl.BlockSpec((tq, e_pad), lambda i: (i, 0)),
                 _const_spec(kv.shape)]
                + [_const_spec(a.shape) for a in weights])
    return pl.pallas_call(
        functools.partial(_encoder_kernel, e_real=e_real, e_pad=e_pad, hd_pad=hd_pad,
                          s_real=s_real, s_pad=S),
        out_shape=jax.ShapeDtypeStruct((S, e_pad), jnp.float32),
        grid=(S // tq,),
        in_specs=in_specs,
        out_specs=pl.BlockSpec((tq, e_pad), lambda i: (i, 0)),
        compiler_params=pltpu.CompilerParams(
            dimension_semantics=("parallel",),
            vmem_limit_bytes=_vmem_limit(need)),
    )(h, kv, *weights)


# --------------------------------------------------------------- parameter preparation
def _prepare_params(params, input_dim, hidden_dim, num_classes):
    (emb_w, emb_b, qkv_w, qkv_b, out_w, out_b, ff1_w, ff1_b,
     ff2_w, ff2_b, n1_w, n1_b, n2_w, n2_b, fc_w, fc_b) = params
    E = hidden_dim
    hd = E // NHEAD
    F = ff1_w.shape[-1]

    din_p = _round_up(input_dim, LANE)
    e_p = _round_up(E, LANE)            # activation width stays at round_up(E,128)
    hd_p = _round_up(hd, LANE)          # internal per-head Q/K/V column layout only
    f_p = _round_up(F, LANE)
    c_p = _round_up(num_classes, LANE)
    scale = 1.0 / math.sqrt(hd)

    def pad2(a, rows, cols):
        return jnp.pad(a, ((0, rows - a.shape[0]), (0, cols - a.shape[1])))

    def head_cols(w, b):
        # (E, E)/(1, E) per-head columns -> (e_p, NHEAD*hd_p)/(1, NHEAD*hd_p)
        wp = [pad2(w[:, h * hd:(h + 1) * hd], e_p, hd_p) for h in range(NHEAD)]
        bp = [pad2(b[:, h * hd:(h + 1) * hd], 1, hd_p) for h in range(NHEAD)]
        return jnp.concatenate(wp, axis=1), jnp.concatenate(bp, axis=1)

    prepped = dict(
        emb_w=pad2(emb_w, din_p, e_p).astype(jnp.bfloat16),
        emb_b=pad2(emb_b, 1, e_p).astype(jnp.float32),
        fc_w=pad2(fc_w, e_p, c_p).astype(jnp.bfloat16),
        fc_b=pad2(fc_b, 1, c_p).astype(jnp.float32),
        layers=[],
    )
    for l in range(NUM_LAYERS):
        wq, wk, wv = qkv_w[l, :, :E], qkv_w[l, :, E:2 * E], qkv_w[l, :, 2 * E:]
        bq, bk, bv = qkv_b[l, :, :E], qkv_b[l, :, E:2 * E], qkv_b[l, :, 2 * E:]
        # fold the 1/sqrt(head_dim) attention scale into the Q projection (free).
        q_w_p, q_b_p = head_cols(wq * scale, bq * scale)
        k_w_p, k_b_p = head_cols(wk, bk)
        v_w_p, v_b_p = head_cols(wv, bv)
        # out-projection rows follow the per-head (padded) concat layout.
        ow = jnp.concatenate(
            [pad2(out_w[l, h * hd:(h + 1) * hd, :], hd_p, e_p) for h in range(NHEAD)],
            axis=0)
        prepped["layers"].append(dict(
            q_w=q_w_p.astype(jnp.bfloat16),
            q_b=q_b_p.astype(jnp.float32),
            kv_w=jnp.concatenate([k_w_p, v_w_p], axis=1).astype(jnp.bfloat16),
            kv_b=jnp.concatenate([k_b_p, v_b_p], axis=1).astype(jnp.float32),
            out_w=ow.astype(jnp.bfloat16),
            out_b=pad2(out_b[l], 1, e_p).astype(jnp.float32),
            ff1_w=pad2(ff1_w[l], e_p, f_p).astype(jnp.bfloat16),
            ff1_b=pad2(ff1_b[l], 1, f_p).astype(jnp.float32),
            ff2_w=pad2(ff2_w[l], f_p, e_p).astype(jnp.bfloat16),
            ff2_b=pad2(ff2_b[l], 1, e_p).astype(jnp.float32),
            n1_w=pad2(n1_w[l], 1, e_p).astype(jnp.float32),
            n1_b=pad2(n1_b[l], 1, e_p).astype(jnp.float32),
            n2_w=pad2(n2_w[l], 1, e_p).astype(jnp.float32),
            n2_b=pad2(n2_b[l], 1, e_p).astype(jnp.float32),
        ))
    return prepped, dict(din_p=din_p, e_p=e_p, hd_p=hd_p, c_p=c_p)


def transformer_classifier(x, params):
    S, input_dim = x.shape
    hidden_dim = params[0].shape[1]
    num_classes = params[-2].shape[1]
    prepped, dims = _prepare_params(params, input_dim, hidden_dim, num_classes)

    if S <= FUSED_MAX_ROWS:
        # Small-sequence regime (the shipped test): one fused kernel, no HBM round trips.
        s_pad = _round_up(max(S, 8), 8)
        x_p = jnp.pad(x, ((0, s_pad - S), (0, dims["din_p"] - input_dim)))
        out = _fused_call(x_p.astype(jnp.bfloat16), prepped, dims,
                          s_real=S, e_real=hidden_dim)
    else:
        tq = _row_tile()
        s_pad = _round_up(S, tq)
        x_p = jnp.pad(x, ((0, s_pad - S), (0, dims["din_p"] - input_dim)))
        h = _linear_call(x_p.astype(jnp.bfloat16), prepped["emb_w"], prepped["emb_b"],
                         tq=tq, apply_sigmoid=False)
        for lw in prepped["layers"]:
            kv = _kv_call(h, lw["kv_w"], lw["kv_b"], tq=tq)
            h = _encoder_call(h, kv, lw, tq=tq, e_real=hidden_dim,
                              e_pad=dims["e_p"], hd_pad=dims["hd_p"], s_real=S)
        out = _linear_call(h, prepped["fc_w"], prepped["fc_b"], tq=tq, apply_sigmoid=True)
    return out[:S, :num_classes]


# -------------------------------------------------------------------------- test setup
def init_params(key, input_dim, hidden_dim, num_classes):
    E = hidden_dim
    keys = jax.random.split(key, 12)

    def dense(k, fan_in, shape):
        bound = 1.0 / np.sqrt(fan_in)
        return jax.random.uniform(k, shape, jnp.float32, -bound, bound)

    emb_w = dense(keys[0], input_dim, (input_dim, E))
    emb_b = dense(keys[1], input_dim, (1, E))
    qkv_w = dense(keys[2], E, (NUM_LAYERS, E, 3 * E))
    qkv_b = dense(keys[3], E, (NUM_LAYERS, 1, 3 * E))
    out_w = dense(keys[4], E, (NUM_LAYERS, E, E))
    out_b = dense(keys[5], E, (NUM_LAYERS, 1, E))
    ff1_w = dense(keys[6], E, (NUM_LAYERS, E, FFN_DIM))
    ff1_b = dense(keys[7], E, (NUM_LAYERS, 1, FFN_DIM))
    ff2_w = dense(keys[8], FFN_DIM, (NUM_LAYERS, FFN_DIM, E))
    ff2_b = dense(keys[9], FFN_DIM, (NUM_LAYERS, 1, E))
    n1_w = jnp.ones((NUM_LAYERS, 1, E), jnp.float32)
    n1_b = jnp.zeros((NUM_LAYERS, 1, E), jnp.float32)
    n2_w = jnp.ones((NUM_LAYERS, 1, E), jnp.float32)
    n2_b = jnp.zeros((NUM_LAYERS, 1, E), jnp.float32)
    fc_w = dense(keys[10], E, (E, num_classes))
    fc_b = dense(keys[11], E, (1, num_classes))
    return [emb_w, emb_b, qkv_w, qkv_b, out_w, out_b, ff1_w, ff1_b,
            ff2_w, ff2_b, n1_w, n1_b, n2_w, n2_b, fc_w, fc_b]


def ref_forward(x, params):
    # Pure numpy (float64) reference matching PyTorch eval-mode semantics.
    (emb_w, emb_b, qkv_w, qkv_b, out_w, out_b, ff1_w, ff1_b,
     ff2_w, ff2_b, n1_w, n1_b, n2_w, n2_b, fc_w, fc_b) = params

    def ln(z, w, b):
        mu = z.mean(-1, keepdims=True)
        var = ((z - mu) ** 2).mean(-1, keepdims=True)
        return (z - mu) / np.sqrt(var + LN_EPS) * w + b

    h = x @ emb_w + emb_b
    S, E = h.shape
    hd = E // NHEAD
    for l in range(NUM_LAYERS):
        qkv = h @ qkv_w[l] + qkv_b[l]
        q, k, v = qkv[:, :E], qkv[:, E:2 * E], qkv[:, 2 * E:]
        concat = np.zeros((S, E))
        for hi in range(NHEAD):
            qh = q[:, hi * hd:(hi + 1) * hd]
            kh = k[:, hi * hd:(hi + 1) * hd]
            vh = v[:, hi * hd:(hi + 1) * hd]
            s = qh @ kh.T / np.sqrt(hd)
            s = s - s.max(-1, keepdims=True)
            p = np.exp(s)
            p = p / p.sum(-1, keepdims=True)
            concat[:, hi * hd:(hi + 1) * hd] = p @ vh
        sa = concat @ out_w[l] + out_b[l]
        h = ln(h + sa, n1_w[l], n1_b[l])
        ff = np.maximum(h @ ff1_w[l] + ff1_b[l], 0.0)
        ff = ff @ ff2_w[l] + ff2_b[l]
        h = ln(h + ff, n2_w[l], n2_b[l])
    logits = h @ fc_w + fc_b
    return 1.0 / (1.0 + np.exp(-logits))


if __name__ == "__main__":
    batch, input_dim, hidden_dim, num_classes = 8, 16, 32, 3
    key = jax.random.PRNGKey(0)
    kx, kp = jax.random.split(key)
    x = jax.random.normal(kx, (batch, input_dim), jnp.float32)
    params = init_params(kp, input_dim, hidden_dim, num_classes)

    out = jax.block_until_ready(transformer_classifier(x, params))

    ref = ref_forward(np.asarray(x, np.float64),
                      [np.asarray(p, np.float64) for p in params])
    assert out.shape == (batch, num_classes)
    err = float(np.max(np.abs(np.asarray(out) - ref)))
    # bf16 MXU matmuls (f32 accumulation) vs. float64 reference -> widened tolerance.
    assert np.allclose(np.asarray(out), ref, atol=2e-2, rtol=2e-2), f"max abs diff {err}"
    print("KERNEL_OK")
</pallas_src>

<mosaic_0001>
module attributes {stable_mosaic.version = 11 : i64} {
  func.func @_fused_kernel(%arg0: i32, %arg1: memref<8x128xbf16, #tpu.memory_space<vmem>>, %arg2: memref<128x128xbf16, #tpu.memory_space<vmem>>, %arg3: memref<1x128xf32, #tpu.memory_space<vmem>>, %arg4: memref<2x128x512xbf16, #tpu.memory_space<vmem>>, %arg5: memref<2x1x512xf32, #tpu.memory_space<vmem>>, %arg6: memref<2x128x1024xbf16, #tpu.memory_space<vmem>>, %arg7: memref<2x1x1024xf32, #tpu.memory_space<vmem>>, %arg8: memref<2x512x128xbf16, #tpu.memory_space<vmem>>, %arg9: memref<2x1x128xf32, #tpu.memory_space<vmem>>, %arg10: memref<2x128x2048xbf16, #tpu.memory_space<vmem>>, %arg11: memref<2x1x2048xf32, #tpu.memory_space<vmem>>, %arg12: memref<2x2048x128xbf16, #tpu.memory_space<vmem>>, %arg13: memref<2x1x128xf32, #tpu.memory_space<vmem>>, %arg14: memref<2x1x128xf32, #tpu.memory_space<vmem>>, %arg15: memref<2x1x128xf32, #tpu.memory_space<vmem>>, %arg16: memref<2x1x128xf32, #tpu.memory_space<vmem>>, %arg17: memref<2x1x128xf32, #tpu.memory_space<vmem>>, %arg18: memref<128x128xbf16, #tpu.memory_space<vmem>>, %arg19: memref<1x128xf32, #tpu.memory_space<vmem>>, %arg20: memref<8x128xf32, #tpu.memory_space<vmem>>) attributes {dimension_semantics = [#tpu.dimension_semantics<arbitrary>], iteration_bounds = array<i64: 1>, scalar_prefetch = 0 : i64, scratch_operands = 0 : i64, tpu.core_type = #tpu.core_type<tc>, window_params = [{pipeline_mode = #tpu.pipeline_mode<synchronous>, transform_indices = @transform_0, window_bounds = array<i64: 8, 128>}, {pipeline_mode = #tpu.pipeline_mode<synchronous>, transform_indices = @transform_1, window_bounds = array<i64: 128, 128>}, {pipeline_mode = #tpu.pipeline_mode<synchronous>, transform_indices = @transform_2, window_bounds = array<i64: 1, 128>}, {pipeline_mode = #tpu.pipeline_mode<synchronous>, transform_indices = @transform_3, window_bounds = array<i64: 2, 128, 512>}, {pipeline_mode = #tpu.pipeline_mode<synchronous>, transform_indices = @transform_4, window_bounds = array<i64: 2, 1, 512>}, {pipeline_mode = #tpu.pipeline_mode<synchronous>, transform_indices = @transform_5, window_bounds = array<i64: 2, 128, 1024>}, {pipeline_mode = #tpu.pipeline_mode<synchronous>, transform_indices = @transform_6, window_bounds = array<i64: 2, 1, 1024>}, {pipeline_mode = #tpu.pipeline_mode<synchronous>, transform_indices = @transform_7, window_bounds = array<i64: 2, 512, 128>}, {pipeline_mode = #tpu.pipeline_mode<synchronous>, transform_indices = @transform_8, window_bounds = array<i64: 2, 1, 128>}, {pipeline_mode = #tpu.pipeline_mode<synchronous>, transform_indices = @transform_9, window_bounds = array<i64: 2, 128, 2048>}, {pipeline_mode = #tpu.pipeline_mode<synchronous>, transform_indices = @transform_10, window_bounds = array<i64: 2, 1, 2048>}, {pipeline_mode = #tpu.pipeline_mode<synchronous>, transform_indices = @transform_11, window_bounds = array<i64: 2, 2048, 128>}, {pipeline_mode = #tpu.pipeline_mode<synchronous>, transform_indices = @transform_12, window_bounds = array<i64: 2, 1, 128>}, {pipeline_mode = #tpu.pipeline_mode<synchronous>, transform_indices = @transform_13, window_bounds = array<i64: 2, 1, 128>}, {pipeline_mode = #tpu.pipeline_mode<synchronous>, transform_indices = @transform_14, window_bounds = array<i64: 2, 1, 128>}, {pipeline_mode = #tpu.pipeline_mode<synchronous>, transform_indices = @transform_15, window_bounds = array<i64: 2, 1, 128>}, {pipeline_mode = #tpu.pipeline_mode<synchronous>, transform_indices = @transform_16, window_bounds = array<i64: 2, 1, 128>}, {pipeline_mode = #tpu.pipeline_mode<synchronous>, transform_indices = @transform_17, window_bounds = array<i64: 128, 128>}, {pipeline_mode = #tpu.pipeline_mode<synchronous>, transform_indices = @transform_18, window_bounds = array<i64: 1, 128>}, {pipeline_mode = #tpu.pipeline_mode<synchronous>, transform_indices = @transform_19, window_bounds = array<i64: 8, 128>}]} {
    %c0 = arith.constant 0 : index
    %c0_0 = arith.constant 0 : index
    %0 = vector.load %arg1[%c0, %c0_0] : memref<8x128xbf16, #tpu.memory_space<vmem>>, vector<8x128xbf16>
    %c0_1 = arith.constant 0 : index
    %c0_2 = arith.constant 0 : index
    %1 = vector.load %arg2[%c0_1, %c0_2] : memref<128x128xbf16, #tpu.memory_space<vmem>>, vector<128x128xbf16>
    %cst = arith.constant dense<0.000000e+00> : vector<8x128xf32>
    %2 = tpu.matmul %0, %1, %cst {dimension_numbers = #tpu.dot_dimension_numbers<[1], [0], [0], [1], [0, 0, 1, 1], [], []>} : vector<8x128xbf16>, vector<128x128xbf16>, vector<8x128xf32> -> vector<8x128xf32>
    %c0_3 = arith.constant 0 : index
    %c0_4 = arith.constant 0 : index
    %3 = vector.load %arg3[%c0_3, %c0_4] : memref<1x128xf32, #tpu.memory_space<vmem>>, vector<1x128xf32>
    %4 = vector.broadcast %3 : vector<1x128xf32> to vector<8x128xf32>
    %5 = arith.addf %2, %4 : vector<8x128xf32>
    %6 = arith.truncf %5 : vector<8x128xf32> to vector<8x128xbf16>
    %c0_5 = arith.constant 0 : index
    %c0_6 = arith.constant 0 : index
    %c0_7 = arith.constant 0 : index
    %7 = vector.load %arg6[%c0_5, %c0_6, %c0_7] : memref<2x128x1024xbf16, #tpu.memory_space<vmem>>, vector<1x128x1024xbf16>
    %8 = vector.shape_cast %7 : vector<1x128x1024xbf16> to vector<128x1024xbf16>
    %cst_8 = arith.constant dense<0.000000e+00> : vector<8x1024xf32>
    %9 = tpu.matmul %6, %8, %cst_8 {dimension_numbers = #tpu.dot_dimension_numbers<[1], [0], [0], [1], [0, 0, 1, 1], [], []>} : vector<8x128xbf16>, vector<128x1024xbf16>, vector<8x1024xf32> -> vector<8x1024xf32>
    %c0_9 = arith.constant 0 : index
    %c0_10 = arith.constant 0 : index
    %c0_11 = arith.constant 0 : index
    %10 = vector.load %arg7[%c0_9, %c0_10, %c0_11] : memref<2x1x1024xf32, #tpu.memory_space<vmem>>, vector<1x1x1024xf32>
    %11 = vector.shape_cast %10 : vector<1x1x1024xf32> to vector<1x1024xf32>
    %12 = vector.broadcast %11 : vector<1x1024xf32> to vector<8x1024xf32>
    %13 = arith.addf %9, %12 : vector<8x1024xf32>
    %14 = arith.truncf %13 : vector<8x1024xf32> to vector<8x1024xbf16>
    %c0_12 = arith.constant 0 : index
    %c0_13 = arith.constant 0 : index
    %c0_14 = arith.constant 0 : index
    %15 = vector.load %arg4[%c0_12, %c0_13, %c0_14] : memref<2x128x512xbf16, #tpu.memory_space<vmem>>, vector<1x128x512xbf16>
    %16 = vector.shape_cast %15 : vector<1x128x512xbf16> to vector<128x512xbf16>
    %c0_15 = arith.constant 0 : index
    %c0_16 = arith.constant 0 : index
    %c0_17 = arith.constant 0 : index
    %17 = vector.load %arg5[%c0_15, %c0_16, %c0_17] : memref<2x1x512xf32, #tpu.memory_space<vmem>>, vector<1x1x512xf32>
    %18 = vector.shape_cast %17 : vector<1x1x512xf32> to vector<1x512xf32>
    %c0_18 = arith.constant 0 : index
    %c0_19 = arith.constant 0 : index
    %c0_20 = arith.constant 0 : index
    %19 = vector.load %arg8[%c0_18, %c0_19, %c0_20] : memref<2x512x128xbf16, #tpu.memory_space<vmem>>, vector<1x512x128xbf16>
    %20 = vector.shape_cast %19 : vector<1x512x128xbf16> to vector<512x128xbf16>
    %c0_21 = arith.constant 0 : index
    %c0_22 = arith.constant 0 : index
    %c0_23 = arith.constant 0 : index
    %21 = vector.load %arg9[%c0_21, %c0_22, %c0_23] : memref<2x1x128xf32, #tpu.memory_space<vmem>>, vector<1x1x128xf32>
    %22 = vector.shape_cast %21 : vector<1x1x128xf32> to vector<1x128xf32>
    %c0_24 = arith.constant 0 : index
    %c0_25 = arith.constant 0 : index
    %c0_26 = arith.constant 0 : index
    %23 = vector.load %arg10[%c0_24, %c0_25, %c0_26] : memref<2x128x2048xbf16, #tpu.memory_space<vmem>>, vector<1x128x2048xbf16>
    %24 = vector.shape_cast %23 : vector<1x128x2048xbf16> to vector<128x2048xbf16>
    %c0_27 = arith.constant 0 : index
    %c0_28 = arith.constant 0 : index
    %c0_29 = arith.constant 0 : index
    %25 = vector.load %arg11[%c0_27, %c0_28, %c0_29] : memref<2x1x2048xf32, #tpu.memory_space<vmem>>, vector<1x1x2048xf32>
    %26 = vector.shape_cast %25 : vector<1x1x2048xf32> to vector<1x2048xf32>
    %c0_30 = arith.constant 0 : index
    %c0_31 = arith.constant 0 : index
    %c0_32 = arith.constant 0 : index
    %27 = vector.load %arg12[%c0_30, %c0_31, %c0_32] : memref<2x2048x128xbf16, #tpu.memory_space<vmem>>, vector<1x2048x128xbf16>
    %28 = vector.shape_cast %27 : vector<1x2048x128xbf16> to vector<2048x128xbf16>
    %c0_33 = arith.constant 0 : index
    %c0_34 = arith.constant 0 : index
    %c0_35 = arith.constant 0 : index
    %29 = vector.load %arg13[%c0_33, %c0_34, %c0_35] : memref<2x1x128xf32, #tpu.memory_space<vmem>>, vector<1x1x128xf32>
    %30 = vector.shape_cast %29 : vector<1x1x128xf32> to vector<1x128xf32>
    %c0_36 = arith.constant 0 : index
    %c0_37 = arith.constant 0 : index
    %c0_38 = arith.constant 0 : index
    %31 = vector.load %arg14[%c0_36, %c0_37, %c0_38] : memref<2x1x128xf32, #tpu.memory_space<vmem>>, vector<1x1x128xf32>
    %32 = vector.shape_cast %31 : vector<1x1x128xf32> to vector<1x128xf32>
    %c0_39 = arith.constant 0 : index
    %c0_40 = arith.constant 0 : index
    %c0_41 = arith.constant 0 : index
    %33 = vector.load %arg15[%c0_39, %c0_40, %c0_41] : memref<2x1x128xf32, #tpu.memory_space<vmem>>, vector<1x1x128xf32>
    %34 = vector.shape_cast %33 : vector<1x1x128xf32> to vector<1x128xf32>
    %c0_42 = arith.constant 0 : index
    %c0_43 = arith.constant 0 : index
    %c0_44 = arith.constant 0 : index
    %35 = vector.load %arg16[%c0_42, %c0_43, %c0_44] : memref<2x1x128xf32, #tpu.memory_space<vmem>>, vector<1x1x128xf32>
    %36 = vector.shape_cast %35 : vector<1x1x128xf32> to vector<1x128xf32>
    %c0_45 = arith.constant 0 : index
    %c0_46 = arith.constant 0 : index
    %c0_47 = arith.constant 0 : index
    %37 = vector.load %arg17[%c0_45, %c0_46, %c0_47] : memref<2x1x128xf32, #tpu.memory_space<vmem>>, vector<1x1x128xf32>
    %38 = vector.shape_cast %37 : vector<1x1x128xf32> to vector<1x128xf32>
    %39 = tpu.iota {dimensions = array<i32: 1>} : vector<1x128xi32>
    %c32_i32 = arith.constant 32 : i32
    %40 = vector.broadcast %c32_i32 : i32 to vector<1x128xi32>
    %41 = arith.cmpi slt, %39, %40 : vector<1x128xi32>
    %42 = arith.truncf %5 : vector<8x128xf32> to vector<8x128xbf16>
    %cst_48 = arith.constant dense<0.000000e+00> : vector<8x512xf32>
    %43 = tpu.matmul %42, %16, %cst_48 {dimension_numbers = #tpu.dot_dimension_numbers<[1], [0], [0], [1], [0, 0, 1, 1], [], []>} : vector<8x128xbf16>, vector<128x512xbf16>, vector<8x512xf32> -> vector<8x512xf32>
    %44 = vector.broadcast %18 : vector<1x512xf32> to vector<8x512xf32>
    %45 = arith.addf %43, %44 : vector<8x512xf32>
    %46 = vector.extract_strided_slice %45 {offsets = [0, 0], sizes = [8, 128], strides = [1, 1]} : vector<8x512xf32> to vector<8x128xf32>
    %47 = arith.truncf %46 : vector<8x128xf32> to vector<8x128xbf16>
    %48 = vector.extract_strided_slice %14 {offsets = [0, 0], sizes = [8, 128], strides = [1, 1]} : vector<8x1024xbf16> to vector<8x128xbf16>
    %49 = vector.extract_strided_slice %14 {offsets = [0, 512], sizes = [8, 128], strides = [1, 1]} : vector<8x1024xbf16> to vector<8x128xbf16>
    %cst_49 = arith.constant dense<0.000000e+00> : vector<8x8xf32>
    %50 = tpu.matmul %47, %48, %cst_49 {dimension_numbers = #tpu.dot_dimension_numbers<[1], [1], [0], [0], [0, 0, 1, 0], [], []>} : vector<8x128xbf16>, vector<8x128xbf16>, vector<8x8xf32> -> vector<8x8xf32>
    %cst_50 = arith.constant dense<0xFF800000> : vector<8xf32>
    %51 = vector.multi_reduction <maximumf>, %50, %cst_50 [1] : vector<8x8xf32> to vector<8xf32>
    %52 = vector.shape_cast %51 : vector<8xf32> to vector<8x1xf32>
    %53 = vector.broadcast %52 : vector<8x1xf32> to vector<8x8xf32>
    %54 = arith.subf %50, %53 : vector<8x8xf32>
    %55 = math.exp %54 : vector<8x8xf32>
    %cst_51 = arith.constant dense<0.000000e+00> : vector<8xf32>
    %56 = vector.multi_reduction <add>, %55, %cst_51 [1] : vector<8x8xf32> to vector<8xf32>
    %57 = vector.shape_cast %56 : vector<8xf32> to vector<8x1xf32>
    %58 = tpu.reciprocal %57 {approx = true} : vector<8x1xf32> -> vector<8x1xf32>
    %59 = vector.broadcast %58 : vector<8x1xf32> to vector<8x8xf32>
    %60 = arith.mulf %55, %59 : vector<8x8xf32>
    %61 = arith.truncf %60 : vector<8x8xf32> to vector<8x8xbf16>
    %cst_52 = arith.constant dense<0.000000e+00> : vector<8x128xf32>
    %62 = tpu.matmul %61, %49, %cst_52 {dimension_numbers = #tpu.dot_dimension_numbers<[1], [0], [0], [1], [0, 0, 1, 1], [], []>} : vector<8x8xbf16>, vector<8x128xbf16>, vector<8x128xf32> -> vector<8x128xf32>
    %63 = vector.extract_strided_slice %45 {offsets = [0, 128], sizes = [8, 128], strides = [1, 1]} : vector<8x512xf32> to vector<8x128xf32>
    %64 = arith.truncf %63 : vector<8x128xf32> to vector<8x128xbf16>
    %65 = vector.extract_strided_slice %14 {offsets = [0, 128], sizes = [8, 128], strides = [1, 1]} : vector<8x1024xbf16> to vector<8x128xbf16>
    %66 = vector.extract_strided_slice %14 {offsets = [0, 640], sizes = [8, 128], strides = [1, 1]} : vector<8x1024xbf16> to vector<8x128xbf16>
    %cst_53 = arith.constant dense<0.000000e+00> : vector<8x8xf32>
    %67 = tpu.matmul %64, %65, %cst_53 {dimension_numbers = #tpu.dot_dimension_numbers<[1], [1], [0], [0], [0, 0, 1, 0], [], []>} : vector<8x128xbf16>, vector<8x128xbf16>, vector<8x8xf32> -> vector<8x8xf32>
    %cst_54 = arith.constant dense<0xFF800000> : vector<8xf32>
    %68 = vector.multi_reduction <maximumf>, %67, %cst_54 [1] : vector<8x8xf32> to vector<8xf32>
    %69 = vector.shape_cast %68 : vector<8xf32> to vector<8x1xf32>
    %70 = vector.broadcast %69 : vector<8x1xf32> to vector<8x8xf32>
    %71 = arith.subf %67, %70 : vector<8x8xf32>
    %72 = math.exp %71 : vector<8x8xf32>
    %cst_55 = arith.constant dense<0.000000e+00> : vector<8xf32>
    %73 = vector.multi_reduction <add>, %72, %cst_55 [1] : vector<8x8xf32> to vector<8xf32>
    %74 = vector.shape_cast %73 : vector<8xf32> to vector<8x1xf32>
    %75 = tpu.reciprocal %74 {approx = true} : vector<8x1xf32> -> vector<8x1xf32>
    %76 = vector.broadcast %75 : vector<8x1xf32> to vector<8x8xf32>
    %77 = arith.mulf %72, %76 : vector<8x8xf32>
    %78 = arith.truncf %77 : vector<8x8xf32> to vector<8x8xbf16>
    %cst_56 = arith.constant dense<0.000000e+00> : vector<8x128xf32>
    %79 = tpu.matmul %78, %66, %cst_56 {dimension_numbers = #tpu.dot_dimension_numbers<[1], [0], [0], [1], [0, 0, 1, 1], [], []>} : vector<8x8xbf16>, vector<8x128xbf16>, vector<8x128xf32> -> vector<8x128xf32>
    %80 = vector.extract_strided_slice %45 {offsets = [0, 256], sizes = [8, 128], strides = [1, 1]} : vector<8x512xf32> to vector<8x128xf32>
    %81 = arith.truncf %80 : vector<8x128xf32> to vector<8x128xbf16>
    %82 = vector.extract_strided_slice %14 {offsets = [0, 256], sizes = [8, 128], strides = [1, 1]} : vector<8x1024xbf16> to vector<8x128xbf16>
    %83 = vector.extract_strided_slice %14 {offsets = [0, 768], sizes = [8, 128], strides = [1, 1]} : vector<8x1024xbf16> to vector<8x128xbf16>
    %cst_57 = arith.constant dense<0.000000e+00> : vector<8x8xf32>
    %84 = tpu.matmul %81, %82, %cst_57 {dimension_numbers = #tpu.dot_dimension_numbers<[1], [1], [0], [0], [0, 0, 1, 0], [], []>} : vector<8x128xbf16>, vector<8x128xbf16>, vector<8x8xf32> -> vector<8x8xf32>
    %cst_58 = arith.constant dense<0xFF800000> : vector<8xf32>
    %85 = vector.multi_reduction <maximumf>, %84, %cst_58 [1] : vector<8x8xf32> to vector<8xf32>
    %86 = vector.shape_cast %85 : vector<8xf32> to vector<8x1xf32>
    %87 = vector.broadcast %86 : vector<8x1xf32> to vector<8x8xf32>
    %88 = arith.subf %84, %87 : vector<8x8xf32>
    %89 = math.exp %88 : vector<8x8xf32>
    %cst_59 = arith.constant dense<0.000000e+00> : vector<8xf32>
    %90 = vector.multi_reduction <add>, %89, %cst_59 [1] : vector<8x8xf32> to vector<8xf32>
    %91 = vector.shape_cast %90 : vector<8xf32> to vector<8x1xf32>
    %92 = tpu.reciprocal %91 {approx = true} : vector<8x1xf32> -> vector<8x1xf32>
    %93 = vector.broadcast %92 : vector<8x1xf32> to vector<8x8xf32>
    %94 = arith.mulf %89, %93 : vector<8x8xf32>
    %95 = arith.truncf %94 : vector<8x8xf32> to vector<8x8xbf16>
    %cst_60 = arith.constant dense<0.000000e+00> : vector<8x128xf32>
    %96 = tpu.matmul %95, %83, %cst_60 {dimension_numbers = #tpu.dot_dimension_numbers<[1], [0], [0], [1], [0, 0, 1, 1], [], []>} : vector<8x8xbf16>, vector<8x128xbf16>, vector<8x128xf32> -> vector<8x128xf32>
    %97 = vector.extract_strided_slice %45 {offsets = [0, 384], sizes = [8, 128], strides = [1, 1]} : vector<8x512xf32> to vector<8x128xf32>
    %98 = arith.truncf %97 : vector<8x128xf32> to vector<8x128xbf16>
    %99 = vector.extract_strided_slice %14 {offsets = [0, 384], sizes = [8, 128], strides = [1, 1]} : vector<8x1024xbf16> to vector<8x128xbf16>
    %100 = vector.extract_strided_slice %14 {offsets = [0, 896], sizes = [8, 128], strides = [1, 1]} : vector<8x1024xbf16> to vector<8x128xbf16>
    %cst_61 = arith.constant dense<0.000000e+00> : vector<8x8xf32>
    %101 = tpu.matmul %98, %99, %cst_61 {dimension_numbers = #tpu.dot_dimension_numbers<[1], [1], [0], [0], [0, 0, 1, 0], [], []>} : vector<8x128xbf16>, vector<8x128xbf16>, vector<8x8xf32> -> vector<8x8xf32>
    %cst_62 = arith.constant dense<0xFF800000> : vector<8xf32>
    %102 = vector.multi_reduction <maximumf>, %101, %cst_62 [1] : vector<8x8xf32> to vector<8xf32>
    %103 = vector.shape_cast %102 : vector<8xf32> to vector<8x1xf32>
    %104 = vector.broadcast %103 : vector<8x1xf32> to vector<8x8xf32>
    %105 = arith.subf %101, %104 : vector<8x8xf32>
    %106 = math.exp %105 : vector<8x8xf32>
    %cst_63 = arith.constant dense<0.000000e+00> : vector<8xf32>
    %107 = vector.multi_reduction <add>, %106, %cst_63 [1] : vector<8x8xf32> to vector<8xf32>
    %108 = vector.shape_cast %107 : vector<8xf32> to vector<8x1xf32>
    %109 = tpu.reciprocal %108 {approx = true} : vector<8x1xf32> -> vector<8x1xf32>
    %110 = vector.broadcast %109 : vector<8x1xf32> to vector<8x8xf32>
    %111 = arith.mulf %106, %110 : vector<8x8xf32>
    %112 = arith.truncf %111 : vector<8x8xf32> to vector<8x8xbf16>
    %cst_64 = arith.constant dense<0.000000e+00> : vector<8x128xf32>
    %113 = tpu.matmul %112, %100, %cst_64 {dimension_numbers = #tpu.dot_dimension_numbers<[1], [0], [0], [1], [0, 0, 1, 1], [], []>} : vector<8x8xbf16>, vector<8x128xbf16>, vector<8x128xf32> -> vector<8x128xf32>
    %114 = tpu.concatenate %62, %79, %96, %113 in 1 : vector<8x128xf32>, vector<8x128xf32>, vector<8x128xf32>, vector<8x128xf32> -> vector<8x512xf32>
    %115 = arith.truncf %114 : vector<8x512xf32> to vector<8x512xbf16>
    %cst_65 = arith.constant dense<0.000000e+00> : vector<8x128xf32>
    %116 = tpu.matmul %115, %20, %cst_65 {dimension_numbers = #tpu.dot_dimension_numbers<[1], [0], [0], [1], [0, 0, 1, 1], [], []>} : vector<8x512xbf16>, vector<512x128xbf16>, vector<8x128xf32> -> vector<8x128xf32>
    %117 = vector.broadcast %22 : vector<1x128xf32> to vector<8x128xf32>
    %118 = arith.addf %116, %117 : vector<8x128xf32>
    %119 = arith.addf %5, %118 : vector<8x128xf32>
    %cst_66 = arith.constant dense<0.000000e+00> : vector<8xf32>
    %120 = vector.multi_reduction <add>, %119, %cst_66 [1] : vector<8x128xf32> to vector<8xf32>
    %121 = vector.shape_cast %120 : vector<8xf32> to vector<8x1xf32>
    %cst_67 = arith.constant 3.125000e-02 : f32
    %122 = vector.broadcast %cst_67 : f32 to vector<8x1xf32>
    %123 = arith.mulf %121, %122 : vector<8x1xf32>
    %124 = vector.broadcast %123 : vector<8x1xf32> to vector<8x128xf32>
    %125 = arith.subf %119, %124 : vector<8x128xf32>
    %cst_68 = arith.constant 0.000000e+00 : f32
    %126 = vector.shape_cast %41 : vector<1x128xi1> to vector<1x128xi1>
    %127 = vector.broadcast %126 : vector<1x128xi1> to vector<8x128xi1>
    %128 = vector.broadcast %cst_68 : f32 to vector<8x128xf32>
    %129 = arith.select %127, %125, %128 : vector<8x128xi1>, vector<8x128xf32>
    %130 = arith.mulf %129, %129 : vector<8x128xf32>
    %cst_69 = arith.constant dense<0.000000e+00> : vector<8xf32>
    %131 = vector.multi_reduction <add>, %130, %cst_69 [1] : vector<8x128xf32> to vector<8xf32>
    %132 = vector.shape_cast %131 : vector<8xf32> to vector<8x1xf32>
    %cst_70 = arith.constant 3.125000e-02 : f32
    %133 = vector.broadcast %cst_70 : f32 to vector<8x1xf32>
    %134 = arith.mulf %132, %133 : vector<8x1xf32>
    %cst_71 = arith.constant 9.99999974E-6 : f32
    %135 = vector.broadcast %cst_71 : f32 to vector<8x1xf32>
    %136 = arith.addf %134, %135 : vector<8x1xf32>
    %137 = math.rsqrt %136 : vector<8x1xf32>
    %138 = vector.broadcast %137 : vector<8x1xf32> to vector<8x128xf32>
    %139 = arith.mulf %129, %138 : vector<8x128xf32>
    %140 = vector.broadcast %32 : vector<1x128xf32> to vector<8x128xf32>
    %141 = arith.mulf %139, %140 : vector<8x128xf32>
    %142 = vector.broadcast %34 : vector<1x128xf32> to vector<8x128xf32>
    %143 = arith.addf %141, %142 : vector<8x128xf32>
    %144 = arith.truncf %143 : vector<8x128xf32> to vector<8x128xbf16>
    %cst_72 = arith.constant dense<0.000000e+00> : vector<8x2048xf32>
    %145 = tpu.matmul %144, %24, %cst_72 {dimension_numbers = #tpu.dot_dimension_numbers<[1], [0], [0], [1], [0, 0, 1, 1], [], []>} : vector<8x128xbf16>, vector<128x2048xbf16>, vector<8x2048xf32> -> vector<8x2048xf32>
    %146 = vector.broadcast %26 : vector<1x2048xf32> to vector<8x2048xf32>
    %147 = arith.addf %145, %146 : vector<8x2048xf32>
    %cst_73 = arith.constant 0.000000e+00 : f32
    %148 = vector.broadcast %cst_73 : f32 to vector<8x2048xf32>
    %149 = arith.maximumf %147, %148 : vector<8x2048xf32>
    %150 = arith.truncf %149 : vector<8x2048xf32> to vector<8x2048xbf16>
    %cst_74 = arith.constant dense<0.000000e+00> : vector<8x128xf32>
    %151 = tpu.matmul %150, %28, %cst_74 {dimension_numbers = #tpu.dot_dimension_numbers<[1], [0], [0], [1], [0, 0, 1, 1], [], []>} : vector<8x2048xbf16>, vector<2048x128xbf16>, vector<8x128xf32> -> vector<8x128xf32>
    %152 = vector.broadcast %30 : vector<1x128xf32> to vector<8x128xf32>
    %153 = arith.addf %151, %152 : vector<8x128xf32>
    %154 = arith.addf %143, %153 : vector<8x128xf32>
    %cst_75 = arith.constant dense<0.000000e+00> : vector<8xf32>
    %155 = vector.multi_reduction <add>, %154, %cst_75 [1] : vector<8x128xf32> to vector<8xf32>
    %156 = vector.shape_cast %155 : vector<8xf32> to vector<8x1xf32>
    %cst_76 = arith.constant 3.125000e-02 : f32
    %157 = vector.broadcast %cst_76 : f32 to vector<8x1xf32>
    %158 = arith.mulf %156, %157 : vector<8x1xf32>
    %159 = vector.broadcast %158 : vector<8x1xf32> to vector<8x128xf32>
    %160 = arith.subf %154, %159 : vector<8x128xf32>
    %cst_77 = arith.constant 0.000000e+00 : f32
    %161 = vector.shape_cast %41 : vector<1x128xi1> to vector<1x128xi1>
    %162 = vector.broadcast %161 : vector<1x128xi1> to vector<8x128xi1>
    %163 = vector.broadcast %cst_77 : f32 to vector<8x128xf32>
    %164 = arith.select %162, %160, %163 : vector<8x128xi1>, vector<8x128xf32>
    %165 = arith.mulf %164, %164 : vector<8x128xf32>
    %cst_78 = arith.constant dense<0.000000e+00> : vector<8xf32>
    %166 = vector.multi_reduction <add>, %165, %cst_78 [1] : vector<8x128xf32> to vector<8xf32>
    %167 = vector.shape_cast %166 : vector<8xf32> to vector<8x1xf32>
    %cst_79 = arith.constant 3.125000e-02 : f32
    %168 = vector.broadcast %cst_79 : f32 to vector<8x1xf32>
    %169 = arith.mulf %167, %168 : vector<8x1xf32>
    %cst_80 = arith.constant 9.99999974E-6 : f32
    %170 = vector.broadcast %cst_80 : f32 to vector<8x1xf32>
    %171 = arith.addf %169, %170 : vector<8x1xf32>
    %172 = math.rsqrt %171 : vector<8x1xf32>
    %173 = vector.broadcast %172 : vector<8x1xf32> to vector<8x128xf32>
    %174 = arith.mulf %164, %173 : vector<8x128xf32>
    %175 = vector.broadcast %36 : vector<1x128xf32> to vector<8x128xf32>
    %176 = arith.mulf %174, %175 : vector<8x128xf32>
    %177 = vector.broadcast %38 : vector<1x128xf32> to vector<8x128xf32>
    %178 = arith.addf %176, %177 : vector<8x128xf32>
    %179 = arith.truncf %178 : vector<8x128xf32> to vector<8x128xbf16>
    %c1 = arith.constant 1 : index
    %c0_81 = arith.constant 0 : index
    %c0_82 = arith.constant 0 : index
    %180 = vector.load %arg6[%c1, %c0_81, %c0_82] : memref<2x128x1024xbf16, #tpu.memory_space<vmem>>, vector<1x128x1024xbf16>
    %181 = vector.shape_cast %180 : vector<1x128x1024xbf16> to vector<128x1024xbf16>
    %cst_83 = arith.constant dense<0.000000e+00> : vector<8x1024xf32>
    %182 = tpu.matmul %179, %181, %cst_83 {dimension_numbers = #tpu.dot_dimension_numbers<[1], [0], [0], [1], [0, 0, 1, 1], [], []>} : vector<8x128xbf16>, vector<128x1024xbf16>, vector<8x1024xf32> -> vector<8x1024xf32>
    %c1_84 = arith.constant 1 : index
    %c0_85 = arith.constant 0 : index
    %c0_86 = arith.constant 0 : index
    %183 = vector.load %arg7[%c1_84, %c0_85, %c0_86] : memref<2x1x1024xf32, #tpu.memory_space<vmem>>, vector<1x1x1024xf32>
    %184 = vector.shape_cast %183 : vector<1x1x1024xf32> to vector<1x1024xf32>
    %185 = vector.broadcast %184 : vector<1x1024xf32> to vector<8x1024xf32>
    %186 = arith.addf %182, %185 : vector<8x1024xf32>
    %187 = arith.truncf %186 : vector<8x1024xf32> to vector<8x1024xbf16>
    %c1_87 = arith.constant 1 : index
    %c0_88 = arith.constant 0 : index
    %c0_89 = arith.constant 0 : index
    %188 = vector.load %arg4[%c1_87, %c0_88, %c0_89] : memref<2x128x512xbf16, #tpu.memory_space<vmem>>, vector<1x128x512xbf16>
    %189 = vector.shape_cast %188 : vector<1x128x512xbf16> to vector<128x512xbf16>
    %c1_90 = arith.constant 1 : index
    %c0_91 = arith.constant 0 : index
    %c0_92 = arith.constant 0 : index
    %190 = vector.load %arg5[%c1_90, %c0_91, %c0_92] : memref<2x1x512xf32, #tpu.memory_space<vmem>>, vector<1x1x512xf32>
    %191 = vector.shape_cast %190 : vector<1x1x512xf32> to vector<1x512xf32>
    %c1_93 = arith.constant 1 : index
    %c0_94 = arith.constant 0 : index
    %c0_95 = arith.constant 0 : index
    %192 = vector.load %arg8[%c1_93, %c0_94, %c0_95] : memref<2x512x128xbf16, #tpu.memory_space<vmem>>, vector<1x512x128xbf16>
    %193 = vector.shape_cast %192 : vector<1x512x128xbf16> to vector<512x128xbf16>
    %c1_96 = arith.constant 1 : index
    %c0_97 = arith.constant 0 : index
    %c0_98 = arith.constant 0 : index
    %194 = vector.load %arg9[%c1_96, %c0_97, %c0_98] : memref<2x1x128xf32, #tpu.memory_space<vmem>>, vector<1x1x128xf32>
    %195 = vector.shape_cast %194 : vector<1x1x128xf32> to vector<1x128xf32>
    %c1_99 = arith.constant 1 : index
    %c0_100 = arith.constant 0 : index
    %c0_101 = arith.constant 0 : index
    %196 = vector.load %arg10[%c1_99, %c0_100, %c0_101] : memref<2x128x2048xbf16, #tpu.memory_space<vmem>>, vector<1x128x2048xbf16>
    %197 = vector.shape_cast %196 : vector<1x128x2048xbf16> to vector<128x2048xbf16>
    %c1_102 = arith.constant 1 : index
    %c0_103 = arith.constant 0 : index
    %c0_104 = arith.constant 0 : index
    %198 = vector.load %arg11[%c1_102, %c0_103, %c0_104] : memref<2x1x2048xf32, #tpu.memory_space<vmem>>, vector<1x1x2048xf32>
    %199 = vector.shape_cast %198 : vector<1x1x2048xf32> to vector<1x2048xf32>
    %c1_105 = arith.constant 1 : index
    %c0_106 = arith.constant 0 : index
    %c0_107 = arith.constant 0 : index
    %200 = vector.load %arg12[%c1_105, %c0_106, %c0_107] : memref<2x2048x128xbf16, #tpu.memory_space<vmem>>, vector<1x2048x128xbf16>
    %201 = vector.shape_cast %200 : vector<1x2048x128xbf16> to vector<2048x128xbf16>
    %c1_108 = arith.constant 1 : index
    %c0_109 = arith.constant 0 : index
    %c0_110 = arith.constant 0 : index
    %202 = vector.load %arg13[%c1_108, %c0_109, %c0_110] : memref<2x1x128xf32, #tpu.memory_space<vmem>>, vector<1x1x128xf32>
    %203 = vector.shape_cast %202 : vector<1x1x128xf32> to vector<1x128xf32>
    %c1_111 = arith.constant 1 : index
    %c0_112 = arith.constant 0 : index
    %c0_113 = arith.constant 0 : index
    %204 = vector.load %arg14[%c1_111, %c0_112, %c0_113] : memref<2x1x128xf32, #tpu.memory_space<vmem>>, vector<1x1x128xf32>
    %205 = vector.shape_cast %204 : vector<1x1x128xf32> to vector<1x128xf32>
    %c1_114 = arith.constant 1 : index
    %c0_115 = arith.constant 0 : index
    %c0_116 = arith.constant 0 : index
    %206 = vector.load %arg15[%c1_114, %c0_115, %c0_116] : memref<2x1x128xf32, #tpu.memory_space<vmem>>, vector<1x1x128xf32>
    %207 = vector.shape_cast %206 : vector<1x1x128xf32> to vector<1x128xf32>
    %c1_117 = arith.constant 1 : index
    %c0_118 = arith.constant 0 : index
    %c0_119 = arith.constant 0 : index
    %208 = vector.load %arg16[%c1_117, %c0_118, %c0_119] : memref<2x1x128xf32, #tpu.memory_space<vmem>>, vector<1x1x128xf32>
    %209 = vector.shape_cast %208 : vector<1x1x128xf32> to vector<1x128xf32>
    %c1_120 = arith.constant 1 : index
    %c0_121 = arith.constant 0 : index
    %c0_122 = arith.constant 0 : index
    %210 = vector.load %arg17[%c1_120, %c0_121, %c0_122] : memref<2x1x128xf32, #tpu.memory_space<vmem>>, vector<1x1x128xf32>
    %211 = vector.shape_cast %210 : vector<1x1x128xf32> to vector<1x128xf32>
    %212 = tpu.iota {dimensions = array<i32: 1>} : vector<1x128xi32>
    %c32_i32_123 = arith.constant 32 : i32
    %213 = vector.broadcast %c32_i32_123 : i32 to vector<1x128xi32>
    %214 = arith.cmpi slt, %212, %213 : vector<1x128xi32>
    %215 = arith.truncf %178 : vector<8x128xf32> to vector<8x128xbf16>
    %cst_124 = arith.constant dense<0.000000e+00> : vector<8x512xf32>
    %216 = tpu.matmul %215, %189, %cst_124 {dimension_numbers = #tpu.dot_dimension_numbers<[1], [0], [0], [1], [0, 0, 1, 1], [], []>} : vector<8x128xbf16>, vector<128x512xbf16>, vector<8x512xf32> -> vector<8x512xf32>
    %217 = vector.broadcast %191 : vector<1x512xf32> to vector<8x512xf32>
    %218 = arith.addf %216, %217 : vector<8x512xf32>
    %219 = vector.extract_strided_slice %218 {offsets = [0, 0], sizes = [8, 128], strides = [1, 1]} : vector<8x512xf32> to vector<8x128xf32>
    %220 = arith.truncf %219 : vector<8x128xf32> to vector<8x128xbf16>
    %221 = vector.extract_strided_slice %187 {offsets = [0, 0], sizes = [8, 128], strides = [1, 1]} : vector<8x1024xbf16> to vector<8x128xbf16>
    %222 = vector.extract_strided_slice %187 {offsets = [0, 512], sizes = [8, 128], strides = [1, 1]} : vector<8x1024xbf16> to vector<8x128xbf16>
    %cst_125 = arith.constant dense<0.000000e+00> : vector<8x8xf32>
    %223 = tpu.matmul %220, %221, %cst_125 {dimension_numbers = #tpu.dot_dimension_numbers<[1], [1], [0], [0], [0, 0, 1, 0], [], []>} : vector<8x128xbf16>, vector<8x128xbf16>, vector<8x8xf32> -> vector<8x8xf32>
    %cst_126 = arith.constant dense<0xFF800000> : vector<8xf32>
    %224 = vector.multi_reduction <maximumf>, %223, %cst_126 [1] : vector<8x8xf32> to vector<8xf32>
    %225 = vector.shape_cast %224 : vector<8xf32> to vector<8x1xf32>
    %226 = vector.broadcast %225 : vector<8x1xf32> to vector<8x8xf32>
    %227 = arith.subf %223, %226 : vector<8x8xf32>
    %228 = math.exp %227 : vector<8x8xf32>
    %cst_127 = arith.constant dense<0.000000e+00> : vector<8xf32>
    %229 = vector.multi_reduction <add>, %228, %cst_127 [1] : vector<8x8xf32> to vector<8xf32>
    %230 = vector.shape_cast %229 : vector<8xf32> to vector<8x1xf32>
    %231 = tpu.reciprocal %230 {approx = true} : vector<8x1xf32> -> vector<8x1xf32>
    %232 = vector.broadcast %231 : vector<8x1xf32> to vector<8x8xf32>
    %233 = arith.mulf %228, %232 : vector<8x8xf32>
    %234 = arith.truncf %233 : vector<8x8xf32> to vector<8x8xbf16>
    %cst_128 = arith.constant dense<0.000000e+00> : vector<8x128xf32>
    %235 = tpu.matmul %234, %222, %cst_128 {dimension_numbers = #tpu.dot_dimension_numbers<[1], [0], [0], [1], [0, 0, 1, 1], [], []>} : vector<8x8xbf16>, vector<8x128xbf16>, vector<8x128xf32> -> vector<8x128xf32>
    %236 = vector.extract_strided_slice %218 {offsets = [0, 128], sizes = [8, 128], strides = [1, 1]} : vector<8x512xf32> to vector<8x128xf32>
    %237 = arith.truncf %236 : vector<8x128xf32> to vector<8x128xbf16>
    %238 = vector.extract_strided_slice %187 {offsets = [0, 128], sizes = [8, 128], strides = [1, 1]} : vector<8x1024xbf16> to vector<8x128xbf16>
    %239 = vector.extract_strided_slice %187 {offsets = [0, 640], sizes = [8, 128], strides = [1, 1]} : vector<8x1024xbf16> to vector<8x128xbf16>
    %cst_129 = arith.constant dense<0.000000e+00> : vector<8x8xf32>
    %240 = tpu.matmul %237, %238, %cst_129 {dimension_numbers = #tpu.dot_dimension_numbers<[1], [1], [0], [0], [0, 0, 1, 0], [], []>} : vector<8x128xbf16>, vector<8x128xbf16>, vector<8x8xf32> -> vector<8x8xf32>
    %cst_130 = arith.constant dense<0xFF800000> : vector<8xf32>
    %241 = vector.multi_reduction <maximumf>, %240, %cst_130 [1] : vector<8x8xf32> to vector<8xf32>
    %242 = vector.shape_cast %241 : vector<8xf32> to vector<8x1xf32>
    %243 = vector.broadcast %242 : vector<8x1xf32> to vector<8x8xf32>
    %244 = arith.subf %240, %243 : vector<8x8xf32>
    %245 = math.exp %244 : vector<8x8xf32>
    %cst_131 = arith.constant dense<0.000000e+00> : vector<8xf32>
    %246 = vector.multi_reduction <add>, %245, %cst_131 [1] : vector<8x8xf32> to vector<8xf32>
    %247 = vector.shape_cast %246 : vector<8xf32> to vector<8x1xf32>
    %248 = tpu.reciprocal %247 {approx = true} : vector<8x1xf32> -> vector<8x1xf32>
    %249 = vector.broadcast %248 : vector<8x1xf32> to vector<8x8xf32>
    %250 = arith.mulf %245, %249 : vector<8x8xf32>
    %251 = arith.truncf %250 : vector<8x8xf32> to vector<8x8xbf16>
    %cst_132 = arith.constant dense<0.000000e+00> : vector<8x128xf32>
    %252 = tpu.matmul %251, %239, %cst_132 {dimension_numbers = #tpu.dot_dimension_numbers<[1], [0], [0], [1], [0, 0, 1, 1], [], []>} : vector<8x8xbf16>, vector<8x128xbf16>, vector<8x128xf32> -> vector<8x128xf32>
    %253 = vector.extract_strided_slice %218 {offsets = [0, 256], sizes = [8, 128], strides = [1, 1]} : vector<8x512xf32> to vector<8x128xf32>
    %254 = arith.truncf %253 : vector<8x128xf32> to vector<8x128xbf16>
    %255 = vector.extract_strided_slice %187 {offsets = [0, 256], sizes = [8, 128], strides = [1, 1]} : vector<8x1024xbf16> to vector<8x128xbf16>
    %256 = vector.extract_strided_slice %187 {offsets = [0, 768], sizes = [8, 128], strides = [1, 1]} : vector<8x1024xbf16> to vector<8x128xbf16>
    %cst_133 = arith.constant dense<0.000000e+00> : vector<8x8xf32>
    %257 = tpu.matmul %254, %255, %cst_133 {dimension_numbers = #tpu.dot_dimension_numbers<[1], [1], [0], [0], [0, 0, 1, 0], [], []>} : vector<8x128xbf16>, vector<8x128xbf16>, vector<8x8xf32> -> vector<8x8xf32>
    %cst_134 = arith.constant dense<0xFF800000> : vector<8xf32>
    %258 = vector.multi_reduction <maximumf>, %257, %cst_134 [1] : vector<8x8xf32> to vector<8xf32>
    %259 = vector.shape_cast %258 : vector<8xf32> to vector<8x1xf32>
    %260 = vector.broadcast %259 : vector<8x1xf32> to vector<8x8xf32>
    %261 = arith.subf %257, %260 : vector<8x8xf32>
    %262 = math.exp %261 : vector<8x8xf32>
    %cst_135 = arith.constant dense<0.000000e+00> : vector<8xf32>
    %263 = vector.multi_reduction <add>, %262, %cst_135 [1] : vector<8x8xf32> to vector<8xf32>
    %264 = vector.shape_cast %263 : vector<8xf32> to vector<8x1xf32>
    %265 = tpu.reciprocal %264 {approx = true} : vector<8x1xf32> -> vector<8x1xf32>
    %266 = vector.broadcast %265 : vector<8x1xf32> to vector<8x8xf32>
    %267 = arith.mulf %262, %266 : vector<8x8xf32>
    %268 = arith.truncf %267 : vector<8x8xf32> to vector<8x8xbf16>
    %cst_136 = arith.constant dense<0.000000e+00> : vector<8x128xf32>
    %269 = tpu.matmul %268, %256, %cst_136 {dimension_numbers = #tpu.dot_dimension_numbers<[1], [0], [0], [1], [0, 0, 1, 1], [], []>} : vector<8x8xbf16>, vector<8x128xbf16>, vector<8x128xf32> -> vector<8x128xf32>
    %270 = vector.extract_strided_slice %218 {offsets = [0, 384], sizes = [8, 128], strides = [1, 1]} : vector<8x512xf32> to vector<8x128xf32>
    %271 = arith.truncf %270 : vector<8x128xf32> to vector<8x128xbf16>
    %272 = vector.extract_strided_slice %187 {offsets = [0, 384], sizes = [8, 128], strides = [1, 1]} : vector<8x1024xbf16> to vector<8x128xbf16>
    %273 = vector.extract_strided_slice %187 {offsets = [0, 896], sizes = [8, 128], strides = [1, 1]} : vector<8x1024xbf16> to vector<8x128xbf16>
    %cst_137 = arith.constant dense<0.000000e+00> : vector<8x8xf32>
    %274 = tpu.matmul %271, %272, %cst_137 {dimension_numbers = #tpu.dot_dimension_numbers<[1], [1], [0], [0], [0, 0, 1, 0], [], []>} : vector<8x128xbf16>, vector<8x128xbf16>, vector<8x8xf32> -> vector<8x8xf32>
    %cst_138 = arith.constant dense<0xFF800000> : vector<8xf32>
    %275 = vector.multi_reduction <maximumf>, %274, %cst_138 [1] : vector<8x8xf32> to vector<8xf32>
    %276 = vector.shape_cast %275 : vector<8xf32> to vector<8x1xf32>
    %277 = vector.broadcast %276 : vector<8x1xf32> to vector<8x8xf32>
    %278 = arith.subf %274, %277 : vector<8x8xf32>
    %279 = math.exp %278 : vector<8x8xf32>
    %cst_139 = arith.constant dense<0.000000e+00> : vector<8xf32>
    %280 = vector.multi_reduction <add>, %279, %cst_139 [1] : vector<8x8xf32> to vector<8xf32>
    %281 = vector.shape_cast %280 : vector<8xf32> to vector<8x1xf32>
    %282 = tpu.reciprocal %281 {approx = true} : vector<8x1xf32> -> vector<8x1xf32>
    %283 = vector.broadcast %282 : vector<8x1xf32> to vector<8x8xf32>
    %284 = arith.mulf %279, %283 : vector<8x8xf32>
    %285 = arith.truncf %284 : vector<8x8xf32> to vector<8x8xbf16>
    %cst_140 = arith.constant dense<0.000000e+00> : vector<8x128xf32>
    %286 = tpu.matmul %285, %273, %cst_140 {dimension_numbers = #tpu.dot_dimension_numbers<[1], [0], [0], [1], [0, 0, 1, 1], [], []>} : vector<8x8xbf16>, vector<8x128xbf16>, vector<8x128xf32> -> vector<8x128xf32>
    %287 = tpu.concatenate %235, %252, %269, %286 in 1 : vector<8x128xf32>, vector<8x128xf32>, vector<8x128xf32>, vector<8x128xf32> -> vector<8x512xf32>
    %288 = arith.truncf %287 : vector<8x512xf32> to vector<8x512xbf16>
    %cst_141 = arith.constant dense<0.000000e+00> : vector<8x128xf32>
    %289 = tpu.matmul %288, %193, %cst_141 {dimension_numbers = #tpu.dot_dimension_numbers<[1], [0], [0], [1], [0, 0, 1, 1], [], []>} : vector<8x512xbf16>, vector<512x128xbf16>, vector<8x128xf32> -> vector<8x128xf32>
    %290 = vector.broadcast %195 : vector<1x128xf32> to vector<8x128xf32>
    %291 = arith.addf %289, %290 : vector<8x128xf32>
    %292 = arith.addf %178, %291 : vector<8x128xf32>
    %cst_142 = arith.constant dense<0.000000e+00> : vector<8xf32>
    %293 = vector.multi_reduction <add>, %292, %cst_142 [1] : vector<8x128xf32> to vector<8xf32>
    %294 = vector.shape_cast %293 : vector<8xf32> to vector<8x1xf32>
    %cst_143 = arith.constant 3.125000e-02 : f32
    %295 = vector.broadcast %cst_143 : f32 to vector<8x1xf32>
    %296 = arith.mulf %294, %295 : vector<8x1xf32>
    %297 = vector.broadcast %296 : vector<8x1xf32> to vector<8x128xf32>
    %298 = arith.subf %292, %297 : vector<8x128xf32>
    %cst_144 = arith.constant 0.000000e+00 : f32
    %299 = vector.shape_cast %214 : vector<1x128xi1> to vector<1x128xi1>
    %300 = vector.broadcast %299 : vector<1x128xi1> to vector<8x128xi1>
    %301 = vector.broadcast %cst_144 : f32 to vector<8x128xf32>
    %302 = arith.select %300, %298, %301 : vector<8x128xi1>, vector<8x128xf32>
    %303 = arith.mulf %302, %302 : vector<8x128xf32>
    %cst_145 = arith.constant dense<0.000000e+00> : vector<8xf32>
    %304 = vector.multi_reduction <add>, %303, %cst_145 [1] : vector<8x128xf32> to vector<8xf32>
    %305 = vector.shape_cast %304 : vector<8xf32> to vector<8x1xf32>
    %cst_146 = arith.constant 3.125000e-02 : f32
    %306 = vector.broadcast %cst_146 : f32 to vector<8x1xf32>
    %307 = arith.mulf %305, %306 : vector<8x1xf32>
    %cst_147 = arith.constant 9.99999974E-6 : f32
    %308 = vector.broadcast %cst_147 : f32 to vector<8x1xf32>
    %309 = arith.addf %307, %308 : vector<8x1xf32>
    %310 = math.rsqrt %309 : vector<8x1xf32>
    %311 = vector.broadcast %310 : vector<8x1xf32> to vector<8x128xf32>
    %312 = arith.mulf %302, %311 : vector<8x128xf32>
    %313 = vector.broadcast %205 : vector<1x128xf32> to vector<8x128xf32>
    %314 = arith.mulf %312, %313 : vector<8x128xf32>
    %315 = vector.broadcast %207 : vector<1x128xf32> to vector<8x128xf32>
    %316 = arith.addf %314, %315 : vector<8x128xf32>
    %317 = arith.truncf %316 : vector<8x128xf32> to vector<8x128xbf16>
    %cst_148 = arith.constant dense<0.000000e+00> : vector<8x2048xf32>
    %318 = tpu.matmul %317, %197, %cst_148 {dimension_numbers = #tpu.dot_dimension_numbers<[1], [0], [0], [1], [0, 0, 1, 1], [], []>} : vector<8x128xbf16>, vector<128x2048xbf16>, vector<8x2048xf32> -> vector<8x2048xf32>
    %319 = vector.broadcast %199 : vector<1x2048xf32> to vector<8x2048xf32>
    %320 = arith.addf %318, %319 : vector<8x2048xf32>
    %cst_149 = arith.constant 0.000000e+00 : f32
    %321 = vector.broadcast %cst_149 : f32 to vector<8x2048xf32>
    %322 = arith.maximumf %320, %321 : vector<8x2048xf32>
    %323 = arith.truncf %322 : vector<8x2048xf32> to vector<8x2048xbf16>
    %cst_150 = arith.constant dense<0.000000e+00> : vector<8x128xf32>
    %324 = tpu.matmul %323, %201, %cst_150 {dimension_numbers = #tpu.dot_dimension_numbers<[1], [0], [0], [1], [0, 0, 1, 1], [], []>} : vector<8x2048xbf16>, vector<2048x128xbf16>, vector<8x128xf32> -> vector<8x128xf32>
    %325 = vector.broadcast %203 : vector<1x128xf32> to vector<8x128xf32>
    %326 = arith.addf %324, %325 : vector<8x128xf32>
    %327 = arith.addf %316, %326 : vector<8x128xf32>
    %cst_151 = arith.constant dense<0.000000e+00> : vector<8xf32>
    %328 = vector.multi_reduction <add>, %327, %cst_151 [1] : vector<8x128xf32> to vector<8xf32>
    %329 = vector.shape_cast %328 : vector<8xf32> to vector<8x1xf32>
    %cst_152 = arith.constant 3.125000e-02 : f32
    %330 = vector.broadcast %cst_152 : f32 to vector<8x1xf32>
    %331 = arith.mulf %329, %330 : vector<8x1xf32>
    %332 = vector.broadcast %331 : vector<8x1xf32> to vector<8x128xf32>
    %333 = arith.subf %327, %332 : vector<8x128xf32>
    %cst_153 = arith.constant 0.000000e+00 : f32
    %334 = vector.shape_cast %214 : vector<1x128xi1> to vector<1x128xi1>
    %335 = vector.broadcast %334 : vector<1x128xi1> to vector<8x128xi1>
    %336 = vector.broadcast %cst_153 : f32 to vector<8x128xf32>
    %337 = arith.select %335, %333, %336 : vector<8x128xi1>, vector<8x128xf32>
    %338 = arith.mulf %337, %337 : vector<8x128xf32>
    %cst_154 = arith.constant dense<0.000000e+00> : vector<8xf32>
    %339 = vector.multi_reduction <add>, %338, %cst_154 [1] : vector<8x128xf32> to vector<8xf32>
    %340 = vector.shape_cast %339 : vector<8xf32> to vector<8x1xf32>
    %cst_155 = arith.constant 3.125000e-02 : f32
    %341 = vector.broadcast %cst_155 : f32 to vector<8x1xf32>
    %342 = arith.mulf %340, %341 : vector<8x1xf32>
    %cst_156 = arith.constant 9.99999974E-6 : f32
    %343 = vector.broadcast %cst_156 : f32 to vector<8x1xf32>
    %344 = arith.addf %342, %343 : vector<8x1xf32>
    %345 = math.rsqrt %344 : vector<8x1xf32>
    %346 = vector.broadcast %345 : vector<8x1xf32> to vector<8x128xf32>
    %347 = arith.mulf %337, %346 : vector<8x128xf32>
    %348 = vector.broadcast %209 : vector<1x128xf32> to vector<8x128xf32>
    %349 = arith.mulf %347, %348 : vector<8x128xf32>
    %350 = vector.broadcast %211 : vector<1x128xf32> to vector<8x128xf32>
    %351 = arith.addf %349, %350 : vector<8x128xf32>
    %352 = arith.truncf %351 : vector<8x128xf32> to vector<8x128xbf16>
    %c0_157 = arith.constant 0 : index
    %c0_158 = arith.constant 0 : index
    %353 = vector.load %arg18[%c0_157, %c0_158] : memref<128x128xbf16, #tpu.memory_space<vmem>>, vector<128x128xbf16>
    %cst_159 = arith.constant dense<0.000000e+00> : vector<8x128xf32>
    %354 = tpu.matmul %352, %353, %cst_159 {dimension_numbers = #tpu.dot_dimension_numbers<[1], [0], [0], [1], [0, 0, 1, 1], [], []>} : vector<8x128xbf16>, vector<128x128xbf16>, vector<8x128xf32> -> vector<8x128xf32>
    %c0_160 = arith.constant 0 : index
    %c0_161 = arith.constant 0 : index
    %355 = vector.load %arg19[%c0_160, %c0_161] : memref<1x128xf32, #tpu.memory_space<vmem>>, vector<1x128xf32>
    %356 = vector.broadcast %355 : vector<1x128xf32> to vector<8x128xf32>
    %357 = arith.addf %354, %356 : vector<8x128xf32>
    %358 = math.absf %357 : vector<8x128xf32>
    %cst_162 = arith.constant 0.000000e+00 : f32
    %359 = vector.broadcast %cst_162 : f32 to vector<8x128xf32>
    %360 = arith.subf %359, %358 : vector<8x128xf32>
    %361 = math.exp %360 : vector<8x128xf32>
    %cst_163 = arith.constant 1.000000e+00 : f32
    %362 = vector.broadcast %cst_163 : f32 to vector<8x128xf32>
    %363 = arith.addf %362, %361 : vector<8x128xf32>
    %cst_164 = arith.constant 1.000000e+00 : f32
    %364 = vector.broadcast %cst_164 : f32 to vector<8x128xf32>
    %365 = arith.divf %364, %363 : vector<8x128xf32>
    %cst_165 = arith.constant 0.000000e+00 : f32
    %366 = vector.broadcast %cst_165 : f32 to vector<8x128xf32>
    %367 = arith.cmpf oge, %357, %366 : vector<8x128xf32>
    %368 = arith.mulf %361, %365 : vector<8x128xf32>
    %369 = arith.select %367, %365, %368 : vector<8x128xi1>, vector<8x128xf32>
    %c0_166 = arith.constant 0 : index
    %c0_167 = arith.constant 0 : index
    %370 = vector.load %arg20[%c0_166, %c0_167] : memref<8x128xf32, #tpu.memory_space<vmem>>, vector<8x128xf32>
    tpu.vector_store %arg20[%c0_166, %c0_167], %369 {strides = array<i32>} : memref<8x128xf32, #tpu.memory_space<vmem>>, vector<8x128xf32>,
    return
  }
  func.func @transform_0(%arg0: i32) -> (i32, i32) {
    %c0_i32 = arith.constant 0 : i32
    %c0_i32_0 = arith.constant 0 : i32
    %c0_i32_1 = arith.constant 0 : i32
    return %c0_i32, %c0_i32_0 : i32, i32
  }
  func.func @transform_1(%arg0: i32) -> (i32, i32) {
    %c0_i32 = arith.constant 0 : i32
    %c0_i32_0 = arith.constant 0 : i32
    %c0_i32_1 = arith.constant 0 : i32
    return %c0_i32, %c0_i32_0 : i32, i32
  }
  func.func @transform_2(%arg0: i32) -> (i32, i32) {
    %c0_i32 = arith.constant 0 : i32
    %c0_i32_0 = arith.constant 0 : i32
    %c0_i32_1 = arith.constant 0 : i32
    return %c0_i32, %c0_i32_0 : i32, i32
  }
  func.func @transform_3(%arg0: i32) -> (i32, i32, i32) {
    %c0_i32 = arith.constant 0 : i32
    %c0_i32_0 = arith.constant 0 : i32
    %c0_i32_1 = arith.constant 0 : i32
    %c0_i32_2 = arith.constant 0 : i32
    return %c0_i32, %c0_i32_0, %c0_i32_1 : i32, i32, i32
  }
  func.func @transform_4(%arg0: i32) -> (i32, i32, i32) {
    %c0_i32 = arith.constant 0 : i32
    %c0_i32_0 = arith.constant 0 : i32
    %c0_i32_1 = arith.constant 0 : i32
    %c0_i32_2 = arith.constant 0 : i32
    return %c0_i32, %c0_i32_0, %c0_i32_1 : i32, i32, i32
  }
  func.func @transform_5(%arg0: i32) -> (i32, i32, i32) {
    %c0_i32 = arith.constant 0 : i32
    %c0_i32_0 = arith.constant 0 : i32
    %c0_i32_1 = arith.constant 0 : i32
    %c0_i32_2 = arith.constant 0 : i32
    return %c0_i32, %c0_i32_0, %c0_i32_1 : i32, i32, i32
  }
  func.func @transform_6(%arg0: i32) -> (i32, i32, i32) {
    %c0_i32 = arith.constant 0 : i32
    %c0_i32_0 = arith.constant 0 : i32
    %c0_i32_1 = arith.constant 0 : i32
    %c0_i32_2 = arith.constant 0 : i32
    return %c0_i32, %c0_i32_0, %c0_i32_1 : i32, i32, i32
  }
  func.func @transform_7(%arg0: i32) -> (i32, i32, i32) {
    %c0_i32 = arith.constant 0 : i32
    %c0_i32_0 = arith.constant 0 : i32
    %c0_i32_1 = arith.constant 0 : i32
    %c0_i32_2 = arith.constant 0 : i32
    return %c0_i32, %c0_i32_0, %c0_i32_1 : i32, i32, i32
  }
  func.func @transform_8(%arg0: i32) -> (i32, i32, i32) {
    %c0_i32 = arith.constant 0 : i32
    %c0_i32_0 = arith.constant 0 : i32
    %c0_i32_1 = arith.constant 0 : i32
    %c0_i32_2 = arith.constant 0 : i32
    return %c0_i32, %c0_i32_0, %c0_i32_1 : i32, i32, i32
  }
  func.func @transform_9(%arg0: i32) -> (i32, i32, i32) {
    %c0_i32 = arith.constant 0 : i32
    %c0_i32_0 = arith.constant 0 : i32
    %c0_i32_1 = arith.constant 0 : i32
    %c0_i32_2 = arith.constant 0 : i32
    return %c0_i32, %c0_i32_0, %c0_i32_1 : i32, i32, i32
  }
  func.func @transform_10(%arg0: i32) -> (i32, i32, i32) {
    %c0_i32 = arith.constant 0 : i32
    %c0_i32_0 = arith.constant 0 : i32
    %c0_i32_1 = arith.constant 0 : i32
    %c0_i32_2 = arith.constant 0 : i32
    return %c0_i32, %c0_i32_0, %c0_i32_1 : i32, i32, i32
  }
  func.func @transform_11(%arg0: i32) -> (i32, i32, i32) {
    %c0_i32 = arith.constant 0 : i32
    %c0_i32_0 = arith.constant 0 : i32
    %c0_i32_1 = arith.constant 0 : i32
    %c0_i32_2 = arith.constant 0 : i32
    return %c0_i32, %c0_i32_0, %c0_i32_1 : i32, i32, i32
  }
  func.func @transform_12(%arg0: i32) -> (i32, i32, i32) {
    %c0_i32 = arith.constant 0 : i32
    %c0_i32_0 = arith.constant 0 : i32
    %c0_i32_1 = arith.constant 0 : i32
    %c0_i32_2 = arith.constant 0 : i32
    return %c0_i32, %c0_i32_0, %c0_i32_1 : i32, i32, i32
  }
  func.func @transform_13(%arg0: i32) -> (i32, i32, i32) {
    %c0_i32 = arith.constant 0 : i32
    %c0_i32_0 = arith.constant 0 : i32
    %c0_i32_1 = arith.constant 0 : i32
    %c0_i32_2 = arith.constant 0 : i32
    return %c0_i32, %c0_i32_0, %c0_i32_1 : i32, i32, i32
  }
  func.func @transform_14(%arg0: i32) -> (i32, i32, i32) {
    %c0_i32 = arith.constant 0 : i32
    %c0_i32_0 = arith.constant 0 : i32
    %c0_i32_1 = arith.constant 0 : i32
    %c0_i32_2 = arith.constant 0 : i32
    return %c0_i32, %c0_i32_0, %c0_i32_1 : i32, i32, i32
  }
  func.func @transform_15(%arg0: i32) -> (i32, i32, i32) {
    %c0_i32 = arith.constant 0 : i32
    %c0_i32_0 = arith.constant 0 : i32
    %c0_i32_1 = arith.constant 0 : i32
    %c0_i32_2 = arith.constant 0 : i32
    return %c0_i32, %c0_i32_0, %c0_i32_1 : i32, i32, i32
  }
  func.func @transform_16(%arg0: i32) -> (i32, i32, i32) {
    %c0_i32 = arith.constant 0 : i32
    %c0_i32_0 = arith.constant 0 : i32
    %c0_i32_1 = arith.constant 0 : i32
    %c0_i32_2 = arith.constant 0 : i32
    return %c0_i32, %c0_i32_0, %c0_i32_1 : i32, i32, i32
  }
  func.func @transform_17(%arg0: i32) -> (i32, i32) {
    %c0_i32 = arith.constant 0 : i32
    %c0_i32_0 = arith.constant 0 : i32
    %c0_i32_1 = arith.constant 0 : i32
    return %c0_i32, %c0_i32_0 : i32, i32
  }
  func.func @transform_18(%arg0: i32) -> (i32, i32) {
    %c0_i32 = arith.constant 0 : i32
    %c0_i32_0 = arith.constant 0 : i32
    %c0_i32_1 = arith.constant 0 : i32
    return %c0_i32, %c0_i32_0 : i32, i32
  }
  func.func @transform_19(%arg0: i32) -> (i32, i32) {
    %c0_i32 = arith.constant 0 : i32
    %c0_i32_0 = arith.constant 0 : i32
    %c0_i32_1 = arith.constant 0 : i32
    return %c0_i32, %c0_i32_0 : i32, i32
  }
}

</mosaic_0001>

<llo_original>
// kernel: tpu_custom_call.1
$region0: #{tpu_custom_call.1}
  #allocation0 [shape = 'u32[]', space=smem, size = 0x4, offset = 0x4, fixed_abs, tag = 'smem constant byte address 0x4 - core index']
  #allocation1 [shape = 'u32[144,128]{1,0:T(1,128)}', space=vmem, size = 0x12000, scoped, tag = 'internal scratch']
  %s0 = inlined_call_operand.hbm [shape: bf16[8,128], index: 0, kind: input, shape index: {}]
  %s1 = inlined_call_operand.hbm [shape: bf16[128,128], index: 1, kind: input, shape index: {}]
  %s2 = inlined_call_operand.hbm [shape: f32[1,128], index: 2, kind: input, shape index: {}]
  %s3 = inlined_call_operand.hbm [shape: bf16[2,128,512], index: 3, kind: input, shape index: {}]
  %s4 = inlined_call_operand.hbm [shape: f32[2,1,512], index: 4, kind: input, shape index: {}]
  %s5 = inlined_call_operand.hbm [shape: bf16[2,128,1024], index: 5, kind: input, shape index: {}]
  %s6 = inlined_call_operand.hbm [shape: f32[2,1,1024], index: 6, kind: input, shape index: {}]
  %s7 = inlined_call_operand.hbm [shape: bf16[2,512,128], index: 7, kind: input, shape index: {}]
  %s8 = inlined_call_operand.hbm [shape: f32[2,1,128], index: 8, kind: input, shape index: {}]
  %s9 = inlined_call_operand.hbm [shape: bf16[2,128,2048], index: 9, kind: input, shape index: {}]
  %s10 = inlined_call_operand.hbm [shape: f32[2,1,2048], index: 10, kind: input, shape index: {}]
  %s11 = inlined_call_operand.hbm [shape: bf16[2,2048,128], index: 11, kind: input, shape index: {}]
  %s12 = inlined_call_operand.hbm [shape: f32[2,1,128], index: 12, kind: input, shape index: {}]
  %s13 = inlined_call_operand.hbm [shape: f32[2,1,128], index: 13, kind: input, shape index: {}]
  %s14 = inlined_call_operand.hbm [shape: f32[2,1,128], index: 14, kind: input, shape index: {}]
  %s15 = inlined_call_operand.hbm [shape: f32[2,1,128], index: 15, kind: input, shape index: {}]
  %s16 = inlined_call_operand.hbm [shape: f32[2,1,128], index: 16, kind: input, shape index: {}]
  %s17 = inlined_call_operand.vmem [shape: bf16[128,128], index: 17, kind: input, shape index: {}]
  %s18 = inlined_call_operand.vmem [shape: f32[1,128], index: 18, kind: input, shape index: {}]
  %s19 = inlined_call_operand.hbm [shape: f32[8,128], index: 19, kind: output, shape index: {}]
  %s20 = sld [smem:[#allocation0]]
  $region154: #{tpu_custom_call.1} parent=0
    _
  %s22 = ssub.s32 1, %s20
  %s23 = scalar_select 0, %s22, %s20
  $region1: #{tpu_custom_call.1} parent=0
    #allocation2 [shape = 'u8[2048]{0}', space=vmem, size = 0x800, scoped, tag = 'input window, operand 0, single buffered']
    #allocation3 [shape = 's32[1]{0}', space=sflag, size = 0x4, scoped, tag = 'scoped memory for tpu_custom_call.1']
    #allocation4 [shape = 's32[1]{0}', space=sflag, size = 0x4, scoped, tag = 'scoped memory for tpu_custom_call.1']
    #allocation5 [shape = 'u8[32768]{0}', space=vmem, size = 0x8000, scoped, tag = 'input window, operand 1, single buffered']
    #allocation6 [shape = 's32[1]{0}', space=sflag, size = 0x4, scoped, tag = 'scoped memory for tpu_custom_call.1']
    #allocation7 [shape = 'u8[512]{0}', space=vmem, size = 0x400, scoped, tag = 'input window, operand 2, single buffered']
    #allocation8 [shape = 'u8[262144]{0}', space=vmem, size = 0x40000, scoped, tag = 'input window, operand 3, single buffered']
    #allocation9 [shape = 's32[1]{0}', space=sflag, size = 0x4, scoped, tag = 'scoped memory for tpu_custom_call.1']
    #allocation10 [shape = 'u8[4096]{0}', space=vmem, size = 0x1000, scoped, tag = 'input window, operand 4, single buffered']
    #allocation11 [shape = 'u8[524288]{0}', space=vmem, size = 0x80000, scoped, tag = 'input window, operand 5, single buffered']
    #allocation12 [shape = 's32[1]{0}', space=sflag, size = 0x4, scoped, tag = 'scoped memory for tpu_custom_call.1']
    #allocation13 [shape = 'u8[8192]{0}', space=vmem, size = 0x2000, scoped, tag = 'input window, operand 6, single buffered']
    #allocation14 [shape = 'u8[262144]{0}', space=vmem, size = 0x40000, scoped, tag = 'input window, operand 7, single buffered']
    #allocation15 [shape = 's32[1]{0}', space=sflag, size = 0x4, scoped, tag = 'scoped memory for tpu_custom_call.1']
    #allocation16 [shape = 'u8[1024]{0}', space=vmem, size = 0x400, scoped, tag = 'input window, operand 8, single buffered']
    #allocation17 [shape = 'u8[1048576]{0}', space=vmem, size = 0x100000, scoped, tag = 'input window, operand 9, single buffered']
    #allocation18 [shape = 's32[1]{0}', space=sflag, size = 0x4, scoped, tag = 'scoped memory for tpu_custom_call.1']
    #allocation19 [shape = 'u8[16384]{0}', space=vmem, size = 0x4000, scoped, tag = 'input window, operand 10, single buffered']
    #allocation20 [shape = 'u8[1048576]{0}', space=vmem, size = 0x100000, scoped, tag = 'input window, operand 11, single buffered']
    #allocation21 [shape = 's32[1]{0}', space=sflag, size = 0x4, scoped, tag = 'scoped memory for tpu_custom_call.1']
    #allocation22 [shape = 'u8[1024]{0}', space=vmem, size = 0x400, scoped, tag = 'input window, operand 12, single buffered']
    #allocation23 [shape = 'u8[1024]{0}', space=vmem, size = 0x400, scoped, tag = 'input window, operand 13, single buffered']
    #allocation24 [shape = 's32[1]{0}', space=sflag, size = 0x4, scoped, tag = 'scoped memory for tpu_custom_call.1']
    #allocation25 [shape = 'u8[1024]{0}', space=vmem, size = 0x400, scoped, tag = 'input window, operand 14, single buffered']
    #allocation26 [shape = 'u8[1024]{0}', space=vmem, size = 0x400, scoped, tag = 'input window, operand 15, single buffered']
    #allocation27 [shape = 's32[1]{0}', space=sflag, size = 0x4, scoped, tag = 'scoped memory for tpu_custom_call.1']
    #allocation28 [shape = 'u8[1024]{0}', space=vmem, size = 0x400, scoped, tag = 'input window, operand 16, single buffered']
    #allocation29 [shape = 'u8[4096]{0}', space=vmem, size = 0x1000, scoped, tag = 'output window, operand 0, single buffered']
    %24 = vsyncpa [#allocation3], 0
    %25 = vsyncpa [#allocation6], 0
    %26 = vsyncpa [#allocation9], 0
    %27 = vsyncpa [#allocation12], 0
    %28 = vsyncpa [#allocation15], 0
    %29 = vsyncpa [#allocation18], 0
    %30 = vsyncpa [#allocation21], 0
    %31 = vsyncpa [#allocation24], 0
    %32 = vsyncpa [#allocation27], 0
    %33 = vsyncpa [#allocation4], 0
    // Predicated region
    $region2: #{tpu_custom_call.1} parent=1 // pred_check
      _
    $region3: #{tpu_custom_call.1} parent=1 // pred_check_branch
      %35 = sbr.rel (0) target = $region5
    $region4: #{tpu_custom_call.1} parent=1 // pred_region
      %s37 = ssub.s32 64, 64
      %38 = vsyncadd [#allocation3], %s37
      %s40 = sshll.u32 [#allocation2], 4
      %s41 = int_to_ptr.vmem [resolvable:$true] %s40
      %43 = dma.hbm_to_vmem [thread:$0]  %s0, 64, %s41, [#allocation3]
    $region5: #{tpu_custom_call.1} parent=1 // pred_fallthru
      _
    // Predicated region
    $region6: #{tpu_custom_call.1} parent=1 // pred_check
      _
    $region7: #{tpu_custom_call.1} parent=1 // pred_check_branch
      %45 = sbr.rel (0) target = $region9
    $region8: #{tpu_custom_call.1} parent=1 // pred_region
      %s47 = ssub.s32 1024, 1024
      %48 = vsyncadd [#allocation6], %s47
      %s49 = sshll.u32 [#allocation5], 4
      %s50 = int_to_ptr.vmem [resolvable:$true] %s49
      %55 = dma.hbm_to_vmem [thread:$0]  %s1, 1024, %s50, [#allocation6], 64, 64, 4
    $region9: #{tpu_custom_call.1} parent=1 // pred_fallthru
      _
    // Predicated region
    $region10: #{tpu_custom_call.1} parent=1 // pred_check
      _
    $region11: #{tpu_custom_call.1} parent=1 // pred_check_branch
      %57 = sbr.rel (0) target = $region13
    $region12: #{tpu_custom_call.1} parent=1 // pred_region
      %s59 = ssub.s32 16, 16
      %60 = vsyncadd [#allocation6], %s59
      %s62 = sshll.u32 [#allocation7], 4
      %s63 = int_to_ptr.vmem [resolvable:$true] %s62
      %65 = dma.hbm_to_vmem [thread:$0]  %s2, 16, %s63, [#allocation6]
    $region13: #{tpu_custom_call.1} parent=1 // pred_fallthru
      _
    // Predicated region
    $region14: #{tpu_custom_call.1} parent=1 // pred_check
      _
    $region15: #{tpu_custom_call.1} parent=1 // pred_check_branch
      %67 = sbr.rel (0) target = $region17
    $region16: #{tpu_custom_call.1} parent=1 // pred_region
      %s69 = ssub.s32 8192, 8192
      %70 = vsyncadd [#allocation9], %s69
      %s71 = sshll.u32 [#allocation8], 4
      %s72 = int_to_ptr.vmem [resolvable:$true] %s71
      %77 = dma.hbm_to_vmem [thread:$0]  %s3, 8192, %s72, [#allocation9], 256, 256, 16
    $region17: #{tpu_custom_call.1} parent=1 // pred_fallthru
      _
    // Predicated region
    $region18: #{tpu_custom_call.1} parent=1 // pred_check
      _
    $region19: #{tpu_custom_call.1} parent=1 // pred_check_branch
      %79 = sbr.rel (0) target = $region21
    $region20: #{tpu_custom_call.1} parent=1 // pred_region
      %s81 = ssub.s32 128, 128
      %82 = vsyncadd [#allocation9], %s81
      %s83 = sshll.u32 [#allocation10], 4
      %s84 = int_to_ptr.vmem [resolvable:$true] %s83
      %89 = dma.hbm_to_vmem [thread:$0]  %s4, 128, %s84, [#allocation9], 64, 64, 4
    $region21: #{tpu_custom_call.1} parent=1 // pred_fallthru
      _
    // Predicated region
    $region22: #{tpu_custom_call.1} parent=1 // pred_check
      _
    $region23: #{tpu_custom_call.1} parent=1 // pred_check_branch
      %91 = sbr.rel (0) target = $region25
    $region24: #{tpu_custom_call.1} parent=1 // pred_region
      %s93 = ssub.s32 16384, 16384
      %94 = vsyncadd [#allocation12], %s93
      %s95 = sshll.u32 [#allocation11], 4
      %s96 = int_to_ptr.vmem [resolvable:$true] %s95
      %101 = dma.hbm_to_vmem [thread:$0]  %s5, 16384, %s96, [#allocation12], 512, 512, 32
    $region25: #{tpu_custom_call.1} parent=1 // pred_fallthru
      _
    // Predicated region
    $region26: #{tpu_custom_call.1} parent=1 // pred_check
      _
    $region27: #{tpu_custom_call.1} parent=1 // pred_check_branch
      %103 = sbr.rel (0) target = $region29
    $region28: #{tpu_custom_call.1} parent=1 // pred_region
      %s105 = ssub.s32 256, 256
      %106 = vsyncadd [#allocation12], %s105
      %s107 = sshll.u32 [#allocation13], 4
      %s108 = int_to_ptr.vmem [resolvable:$true] %s107
      %113 = dma.hbm_to_vmem [thread:$0]  %s6, 256, %s108, [#allocation12], 128, 128, 8
    $region29: #{tpu_custom_call.1} parent=1 // pred_fallthru
      _
    // Predicated region
    $region30: #{tpu_custom_call.1} parent=1 // pred_check
      _
    $region31: #{tpu_custom_call.1} parent=1 // pred_check_branch
      %115 = sbr.rel (0) target = $region33
    $region32: #{tpu_custom_call.1} parent=1 // pred_region
      %s117 = ssub.s32 8192, 8192
      %118 = vsyncadd [#allocation15], %s117
      %s119 = sshll.u32 [#allocation14], 4
      %s120 = int_to_ptr.vmem [resolvable:$true] %s119
      %125 = dma.hbm_to_vmem [thread:$0]  %s7, 8192, %s120, [#allocation15], 64, 64, 4
    $region33: #{tpu_custom_call.1} parent=1 // pred_fallthru
      _
    // Predicated region
    $region34: #{tpu_custom_call.1} parent=1 // pred_check
      _
    $region35: #{tpu_custom_call.1} parent=1 // pred_check_branch
      %127 = sbr.rel (0) target = $region37
    $region36: #{tpu_custom_call.1} parent=1 // pred_region
      %s129 = ssub.s32 32, 32
      %130 = vsyncadd [#allocation15], %s129
      %s131 = sshll.u32 [#allocation16], 4
      %s132 = int_to_ptr.vmem [resolvable:$true] %s131
      %137 = dma.hbm_to_vmem [thread:$0]  %s8, 32, %s132, [#allocation15], 16, 16, 1
    $region37: #{tpu_custom_call.1} parent=1 // pred_fallthru
      _
    // Predicated region
    $region38: #{tpu_custom_call.1} parent=1 // pred_check
      _
    $region39: #{tpu_custom_call.1} parent=1 // pred_check_branch
      %139 = sbr.rel (0) target = $region41
    $region40: #{tpu_custom_call.1} parent=1 // pred_region
      %s141 = ssub.s32 32768, 32768
      %142 = vsyncadd [#allocation18], %s141
      %s143 = sshll.u32 [#allocation17], 4
      %s144 = int_to_ptr.vmem [resolvable:$true] %s143
      %149 = dma.hbm_to_vmem [thread:$0]  %s9, 32768, %s144, [#allocation18], 1024, 1024, 64
    $region41: #{tpu_custom_call.1} parent=1 // pred_fallthru
      _
    // Predicated region
    $region42: #{tpu_custom_call.1} parent=1 // pred_check
      _
    $region43: #{tpu_custom_call.1} parent=1 // pred_check_branch
      %151 = sbr.rel (0) target = $region45
    $region44: #{tpu_custom_call.1} parent=1 // pred_region
      %s153 = ssub.s32 512, 512
      %154 = vsyncadd [#allocation18], %s153
      %s155 = sshll.u32 [#allocation19], 4
      %s156 = int_to_ptr.vmem [resolvable:$true] %s155
      %161 = dma.hbm_to_vmem [thread:$0]  %s10, 512, %s156, [#allocation18], 256, 256, 16
    $region45: #{tpu_custom_call.1} parent=1 // pred_fallthru
      _
    // Predicated region
    $region46: #{tpu_custom_call.1} parent=1 // pred_check
      _
    $region47: #{tpu_custom_call.1} parent=1 // pred_check_branch
      %163 = sbr.rel (0) target = $region49
    $region48: #{tpu_custom_call.1} parent=1 // pred_region
      %s165 = ssub.s32 32768, 32768
      %166 = vsyncadd [#allocation21], %s165
      %s167 = sshll.u32 [#allocation20], 4
      %s168 = int_to_ptr.vmem [resolvable:$true] %s167
      %173 = dma.hbm_to_vmem [thread:$0]  %s11, 32768, %s168, [#allocation21], 64, 64, 4
    $region49: #{tpu_custom_call.1} parent=1 // pred_fallthru
      _
    // Predicated region
    $region50: #{tpu_custom_call.1} parent=1 // pred_check
      _
    $region51: #{tpu_custom_call.1} parent=1 // pred_check_branch
      %175 = sbr.rel (0) target = $region53
    $region52: #{tpu_custom_call.1} parent=1 // pred_region
      %s177 = ssub.s32 32, 32
      %178 = vsyncadd [#allocation21], %s177
      %s179 = sshll.u32 [#allocation22], 4
      %s180 = int_to_ptr.vmem [resolvable:$true] %s179
      %185 = dma.hbm_to_vmem [thread:$0]  %s12, 32, %s180, [#allocation21], 16, 16, 1
    $region53: #{tpu_custom_call.1} parent=1 // pred_fallthru
      _
    // Predicated region
    $region54: #{tpu_custom_call.1} parent=1 // pred_check
      _
    $region55: #{tpu_custom_call.1} parent=1 // pred_check_branch
      %187 = sbr.rel (0) target = $region57
    $region56: #{tpu_custom_call.1} parent=1 // pred_region
      %s189 = ssub.s32 32, 32
      %190 = vsyncadd [#allocation24], %s189
      %s191 = sshll.u32 [#allocation23], 4
      %s192 = int_to_ptr.vmem [resolvable:$true] %s191
      %197 = dma.hbm_to_vmem [thread:$0]  %s13, 32, %s192, [#allocation24], 16, 16, 1
    $region57: #{tpu_custom_call.1} parent=1 // pred_fallthru
      _
    // Predicated region
    $region58: #{tpu_custom_call.1} parent=1 // pred_check
      _
    $region59: #{tpu_custom_call.1} parent=1 // pred_check_branch
      %199 = sbr.rel (0) target = $region61
    $region60: #{tpu_custom_call.1} parent=1 // pred_region
      %s201 = ssub.s32 32, 32
      %202 = vsyncadd [#allocation24], %s201
      %s203 = sshll.u32 [#allocation25], 4
      %s204 = int_to_ptr.vmem [resolvable:$true] %s203
      %209 = dma.hbm_to_vmem [thread:$0]  %s14, 32, %s204, [#allocation24], 16, 16, 1
    $region61: #{tpu_custom_call.1} parent=1 // pred_fallthru
      _
    // Predicated region
    $region62: #{tpu_custom_call.1} parent=1 // pred_check
      _
    $region63: #{tpu_custom_call.1} parent=1 // pred_check_branch
      %211 = sbr.rel (0) target = $region65
    $region64: #{tpu_custom_call.1} parent=1 // pred_region
      %s213 = ssub.s32 32, 32
      %214 = vsyncadd [#allocation27], %s213
      %s215 = sshll.u32 [#allocation26], 4
      %s216 = int_to_ptr.vmem [resolvable:$true] %s215
      %221 = dma.hbm_to_vmem [thread:$0]  %s15, 32, %s216, [#allocation27], 16, 16, 1
    $region65: #{tpu_custom_call.1} parent=1 // pred_fallthru
      _
    // Predicated region
    $region66: #{tpu_custom_call.1} parent=1 // pred_check
      _
    $region67: #{tpu_custom_call.1} parent=1 // pred_check_branch
      %223 = sbr.rel (0) target = $region69
    $region68: #{tpu_custom_call.1} parent=1 // pred_region
      %s225 = ssub.s32 32, 32
      %226 = vsyncadd [#allocation27], %s225
      %s227 = sshll.u32 [#allocation28], 4
      %s228 = int_to_ptr.vmem [resolvable:$true] %s227
      %233 = dma.hbm_to_vmem [thread:$0]  %s16, 32, %s228, [#allocation27], 16, 16, 1
    $region69: #{tpu_custom_call.1} parent=1 // pred_fallthru
      _
    // Predicated region
    $region70: #{tpu_custom_call.1} parent=1 // pred_check
      _
    $region71: #{tpu_custom_call.1} parent=1 // pred_check_branch
      %235 = sbr.rel (0) target = $region73
    $region72: #{tpu_custom_call.1} parent=1 // pred_region
      _
    $region73: #{tpu_custom_call.1} parent=1 // pred_fallthru
      _
    // Predicated region
    $region74: #{tpu_custom_call.1} parent=1 // pred_check
      _
    $region75: #{tpu_custom_call.1} parent=1 // pred_check_branch
      %237 = sbr.rel (0) target = $region77
    $region76: #{tpu_custom_call.1} parent=1 // pred_region
      _
    $region77: #{tpu_custom_call.1} parent=1 // pred_fallthru
      _
    // Predicated region
    $region78: #{tpu_custom_call.1} parent=1 // pred_check
      _
    $region79: #{tpu_custom_call.1} parent=1 // pred_check_branch
      %239 = sbr.rel (0) target = $region81
    $region80: #{tpu_custom_call.1} parent=1 // pred_region
      %240 = dma.done [#allocation3], 64
    $region81: #{tpu_custom_call.1} parent=1 // pred_fallthru
      _
    // Predicated region
    $region82: #{tpu_custom_call.1} parent=1 // pred_check
      _
    $region83: #{tpu_custom_call.1} parent=1 // pred_check_branch
      %242 = sbr.rel (0) target = $region85
    $region84: #{tpu_custom_call.1} parent=1 // pred_region
      %243 = dma.done [#allocation6], 1024
    $region85: #{tpu_custom_call.1} parent=1 // pred_fallthru
      _
    // Predicated region
    $region86: #{tpu_custom_call.1} parent=1 // pred_check
      _
    $region87: #{tpu_custom_call.1} parent=1 // pred_check_branch
      %245 = sbr.rel (0) target = $region89
    $region88: #{tpu_custom_call.1} parent=1 // pred_region
      %246 = dma.done [#allocation6], 16
    $region89: #{tpu_custom_call.1} parent=1 // pred_fallthru
      _
    // Predicated region
    $region90: #{tpu_custom_call.1} parent=1 // pred_check
      _
    $region91: #{tpu_custom_call.1} parent=1 // pred_check_branch
      %248 = sbr.rel (0) target = $region93
    $region92: #{tpu_custom_call.1} parent=1 // pred_region
      %249 = dma.done [#allocation9], 8192
    $region93: #{tpu_custom_call.1} parent=1 // pred_fallthru
      _
    // Predicated region
    $region94: #{tpu_custom_call.1} parent=1 // pred_check
      _
    $region95: #{tpu_custom_call.1} parent=1 // pred_check_branch
      %251 = sbr.rel (0) target = $region97
    $region96: #{tpu_custom_call.1} parent=1 // pred_region
      %252 = dma.done [#allocation9], 128
    $region97: #{tpu_custom_call.1} parent=1 // pred_fallthru
      _
    // Predicated region
    $region98: #{tpu_custom_call.1} parent=1 // pred_check
      _
    $region99: #{tpu_custom_call.1} parent=1 // pred_check_branch
      %254 = sbr.rel (0) target = $region101
    $region100: #{tpu_custom_call.1} parent=1 // pred_region
      %255 = dma.done [#allocation12], 16384
    $region101: #{tpu_custom_call.1} parent=1 // pred_fallthru
      _
    // Predicated region
    $region102: #{tpu_custom_call.1} parent=1 // pred_check
      _
    $region103: #{tpu_custom_call.1} parent=1 // pred_check_branch
      %257 = sbr.rel (0) target = $region105
    $region104: #{tpu_custom_call.1} parent=1 // pred_region
      %258 = dma.done [#allocation12], 256
    $region105: #{tpu_custom_call.1} parent=1 // pred_fallthru
      _
    // Predicated region
    $region106: #{tpu_custom_call.1} parent=1 // pred_check
      _
    $region107: #{tpu_custom_call.1} parent=1 // pred_check_branch
      %260 = sbr.rel (0) target = $region109
    $region108: #{tpu_custom_call.1} parent=1 // pred_region
      %261 = dma.done [#allocation15], 8192
    $region109: #{tpu_custom_call.1} parent=1 // pred_fallthru
      _
    // Predicated region
    $region110: #{tpu_custom_call.1} parent=1 // pred_check
      _
    $region111: #{tpu_custom_call.1} parent=1 // pred_check_branch
      %263 = sbr.rel (0) target = $region113
    $region112: #{tpu_custom_call.1} parent=1 // pred_region
      %264 = dma.done [#allocation15], 32
    $region113: #{tpu_custom_call.1} parent=1 // pred_fallthru
      _
    // Predicated region
    $region114: #{tpu_custom_call.1} parent=1 // pred_check
      _
    $region115: #{tpu_custom_call.1} parent=1 // pred_check_branch
      %266 = sbr.rel (0) target = $region117
    $region116: #{tpu_custom_call.1} parent=1 // pred_region
      %267 = dma.done [#allocation18], 32768
    $region117: #{tpu_custom_call.1} parent=1 // pred_fallthru
      _
    // Predicated region
    $region118: #{tpu_custom_call.1} parent=1 // pred_check
      _
    $region119: #{tpu_custom_call.1} parent=1 // pred_check_branch
      %269 = sbr.rel (0) target = $region121
    $region120: #{tpu_custom_call.1} parent=1 // pred_region
      %270 = dma.done [#allocation18], 512
    $region121: #{tpu_custom_call.1} parent=1 // pred_fallthru
      _
    // Predicated region
    $region122: #{tpu_custom_call.1} parent=1 // pred_check
      _
    $region123: #{tpu_custom_call.1} parent=1 // pred_check_branch
      %272 = sbr.rel (0) target = $region125
    $region124: #{tpu_custom_call.1} parent=1 // pred_region
      %273 = dma.done [#allocation21], 32768
    $region125: #{tpu_custom_call.1} parent=1 // pred_fallthru
      _
    // Predicated region
    $region126: #{tpu_custom_call.1} parent=1 // pred_check
      _
    $region127: #{tpu_custom_call.1} parent=1 // pred_check_branch
      %275 = sbr.rel (0) target = $region129
    $region128: #{tpu_custom_call.1} parent=1 // pred_region
      %276 = dma.done [#allocation21], 32
    $region129: #{tpu_custom_call.1} parent=1 // pred_fallthru
      _
    // Predicated region
    $region130: #{tpu_custom_call.1} parent=1 // pred_check
      _
    $region131: #{tpu_custom_call.1} parent=1 // pred_check_branch
      %278 = sbr.rel (0) target = $region133
    $region132: #{tpu_custom_call.1} parent=1 // pred_region
      %279 = dma.done [#allocation24], 32
    $region133: #{tpu_custom_call.1} parent=1 // pred_fallthru
      _
    // Predicated region
    $region134: #{tpu_custom_call.1} parent=1 // pred_check
      _
    $region135: #{tpu_custom_call.1} parent=1 // pred_check_branch
      %281 = sbr.rel (0) target = $region137
    $region136: #{tpu_custom_call.1} parent=1 // pred_region
      %282 = dma.done [#allocation24], 32
    $region137: #{tpu_custom_call.1} parent=1 // pred_fallthru
      _
    // Predicated region
    $region138: #{tpu_custom_call.1} parent=1 // pred_check
      _
    $region139: #{tpu_custom_call.1} parent=1 // pred_check_branch
      %284 = sbr.rel (0) target = $region141
    $region140: #{tpu_custom_call.1} parent=1 // pred_region
      %285 = dma.done [#allocation27], 32
    $region141: #{tpu_custom_call.1} parent=1 // pred_fallthru
      _
    // Predicated region
    $region142: #{tpu_custom_call.1} parent=1 // pred_check
      _
    $region143: #{tpu_custom_call.1} parent=1 // pred_check_branch
      %287 = sbr.rel (0) target = $region145
    $region144: #{tpu_custom_call.1} parent=1 // pred_region
      %288 = dma.done [#allocation27], 32
    $region145: #{tpu_custom_call.1} parent=1 // pred_fallthru
      _
    %v290 = vld [vmem:[#allocation2] sm:$0xf]
    %v291 = vld [vmem:[#allocation5] sm:$0xf]
    %v292 = vld [vmem:[#allocation5 + $0x4] sm:$0xf]
    %v293 = vld [vmem:[#allocation5 + $0x8] sm:$0xf]
    %v294 = vld [vmem:[#allocation5 + $0xc] sm:$0xf]
    %v295 = vld [vmem:[#allocation5 + $0x10] sm:$0xf]
    %v296 = vld [vmem:[#allocation5 + $0x14] sm:$0xf]
    %v297 = vld [vmem:[#allocation5 + $0x18] sm:$0xf]
    %v298 = vld [vmem:[#allocation5 + $0x1c] sm:$0xf]
    %v299 = vld [vmem:[#allocation5 + $0x20] sm:$0xf]
    %v300 = vld [vmem:[#allocation5 + $0x24] sm:$0xf]
    %v301 = vld [vmem:[#allocation5 + $0x28] sm:$0xf]
    %v302 = vld [vmem:[#allocation5 + $0x2c] sm:$0xf]
    %v303 = vld [vmem:[#allocation5 + $0x30] sm:$0xf]
    %v304 = vld [vmem:[#allocation5 + $0x34] sm:$0xf]
    %v305 = vld [vmem:[#allocation5 + $0x38] sm:$0xf]
    %v306 = vld [vmem:[#allocation5 + $0x3c] sm:$0xf]
    %v307 = vld [vmem:[#allocation7] sm:$0x1]
    %v309 = vlaneseq
    %v310 = vshrl.u32 %v309, 7
    %v311 = vsub.s32 0, %v310
    %v312 = vrot.slane %v307, %v311
    %v330 = vunpack.c.l.b16 %v291
    %v331 = vunpack.c.l.b16 %v292
    %v332 = vunpack.c.l.b16 %v293
    %v333 = vunpack.c.l.b16 %v294
    %v334 = vunpack.c.l.b16 %v295
    %v335 = vunpack.c.l.b16 %v296
    %v336 = vunpack.c.l.b16 %v297
    %v337 = vunpack.c.l.b16 %v298
    %v338 = vunpack.c.l.b16 %v299
    %v339 = vunpack.c.l.b16 %v300
    %v340 = vunpack.c.l.b16 %v301
    %v341 = vunpack.c.l.b16 %v302
    %v342 = vunpack.c.l.b16 %v303
    %v343 = vunpack.c.l.b16 %v304
    %v344 = vunpack.c.l.b16 %v305
    %v345 = vunpack.c.l.b16 %v306
    %v346 = vpack.c.b16 %v331, %v330
    %v347 = vpack.c.b16 %v333, %v332
    %v348 = vpack.c.b16 %v335, %v334
    %v349 = vpack.c.b16 %v337, %v336
    %v350 = vpack.c.b16 %v339, %v338
    %v351 = vpack.c.b16 %v341, %v340
    %v352 = vpack.c.b16 %v343, %v342
    %v353 = vpack.c.b16 %v345, %v344
    %362 = vmatprep.subr.bf16.mxu0 0
    %363 = vmatpush1.bf16.msra.mxu0 %v346
    %364 = vmatprep.subr.bf16.mxu0 0
    %365 = vmatpush1.bf16.msra.mxu0 %v347
    %366 = vmatprep.subr.bf16.mxu0 0
    %367 = vmatpush1.bf16.msra.mxu0 %v348
    %368 = vmatprep.subr.bf16.mxu0 0
    %369 = vmatpush1.bf16.msra.mxu0 %v349
    %370 = vmatprep.subr.bf16.mxu0 0
    %371 = vmatpush1.bf16.msra.mxu0 %v350
    %372 = vmatprep.subr.bf16.mxu0 0
    %373 = vmatpush1.bf16.msra.mxu0 %v351
    %374 = vmatprep.subr.bf16.mxu0 0
    %375 = vmatpush1.bf16.msra.mxu0 %v352
    %376 = vmatprep.subr.bf16.mxu0 0
    %377 = vmatpush1.bf16.msra.mxu0 %v353
    %378 = vmatprep.subr.bf16.mxu0 0
    %379 = vmatpush1.bf16.msra.mxu0 0
    %380 = vmatprep.subr.bf16.mxu0 0
    %381 = vmatpush1.bf16.msra.mxu0 0
    %382 = vmatprep.subr.bf16.mxu0 0
    %383 = vmatpush1.bf16.msra.mxu0 0
    %384 = vmatprep.subr.bf16.mxu0 0
    %385 = vmatpush1.bf16.msra.mxu0 0
    %386 = vmatprep.subr.bf16.mxu0 0
    %387 = vmatpush1.bf16.msra.mxu0 0
    %388 = vmatprep.subr.bf16.mxu0 0
    %389 = vmatpush1.bf16.msra.mxu0 0
    %390 = vmatprep.subr.bf16.mxu0 0
    %391 = vmatpush1.bf16.msra.mxu0 0
    %392 = vmatprep.subr.bf16.mxu0 0
    %393 = vmatpush1.bf16.msra.mxu0 0
    %394 = vmatprep.mubr.bf16.mxu0 0
    %395 = vmatmul.mubr.bf16.gmra.mrb[0].mxu0 %v290
    %v396 = vpop.f32.mrb[0].mxu0
    %v397 = vadd.f32 %v312, %v396
    %v398 = vpop.f32.mrb[0].mxu0
    %v399 = vpop.f32.mrb[0].mxu0
    %v400 = vpop.f32.mrb[0].mxu0
    %401 = vdwg.mxu0
    %v402 = vpack.c.bf16 %v397, %v397
    %v403 = vld [vmem:[#allocation11] sm:$0xff]
    %v404 = vld [vmem:[#allocation11 + $0x8] sm:$0xff]
    %v405 = vld [vmem:[#allocation11 + $0x10] sm:$0xff]
    %v406 = vld [vmem:[#allocation11 + $0x18] sm:$0xff]
    %v407 = vld [vmem:[#allocation11 + $0x20] sm:$0xff]
    %v408 = vld [vmem:[#allocation11 + $0x28] sm:$0xff]
    %v409 = vld [vmem:[#allocation11 + $0x30] sm:$0xff]
    %v410 = vld [vmem:[#allocation11 + $0x38] sm:$0xff]
    %v411 = vld [vmem:[#allocation11 + $0x40] sm:$0xff]
    %v412 = vld [vmem:[#allocation11 + $0x48] sm:$0xff]
    %v413 = vld [vmem:[#allocation11 + $0x50] sm:$0xff]
    %v414 = vld [vmem:[#allocation11 + $0x58] sm:$0xff]
    %v415 = vld [vmem:[#allocation11 + $0x60] sm:$0xff]
    %v416 = vld [vmem:[#allocation11 + $0x68] sm:$0xff]
    %v417 = vld [vmem:[#allocation11 + $0x70] sm:$0xff]
    %v418 = vld [vmem:[#allocation11 + $0x78] sm:$0xff]
    %v419 = vld [vmem:[#allocation11 + $0x80] sm:$0xff]
    %v420 = vld [vmem:[#allocation11 + $0x88] sm:$0xff]
    %v421 = vld [vmem:[#allocation11 + $0x90] sm:$0xff]
    %v422 = vld [vmem:[#allocation11 + $0x98] sm:$0xff]
    %v423 = vld [vmem:[#allocation11 + $0xa0] sm:$0xff]
    %v424 = vld [vmem:[#allocation11 + $0xa8] sm:$0xff]
    %v425 = vld [vmem:[#allocation11 + $0xb0] sm:$0xff]
    %v426 = vld [vmem:[#allocation11 + $0xb8] sm:$0xff]
    %v427 = vld [vmem:[#allocation11 + $0xc0] sm:$0xff]
    %v428 = vld [vmem:[#allocation11 + $0xc8] sm:$0xff]
    %v429 = vld [vmem:[#allocation11 + $0xd0] sm:$0xff]
    %v430 = vld [vmem:[#allocation11 + $0xd8] sm:$0xff]
    %v431 = vld [vmem:[#allocation11 + $0xe0] sm:$0xff]
    %v432 = vld [vmem:[#allocation11 + $0xe8] sm:$0xff]
    %v433 = vld [vmem:[#allocation11 + $0xf0] sm:$0xff]
    %v434 = vld [vmem:[#allocation11 + $0xf8] sm:$0xff]
    %v435 = vld [vmem:[#allocation11 + $0x100] sm:$0xff]
    %v436 = vld [vmem:[#allocation11 + $0x108] sm:$0xff]
    %v437 = vld [vmem:[#allocation11 + $0x110] sm:$0xff]
    %v438 = vld [vmem:[#allocation11 + $0x118] sm:$0xff]
    %v439 = vld [vmem:[#allocation11 + $0x120] sm:$0xff]
    %v440 = vld [vmem:[#allocation11 + $0x128] sm:$0xff]
    %v441 = vld [vmem:[#allocation11 + $0x130] sm:$0xff]
    %v442 = vld [vmem:[#allocation11 + $0x138] sm:$0xff]
    %v443 = vld [vmem:[#allocation11 + $0x140] sm:$0xff]
    %v444 = vld [vmem:[#allocation11 + $0x148] sm:$0xff]
    %v445 = vld [vmem:[#allocation11 + $0x150] sm:$0xff]
    %v446 = vld [vmem:[#allocation11 + $0x158] sm:$0xff]
    %v447 = vld [vmem:[#allocation11 + $0x160] sm:$0xff]
    %v448 = vld [vmem:[#allocation11 + $0x168] sm:$0xff]
    %v449 = vld [vmem:[#allocation11 + $0x170] sm:$0xff]
    %v450 = vld [vmem:[#allocation11 + $0x178] sm:$0xff]
    %v451 = vld [vmem:[#allocation11 + $0x180] sm:$0xff]
    %v452 = vld [vmem:[#allocation11 + $0x188] sm:$0xff]
    %v453 = vld [vmem:[#allocation11 + $0x190] sm:$0xff]
    %v454 = vld [vmem:[#allocation11 + $0x198] sm:$0xff]
    %v455 = vld [vmem:[#allocation11 + $0x1a0] sm:$0xff]
    %v456 = vld [vmem:[#allocation11 + $0x1a8] sm:$0xff]
    %v457 = vld [vmem:[#allocation11 + $0x1b0] sm:$0xff]
    %v458 = vld [vmem:[#allocation11 + $0x1b8] sm:$0xff]
    %v459 = vld [vmem:[#allocation11 + $0x1c0] sm:$0xff]
    %v460 = vld [vmem:[#allocation11 + $0x1c8] sm:$0xff]
    %v461 = vld [vmem:[#allocation11 + $0x1d0] sm:$0xff]
    %v462 = vld [vmem:[#allocation11 + $0x1d8] sm:$0xff]
    %v463 = vld [vmem:[#allocation11 + $0x1e0] sm:$0xff]
    %v464 = vld [vmem:[#allocation11 + $0x1e8] sm:$0xff]
    %v465 = vld [vmem:[#allocation11 + $0x1f0] sm:$0xff]
    %v466 = vld [vmem:[#allocation11 + $0x1f8] sm:$0xff]
    %v467 = vld [vmem:[#allocation13] sm:$0xff]
    %v469 = vlaneseq
    %v470 = vshrl.u32 %v469, 7
    %v471 = vsub.s32 0, %v470
    %v472 = vrot.slane %v467, %v471
    %v473 = vlaneseq
    %v474 = vshrl.u32 %v473, 7
    %v475 = vsub.s32 1, %v474
    %v476 = vrot.slane %v467, %v475
    %v477 = vlaneseq
    %v478 = vshrl.u32 %v477, 7
    %v479 = vsub.s32 2, %v478
    %v480 = vrot.slane %v467, %v479
    %v481 = vlaneseq
    %v482 = vshrl.u32 %v481, 7
    %v483 = vsub.s32 3, %v482
    %v484 = vrot.slane %v467, %v483
    %v485 = vlaneseq
    %v486 = vshrl.u32 %v485, 7
    %v487 = vsub.s32 4, %v486
    %v488 = vrot.slane %v467, %v487
    %v489 = vlaneseq
    %v490 = vshrl.u32 %v489, 7
    %v491 = vsub.s32 5, %v490
    %v492 = vrot.slane %v467, %v491
    %v493 = vlaneseq
    %v494 = vshrl.u32 %v493, 7
    %v495 = vsub.s32 6, %v494
    %v496 = vrot.slane %v467, %v495
    %v497 = vlaneseq
    %v498 = vshrl.u32 %v497, 7
    %v499 = vsub.s32 7, %v498
    %v500 = vrot.slane %v467, %v499
    %v573 = vunpack.c.l.b16 %v403
    %v574 = vunpack.c.h.b16 %v403
    %v575 = vunpack.c.l.b16 %v404
    %v576 = vunpack.c.h.b16 %v404
    %v577 = vunpack.c.l.b16 %v405
    %v578 = vunpack.c.h.b16 %v405
    %v579 = vunpack.c.l.b16 %v406
    %v580 = vunpack.c.h.b16 %v406
    %v581 = vunpack.c.l.b16 %v407
    %v582 = vunpack.c.h.b16 %v407
    %v583 = vunpack.c.l.b16 %v408
    %v584 = vunpack.c.h.b16 %v408
    %v585 = vunpack.c.l.b16 %v409
    %v586 = vunpack.c.h.b16 %v409
    %v587 = vunpack.c.l.b16 %v410
    %v588 = vunpack.c.h.b16 %v410
    %v589 = vunpack.c.l.b16 %v411
    %v590 = vunpack.c.h.b16 %v411
    %v591 = vunpack.c.l.b16 %v412
    %v592 = vunpack.c.h.b16 %v412
    %v593 = vunpack.c.l.b16 %v413
    %v594 = vunpack.c.h.b16 %v413
    %v595 = vunpack.c.l.b16 %v414
    %v596 = vunpack.c.h.b16 %v414
    %v597 = vunpack.c.l.b16 %v415
    %v598 = vunpack.c.h.b16 %v415
    %v599 = vunpack.c.l.b16 %v416
    %v600 = vunpack.c.h.b16 %v416
    %v601 = vunpack.c.l.b16 %v417
    %v602 = vunpack.c.h.b16 %v417
    %v603 = vunpack.c.l.b16 %v418
    %v604 = vunpack.c.h.b16 %v418
    %v605 = vunpack.c.l.b16 %v419
    %v606 = vunpack.c.h.b16 %v419
    %v607 = vunpack.c.l.b16 %v420
    %v608 = vunpack.c.h.b16 %v420
    %v609 = vunpack.c.l.b16 %v421
    %v610 = vunpack.c.h.b16 %v421
    %v611 = vunpack.c.l.b16 %v422
    %v612 = vunpack.c.h.b16 %v422
    %v613 = vunpack.c.l.b16 %v423
    %v614 = vunpack.c.h.b16 %v423
    %v615 = vunpack.c.l.b16 %v424
    %v616 = vunpack.c.h.b16 %v424
    %v617 = vunpack.c.l.b16 %v425
    %v618 = vunpack.c.h.b16 %v425
    %v619 = vunpack.c.l.b16 %v426
    %v620 = vunpack.c.h.b16 %v426
    %v621 = vunpack.c.l.b16 %v427
    %v622 = vunpack.c.h.b16 %v427
    %v623 = vunpack.c.l.b16 %v428
    %v624 = vunpack.c.h.b16 %v428
    %v625 = vunpack.c.l.b16 %v429
    %v626 = vunpack.c.h.b16 %v429
    %v627 = vunpack.c.l.b16 %v430
    %v628 = vunpack.c.h.b16 %v430
    %v629 = vunpack.c.l.b16 %v431
    %v630 = vunpack.c.h.b16 %v431
    %v631 = vunpack.c.l.b16 %v432
    %v632 = vunpack.c.h.b16 %v432
    %v633 = vunpack.c.l.b16 %v433
    %v634 = vunpack.c.h.b16 %v433
    %v635 = vunpack.c.l.b16 %v434
    %v636 = vunpack.c.h.b16 %v434
    %v637 = vunpack.c.l.b16 %v435
    %v638 = vunpack.c.h.b16 %v435
    %v639 = vunpack.c.l.b16 %v436
    %v640 = vunpack.c.h.b16 %v436
    %v641 = vunpack.c.l.b16 %v437
    %v642 = vunpack.c.h.b16 %v437
    %v643 = vunpack.c.l.b16 %v438
    %v644 = vunpack.c.h.b16 %v438
    %v645 = vunpack.c.l.b16 %v439
    %v646 = vunpack.c.h.b16 %v439
    %v647 = vunpack.c.l.b16 %v440
    %v648 = vunpack.c.h.b16 %v440
    %v649 = vunpack.c.l.b16 %v441
    %v650 = vunpack.c.h.b16 %v441
    %v651 = vunpack.c.l.b16 %v442
    %v652 = vunpack.c.h.b16 %v442
    %v653 = vunpack.c.l.b16 %v443
    %v654 = vunpack.c.h.b16 %v443
    %v655 = vunpack.c.l.b16 %v444
    %v656 = vunpack.c.h.b16 %v444
    %v657 = vunpack.c.l.b16 %v445
    %v658 = vunpack.c.h.b16 %v445
    %v659 = vunpack.c.l.b16 %v446
    %v660 = vunpack.c.h.b16 %v446
    %v661 = vunpack.c.l.b16 %v447
    %v662 = vunpack.c.h.b16 %v447
    %v663 = vunpack.c.l.b16 %v448
    %v664 = vunpack.c.h.b16 %v448
    %v665 = vunpack.c.l.b16 %v449
    %v666 = vunpack.c.h.b16 %v449
    %v667 = vunpack.c.l.b16 %v450
    %v668 = vunpack.c.h.b16 %v450
    %v669 = vunpack.c.l.b16 %v451
    %v670 = vunpack.c.h.b16 %v451
    %v671 = vunpack.c.l.b16 %v452
    %v672 = vunpack.c.h.b16 %v452
    %v673 = vunpack.c.l.b16 %v453
    %v674 = vunpack.c.h.b16 %v453
    %v675 = vunpack.c.l.b16 %v454
    %v676 = vunpack.c.h.b16 %v454
    %v677 = vunpack.c.l.b16 %v455
    %v678 = vunpack.c.h.b16 %v455
    %v679 = vunpack.c.l.b16 %v456
    %v680 = vunpack.c.h.b16 %v456
    %v681 = vunpack.c.l.b16 %v457
    %v682 = vunpack.c.h.b16 %v457
    %v683 = vunpack.c.l.b16 %v458
    %v684 = vunpack.c.h.b16 %v458
    %v685 = vunpack.c.l.b16 %v459
    %v686 = vunpack.c.h.b16 %v459
    %v687 = vunpack.c.l.b16 %v460
    %v688 = vunpack.c.h.b16 %v460
    %v689 = vunpack.c.l.b16 %v461
    %v690 = vunpack.c.h.b16 %v461
    %v691 = vunpack.c.l.b16 %v462
    %v692 = vunpack.c.h.b16 %v462
    %v693 = vunpack.c.l.b16 %v463
    %v694 = vunpack.c.h.b16 %v463
    %v695 = vunpack.c.l.b16 %v464
    %v696 = vunpack.c.h.b16 %v464
    %v697 = vunpack.c.l.b16 %v465
    %v698 = vunpack.c.h.b16 %v465
    %v699 = vunpack.c.l.b16 %v466
    %v700 = vunpack.c.h.b16 %v466
    %v701 = vpack.c.b16 %v581, %v573
    %v702 = vpack.c.b16 %v582, %v574
    %v703 = vpack.c.b16 %v583, %v575
    %v704 = vpack.c.b16 %v584, %v576
    %v705 = vpack.c.b16 %v585, %v577
    %v706 = vpack.c.b16 %v586, %v578
    %v707 = vpack.c.b16 %v587, %v579
    %v708 = vpack.c.b16 %v588, %v580
    %v709 = vpack.c.b16 %v597, %v589
    %v710 = vpack.c.b16 %v598, %v590
    %v711 = vpack.c.b16 %v599, %v591
    %v712 = vpack.c.b16 %v600, %v592
    %v713 = vpack.c.b16 %v601, %v593
    %v714 = vpack.c.b16 %v602, %v594
    %v715 = vpack.c.b16 %v603, %v595
    %v716 = vpack.c.b16 %v604, %v596
    %v717 = vpack.c.b16 %v613, %v605
    %v718 = vpack.c.b16 %v614, %v606
    %v719 = vpack.c.b16 %v615, %v607
    %v720 = vpack.c.b16 %v616, %v608
    %v721 = vpack.c.b16 %v617, %v609
    %v722 = vpack.c.b16 %v618, %v610
    %v723 = vpack.c.b16 %v619, %v611
    %v724 = vpack.c.b16 %v620, %v612
    %v725 = vpack.c.b16 %v629, %v621
    %v726 = vpack.c.b16 %v630, %v622
    %v727 = vpack.c.b16 %v631, %v623
    %v728 = vpack.c.b16 %v632, %v624
    %v729 = vpack.c.b16 %v633, %v625
    %v730 = vpack.c.b16 %v634, %v626
    %v731 = vpack.c.b16 %v635, %v627
    %v732 = vpack.c.b16 %v636, %v628
    %v733 = vpack.c.b16 %v645, %v637
    %v734 = vpack.c.b16 %v646, %v638
    %v735 = vpack.c.b16 %v647, %v639
    %v736 = vpack.c.b16 %v648, %v640
    %v737 = vpack.c.b16 %v649, %v641
    %v738 = vpack.c.b16 %v650, %v642
    %v739 = vpack.c.b16 %v651, %v643
    %v740 = vpack.c.b16 %v652, %v644
    %v741 = vpack.c.b16 %v661, %v653
    %v742 = vpack.c.b16 %v662, %v654
    %v743 = vpack.c.b16 %v663, %v655
    %v744 = vpack.c.b16 %v664, %v656
    %v745 = vpack.c.b16 %v665, %v657
    %v746 = vpack.c.b16 %v666, %v658
    %v747 = vpack.c.b16 %v667, %v659
    %v748 = vpack.c.b16 %v668, %v660
    %v749 = vpack.c.b16 %v677, %v669
    %v750 = vpack.c.b16 %v678, %v670
    %v751 = vpack.c.b16 %v679, %v671
    %v752 = vpack.c.b16 %v680, %v672
    %v753 = vpack.c.b16 %v681, %v673
    %v754 = vpack.c.b16 %v682, %v674
    %v755 = vpack.c.b16 %v683, %v675
    %v756 = vpack.c.b16 %v684, %v676
    %v757 = vpack.c.b16 %v693, %v685
    %v758 = vpack.c.b16 %v694, %v686
    %v759 = vpack.c.b16 %v695, %v687
    %v760 = vpack.c.b16 %v696, %v688
    %v761 = vpack.c.b16 %v697, %v689
    %v762 = vpack.c.b16 %v698, %v690
    %v763 = vpack.c.b16 %v699, %v691
    %v764 = vpack.c.b16 %v700, %v692
    %829 = vmatprep.subr.bf16.mxu0 %v702
    %830 = vmatpush1.bf16.msra.mxu0 %v701
    %831 = vmatprep.subr.bf16.mxu0 %v710
    %832 = vmatpush1.bf16.msra.mxu0 %v709
    %833 = vmatprep.subr.bf16.mxu0 %v718
    %834 = vmatpush1.bf16.msra.mxu0 %v717
    %835 = vmatprep.subr.bf16.mxu0 %v726
    %836 = vmatpush1.bf16.msra.mxu0 %v725
    %837 = vmatprep.subr.bf16.mxu0 %v734
    %838 = vmatpush1.bf16.msra.mxu0 %v733
    %839 = vmatprep.subr.bf16.mxu0 %v742
    %840 = vmatpush1.bf16.msra.mxu0 %v741
    %841 = vmatprep.subr.bf16.mxu0 %v750
    %842 = vmatpush1.bf16.msra.mxu0 %v749
    %843 = vmatprep.subr.bf16.mxu0 %v758
    %844 = vmatpush1.bf16.msra.mxu0 %v757
    %845 = vmatprep.subr.bf16.mxu0 0
    %846 = vmatpush1.bf16.msra.mxu0 0
    %847 = vmatprep.subr.bf16.mxu0 0
    %848 = vmatpush1.bf16.msra.mxu0 0
    %849 = vmatprep.subr.bf16.mxu0 0
    %850 = vmatpush1.bf16.msra.mxu0 0
    %851 = vmatprep.subr.bf16.mxu0 0
    %852 = vmatpush1.bf16.msra.mxu0 0
    %853 = vmatprep.subr.bf16.mxu0 0
    %854 = vmatpush1.bf16.msra.mxu0 0
    %855 = vmatprep.subr.bf16.mxu0 0
    %856 = vmatpush1.bf16.msra.mxu0 0
    %857 = vmatprep.subr.bf16.mxu0 0
    %858 = vmatpush1.bf16.msra.mxu0 0
    %859 = vmatprep.subr.bf16.mxu0 0
    %860 = vmatpush1.bf16.msra.mxu0 0
    %861 = vmatprep.mubr.bf16.mxu0 0
    %862 = vmatmul.mubr.bf16.gmra.mrb[0].mxu0 %v402
    %v863 = vpop.f32.mrb[0].mxu0
    %v864 = vadd.f32 %v472, %v863
    %v865 = vpop.f32.mrb[0].mxu0
    %v866 = vadd.f32 %v476, %v865
    %v867 = vpop.f32.mrb[0].mxu0
    %v868 = vpop.f32.mrb[0].mxu0
    %869 = vdwg.mxu0
    %870 = vmatprep.subr.bf16.mxu0 %v704
    %871 = vmatpush1.bf16.msra.mxu0 %v703
    %872 = vmatprep.subr.bf16.mxu0 %v712
    %873 = vmatpush1.bf16.msra.mxu0 %v711
    %874 = vmatprep.subr.bf16.mxu0 %v720
    %875 = vmatpush1.bf16.msra.mxu0 %v719
    %876 = vmatprep.subr.bf16.mxu0 %v728
    %877 = vmatpush1.bf16.msra.mxu0 %v727
    %878 = vmatprep.subr.bf16.mxu0 %v736
    %879 = vmatpush1.bf16.msra.mxu0 %v735
    %880 = vmatprep.subr.bf16.mxu0 %v744
    %881 = vmatpush1.bf16.msra.mxu0 %v743
    %882 = vmatprep.subr.bf16.mxu0 %v752
    %883 = vmatpush1.bf16.msra.mxu0 %v751
    %884 = vmatprep.subr.bf16.mxu0 %v760
    %885 = vmatpush1.bf16.msra.mxu0 %v759
    %886 = vmatprep.subr.bf16.mxu0 0
    %887 = vmatpush1.bf16.msra.mxu0 0
    %888 = vmatprep.subr.bf16.mxu0 0
    %889 = vmatpush1.bf16.msra.mxu0 0
    %890 = vmatprep.subr.bf16.mxu0 0
    %891 = vmatpush1.bf16.msra.mxu0 0
    %892 = vmatprep.subr.bf16.mxu0 0
    %893 = vmatpush1.bf16.msra.mxu0 0
    %894 = vmatprep.subr.bf16.mxu0 0
    %895 = vmatpush1.bf16.msra.mxu0 0
    %896 = vmatprep.subr.bf16.mxu0 0
    %897 = vmatpush1.bf16.msra.mxu0 0
    %898 = vmatprep.subr.bf16.mxu0 0
    %899 = vmatpush1.bf16.msra.mxu0 0
    %900 = vmatprep.subr.bf16.mxu0 0
    %901 = vmatpush1.bf16.msra.mxu0 0
    %902 = vmatprep.mubr.bf16.mxu0 0
    %903 = vmatmul.mubr.bf16.gmra.mrb[0].mxu0 %v402
    %v904 = vpop.f32.mrb[0].mxu0
    %v905 = vadd.f32 %v480, %v904
    %v906 = vpop.f32.mrb[0].mxu0
    %v907 = vadd.f32 %v484, %v906
    %v908 = vpop.f32.mrb[0].mxu0
    %v909 = vpop.f32.mrb[0].mxu0
    %910 = vdwg.mxu0
    %911 = vmatprep.subr.bf16.mxu0 %v706
    %912 = vmatpush1.bf16.msra.mxu0 %v705
    %913 = vmatprep.subr.bf16.mxu0 %v714
    %914 = vmatpush1.bf16.msra.mxu0 %v713
    %915 = vmatprep.subr.bf16.mxu0 %v722
    %916 = vmatpush1.bf16.msra.mxu0 %v721
    %917 = vmatprep.subr.bf16.mxu0 %v730
    %918 = vmatpush1.bf16.msra.mxu0 %v729
    %919 = vmatprep.subr.bf16.mxu0 %v738
    %920 = vmatpush1.bf16.msra.mxu0 %v737
    %921 = vmatprep.subr.bf16.mxu0 %v746
    %922 = vmatpush1.bf16.msra.mxu0 %v745
    %923 = vmatprep.subr.bf16.mxu0 %v754
    %924 = vmatpush1.bf16.msra.mxu0 %v753
    %925 = vmatprep.subr.bf16.mxu0 %v762
    %926 = vmatpush1.bf16.msra.mxu0 %v761
    %927 = vmatprep.subr.bf16.mxu0 0
    %928 = vmatpush1.bf16.msra.mxu0 0
    %929 = vmatprep.subr.bf16.mxu0 0
    %930 = vmatpush1.bf16.msra.mxu0 0
    %931 = vmatprep.subr.bf16.mxu0 0
    %932 = vmatpush1.bf16.msra.mxu0 0
    %933 = vmatprep.subr.bf16.mxu0 0
    %934 = vmatpush1.bf16.msra.mxu0 0
    %935 = vmatprep.subr.bf16.mxu0 0
    %936 = vmatpush1.bf16.msra.mxu0 0
    %937 = vmatprep.subr.bf16.mxu0 0
    %938 = vmatpush1.bf16.msra.mxu0 0
    %939 = vmatprep.subr.bf16.mxu0 0
    %940 = vmatpush1.bf16.msra.mxu0 0
    %941 = vmatprep.subr.bf16.mxu0 0
    %942 = vmatpush1.bf16.msra.mxu0 0
    %943 = vmatprep.mubr.bf16.mxu0 0
    %944 = vmatmul.mubr.bf16.gmra.mrb[0].mxu0 %v402
    %v945 = vpop.f32.mrb[0].mxu0
    %v946 = vadd.f32 %v488, %v945
    %v947 = vpop.f32.mrb[0].mxu0
    %v948 = vadd.f32 %v492, %v947
    %v949 = vpop.f32.mrb[0].mxu0
    %v950 = vpop.f32.mrb[0].mxu0
    %951 = vdwg.mxu0
    %952 = vmatprep.subr.bf16.mxu0 %v708
    %953 = vmatpush1.bf16.msra.mxu0 %v707
    %954 = vmatprep.subr.bf16.mxu0 %v716
    %955 = vmatpush1.bf16.msra.mxu0 %v715
    %956 = vmatprep.subr.bf16.mxu0 %v724
    %957 = vmatpush1.bf16.msra.mxu0 %v723
    %958 = vmatprep.subr.bf16.mxu0 %v732
    %959 = vmatpush1.bf16.msra.mxu0 %v731
    %960 = vmatprep.subr.bf16.mxu0 %v740
    %961 = vmatpush1.bf16.msra.mxu0 %v739
    %962 = vmatprep.subr.bf16.mxu0 %v748
    %963 = vmatpush1.bf16.msra.mxu0 %v747
    %964 = vmatprep.subr.bf16.mxu0 %v756
    %965 = vmatpush1.bf16.msra.mxu0 %v755
    %966 = vmatprep.subr.bf16.mxu0 %v764
    %967 = vmatpush1.bf16.msra.mxu0 %v763
    %968 = vmatprep.subr.bf16.mxu0 0
    %969 = vmatpush1.bf16.msra.mxu0 0
    %970 = vmatprep.subr.bf16.mxu0 0
    %971 = vmatpush1.bf16.msra.mxu0 0
    %972 = vmatprep.subr.bf16.mxu0 0
    %973 = vmatpush1.bf16.msra.mxu0 0
    %974 = vmatprep.subr.bf16.mxu0 0
    %975 = vmatpush1.bf16.msra.mxu0 0
    %976 = vmatprep.subr.bf16.mxu0 0
    %977 = vmatpush1.bf16.msra.mxu0 0
    %978 = vmatprep.subr.bf16.mxu0 0
    %979 = vmatpush1.bf16.msra.mxu0 0
    %980 = vmatprep.subr.bf16.mxu0 0
    %981 = vmatpush1.bf16.msra.mxu0 0
    %982 = vmatprep.subr.bf16.mxu0 0
    %983 = vmatpush1.bf16.msra.mxu0 0
    %984 = vmatprep.mubr.bf16.mxu0 0
    %985 = vmatmul.mubr.bf16.gmra.mrb[0].mxu0 %v402
    %v986 = vpop.f32.mrb[0].mxu0
    %v987 = vadd.f32 %v496, %v986
    %v988 = vpop.f32.mrb[0].mxu0
    %v989 = vadd.f32 %v500, %v988
    %v990 = vpop.f32.mrb[0].mxu0
    %v991 = vpop.f32.mrb[0].mxu0
    %992 = vdwg.mxu0
    %v993 = vpack.c.bf16 %v864, %v864
    %v994 = vpack.c.bf16 %v866, %v866
    %v995 = vpack.c.bf16 %v905, %v905
    %v996 = vpack.c.bf16 %v907, %v907
    %v997 = vpack.c.bf16 %v946, %v946
    %v998 = vpack.c.bf16 %v948, %v948
    %v999 = vpack.c.bf16 %v987, %v987
    %v1000 = vpack.c.bf16 %v989, %v989
    %v1001 = vld [vmem:[#allocation8] sm:$0xff]
    %v1002 = vld [vmem:[#allocation8 + $0x8] sm:$0xff]
    %v1003 = vld [vmem:[#allocation8 + $0x10] sm:$0xff]
    %v1004 = vld [vmem:[#allocation8 + $0x18] sm:$0xff]
    %v1005 = vld [vmem:[#allocation8 + $0x20] sm:$0xff]
    %v1006 = vld [vmem:[#allocation8 + $0x28] sm:$0xff]
    %v1007 = vld [vmem:[#allocation8 + $0x30] sm:$0xff]
    %v1008 = vld [vmem:[#allocation8 + $0x38] sm:$0xff]
    %v1009 = vld [vmem:[#allocation8 + $0x40] sm:$0xff]
    %v1010 = vld [vmem:[#allocation8 + $0x48] sm:$0xff]
    %v1011 = vld [vmem:[#allocation8 + $0x50] sm:$0xff]
    %v1012 = vld [vmem:[#allocation8 + $0x58] sm:$0xff]
    %v1013 = vld [vmem:[#allocation8 + $0x60] sm:$0xff]
    %v1014 = vld [vmem:[#allocation8 + $0x68] sm:$0xff]
    %v1015 = vld [vmem:[#allocation8 + $0x70] sm:$0xff]
    %v1016 = vld [vmem:[#allocation8 + $0x78] sm:$0xff]
    %v1017 = vld [vmem:[#allocation8 + $0x80] sm:$0xff]
    %v1018 = vld [vmem:[#allocation8 + $0x88] sm:$0xff]
    %v1019 = vld [vmem:[#allocation8 + $0x90] sm:$0xff]
    %v1020 = vld [vmem:[#allocation8 + $0x98] sm:$0xff]
    %v1021 = vld [vmem:[#allocation8 + $0xa0] sm:$0xff]
    %v1022 = vld [vmem:[#allocation8 + $0xa8] sm:$0xff]
    %v1023 = vld [vmem:[#allocation8 + $0xb0] sm:$0xff]
    %v1024 = vld [vmem:[#allocation8 + $0xb8] sm:$0xff]
    %v1025 = vld [vmem:[#allocation8 + $0xc0] sm:$0xff]
    %v1026 = vld [vmem:[#allocation8 + $0xc8] sm:$0xff]
    %v1027 = vld [vmem:[#allocation8 + $0xd0] sm:$0xff]
    %v1028 = vld [vmem:[#allocation8 + $0xd8] sm:$0xff]
    %v1029 = vld [vmem:[#allocation8 + $0xe0] sm:$0xff]
    %v1030 = vld [vmem:[#allocation8 + $0xe8] sm:$0xff]
    %v1031 = vld [vmem:[#allocation8 + $0xf0] sm:$0xff]
    %v1032 = vld [vmem:[#allocation8 + $0xf8] sm:$0xff]
    %v1033 = vld [vmem:[#allocation10] sm:$0xf]
    %v1034 = vld [vmem:[#allocation14] sm:$0xf]
    %v1035 = vld [vmem:[#allocation14 + $0x4] sm:$0xf]
    %v1036 = vld [vmem:[#allocation14 + $0x8] sm:$0xf]
    %v1037 = vld [vmem:[#allocation14 + $0xc] sm:$0xf]
    %v1038 = vld [vmem:[#allocation14 + $0x10] sm:$0xf]
    %v1039 = vld [vmem:[#allocation14 + $0x14] sm:$0xf]
    %v1040 = vld [vmem:[#allocation14 + $0x18] sm:$0xf]
    %v1041 = vld [vmem:[#allocation14 + $0x1c] sm:$0xf]
    %v1042 = vld [vmem:[#allocation14 + $0x20] sm:$0xf]
    %v1043 = vld [vmem:[#allocation14 + $0x24] sm:$0xf]
    %v1044 = vld [vmem:[#allocation14 + $0x28] sm:$0xf]
    %v1045 = vld [vmem:[#allocation14 + $0x2c] sm:$0xf]
    %v1046 = vld [vmem:[#allocation14 + $0x30] sm:$0xf]
    %v1047 = vld [vmem:[#allocation14 + $0x34] sm:$0xf]
    %v1048 = vld [vmem:[#allocation14 + $0x38] sm:$0xf]
    %v1049 = vld [vmem:[#allocation14 + $0x3c] sm:$0xf]
    %v1050 = vld [vmem:[#allocation14 + $0x40] sm:$0xf]
    %v1051 = vld [vmem:[#allocation14 + $0x44] sm:$0xf]
    %v1052 = vld [vmem:[#allocation14 + $0x48] sm:$0xf]
    %v1053 = vld [vmem:[#allocation14 + $0x4c] sm:$0xf]
    %v1054 = vld [vmem:[#allocation14 + $0x50] sm:$0xf]
    %v1055 = vld [vmem:[#allocation14 + $0x54] sm:$0xf]
    %v1056 = vld [vmem:[#allocation14 + $0x58] sm:$0xf]
    %v1057 = vld [vmem:[#allocation14 + $0x5c] sm:$0xf]
    %v1058 = vld [vmem:[#allocation14 + $0x60] sm:$0xf]
    %v1059 = vld [vmem:[#allocation14 + $0x64] sm:$0xf]
    %v1060 = vld [vmem:[#allocation14 + $0x68] sm:$0xf]
    %v1061 = vld [vmem:[#allocation14 + $0x6c] sm:$0xf]
    %v1062 = vld [vmem:[#allocation14 + $0x70] sm:$0xf]
    %v1063 = vld [vmem:[#allocation14 + $0x74] sm:$0xf]
    %v1064 = vld [vmem:[#allocation14 + $0x78] sm:$0xf]
    %v1065 = vld [vmem:[#allocation14 + $0x7c] sm:$0xf]
    %v1066 = vld [vmem:[#allocation14 + $0x80] sm:$0xf]
    %v1067 = vld [vmem:[#allocation14 + $0x84] sm:$0xf]
    %v1068 = vld [vmem:[#allocation14 + $0x88] sm:$0xf]
    %v1069 = vld [vmem:[#allocation14 + $0x8c] sm:$0xf]
    %v1070 = vld [vmem:[#allocation14 + $0x90] sm:$0xf]
    %v1071 = vld [vmem:[#allocation14 + $0x94] sm:$0xf]
    %v1072 = vld [vmem:[#allocation14 + $0x98] sm:$0xf]
    %v1073 = vld [vmem:[#allocation14 + $0x9c] sm:$0xf]
    %v1074 = vld [vmem:[#allocation14 + $0xa0] sm:$0xf]
    %v1075 = vld [vmem:[#allocation14 + $0xa4] sm:$0xf]
    %v1076 = vld [vmem:[#allocation14 + $0xa8] sm:$0xf]
    %v1077 = vld [vmem:[#allocation14 + $0xac] sm:$0xf]
    %v1078 = vld [vmem:[#allocation14 + $0xb0] sm:$0xf]
    %v1079 = vld [vmem:[#allocation14 + $0xb4] sm:$0xf]
    %v1080 = vld [vmem:[#allocation14 + $0xb8] sm:$0xf]
    %v1081 = vld [vmem:[#allocation14 + $0xbc] sm:$0xf]
    %v1082 = vld [vmem:[#allocation14 + $0xc0] sm:$0xf]
    %v1083 = vld [vmem:[#allocation14 + $0xc4] sm:$0xf]
    %v1084 = vld [vmem:[#allocation14 + $0xc8] sm:$0xf]
    %v1085 = vld [vmem:[#allocation14 + $0xcc] sm:$0xf]
    %v1086 = vld [vmem:[#allocation14 + $0xd0] sm:$0xf]
    %v1087 = vld [vmem:[#allocation14 + $0xd4] sm:$0xf]
    %v1088 = vld [vmem:[#allocation14 + $0xd8] sm:$0xf]
    %v1089 = vld [vmem:[#allocation14 + $0xdc] sm:$0xf]
    %v1090 = vld [vmem:[#allocation14 + $0xe0] sm:$0xf]
    %v1091 = vld [vmem:[#allocation14 + $0xe4] sm:$0xf]
    %v1092 = vld [vmem:[#allocation14 + $0xe8] sm:$0xf]
    %v1093 = vld [vmem:[#allocation14 + $0xec] sm:$0xf]
    %v1094 = vld [vmem:[#allocation14 + $0xf0] sm:$0xf]
    %v1095 = vld [vmem:[#allocation14 + $0xf4] sm:$0xf]
    %v1096 = vld [vmem:[#allocation14 + $0xf8] sm:$0xf]
    %v1097 = vld [vmem:[#allocation14 + $0xfc] sm:$0xf]
    %v1098 = vld [vmem:[#allocation16] sm:$0x1]
    %v1099 = vld [vmem:[#allocation17] sm:$0xff]
    %v1100 = vld [vmem:[#allocation17 + $0x8] sm:$0xff]
    %v1101 = vld [vmem:[#allocation17 + $0x10] sm:$0xff]
    %v1102 = vld [vmem:[#allocation17 + $0x18] sm:$0xff]
    %v1103 = vld [vmem:[#allocation17 + $0x20] sm:$0xff]
    %v1104 = vld [vmem:[#allocation17 + $0x28] sm:$0xff]
    %v1105 = vld [vmem:[#allocation17 + $0x30] sm:$0xff]
    %v1106 = vld [vmem:[#allocation17 + $0x38] sm:$0xff]
    %v1107 = vld [vmem:[#allocation17 + $0x40] sm:$0xff]
    %v1108 = vld [vmem:[#allocation17 + $0x48] sm:$0xff]
    %v1109 = vld [vmem:[#allocation17 + $0x50] sm:$0xff]
    %v1110 = vld [vmem:[#allocation17 + $0x58] sm:$0xff]
    %v1111 = vld [vmem:[#allocation17 + $0x60] sm:$0xff]
    %v1112 = vld [vmem:[#allocation17 + $0x68] sm:$0xff]
    %v1113 = vld [vmem:[#allocation17 + $0x70] sm:$0xff]
    %v1114 = vld [vmem:[#allocation17 + $0x78] sm:$0xff]
    %v1115 = vld [vmem:[#allocation17 + $0x80] sm:$0xff]
    %v1116 = vld [vmem:[#allocation17 + $0x88] sm:$0xff]
    %v1117 = vld [vmem:[#allocation17 + $0x90] sm:$0xff]
    %v1118 = vld [vmem:[#allocation17 + $0x98] sm:$0xff]
    %v1119 = vld [vmem:[#allocation17 + $0xa0] sm:$0xff]
    %v1120 = vld [vmem:[#allocation17 + $0xa8] sm:$0xff]
    %v1121 = vld [vmem:[#allocation17 + $0xb0] sm:$0xff]
    %v1122 = vld [vmem:[#allocation17 + $0xb8] sm:$0xff]
    %v1123 = vld [vmem:[#allocation17 + $0xc0] sm:$0xff]
    %v1124 = vld [vmem:[#allocation17 + $0xc8] sm:$0xff]
    %v1125 = vld [vmem:[#allocation17 + $0xd0] sm:$0xff]
    %v1126 = vld [vmem:[#allocation17 + $0xd8] sm:$0xff]
    %v1127 = vld [vmem:[#allocation17 + $0xe0] sm:$0xff]
    %v1128 = vld [vmem:[#allocation17 + $0xe8] sm:$0xff]
    %v1129 = vld [vmem:[#allocation17 + $0xf0] sm:$0xff]
    %v1130 = vld [vmem:[#allocation17 + $0xf8] sm:$0xff]
    %v1131 = vld [vmem:[#allocation17 + $0x100] sm:$0xff]
    %v1132 = vld [vmem:[#allocation17 + $0x108] sm:$0xff]
    %v1133 = vld [vmem:[#allocation17 + $0x110] sm:$0xff]
    %v1134 = vld [vmem:[#allocation17 + $0x118] sm:$0xff]
    %v1135 = vld [vmem:[#allocation17 + $0x120] sm:$0xff]
    %v1136 = vld [vmem:[#allocation17 + $0x128] sm:$0xff]
    %v1137 = vld [vmem:[#allocation17 + $0x130] sm:$0xff]
    %v1138 = vld [vmem:[#allocation17 + $0x138] sm:$0xff]
    %v1139 = vld [vmem:[#allocation17 + $0x140] sm:$0xff]
    %v1140 = vld [vmem:[#allocation17 + $0x148] sm:$0xff]
    %v1141 = vld [vmem:[#allocation17 + $0x150] sm:$0xff]
    %v1142 = vld [vmem:[#allocation17 + $0x158] sm:$0xff]
    %v1143 = vld [vmem:[#allocation17 + $0x160] sm:$0xff]
    %v1144 = vld [vmem:[#allocation17 + $0x168] sm:$0xff]
    %v1145 = vld [vmem:[#allocation17 + $0x170] sm:$0xff]
    %v1146 = vld [vmem:[#allocation17 + $0x178] sm:$0xff]
    %v1147 = vld [vmem:[#allocation17 + $0x180] sm:$0xff]
    %v1148 = vld [vmem:[#allocation17 + $0x188] sm:$0xff]
    %v1149 = vld [vmem:[#allocation17 + $0x190] sm:$0xff]
    %v1150 = vld [vmem:[#allocation17 + $0x198] sm:$0xff]
    %v1151 = vld [vmem:[#allocation17 + $0x1a0] sm:$0xff]
    %v1152 = vld [vmem:[#allocation17 + $0x1a8] sm:$0xff]
    %v1153 = vld [vmem:[#allocation17 + $0x1b0] sm:$0xff]
    %v1154 = vld [vmem:[#allocation17 + $0x1b8] sm:$0xff]
    %v1155 = vld [vmem:[#allocation17 + $0x1c0] sm:$0xff]
    %v1156 = vld [vmem:[#allocation17 + $0x1c8] sm:$0xff]
    %v1157 = vld [vmem:[#allocation17 + $0x1d0] sm:$0xff]
    %v1158 = vld [vmem:[#allocation17 + $0x1d8] sm:$0xff]
    %v1159 = vld [vmem:[#allocation17 + $0x1e0] sm:$0xff]
    %v1160 = vld [vmem:[#allocation17 + $0x1e8] sm:$0xff]
    %v1161 = vld [vmem:[#allocation17 + $0x1f0] sm:$0xff]
    %v1162 = vld [vmem:[#allocation17 + $0x1f8] sm:$0xff]
    %v1163 = vld [vmem:[#allocation17 + $0x200] sm:$0xff]
    %v1164 = vld [vmem:[#allocation17 + $0x208] sm:$0xff]
    %v1165 = vld [vmem:[#allocation17 + $0x210] sm:$0xff]
    %v1166 = vld [vmem:[#allocation17 + $0x218] sm:$0xff]
    %v1167 = vld [vmem:[#allocation17 + $0x220] sm:$0xff]
    %v1168 = vld [vmem:[#allocation17 + $0x228] sm:$0xff]
    %v1169 = vld [vmem:[#allocation17 + $0x230] sm:$0xff]
    %v1170 = vld [vmem:[#allocation17 + $0x238] sm:$0xff]
    %v1171 = vld [vmem:[#allocation17 + $0x240] sm:$0xff]
    %v1172 = vld [vmem:[#allocation17 + $0x248] sm:$0xff]
    %v1173 = vld [vmem:[#allocation17 + $0x250] sm:$0xff]
    %v1174 = vld [vmem:[#allocation17 + $0x258] sm:$0xff]
    %v1175 = vld [vmem:[#allocation17 + $0x260] sm:$0xff]
    %v1176 = vld [vmem:[#allocation17 + $0x268] sm:$0xff]
    %v1177 = vld [vmem:[#allocation17 + $0x270] sm:$0xff]
    %v1178 = vld [vmem:[#allocation17 + $0x278] sm:$0xff]
    %v1179 = vld [vmem:[#allocation17 + $0x280] sm:$0xff]
    %v1180 = vld [vmem:[#allocation17 + $0x288] sm:$0xff]
    %v1181 = vld [vmem:[#allocation17 + $0x290] sm:$0xff]
    %v1182 = vld [vmem:[#allocation17 + $0x298] sm:$0xff]
    %v1183 = vld [vmem:[#allocation17 + $0x2a0] sm:$0xff]
    %v1184 = vld [vmem:[#allocation17 + $0x2a8] sm:$0xff]
    %v1185 = vld [vmem:[#allocation17 + $0x2b0] sm:$0xff]
    %v1186 = vld [vmem:[#allocation17 + $0x2b8] sm:$0xff]
    %v1187 = vld [vmem:[#allocation17 + $0x2c0] sm:$0xff]
    %v1188 = vld [vmem:[#allocation17 + $0x2c8] sm:$0xff]
    %v1189 = vld [vmem:[#allocation17 + $0x2d0] sm:$0xff]
    %v1190 = vld [vmem:[#allocation17 + $0x2d8] sm:$0xff]
    %v1191 = vld [vmem:[#allocation17 + $0x2e0] sm:$0xff]
    %v1192 = vld [vmem:[#allocation17 + $0x2e8] sm:$0xff]
    %v1193 = vld [vmem:[#allocation17 + $0x2f0] sm:$0xff]
    %v1194 = vld [vmem:[#allocation17 + $0x2f8] sm:$0xff]
    %v1195 = vld [vmem:[#allocation17 + $0x300] sm:$0xff]
    %v1196 = vld [vmem:[#allocation17 + $0x308] sm:$0xff]
    %v1197 = vld [vmem:[#allocation17 + $0x310] sm:$0xff]
    %v1198 = vld [vmem:[#allocation17 + $0x318] sm:$0xff]
    %v1199 = vld [vmem:[#allocation17 + $0x320] sm:$0xff]
    %v1200 = vld [vmem:[#allocation17 + $0x328] sm:$0xff]
    %v1201 = vld [vmem:[#allocation17 + $0x330] sm:$0xff]
    %v1202 = vld [vmem:[#allocation17 + $0x338] sm:$0xff]
    %v1203 = vld [vmem:[#allocation17 + $0x340] sm:$0xff]
    %v1204 = vld [vmem:[#allocation17 + $0x348] sm:$0xff]
    %v1205 = vld [vmem:[#allocation17 + $0x350] sm:$0xff]
    %v1206 = vld [vmem:[#allocation17 + $0x358] sm:$0xff]
    %v1207 = vld [vmem:[#allocation17 + $0x360] sm:$0xff]
    %v1208 = vld [vmem:[#allocation17 + $0x368] sm:$0xff]
    %v1209 = vld [vmem:[#allocation17 + $0x370] sm:$0xff]
    %v1210 = vld [vmem:[#allocation17 + $0x378] sm:$0xff]
    %v1211 = vld [vmem:[#allocation17 + $0x380] sm:$0xff]
    %v1212 = vld [vmem:[#allocation17 + $0x388] sm:$0xff]
    %v1213 = vld [vmem:[#allocation17 + $0x390] sm:$0xff]
    %v1214 = vld [vmem:[#allocation17 + $0x398] sm:$0xff]
    %v1215 = vld [vmem:[#allocation17 + $0x3a0] sm:$0xff]
    %v1216 = vld [vmem:[#allocation17 + $0x3a8] sm:$0xff]
    %v1217 = vld [vmem:[#allocation17 + $0x3b0] sm:$0xff]
    %v1218 = vld [vmem:[#allocation17 + $0x3b8] sm:$0xff]
    %v1219 = vld [vmem:[#allocation17 + $0x3c0] sm:$0xff]
    %v1220 = vld [vmem:[#allocation17 + $0x3c8] sm:$0xff]
    %v1221 = vld [vmem:[#allocation17 + $0x3d0] sm:$0xff]
    %v1222 = vld [vmem:[#allocation17 + $0x3d8] sm:$0xff]
    %v1223 = vld [vmem:[#allocation17 + $0x3e0] sm:$0xff]
    %v1224 = vld [vmem:[#allocation17 + $0x3e8] sm:$0xff]
    %v1225 = vld [vmem:[#allocation17 + $0x3f0] sm:$0xff]
    %v1226 = vld [vmem:[#allocation17 + $0x3f8] sm:$0xff]
    %v1227 = vld [vmem:[#allocation19] sm:$0xff]
    %v1228 = vld [vmem:[#allocation19 + $0x8] sm:$0xff]
    %v1229 = vld [vmem:[#allocation20] sm:$0xf]
    %v1230 = vld [vmem:[#allocation20 + $0x4] sm:$0xf]
    %v1231 = vld [vmem:[#allocation20 + $0x8] sm:$0xf]
    %v1232 = vld [vmem:[#allocation20 + $0xc] sm:$0xf]
    %v1233 = vld [vmem:[#allocation20 + $0x10] sm:$0xf]
    %v1234 = vld [vmem:[#allocation20 + $0x14] sm:$0xf]
    %v1235 = vld [vmem:[#allocation20 + $0x18] sm:$0xf]
    %v1236 = vld [vmem:[#allocation20 + $0x1c] sm:$0xf]
    %v1237 = vld [vmem:[#allocation20 + $0x20] sm:$0xf]
    %v1238 = vld [vmem:[#allocation20 + $0x24] sm:$0xf]
    %v1239 = vld [vmem:[#allocation20 + $0x28] sm:$0xf]
    %v1240 = vld [vmem:[#allocation20 + $0x2c] sm:$0xf]
    %v1241 = vld [vmem:[#allocation20 + $0x30] sm:$0xf]
    %v1242 = vld [vmem:[#allocation20 + $0x34] sm:$0xf]
    %v1243 = vld [vmem:[#allocation20 + $0x38] sm:$0xf]
    %v1244 = vld [vmem:[#allocation20 + $0x3c] sm:$0xf]
    %v1245 = vld [vmem:[#allocation20 + $0x40] sm:$0xf]
    %v1246 = vld [vmem:[#allocation20 + $0x44] sm:$0xf]
    %v1247 = vld [vmem:[#allocation20 + $0x48] sm:$0xf]
    %v1248 = vld [vmem:[#allocation20 + $0x4c] sm:$0xf]
    %v1249 = vld [vmem:[#allocation20 + $0x50] sm:$0xf]
    %v1250 = vld [vmem:[#allocation20 + $0x54] sm:$0xf]
    %v1251 = vld [vmem:[#allocation20 + $0x58] sm:$0xf]
    %v1252 = vld [vmem:[#allocation20 + $0x5c] sm:$0xf]
    %v1253 = vld [vmem:[#allocation20 + $0x60] sm:$0xf]
    %v1254 = vld [vmem:[#allocation20 + $0x64] sm:$0xf]
    %v1255 = vld [vmem:[#allocation20 + $0x68] sm:$0xf]
    %v1256 = vld [vmem:[#allocation20 + $0x6c] sm:$0xf]
    %v1257 = vld [vmem:[#allocation20 + $0x70] sm:$0xf]
    %v1258 = vld [vmem:[#allocation20 + $0x74] sm:$0xf]
    %v1259 = vld [vmem:[#allocation20 + $0x78] sm:$0xf]
    %v1260 = vld [vmem:[#allocation20 + $0x7c] sm:$0xf]
    %v1261 = vld [vmem:[#allocation20 + $0x80] sm:$0xf]
    %v1262 = vld [vmem:[#allocation20 + $0x84] sm:$0xf]
    %v1263 = vld [vmem:[#allocation20 + $0x88] sm:$0xf]
    %v1264 = vld [vmem:[#allocation20 + $0x8c] sm:$0xf]
    %v1265 = vld [vmem:[#allocation20 + $0x90] sm:$0xf]
    %v1266 = vld [vmem:[#allocation20 + $0x94] sm:$0xf]
    %v1267 = vld [vmem:[#allocation20 + $0x98] sm:$0xf]
    %v1268 = vld [vmem:[#allocation20 + $0x9c] sm:$0xf]
    %v1269 = vld [vmem:[#allocation20 + $0xa0] sm:$0xf]
    %v1270 = vld [vmem:[#allocation20 + $0xa4] sm:$0xf]
    %v1271 = vld [vmem:[#allocation20 + $0xa8] sm:$0xf]
    %v1272 = vld [vmem:[#allocation20 + $0xac] sm:$0xf]
    %v1273 = vld [vmem:[#allocation20 + $0xb0] sm:$0xf]
    %v1274 = vld [vmem:[#allocation20 + $0xb4] sm:$0xf]
    %v1275 = vld [vmem:[#allocation20 + $0xb8] sm:$0xf]
    %v1276 = vld [vmem:[#allocation20 + $0xbc] sm:$0xf]
    %v1277 = vld [vmem:[#allocation20 + $0xc0] sm:$0xf]
    %v1278 = vld [vmem:[#allocation20 + $0xc4] sm:$0xf]
    %v1279 = vld [vmem:[#allocation20 + $0xc8] sm:$0xf]
    %v1280 = vld [vmem:[#allocation20 + $0xcc] sm:$0xf]
    %v1281 = vld [vmem:[#allocation20 + $0xd0] sm:$0xf]
    %v1282 = vld [vmem:[#allocation20 + $0xd4] sm:$0xf]
    %v1283 = vld [vmem:[#allocation20 + $0xd8] sm:$0xf]
    %v1284 = vld [vmem:[#allocation20 + $0xdc] sm:$0xf]
    %v1285 = vld [vmem:[#allocation20 + $0xe0] sm:$0xf]
    %v1286 = vld [vmem:[#allocation20 + $0xe4] sm:$0xf]
    %v1287 = vld [vmem:[#allocation20 + $0xe8] sm:$0xf]
    %v1288 = vld [vmem:[#allocation20 + $0xec] sm:$0xf]
    %v1289 = vld [vmem:[#allocation20 + $0xf0] sm:$0xf]
    %v1290 = vld [vmem:[#allocation20 + $0xf4] sm:$0xf]
    %v1291 = vld [vmem:[#allocation20 + $0xf8] sm:$0xf]
    %v1292 = vld [vmem:[#allocation20 + $0xfc] sm:$0xf]
    %v1293 = vld [vmem:[#allocation20 + $0x100] sm:$0xf]
    %v1294 = vld [vmem:[#allocation20 + $0x104] sm:$0xf]
    %v1295 = vld [vmem:[#allocation20 + $0x108] sm:$0xf]
    %v1296 = vld [vmem:[#allocation20 + $0x10c] sm:$0xf]
    %v1297 = vld [vmem:[#allocation20 + $0x110] sm:$0xf]
    %v1298 = vld [vmem:[#allocation20 + $0x114] sm:$0xf]
    %v1299 = vld [vmem:[#allocation20 + $0x118] sm:$0xf]
    %v1300 = vld [vmem:[#allocation20 + $0x11c] sm:$0xf]
    %v1301 = vld [vmem:[#allocation20 + $0x120] sm:$0xf]
    %v1302 = vld [vmem:[#allocation20 + $0x124] sm:$0xf]
    %v1303 = vld [vmem:[#allocation20 + $0x128] sm:$0xf]
    %v1304 = vld [vmem:[#allocation20 + $0x12c] sm:$0xf]
    %v1305 = vld [vmem:[#allocation20 + $0x130] sm:$0xf]
    %v1306 = vld [vmem:[#allocation20 + $0x134] sm:$0xf]
    %v1307 = vld [vmem:[#allocation20 + $0x138] sm:$0xf]
    %v1308 = vld [vmem:[#allocation20 + $0x13c] sm:$0xf]
    %v1309 = vld [vmem:[#allocation20 + $0x140] sm:$0xf]
    %v1310 = vld [vmem:[#allocation20 + $0x144] sm:$0xf]
    %v1311 = vld [vmem:[#allocation20 + $0x148] sm:$0xf]
    %v1312 = vld [vmem:[#allocation20 + $0x14c] sm:$0xf]
    %v1313 = vld [vmem:[#allocation20 + $0x150] sm:$0xf]
    %v1314 = vld [vmem:[#allocation20 + $0x154] sm:$0xf]
    %v1315 = vld [vmem:[#allocation20 + $0x158] sm:$0xf]
    %v1316 = vld [vmem:[#allocation20 + $0x15c] sm:$0xf]
    %v1317 = vld [vmem:[#allocation20 + $0x160] sm:$0xf]
    %v1318 = vld [vmem:[#allocation20 + $0x164] sm:$0xf]
    %v1319 = vld [vmem:[#allocation20 + $0x168] sm:$0xf]
    %v1320 = vld [vmem:[#allocation20 + $0x16c] sm:$0xf]
    %v1321 = vld [vmem:[#allocation20 + $0x170] sm:$0xf]
    %v1322 = vld [vmem:[#allocation20 + $0x174] sm:$0xf]
    %v1323 = vld [vmem:[#allocation20 + $0x178] sm:$0xf]
    %v1324 = vld [vmem:[#allocation20 + $0x17c] sm:$0xf]
    %v1325 = vld [vmem:[#allocation20 + $0x180] sm:$0xf]
    %v1326 = vld [vmem:[#allocation20 + $0x184] sm:$0xf]
    %v1327 = vld [vmem:[#allocation20 + $0x188] sm:$0xf]
    %v1328 = vld [vmem:[#allocation20 + $0x18c] sm:$0xf]
    %v1329 = vld [vmem:[#allocation20 + $0x190] sm:$0xf]
    %v1330 = vld [vmem:[#allocation20 + $0x194] sm:$0xf]
    %v1331 = vld [vmem:[#allocation20 + $0x198] sm:$0xf]
    %v1332 = vld [vmem:[#allocation20 + $0x19c] sm:$0xf]
    %v1333 = vld [vmem:[#allocation20 + $0x1a0] sm:$0xf]
    %v1334 = vld [vmem:[#allocation20 + $0x1a4] sm:$0xf]
    %v1335 = vld [vmem:[#allocation20 + $0x1a8] sm:$0xf]
    %v1336 = vld [vmem:[#allocation20 + $0x1ac] sm:$0xf]
    %v1337 = vld [vmem:[#allocation20 + $0x1b0] sm:$0xf]
    %v1338 = vld [vmem:[#allocation20 + $0x1b4] sm:$0xf]
    %v1339 = vld [vmem:[#allocation20 + $0x1b8] sm:$0xf]
    %v1340 = vld [vmem:[#allocation20 + $0x1bc] sm:$0xf]
    %v1341 = vld [vmem:[#allocation20 + $0x1c0] sm:$0xf]
    %v1342 = vld [vmem:[#allocation20 + $0x1c4] sm:$0xf]
    %v1343 = vld [vmem:[#allocation20 + $0x1c8] sm:$0xf]
    %v1344 = vld [vmem:[#allocation20 + $0x1cc] sm:$0xf]
    %v1345 = vld [vmem:[#allocation20 + $0x1d0] sm:$0xf]
    %v1346 = vld [vmem:[#allocation20 + $0x1d4] sm:$0xf]
    %v1347 = vld [vmem:[#allocation20 + $0x1d8] sm:$0xf]
    %v1348 = vld [vmem:[#allocation20 + $0x1dc] sm:$0xf]
    %v1349 = vld [vmem:[#allocation20 + $0x1e0] sm:$0xf]
    %v1350 = vld [vmem:[#allocation20 + $0x1e4] sm:$0xf]
    %v1351 = vld [vmem:[#allocation20 + $0x1e8] sm:$0xf]
    %v1352 = vld [vmem:[#allocation20 + $0x1ec] sm:$0xf]
    %v1353 = vld [vmem:[#allocation20 + $0x1f0] sm:$0xf]
    %v1354 = vld [vmem:[#allocation20 + $0x1f4] sm:$0xf]
    %v1355 = vld [vmem:[#allocation20 + $0x1f8] sm:$0xf]
    %v1356 = vld [vmem:[#allocation20 + $0x1fc] sm:$0xf]
    %v1357 = vld [vmem:[#allocation20 + $0x200] sm:$0xf]
    %v1358 = vld [vmem:[#allocation20 + $0x204] sm:$0xf]
    %v1359 = vld [vmem:[#allocation20 + $0x208] sm:$0xf]
    %v1360 = vld [vmem:[#allocation20 + $0x20c] sm:$0xf]
    %v1361 = vld [vmem:[#allocation20 + $0x210] sm:$0xf]
    %v1362 = vld [vmem:[#allocation20 + $0x214] sm:$0xf]
    %v1363 = vld [vmem:[#allocation20 + $0x218] sm:$0xf]
    %v1364 = vld [vmem:[#allocation20 + $0x21c] sm:$0xf]
    %v1365 = vld [vmem:[#allocation20 + $0x220] sm:$0xf]
    %v1366 = vld [vmem:[#allocation20 + $0x224] sm:$0xf]
    %v1367 = vld [vmem:[#allocation20 + $0x228] sm:$0xf]
    %v1368 = vld [vmem:[#allocation20 + $0x22c] sm:$0xf]
    %v1369 = vld [vmem:[#allocation20 + $0x230] sm:$0xf]
    %v1370 = vld [vmem:[#allocation20 + $0x234] sm:$0xf]
    %v1371 = vld [vmem:[#allocation20 + $0x238] sm:$0xf]
    %v1372 = vld [vmem:[#allocation20 + $0x23c] sm:$0xf]
    %v1373 = vld [vmem:[#allocation20 + $0x240] sm:$0xf]
    %v1374 = vld [vmem:[#allocation20 + $0x244] sm:$0xf]
    %v1375 = vld [vmem:[#allocation20 + $0x248] sm:$0xf]
    %v1376 = vld [vmem:[#allocation20 + $0x24c] sm:$0xf]
    %v1377 = vld [vmem:[#allocation20 + $0x250] sm:$0xf]
    %v1378 = vld [vmem:[#allocation20 + $0x254] sm:$0xf]
    %v1379 = vld [vmem:[#allocation20 + $0x258] sm:$0xf]
    %v1380 = vld [vmem:[#allocation20 + $0x25c] sm:$0xf]
    %v1381 = vld [vmem:[#allocation20 + $0x260] sm:$0xf]
    %v1382 = vld [vmem:[#allocation20 + $0x264] sm:$0xf]
    %v1383 = vld [vmem:[#allocation20 + $0x268] sm:$0xf]
    %v1384 = vld [vmem:[#allocation20 + $0x26c] sm:$0xf]
    %v1385 = vld [vmem:[#allocation20 + $0x270] sm:$0xf]
    %v1386 = vld [vmem:[#allocation20 + $0x274] sm:$0xf]
    %v1387 = vld [vmem:[#allocation20 + $0x278] sm:$0xf]
    %v1388 = vld [vmem:[#allocation20 + $0x27c] sm:$0xf]
    %v1389 = vld [vmem:[#allocation20 + $0x280] sm:$0xf]
    %v1390 = vld [vmem:[#allocation20 + $0x284] sm:$0xf]
    %v1391 = vld [vmem:[#allocation20 + $0x288] sm:$0xf]
    %v1392 = vld [vmem:[#allocation20 + $0x28c] sm:$0xf]
    %v1393 = vld [vmem:[#allocation20 + $0x290] sm:$0xf]
    %v1394 = vld [vmem:[#allocation20 + $0x294] sm:$0xf]
    %v1395 = vld [vmem:[#allocation20 + $0x298] sm:$0xf]
    %v1396 = vld [vmem:[#allocation20 + $0x29c] sm:$0xf]
    %v1397 = vld [vmem:[#allocation20 + $0x2a0] sm:$0xf]
    %v1398 = vld [vmem:[#allocation20 + $0x2a4] sm:$0xf]
    %v1399 = vld [vmem:[#allocation20 + $0x2a8] sm:$0xf]
    %v1400 = vld [vmem:[#allocation20 + $0x2ac] sm:$0xf]
    %v1401 = vld [vmem:[#allocation20 + $0x2b0] sm:$0xf]
    %v1402 = vld [vmem:[#allocation20 + $0x2b4] sm:$0xf]
    %v1403 = vld [vmem:[#allocation20 + $0x2b8] sm:$0xf]
    %v1404 = vld [vmem:[#allocation20 + $0x2bc] sm:$0xf]
    %v1405 = vld [vmem:[#allocation20 + $0x2c0] sm:$0xf]
    %v1406 = vld [vmem:[#allocation20 + $0x2c4] sm:$0xf]
    %v1407 = vld [vmem:[#allocation20 + $0x2c8] sm:$0xf]
    %v1408 = vld [vmem:[#allocation20 + $0x2cc] sm:$0xf]
    %v1409 = vld [vmem:[#allocation20 + $0x2d0] sm:$0xf]
    %v1410 = vld [vmem:[#allocation20 + $0x2d4] sm:$0xf]
    %v1411 = vld [vmem:[#allocation20 + $0x2d8] sm:$0xf]
    %v1412 = vld [vmem:[#allocation20 + $0x2dc] sm:$0xf]
    %v1413 = vld [vmem:[#allocation20 + $0x2e0] sm:$0xf]
    %v1414 = vld [vmem:[#allocation20 + $0x2e4] sm:$0xf]
    %v1415 = vld [vmem:[#allocation20 + $0x2e8] sm:$0xf]
    %v1416 = vld [vmem:[#allocation20 + $0x2ec] sm:$0xf]
    %v1417 = vld [vmem:[#allocation20 + $0x2f0] sm:$0xf]
    %v1418 = vld [vmem:[#allocation20 + $0x2f4] sm:$0xf]
    %v1419 = vld [vmem:[#allocation20 + $0x2f8] sm:$0xf]
    %v1420 = vld [vmem:[#allocation20 + $0x2fc] sm:$0xf]
    %v1421 = vld [vmem:[#allocation20 + $0x300] sm:$0xf]
    %v1422 = vld [vmem:[#allocation20 + $0x304] sm:$0xf]
    %v1423 = vld [vmem:[#allocation20 + $0x308] sm:$0xf]
    %v1424 = vld [vmem:[#allocation20 + $0x30c] sm:$0xf]
    %v1425 = vld [vmem:[#allocation20 + $0x310] sm:$0xf]
    %v1426 = vld [vmem:[#allocation20 + $0x314] sm:$0xf]
    %v1427 = vld [vmem:[#allocation20 + $0x318] sm:$0xf]
    %v1428 = vld [vmem:[#allocation20 + $0x31c] sm:$0xf]
    %v1429 = vld [vmem:[#allocation20 + $0x320] sm:$0xf]
    %v1430 = vld [vmem:[#allocation20 + $0x324] sm:$0xf]
    %v1431 = vld [vmem:[#allocation20 + $0x328] sm:$0xf]
    %v1432 = vld [vmem:[#allocation20 + $0x32c] sm:$0xf]
    %v1433 = vld [vmem:[#allocation20 + $0x330] sm:$0xf]
    %v1434 = vld [vmem:[#allocation20 + $0x334] sm:$0xf]
    %v1435 = vld [vmem:[#allocation20 + $0x338] sm:$0xf]
    %v1436 = vld [vmem:[#allocation20 + $0x33c] sm:$0xf]
    %v1437 = vld [vmem:[#allocation20 + $0x340] sm:$0xf]
    %v1438 = vld [vmem:[#allocation20 + $0x344] sm:$0xf]
    %v1439 = vld [vmem:[#allocation20 + $0x348] sm:$0xf]
    %v1440 = vld [vmem:[#allocation20 + $0x34c] sm:$0xf]
    %v1441 = vld [vmem:[#allocation20 + $0x350] sm:$0xf]
    %v1442 = vld [vmem:[#allocation20 + $0x354] sm:$0xf]
    %v1443 = vld [vmem:[#allocation20 + $0x358] sm:$0xf]
    %v1444 = vld [vmem:[#allocation20 + $0x35c] sm:$0xf]
    %v1445 = vld [vmem:[#allocation20 + $0x360] sm:$0xf]
    %v1446 = vld [vmem:[#allocation20 + $0x364] sm:$0xf]
    %v1447 = vld [vmem:[#allocation20 + $0x368] sm:$0xf]
    %v1448 = vld [vmem:[#allocation20 + $0x36c] sm:$0xf]
    %v1449 = vld [vmem:[#allocation20 + $0x370] sm:$0xf]
    %v1450 = vld [vmem:[#allocation20 + $0x374] sm:$0xf]
    %v1451 = vld [vmem:[#allocation20 + $0x378] sm:$0xf]
    %v1452 = vld [vmem:[#allocation20 + $0x37c] sm:$0xf]
    %v1453 = vld [vmem:[#allocation20 + $0x380] sm:$0xf]
    %v1454 = vld [vmem:[#allocation20 + $0x384] sm:$0xf]
    %v1455 = vld [vmem:[#allocation20 + $0x388] sm:$0xf]
    %v1456 = vld [vmem:[#allocation20 + $0x38c] sm:$0xf]
    %v1457 = vld [vmem:[#allocation20 + $0x390] sm:$0xf]
    %v1458 = vld [vmem:[#allocation20 + $0x394] sm:$0xf]
    %v1459 = vld [vmem:[#allocation20 + $0x398] sm:$0xf]
    %v1460 = vld [vmem:[#allocation20 + $0x39c] sm:$0xf]
    %v1461 = vld [vmem:[#allocation20 + $0x3a0] sm:$0xf]
    %v1462 = vld [vmem:[#allocation20 + $0x3a4] sm:$0xf]
    %v1463 = vld [vmem:[#allocation20 + $0x3a8] sm:$0xf]
    %v1464 = vld [vmem:[#allocation20 + $0x3ac] sm:$0xf]
    %v1465 = vld [vmem:[#allocation20 + $0x3b0] sm:$0xf]
    %v1466 = vld [vmem:[#allocation20 + $0x3b4] sm:$0xf]
    %v1467 = vld [vmem:[#allocation20 + $0x3b8] sm:$0xf]
    %v1468 = vld [vmem:[#allocation20 + $0x3bc] sm:$0xf]
    %v1469 = vld [vmem:[#allocation20 + $0x3c0] sm:$0xf]
    %v1470 = vld [vmem:[#allocation20 + $0x3c4] sm:$0xf]
    %v1471 = vld [vmem:[#allocation20 + $0x3c8] sm:$0xf]
    %v1472 = vld [vmem:[#allocation20 + $0x3cc] sm:$0xf]
    %v1473 = vld [vmem:[#allocation20 + $0x3d0] sm:$0xf]
    %v1474 = vld [vmem:[#allocation20 + $0x3d4] sm:$0xf]
    %v1475 = vld [vmem:[#allocation20 + $0x3d8] sm:$0xf]
    %v1476 = vld [vmem:[#allocation20 + $0x3dc] sm:$0xf]
    %v1477 = vld [vmem:[#allocation20 + $0x3e0] sm:$0xf]
    %v1478 = vld [vmem:[#allocation20 + $0x3e4] sm:$0xf]
    %v1479 = vld [vmem:[#allocation20 + $0x3e8] sm:$0xf]
    %v1480 = vld [vmem:[#allocation20 + $0x3ec] sm:$0xf]
    %v1481 = vld [vmem:[#allocation20 + $0x3f0] sm:$0xf]
    %v1482 = vld [vmem:[#allocation20 + $0x3f4] sm:$0xf]
    %v1483 = vld [vmem:[#allocation20 + $0x3f8] sm:$0xf]
    %v1484 = vld [vmem:[#allocation20 + $0x3fc] sm:$0xf]
    %v1485 = vld [vmem:[#allocation22] sm:$0x1]
    %v1486 = vld [vmem:[#allocation23] sm:$0x1]
    %v1487 = vld [vmem:[#allocation25] sm:$0x1]
    %v1488 = vld [vmem:[#allocation26] sm:$0x1]
    %v1489 = vld [vmem:[#allocation28] sm:$0x1]
    %v1490 = vlaneseq
    %v1491 = vand.u32 %v1490, 127
    %vm1492 = vcmp.lt.s32.totalorder %v1491, 32
    %v1494 = vlaneseq
    %v1495 = vshrl.u32 %v1494, 7
    %v1496 = vsub.s32 0, %v1495
    %v1497 = vrot.slane %v1033, %v1496
    %v1498 = vlaneseq
    %v1499 = vshrl.u32 %v1498, 7
    %v1500 = vsub.s32 1, %v1499
    %v1501 = vrot.slane %v1033, %v1500
    %v1502 = vlaneseq
    %v1503 = vshrl.u32 %v1502, 7
    %v1504 = vsub.s32 2, %v1503
    %v1505 = vrot.slane %v1033, %v1504
    %v1506 = vlaneseq
    %v1507 = vshrl.u32 %v1506, 7
    %v1508 = vsub.s32 3, %v1507
    %v1509 = vrot.slane %v1033, %v1508
    %v1546 = vunpack.c.l.b16 %v1001
    %v1547 = vunpack.c.h.b16 %v1001
    %v1548 = vunpack.c.l.b16 %v1002
    %v1549 = vunpack.c.h.b16 %v1002
    %v1550 = vunpack.c.l.b16 %v1003
    %v1551 = vunpack.c.h.b16 %v1003
    %v1552 = vunpack.c.l.b16 %v1004
    %v1553 = vunpack.c.h.b16 %v1004
    %v1554 = vunpack.c.l.b16 %v1005
    %v1555 = vunpack.c.h.b16 %v1005
    %v1556 = vunpack.c.l.b16 %v1006
    %v1557 = vunpack.c.h.b16 %v1006
    %v1558 = vunpack.c.l.b16 %v1007
    %v1559 = vunpack.c.h.b16 %v1007
    %v1560 = vunpack.c.l.b16 %v1008
    %v1561 = vunpack.c.h.b16 %v1008
    %v1562 = vunpack.c.l.b16 %v1009
    %v1563 = vunpack.c.h.b16 %v1009
    %v1564 = vunpack.c.l.b16 %v1010
    %v1565 = vunpack.c.h.b16 %v1010
    %v1566 = vunpack.c.l.b16 %v1011
    %v1567 = vunpack.c.h.b16 %v1011
    %v1568 = vunpack.c.l.b16 %v1012
    %v1569 = vunpack.c.h.b16 %v1012
    %v1570 = vunpack.c.l.b16 %v1013
    %v1571 = vunpack.c.h.b16 %v1013
    %v1572 = vunpack.c.l.b16 %v1014
    %v1573 = vunpack.c.h.b16 %v1014
    %v1574 = vunpack.c.l.b16 %v1015
    %v1575 = vunpack.c.h.b16 %v1015
    %v1576 = vunpack.c.l.b16 %v1016
    %v1577 = vunpack.c.h.b16 %v1016
    %v1578 = vunpack.c.l.b16 %v1017
    %v1579 = vunpack.c.h.b16 %v1017
    %v1580 = vunpack.c.l.b16 %v1018
    %v1581 = vunpack.c.h.b16 %v1018
    %v1582 = vunpack.c.l.b16 %v1019
    %v1583 = vunpack.c.h.b16 %v1019
    %v1584 = vunpack.c.l.b16 %v1020
    %v1585 = vunpack.c.h.b16 %v1020
    %v1586 = vunpack.c.l.b16 %v1021
    %v1587 = vunpack.c.h.b16 %v1021
    %v1588 = vunpack.c.l.b16 %v1022
    %v1589 = vunpack.c.h.b16 %v1022
    %v1590 = vunpack.c.l.b16 %v1023
    %v1591 = vunpack.c.h.b16 %v1023
    %v1592 = vunpack.c.l.b16 %v1024
    %v1593 = vunpack.c.h.b16 %v1024
    %v1594 = vunpack.c.l.b16 %v1025
    %v1595 = vunpack.c.h.b16 %v1025
    %v1596 = vunpack.c.l.b16 %v1026
    %v1597 = vunpack.c.h.b16 %v1026
    %v1598 = vunpack.c.l.b16 %v1027
    %v1599 = vunpack.c.h.b16 %v1027
    %v1600 = vunpack.c.l.b16 %v1028
    %v1601 = vunpack.c.h.b16 %v1028
    %v1602 = vunpack.c.l.b16 %v1029
    %v1603 = vunpack.c.h.b16 %v1029
    %v1604 = vunpack.c.l.b16 %v1030
    %v1605 = vunpack.c.h.b16 %v1030
    %v1606 = vunpack.c.l.b16 %v1031
    %v1607 = vunpack.c.h.b16 %v1031
    %v1608 = vunpack.c.l.b16 %v1032
    %v1609 = vunpack.c.h.b16 %v1032
    %v1610 = vpack.c.b16 %v1550, %v1546
    %v1611 = vpack.c.b16 %v1551, %v1547
    %v1612 = vpack.c.b16 %v1552, %v1548
    %v1613 = vpack.c.b16 %v1553, %v1549
    %v1614 = vpack.c.b16 %v1558, %v1554
    %v1615 = vpack.c.b16 %v1559, %v1555
    %v1616 = vpack.c.b16 %v1560, %v1556
    %v1617 = vpack.c.b16 %v1561, %v1557
    %v1618 = vpack.c.b16 %v1566, %v1562
    %v1619 = vpack.c.b16 %v1567, %v1563
    %v1620 = vpack.c.b16 %v1568, %v1564
    %v1621 = vpack.c.b16 %v1569, %v1565
    %v1622 = vpack.c.b16 %v1574, %v1570
    %v1623 = vpack.c.b16 %v1575, %v1571
    %v1624 = vpack.c.b16 %v1576, %v1572
    %v1625 = vpack.c.b16 %v1577, %v1573
    %v1626 = vpack.c.b16 %v1582, %v1578
    %v1627 = vpack.c.b16 %v1583, %v1579
    %v1628 = vpack.c.b16 %v1584, %v1580
    %v1629 = vpack.c.b16 %v1585, %v1581
    %v1630 = vpack.c.b16 %v1590, %v1586
    %v1631 = vpack.c.b16 %v1591, %v1587
    %v1632 = vpack.c.b16 %v1592, %v1588
    %v1633 = vpack.c.b16 %v1593, %v1589
    %v1634 = vpack.c.b16 %v1598, %v1594
    %v1635 = vpack.c.b16 %v1599, %v1595
    %v1636 = vpack.c.b16 %v1600, %v1596
    %v1637 = vpack.c.b16 %v1601, %v1597
    %v1638 = vpack.c.b16 %v1606, %v1602
    %v1639 = vpack.c.b16 %v1607, %v1603
    %v1640 = vpack.c.b16 %v1608, %v1604
    %v1641 = vpack.c.b16 %v1609, %v1605
    %1674 = vmatprep.subr.bf16.mxu0 %v1611
    %1675 = vmatpush1.bf16.msra.mxu0 %v1610
    %1676 = vmatprep.subr.bf16.mxu0 %v1615
    %1677 = vmatpush1.bf16.msra.mxu0 %v1614
    %1678 = vmatprep.subr.bf16.mxu0 %v1619
    %1679 = vmatpush1.bf16.msra.mxu0 %v1618
    %1680 = vmatprep.subr.bf16.mxu0 %v1623
    %1681 = vmatpush1.bf16.msra.mxu0 %v1622
    %1682 = vmatprep.subr.bf16.mxu0 %v1627
    %1683 = vmatpush1.bf16.msra.mxu0 %v1626
    %1684 = vmatprep.subr.bf16.mxu0 %v1631
    %1685 = vmatpush1.bf16.msra.mxu0 %v1630
    %1686 = vmatprep.subr.bf16.mxu0 %v1635
    %1687 = vmatpush1.bf16.msra.mxu0 %v1634
    %1688 = vmatprep.subr.bf16.mxu0 %v1639
    %1689 = vmatpush1.bf16.msra.mxu0 %v1638
    %1690 = vmatprep.subr.bf16.mxu0 0
    %1691 = vmatpush1.bf16.msra.mxu0 0
    %1692 = vmatprep.subr.bf16.mxu0 0
    %1693 = vmatpush1.bf16.msra.mxu0 0
    %1694 = vmatprep.subr.bf16.mxu0 0
    %1695 = vmatpush1.bf16.msra.mxu0 0
    %1696 = vmatprep.subr.bf16.mxu0 0
    %1697 = vmatpush1.bf16.msra.mxu0 0
    %1698 = vmatprep.subr.bf16.mxu0 0
    %1699 = vmatpush1.bf16.msra.mxu0 0
    %1700 = vmatprep.subr.bf16.mxu0 0
    %1701 = vmatpush1.bf16.msra.mxu0 0
    %1702 = vmatprep.subr.bf16.mxu0 0
    %1703 = vmatpush1.bf16.msra.mxu0 0
    %1704 = vmatprep.subr.bf16.mxu0 0
    %1705 = vmatpush1.bf16.msra.mxu0 0
    %1706 = vmatprep.mubr.bf16.mxu0 0
    %1707 = vmatmul.mubr.bf16.gmra.mrb[0].mxu0 %v402
    %v1708 = vpop.f32.mrb[0].mxu0
    %v1709 = vadd.f32 %v1497, %v1708
    %v1710 = vpop.f32.mrb[0].mxu0
    %v1711 = vadd.f32 %v1501, %v1710
    %v1712 = vpop.f32.mrb[0].mxu0
    %v1713 = vpop.f32.mrb[0].mxu0
    %1714 = vdwg.mxu0
    %1715 = vmatprep.subr.bf16.mxu0 %v1613
    %1716 = vmatpush1.bf16.msra.mxu0 %v1612
    %1717 = vmatprep.subr.bf16.mxu0 %v1617
    %1718 = vmatpush1.bf16.msra.mxu0 %v1616
    %1719 = vmatprep.subr.bf16.mxu0 %v1621
    %1720 = vmatpush1.bf16.msra.mxu0 %v1620
    %1721 = vmatprep.subr.bf16.mxu0 %v1625
    %1722 = vmatpush1.bf16.msra.mxu0 %v1624
    %1723 = vmatprep.subr.bf16.mxu0 %v1629
    %1724 = vmatpush1.bf16.msra.mxu0 %v1628
    %1725 = vmatprep.subr.bf16.mxu0 %v1633
    %1726 = vmatpush1.bf16.msra.mxu0 %v1632
    %1727 = vmatprep.subr.bf16.mxu0 %v1637
    %1728 = vmatpush1.bf16.msra.mxu0 %v1636
    %1729 = vmatprep.subr.bf16.mxu0 %v1641
    %1730 = vmatpush1.bf16.msra.mxu0 %v1640
    %1731 = vmatprep.subr.bf16.mxu0 0
    %1732 = vmatpush1.bf16.msra.mxu0 0
    %1733 = vmatprep.subr.bf16.mxu0 0
    %1734 = vmatpush1.bf16.msra.mxu0 0
    %1735 = vmatprep.subr.bf16.mxu0 0
    %1736 = vmatpush1.bf16.msra.mxu0 0
    %1737 = vmatprep.subr.bf16.mxu0 0
    %1738 = vmatpush1.bf16.msra.mxu0 0
    %1739 = vmatprep.subr.bf16.mxu0 0
    %1740 = vmatpush1.bf16.msra.mxu0 0
    %1741 = vmatprep.subr.bf16.mxu0 0
    %1742 = vmatpush1.bf16.msra.mxu0 0
    %1743 = vmatprep.subr.bf16.mxu0 0
    %1744 = vmatpush1.bf16.msra.mxu0 0
    %1745 = vmatprep.subr.bf16.mxu0 0
    %1746 = vmatpush1.bf16.msra.mxu0 0
    %1747 = vmatprep.mubr.bf16.mxu0 0
    %1748 = vmatmul.mubr.bf16.gmra.mrb[0].mxu0 %v402
    %v1749 = vpop.f32.mrb[0].mxu0
    %v1750 = vadd.f32 %v1505, %v1749
    %v1751 = vpop.f32.mrb[0].mxu0
    %v1752 = vadd.f32 %v1509, %v1751
    %v1753 = vpop.f32.mrb[0].mxu0
    %v1754 = vpop.f32.mrb[0].mxu0
    %1755 = vdwg.mxu0
    %v1756 = vpack.c.bf16 %v1709, %v1709
    %1757 = vmatprep.subr.bf16.mxu0 0
    %1758 = vmatpush1.bf16.xpose.msra.mxu0 %v993
    %1759 = vmatprep.subr.bf16.mxu0 0
    %1760 = vmatpush1.bf16.xpose.msra.mxu0 0
    %1761 = vmatprep.subr.bf16.mxu0 0
    %1762 = vmatpush1.bf16.xpose.msra.mxu0 0
    %1763 = vmatprep.subr.bf16.mxu0 0
    %1764 = vmatpush1.bf16.xpose.msra.mxu0 0
    %1765 = vmatprep.subr.bf16.mxu0 0
    %1766 = vmatpush1.bf16.xpose.msra.mxu0 0
    %1767 = vmatprep.subr.bf16.mxu0 0
    %1768 = vmatpush1.bf16.xpose.msra.mxu0 0
    %1769 = vmatprep.subr.bf16.mxu0 0
    %1770 = vmatpush1.bf16.xpose.msra.mxu0 0
    %1771 = vmatprep.subr.bf16.mxu0 0
    %1772 = vmatpush1.bf16.xpose.msra.mxu0 0
    %1773 = vmatprep.subr.bf16.mxu0 0
    %1774 = vmatpush1.bf16.xpose.msra.mxu0 0
    %1775 = vmatprep.subr.bf16.mxu0 0
    %1776 = vmatpush1.bf16.xpose.msra.mxu0 0
    %1777 = vmatprep.subr.bf16.mxu0 0
    %1778 = vmatpush1.bf16.xpose.msra.mxu0 0
    %1779 = vmatprep.subr.bf16.mxu0 0
    %1780 = vmatpush1.bf16.xpose.msra.mxu0 0
    %1781 = vmatprep.subr.bf16.mxu0 0
    %1782 = vmatpush1.bf16.xpose.msra.mxu0 0
    %1783 = vmatprep.subr.bf16.mxu0 0
    %1784 = vmatpush1.bf16.xpose.msra.mxu0 0
    %1785 = vmatprep.subr.bf16.mxu0 0
    %1786 = vmatpush1.bf16.xpose.msra.mxu0 0
    %1787 = vmatprep.subr.bf16.mxu0 0
    %1788 = vmatpush1.bf16.xpose.msra.mxu0 0
    %1789 = vmatprep.mubr.bf16.mxu0 0
    %1790 = vmatmul.mubr.bf16.gmra.mrb[0].mxu0 %v1756
    %v1791 = vpop.f32.mrb[0].mxu0
    %v1792 = vadd.f32 0.0, %v1791
    %v1793 = vpop.f32.mrb[0].mxu0
    %v1794 = vpop.f32.mrb[0].mxu0
    %v1795 = vpop.f32.mrb[0].mxu0
    %1796 = vdwg.mxu0
    %vm1797 = vcmask 64512
    %v1798 = vsel %vm1797, %v1792, -inf
    %1799 = vmax.xlane.f32.xlu0 %v1798
    %v1800 = vpop.xlane.xlu0 %1799
    %v1801 = vsub.f32 %v1792, %v1800
    %v1802 = vmul.f32 %v1801, 1.442695
    %v1803 = vpow.pop %v1802
    %v1804 = vsel %vm1797, %v1803, 0.0
    %1805 = vadd.xlane.f32.xlu0 %v1804
    %v1806 = vpop.xlane.xlu0 %1805
    %v1807 = vrcp.pop %v1806
    %v1808 = vmul.f32 %v1803, %v1807
    %v1809 = vpack.c.bf16 %v1808, %v1808
    %v1811 = vsel %vm1797, %v1809, 0
    %vm1813 = vcmask 1043456
    %v1815 = vsel %vm1813, %v997, 0
    %1817 = vmatprep.subr.bf16.mxu0 0
    %1818 = vmatpush1.bf16.msra.mxu0 %v1815
    %1819 = vmatprep.subr.bf16.mxu0 0
    %1820 = vmatpush1.bf16.msra.mxu0 0
    %1821 = vmatprep.subr.bf16.mxu0 0
    %1822 = vmatpush1.bf16.msra.mxu0 0
    %1823 = vmatprep.subr.bf16.mxu0 0
    %1824 = vmatpush1.bf16.msra.mxu0 0
    %1825 = vmatprep.subr.bf16.mxu0 0
    %1826 = vmatpush1.bf16.msra.mxu0 0
    %1827 = vmatprep.subr.bf16.mxu0 0
    %1828 = vmatpush1.bf16.msra.mxu0 0
    %1829 = vmatprep.subr.bf16.mxu0 0
    %1830 = vmatpush1.bf16.msra.mxu0 0
    %1831 = vmatprep.subr.bf16.mxu0 0
    %1832 = vmatpush1.bf16.msra.mxu0 0
    %1833 = vmatprep.subr.bf16.mxu0 0
    %1834 = vmatpush1.bf16.msra.mxu0 0
    %1835 = vmatprep.subr.bf16.mxu0 0
    %1836 = vmatpush1.bf16.msra.mxu0 0
    %1837 = vmatprep.subr.bf16.mxu0 0
    %1838 = vmatpush1.bf16.msra.mxu0 0
    %1839 = vmatprep.subr.bf16.mxu0 0
    %1840 = vmatpush1.bf16.msra.mxu0 0
    %1841 = vmatprep.subr.bf16.mxu0 0
    %1842 = vmatpush1.bf16.msra.mxu0 0
    %1843 = vmatprep.subr.bf16.mxu0 0
    %1844 = vmatpush1.bf16.msra.mxu0 0
    %1845 = vmatprep.subr.bf16.mxu0 0
    %1846 = vmatpush1.bf16.msra.mxu0 0
    %1847 = vmatprep.subr.bf16.mxu0 0
    %1848 = vmatpush1.bf16.msra.mxu0 0
    %1849 = vmatprep.mubr.bf16.mxu0 0
    %1850 = vmatmul.mubr.bf16.gmra.mrb[0].mxu0 %v1811
    %v1851 = vpop.f32.mrb[0].mxu0
    %v1852 = vadd.f32 0.0, %v1851
    %v1853 = vpop.f32.mrb[0].mxu0
    %v1854 = vpop.f32.mrb[0].mxu0
    %v1855 = vpop.f32.mrb[0].mxu0
    %1856 = vdwg.mxu0
    %v1857 = vpack.c.bf16 %v1711, %v1711
    %1858 = vmatprep.subr.bf16.mxu0 0
    %1859 = vmatpush1.bf16.xpose.msra.mxu0 %v994
    %1860 = vmatprep.subr.bf16.mxu0 0
    %1861 = vmatpush1.bf16.xpose.msra.mxu0 0
    %1862 = vmatprep.subr.bf16.mxu0 0
    %1863 = vmatpush1.bf16.xpose.msra.mxu0 0
    %1864 = vmatprep.subr.bf16.mxu0 0
    %1865 = vmatpush1.bf16.xpose.msra.mxu0 0
    %1866 = vmatprep.subr.bf16.mxu0 0
    %1867 = vmatpush1.bf16.xpose.msra.mxu0 0
    %1868 = vmatprep.subr.bf16.mxu0 0
    %1869 = vmatpush1.bf16.xpose.msra.mxu0 0
    %1870 = vmatprep.subr.bf16.mxu0 0
    %1871 = vmatpush1.bf16.xpose.msra.mxu0 0
    %1872 = vmatprep.subr.bf16.mxu0 0
    %1873 = vmatpush1.bf16.xpose.msra.mxu0 0
    %1874 = vmatprep.subr.bf16.mxu0 0
    %1875 = vmatpush1.bf16.xpose.msra.mxu0 0
    %1876 = vmatprep.subr.bf16.mxu0 0
    %1877 = vmatpush1.bf16.xpose.msra.mxu0 0
    %1878 = vmatprep.subr.bf16.mxu0 0
    %1879 = vmatpush1.bf16.xpose.msra.mxu0 0
    %1880 = vmatprep.subr.bf16.mxu0 0
    %1881 = vmatpush1.bf16.xpose.msra.mxu0 0
    %1882 = vmatprep.subr.bf16.mxu0 0
    %1883 = vmatpush1.bf16.xpose.msra.mxu0 0
    %1884 = vmatprep.subr.bf16.mxu0 0
    %1885 = vmatpush1.bf16.xpose.msra.mxu0 0
    %1886 = vmatprep.subr.bf16.mxu0 0
    %1887 = vmatpush1.bf16.xpose.msra.mxu0 0
    %1888 = vmatprep.subr.bf16.mxu0 0
    %1889 = vmatpush1.bf16.xpose.msra.mxu0 0
    %1890 = vmatprep.mubr.bf16.mxu0 0
    %1891 = vmatmul.mubr.bf16.gmra.mrb[0].mxu0 %v1857
    %v1892 = vpop.f32.mrb[0].mxu0
    %v1893 = vadd.f32 0.0, %v1892
    %v1894 = vpop.f32.mrb[0].mxu0
    %v1895 = vpop.f32.mrb[0].mxu0
    %v1896 = vpop.f32.mrb[0].mxu0
    %1897 = vdwg.mxu0
    %v1898 = vsel %vm1797, %v1893, -inf
    %1899 = vmax.xlane.f32.xlu0 %v1898
    %v1900 = vpop.xlane.xlu0 %1899
    %v1901 = vsub.f32 %v1893, %v1900
    %v1902 = vmul.f32 %v1901, 1.442695
    %v1903 = vpow.pop %v1902
    %v1904 = vsel %vm1797, %v1903, 0.0
    %1905 = vadd.xlane.f32.xlu0 %v1904
    %v1906 = vpop.xlane.xlu0 %1905
    %v1907 = vrcp.pop %v1906
    %v1908 = vmul.f32 %v1903, %v1907
    %v1909 = vpack.c.bf16 %v1908, %v1908
    %v1911 = vsel %vm1797, %v1909, 0
    %v1914 = vsel %vm1813, %v998, 0
    %1916 = vmatprep.subr.bf16.mxu0 0
    %1917 = vmatpush1.bf16.msra.mxu0 %v1914
    %1918 = vmatprep.subr.bf16.mxu0 0
    %1919 = vmatpush1.bf16.msra.mxu0 0
    %1920 = vmatprep.subr.bf16.mxu0 0
    %1921 = vmatpush1.bf16.msra.mxu0 0
    %1922 = vmatprep.subr.bf16.mxu0 0
    %1923 = vmatpush1.bf16.msra.mxu0 0
    %1924 = vmatprep.subr.bf16.mxu0 0
    %1925 = vmatpush1.bf16.msra.mxu0 0
    %1926 = vmatprep.subr.bf16.mxu0 0
    %1927 = vmatpush1.bf16.msra.mxu0 0
    %1928 = vmatprep.subr.bf16.mxu0 0
    %1929 = vmatpush1.bf16.msra.mxu0 0
    %1930 = vmatprep.subr.bf16.mxu0 0
    %1931 = vmatpush1.bf16.msra.mxu0 0
    %1932 = vmatprep.subr.bf16.mxu0 0
    %1933 = vmatpush1.bf16.msra.mxu0 0
    %1934 = vmatprep.subr.bf16.mxu0 0
    %1935 = vmatpush1.bf16.msra.mxu0 0
    %1936 = vmatprep.subr.bf16.mxu0 0
    %1937 = vmatpush1.bf16.msra.mxu0 0
    %1938 = vmatprep.subr.bf16.mxu0 0
    %1939 = vmatpush1.bf16.msra.mxu0 0
    %1940 = vmatprep.subr.bf16.mxu0 0
    %1941 = vmatpush1.bf16.msra.mxu0 0
    %1942 = vmatprep.subr.bf16.mxu0 0
    %1943 = vmatpush1.bf16.msra.mxu0 0
    %1944 = vmatprep.subr.bf16.mxu0 0
    %1945 = vmatpush1.bf16.msra.mxu0 0
    %1946 = vmatprep.subr.bf16.mxu0 0
    %1947 = vmatpush1.bf16.msra.mxu0 0
    %1948 = vmatprep.mubr.bf16.mxu0 0
    %1949 = vmatmul.mubr.bf16.gmra.mrb[0].mxu0 %v1911
    %v1950 = vpop.f32.mrb[0].mxu0
    %v1951 = vadd.f32 0.0, %v1950
    %v1952 = vpop.f32.mrb[0].mxu0
    %v1953 = vpop.f32.mrb[0].mxu0
    %v1954 = vpop.f32.mrb[0].mxu0
    %1955 = vdwg.mxu0
    %v1956 = vpack.c.bf16 %v1750, %v1750
    %1957 = vmatprep.subr.bf16.mxu0 0
    %1958 = vmatpush1.bf16.xpose.msra.mxu0 %v995
    %1959 = vmatprep.subr.bf16.mxu0 0
    %1960 = vmatpush1.bf16.xpose.msra.mxu0 0
    %1961 = vmatprep.subr.bf16.mxu0 0
    %1962 = vmatpush1.bf16.xpose.msra.mxu0 0
    %1963 = vmatprep.subr.bf16.mxu0 0
    %1964 = vmatpush1.bf16.xpose.msra.mxu0 0
    %1965 = vmatprep.subr.bf16.mxu0 0
    %1966 = vmatpush1.bf16.xpose.msra.mxu0 0
    %1967 = vmatprep.subr.bf16.mxu0 0
    %1968 = vmatpush1.bf16.xpose.msra.mxu0 0
    %1969 = vmatprep.subr.bf16.mxu0 0
    %1970 = vmatpush1.bf16.xpose.msra.mxu0 0
    %1971 = vmatprep.subr.bf16.mxu0 0
    %1972 = vmatpush1.bf16.xpose.msra.mxu0 0
    %1973 = vmatprep.subr.bf16.mxu0 0
    %1974 = vmatpush1.bf16.xpose.msra.mxu0 0
    %1975 = vmatprep.subr.bf16.mxu0 0
    %1976 = vmatpush1.bf16.xpose.msra.mxu0 0
    %1977 = vmatprep.subr.bf16.mxu0 0
    %1978 = vmatpush1.bf16.xpose.msra.mxu0 0
    %1979 = vmatprep.subr.bf16.mxu0 0
    %1980 = vmatpush1.bf16.xpose.msra.mxu0 0
    %1981 = vmatprep.subr.bf16.mxu0 0
    %1982 = vmatpush1.bf16.xpose.msra.mxu0 0
    %1983 = vmatprep.subr.bf16.mxu0 0
    %1984 = vmatpush1.bf16.xpose.msra.mxu0 0
    %1985 = vmatprep.subr.bf16.mxu0 0
    %1986 = vmatpush1.bf16.xpose.msra.mxu0 0
    %1987 = vmatprep.subr.bf16.mxu0 0
    %1988 = vmatpush1.bf16.xpose.msra.mxu0 0
    %1989 = vmatprep.mubr.bf16.mxu0 0
    %1990 = vmatmul.mubr.bf16.gmra.mrb[0].mxu0 %v1956
    %v1991 = vpop.f32.mrb[0].mxu0
    %v1992 = vadd.f32 0.0, %v1991
    %v1993 = vpop.f32.mrb[0].mxu0
    %v1994 = vpop.f32.mrb[0].mxu0
    %v1995 = vpop.f32.mrb[0].mxu0
    %1996 = vdwg.mxu0
    %v1997 = vsel %vm1797, %v1992, -inf
    %1998 = vmax.xlane.f32.xlu0 %v1997
    %v1999 = vpop.xlane.xlu0 %1998
    %v2000 = vsub.f32 %v1992, %v1999
    %v2001 = vmul.f32 %v2000, 1.442695
    %v2002 = vpow.pop %v2001
    %v2003 = vsel %vm1797, %v2002, 0.0
    %2004 = vadd.xlane.f32.xlu0 %v2003
    %v2005 = vpop.xlane.xlu0 %2004
    %v2006 = vrcp.pop %v2005
    %v2007 = vmul.f32 %v2002, %v2006
    %v2008 = vpack.c.bf16 %v2007, %v2007
    %v2010 = vsel %vm1797, %v2008, 0
    %v2013 = vsel %vm1813, %v999, 0
    %2015 = vmatprep.subr.bf16.mxu0 0
    %2016 = vmatpush1.bf16.msra.mxu0 %v2013
    %2017 = vmatprep.subr.bf16.mxu0 0
    %2018 = vmatpush1.bf16.msra.mxu0 0
    %2019 = vmatprep.subr.bf16.mxu0 0
    %2020 = vmatpush1.bf16.msra.mxu0 0
    %2021 = vmatprep.subr.bf16.mxu0 0
    %2022 = vmatpush1.bf16.msra.mxu0 0
    %2023 = vmatprep.subr.bf16.mxu0 0
    %2024 = vmatpush1.bf16.msra.mxu0 0
    %2025 = vmatprep.subr.bf16.mxu0 0
    %2026 = vmatpush1.bf16.msra.mxu0 0
    %2027 = vmatprep.subr.bf16.mxu0 0
    %2028 = vmatpush1.bf16.msra.mxu0 0
    %2029 = vmatprep.subr.bf16.mxu0 0
    %2030 = vmatpush1.bf16.msra.mxu0 0
    %2031 = vmatprep.subr.bf16.mxu0 0
    %2032 = vmatpush1.bf16.msra.mxu0 0
    %2033 = vmatprep.subr.bf16.mxu0 0
    %2034 = vmatpush1.bf16.msra.mxu0 0
    %2035 = vmatprep.subr.bf16.mxu0 0
    %2036 = vmatpush1.bf16.msra.mxu0 0
    %2037 = vmatprep.subr.bf16.mxu0 0
    %2038 = vmatpush1.bf16.msra.mxu0 0
    %2039 = vmatprep.subr.bf16.mxu0 0
    %2040 = vmatpush1.bf16.msra.mxu0 0
    %2041 = vmatprep.subr.bf16.mxu0 0
    %2042 = vmatpush1.bf16.msra.mxu0 0
    %2043 = vmatprep.subr.bf16.mxu0 0
    %2044 = vmatpush1.bf16.msra.mxu0 0
    %2045 = vmatprep.subr.bf16.mxu0 0
    %2046 = vmatpush1.bf16.msra.mxu0 0
    %2047 = vmatprep.mubr.bf16.mxu0 0
    %2048 = vmatmul.mubr.bf16.gmra.mrb[0].mxu0 %v2010
    %v2049 = vpop.f32.mrb[0].mxu0
    %v2050 = vadd.f32 0.0, %v2049
    %v2051 = vpop.f32.mrb[0].mxu0
    %v2052 = vpop.f32.mrb[0].mxu0
    %v2053 = vpop.f32.mrb[0].mxu0
    %2054 = vdwg.mxu0
    %v2055 = vpack.c.bf16 %v1752, %v1752
    %2056 = vmatprep.subr.bf16.mxu0 0
    %2057 = vmatpush1.bf16.xpose.msra.mxu0 %v996
    %2058 = vmatprep.subr.bf16.mxu0 0
    %2059 = vmatpush1.bf16.xpose.msra.mxu0 0
    %2060 = vmatprep.subr.bf16.mxu0 0
    %2061 = vmatpush1.bf16.xpose.msra.mxu0 0
    %2062 = vmatprep.subr.bf16.mxu0 0
    %2063 = vmatpush1.bf16.xpose.msra.mxu0 0
    %2064 = vmatprep.subr.bf16.mxu0 0
    %2065 = vmatpush1.bf16.xpose.msra.mxu0 0
    %2066 = vmatprep.subr.bf16.mxu0 0
    %2067 = vmatpush1.bf16.xpose.msra.mxu0 0
    %2068 = vmatprep.subr.bf16.mxu0 0
    %2069 = vmatpush1.bf16.xpose.msra.mxu0 0
    %2070 = vmatprep.subr.bf16.mxu0 0
    %2071 = vmatpush1.bf16.xpose.msra.mxu0 0
    %2072 = vmatprep.subr.bf16.mxu0 0
    %2073 = vmatpush1.bf16.xpose.msra.mxu0 0
    %2074 = vmatprep.subr.bf16.mxu0 0
    %2075 = vmatpush1.bf16.xpose.msra.mxu0 0
    %2076 = vmatprep.subr.bf16.mxu0 0
    %2077 = vmatpush1.bf16.xpose.msra.mxu0 0
    %2078 = vmatprep.subr.bf16.mxu0 0
    %2079 = vmatpush1.bf16.xpose.msra.mxu0 0
    %2080 = vmatprep.subr.bf16.mxu0 0
    %2081 = vmatpush1.bf16.xpose.msra.mxu0 0
    %2082 = vmatprep.subr.bf16.mxu0 0
    %2083 = vmatpush1.bf16.xpose.msra.mxu0 0
    %2084 = vmatprep.subr.bf16.mxu0 0
    %2085 = vmatpush1.bf16.xpose.msra.mxu0 0
    %2086 = vmatprep.subr.bf16.mxu0 0
    %2087 = vmatpush1.bf16.xpose.msra.mxu0 0
    %2088 = vmatprep.mubr.bf16.mxu0 0
    %2089 = vmatmul.mubr.bf16.gmra.mrb[0].mxu0 %v2055
    %v2090 = vpop.f32.mrb[0].mxu0
    %v2091 = vadd.f32 0.0, %v2090
    %v2092 = vpop.f32.mrb[0].mxu0
    %v2093 = vpop.f32.mrb[0].mxu0
    %v2094 = vpop.f32.mrb[0].mxu0
    %2095 = vdwg.mxu0
    %v2096 = vsel %vm1797, %v2091, -inf
    %2097 = vmax.xlane.f32.xlu0 %v2096
    %v2098 = vpop.xlane.xlu0 %2097
    %v2099 = vsub.f32 %v2091, %v2098
    %v2100 = vmul.f32 %v2099, 1.442695
    %v2101 = vpow.pop %v2100
    %v2102 = vsel %vm1797, %v2101, 0.0
    %2103 = vadd.xlane.f32.xlu0 %v2102
    %v2104 = vpop.xlane.xlu0 %2103
    %v2105 = vrcp.pop %v2104
    %v2106 = vmul.f32 %v2101, %v2105
    %v2107 = vpack.c.bf16 %v2106, %v2106
    %v2109 = vsel %vm1797, %v2107, 0
    %v2112 = vsel %vm1813, %v1000, 0
    %2114 = vmatprep.subr.bf16.mxu0 0
    %2115 = vmatpush1.bf16.msra.mxu0 %v2112
    %2116 = vmatprep.subr.bf16.mxu0 0
    %2117 = vmatpush1.bf16.msra.mxu0 0
    %2118 = vmatprep.subr.bf16.mxu0 0
    %2119 = vmatpush1.bf16.msra.mxu0 0
    %2120 = vmatprep.subr.bf16.mxu0 0
    %2121 = vmatpush1.bf16.msra.mxu0 0
    %2122 = vmatprep.subr.bf16.mxu0 0
    %2123 = vmatpush1.bf16.msra.mxu0 0
    %2124 = vmatprep.subr.bf16.mxu0 0
    %2125 = vmatpush1.bf16.msra.mxu0 0
    %2126 = vmatprep.subr.bf16.mxu0 0
    %2127 = vmatpush1.bf16.msra.mxu0 0
    %2128 = vmatprep.subr.bf16.mxu0 0
    %2129 = vmatpush1.bf16.msra.mxu0 0
    %2130 = vmatprep.subr.bf16.mxu0 0
    %2131 = vmatpush1.bf16.msra.mxu0 0
    %2132 = vmatprep.subr.bf16.mxu0 0
    %2133 = vmatpush1.bf16.msra.mxu0 0
    %2134 = vmatprep.subr.bf16.mxu0 0
    %2135 = vmatpush1.bf16.msra.mxu0 0
    %2136 = vmatprep.subr.bf16.mxu0 0
    %2137 = vmatpush1.bf16.msra.mxu0 0
    %2138 = vmatprep.subr.bf16.mxu0 0
    %2139 = vmatpush1.bf16.msra.mxu0 0
    %2140 = vmatprep.subr.bf16.mxu0 0
    %2141 = vmatpush1.bf16.msra.mxu0 0
    %2142 = vmatprep.subr.bf16.mxu0 0
    %2143 = vmatpush1.bf16.msra.mxu0 0
    %2144 = vmatprep.subr.bf16.mxu0 0
    %2145 = vmatpush1.bf16.msra.mxu0 0
    %2146 = vmatprep.mubr.bf16.mxu0 0
    %2147 = vmatmul.mubr.bf16.gmra.mrb[0].mxu0 %v2109
    %v2148 = vpop.f32.mrb[0].mxu0
    %v2149 = vadd.f32 0.0, %v2148
    %v2150 = vpop.f32.mrb[0].mxu0
    %v2151 = vpop.f32.mrb[0].mxu0
    %v2152 = vpop.f32.mrb[0].mxu0
    %2153 = vdwg.mxu0
    %v2154 = vpack.c.bf16 %v1852, %v1852
    %v2155 = vpack.c.bf16 %v1951, %v1951
    %v2156 = vpack.c.bf16 %v2050, %v2050
    %v2157 = vpack.c.bf16 %v2149, %v2149
    %v2159 = vlaneseq
    %v2160 = vshrl.u32 %v2159, 7
    %v2161 = vsub.s32 0, %v2160
    %v2162 = vrot.slane %v1098, %v2161
    %v2228 = vunpack.c.l.b16 %v1034
    %v2229 = vunpack.c.l.b16 %v1035
    %v2230 = vunpack.c.l.b16 %v1036
    %v2231 = vunpack.c.l.b16 %v1037
    %v2232 = vunpack.c.l.b16 %v1038
    %v2233 = vunpack.c.l.b16 %v1039
    %v2234 = vunpack.c.l.b16 %v1040
    %v2235 = vunpack.c.l.b16 %v1041
    %v2236 = vunpack.c.l.b16 %v1042
    %v2237 = vunpack.c.l.b16 %v1043
    %v2238 = vunpack.c.l.b16 %v1044
    %v2239 = vunpack.c.l.b16 %v1045
    %v2240 = vunpack.c.l.b16 %v1046
    %v2241 = vunpack.c.l.b16 %v1047
    %v2242 = vunpack.c.l.b16 %v1048
    %v2243 = vunpack.c.l.b16 %v1049
    %v2244 = vunpack.c.l.b16 %v1050
    %v2245 = vunpack.c.l.b16 %v1051
    %v2246 = vunpack.c.l.b16 %v1052
    %v2247 = vunpack.c.l.b16 %v1053
    %v2248 = vunpack.c.l.b16 %v1054
    %v2249 = vunpack.c.l.b16 %v1055
    %v2250 = vunpack.c.l.b16 %v1056
    %v2251 = vunpack.c.l.b16 %v1057
    %v2252 = vunpack.c.l.b16 %v1058
    %v2253 = vunpack.c.l.b16 %v1059
    %v2254 = vunpack.c.l.b16 %v1060
    %v2255 = vunpack.c.l.b16 %v1061
    %v2256 = vunpack.c.l.b16 %v1062
    %v2257 = vunpack.c.l.b16 %v1063
    %v2258 = vunpack.c.l.b16 %v1064
    %v2259 = vunpack.c.l.b16 %v1065
    %v2260 = vunpack.c.l.b16 %v1066
    %v2261 = vunpack.c.l.b16 %v1067
    %v2262 = vunpack.c.l.b16 %v1068
    %v2263 = vunpack.c.l.b16 %v1069
    %v2264 = vunpack.c.l.b16 %v1070
    %v2265 = vunpack.c.l.b16 %v1071
    %v2266 = vunpack.c.l.b16 %v1072
    %v2267 = vunpack.c.l.b16 %v1073
    %v2268 = vunpack.c.l.b16 %v1074
    %v2269 = vunpack.c.l.b16 %v1075
    %v2270 = vunpack.c.l.b16 %v1076
    %v2271 = vunpack.c.l.b16 %v1077
    %v2272 = vunpack.c.l.b16 %v1078
    %v2273 = vunpack.c.l.b16 %v1079
    %v2274 = vunpack.c.l.b16 %v1080
    %v2275 = vunpack.c.l.b16 %v1081
    %v2276 = vunpack.c.l.b16 %v1082
    %v2277 = vunpack.c.l.b16 %v1083
    %v2278 = vunpack.c.l.b16 %v1084
    %v2279 = vunpack.c.l.b16 %v1085
    %v2280 = vunpack.c.l.b16 %v1086
    %v2281 = vunpack.c.l.b16 %v1087
    %v2282 = vunpack.c.l.b16 %v1088
    %v2283 = vunpack.c.l.b16 %v1089
    %v2284 = vunpack.c.l.b16 %v1090
    %v2285 = vunpack.c.l.b16 %v1091
    %v2286 = vunpack.c.l.b16 %v1092
    %v2287 = vunpack.c.l.b16 %v1093
    %v2288 = vunpack.c.l.b16 %v1094
    %v2289 = vunpack.c.l.b16 %v1095
    %v2290 = vunpack.c.l.b16 %v1096
    %v2291 = vunpack.c.l.b16 %v1097
    %v2292 = vpack.c.b16 %v2229, %v2228
    %v2293 = vpack.c.b16 %v2231, %v2230
    %v2294 = vpack.c.b16 %v2233, %v2232
    %v2295 = vpack.c.b16 %v2235, %v2234
    %v2296 = vpack.c.b16 %v2237, %v2236
    %v2297 = vpack.c.b16 %v2239, %v2238
    %v2298 = vpack.c.b16 %v2241, %v2240
    %v2299 = vpack.c.b16 %v2243, %v2242
    %v2300 = vpack.c.b16 %v2245, %v2244
    %v2301 = vpack.c.b16 %v2247, %v2246
    %v2302 = vpack.c.b16 %v2249, %v2248
    %v2303 = vpack.c.b16 %v2251, %v2250
    %v2304 = vpack.c.b16 %v2253, %v2252
    %v2305 = vpack.c.b16 %v2255, %v2254
    %v2306 = vpack.c.b16 %v2257, %v2256
    %v2307 = vpack.c.b16 %v2259, %v2258
    %v2308 = vpack.c.b16 %v2261, %v2260
    %v2309 = vpack.c.b16 %v2263, %v2262
    %v2310 = vpack.c.b16 %v2265, %v2264
    %v2311 = vpack.c.b16 %v2267, %v2266
    %v2312 = vpack.c.b16 %v2269, %v2268
    %v2313 = vpack.c.b16 %v2271, %v2270
    %v2314 = vpack.c.b16 %v2273, %v2272
    %v2315 = vpack.c.b16 %v2275, %v2274
    %v2316 = vpack.c.b16 %v2277, %v2276
    %v2317 = vpack.c.b16 %v2279, %v2278
    %v2318 = vpack.c.b16 %v2281, %v2280
    %v2319 = vpack.c.b16 %v2283, %v2282
    %v2320 = vpack.c.b16 %v2285, %v2284
    %v2321 = vpack.c.b16 %v2287, %v2286
    %v2322 = vpack.c.b16 %v2289, %v2288
    %v2323 = vpack.c.b16 %v2291, %v2290
    %2356 = vmatprep.subr.bf16.mxu0 0
    %2357 = vmatpush1.bf16.msra.mxu0 %v2292
    %2358 = vmatprep.subr.bf16.mxu0 0
    %2359 = vmatpush1.bf16.msra.mxu0 %v2293
    %2360 = vmatprep.subr.bf16.mxu0 0
    %2361 = vmatpush1.bf16.msra.mxu0 %v2294
    %2362 = vmatprep.subr.bf16.mxu0 0
    %2363 = vmatpush1.bf16.msra.mxu0 %v2295
    %2364 = vmatprep.subr.bf16.mxu0 0
    %2365 = vmatpush1.bf16.msra.mxu0 %v2296
    %2366 = vmatprep.subr.bf16.mxu0 0
    %2367 = vmatpush1.bf16.msra.mxu0 %v2297
    %2368 = vmatprep.subr.bf16.mxu0 0
    %2369 = vmatpush1.bf16.msra.mxu0 %v2298
    %2370 = vmatprep.subr.bf16.mxu0 0
    %2371 = vmatpush1.bf16.msra.mxu0 %v2299
    %2372 = vmatprep.subr.bf16.mxu0 0
    %2373 = vmatpush1.bf16.msra.mxu0 %v2300
    %2374 = vmatprep.subr.bf16.mxu0 0
    %2375 = vmatpush1.bf16.msra.mxu0 %v2301
    %2376 = vmatprep.subr.bf16.mxu0 0
    %2377 = vmatpush1.bf16.msra.mxu0 %v2302
    %2378 = vmatprep.subr.bf16.mxu0 0
    %2379 = vmatpush1.bf16.msra.mxu0 %v2303
    %2380 = vmatprep.subr.bf16.mxu0 0
    %2381 = vmatpush1.bf16.msra.mxu0 %v2304
    %2382 = vmatprep.subr.bf16.mxu0 0
    %2383 = vmatpush1.bf16.msra.mxu0 %v2305
    %2384 = vmatprep.subr.bf16.mxu0 0
    %2385 = vmatpush1.bf16.msra.mxu0 %v2306
    %2386 = vmatprep.subr.bf16.mxu0 0
    %2387 = vmatpush1.bf16.msra.mxu0 %v2307
    %2388 = vmatprep.mubr.bf16.mxu0 %v2155
    %2389 = vmatmul.mubr.bf16.gmra.mrb[0].mxu0 %v2154
    %v2390 = vpop.f32.mrb[0].mxu0
    %v2391 = vadd.f32 %v2162, %v2390
    %v2392 = vpop.f32.mrb[0].mxu0
    %v2393 = vpop.f32.mrb[0].mxu0
    %v2394 = vpop.f32.mrb[0].mxu0
    %2395 = vdwg.mxu0
    %2396 = vmatprep.subr.bf16.mxu0 0
    %2397 = vmatpush1.bf16.msra.mxu0 %v2308
    %2398 = vmatprep.subr.bf16.mxu0 0
    %2399 = vmatpush1.bf16.msra.mxu0 %v2309
    %2400 = vmatprep.subr.bf16.mxu0 0
    %2401 = vmatpush1.bf16.msra.mxu0 %v2310
    %2402 = vmatprep.subr.bf16.mxu0 0
    %2403 = vmatpush1.bf16.msra.mxu0 %v2311
    %2404 = vmatprep.subr.bf16.mxu0 0
    %2405 = vmatpush1.bf16.msra.mxu0 %v2312
    %2406 = vmatprep.subr.bf16.mxu0 0
    %2407 = vmatpush1.bf16.msra.mxu0 %v2313
    %2408 = vmatprep.subr.bf16.mxu0 0
    %2409 = vmatpush1.bf16.msra.mxu0 %v2314
    %2410 = vmatprep.subr.bf16.mxu0 0
    %2411 = vmatpush1.bf16.msra.mxu0 %v2315
    %2412 = vmatprep.subr.bf16.mxu0 0
    %2413 = vmatpush1.bf16.msra.mxu0 %v2316
    %2414 = vmatprep.subr.bf16.mxu0 0
    %2415 = vmatpush1.bf16.msra.mxu0 %v2317
    %2416 = vmatprep.subr.bf16.mxu0 0
    %2417 = vmatpush1.bf16.msra.mxu0 %v2318
    %2418 = vmatprep.subr.bf16.mxu0 0
    %2419 = vmatpush1.bf16.msra.mxu0 %v2319
    %2420 = vmatprep.subr.bf16.mxu0 0
    %2421 = vmatpush1.bf16.msra.mxu0 %v2320
    %2422 = vmatprep.subr.bf16.mxu0 0
    %2423 = vmatpush1.bf16.msra.mxu0 %v2321
    %2424 = vmatprep.subr.bf16.mxu0 0
    %2425 = vmatpush1.bf16.msra.mxu0 %v2322
    %2426 = vmatprep.subr.bf16.mxu0 0
    %2427 = vmatpush1.bf16.msra.mxu0 %v2323
    %2428 = vmatprep.mubr.bf16.mxu0 %v2157
    %2429 = vmatmul.mubr.bf16.gmra.mrb[0].mxu0 %v2156
    %v2430 = vpop.f32.mrb[0].mxu0
    %v2431 = vadd.f32 %v2391, %v2430
    %v2432 = vpop.f32.mrb[0].mxu0
    %v2433 = vpop.f32.mrb[0].mxu0
    %v2434 = vpop.f32.mrb[0].mxu0
    %2435 = vdwg.mxu0
    %v2436 = vadd.f32 %v397, %v2431
    %2437 = vadd.xlane.f32.xlu0 %v2436
    %v2438 = vpop.xlane.xlu0 %2437
    %v2439 = vmul.f32 %v2438, 0.03125
    %v2440 = vsub.f32 %v2436, %v2439
    %v2441 = vsel %vm1492, 1, 0
    %vm2442 = vcmp.eq.s32.totalorder %v2441, 1
    %v2443 = vsel %vm2442, %v2440, 0.0
    %v2444 = vmul.f32 %v2443, %v2443
    %2445 = vadd.xlane.f32.xlu0 %v2444
    %v2446 = vpop.xlane.xlu0 %2445
    %v2447 = vmul.f32 %v2446, 0.03125
    %v2448 = vadd.f32 %v2447, 1e-05
    %v2449 = vrsqrt.pop %v2448
    %v2450 = vmul.f32 %v2443, %v2449
    %v2452 = vlaneseq
    %v2453 = vshrl.u32 %v2452, 7
    %v2454 = vsub.s32 0, %v2453
    %v2455 = vrot.slane %v1486, %v2454
    %v2457 = vmul.f32 %v2450, %v2455
    %v2459 = vlaneseq
    %v2460 = vshrl.u32 %v2459, 7
    %v2461 = vsub.s32 0, %v2460
    %v2462 = vrot.slane %v1487, %v2461
    %v2464 = vadd.f32 %v2457, %v2462
    %v2465 = vpack.c.bf16 %v2464, %v2464
    %v2468 = vlaneseq
    %v2469 = vshrl.u32 %v2468, 7
    %v2470 = vsub.s32 0, %v2469
    %v2471 = vrot.slane %v1227, %v2470
    %v2472 = vlaneseq
    %v2473 = vshrl.u32 %v2472, 7
    %v2474 = vsub.s32 1, %v2473
    %v2475 = vrot.slane %v1227, %v2474
    %v2476 = vlaneseq
    %v2477 = vshrl.u32 %v2476, 7
    %v2478 = vsub.s32 2, %v2477
    %v2479 = vrot.slane %v1227, %v2478
    %v2480 = vlaneseq
    %v2481 = vshrl.u32 %v2480, 7
    %v2482 = vsub.s32 3, %v2481
    %v2483 = vrot.slane %v1227, %v2482
    %v2484 = vlaneseq
    %v2485 = vshrl.u32 %v2484, 7
    %v2486 = vsub.s32 4, %v2485
    %v2487 = vrot.slane %v1227, %v2486
    %v2488 = vlaneseq
    %v2489 = vshrl.u32 %v2488, 7
    %v2490 = vsub.s32 5, %v2489
    %v2491 = vrot.slane %v1227, %v2490
    %v2492 = vlaneseq
    %v2493 = vshrl.u32 %v2492, 7
    %v2494 = vsub.s32 6, %v2493
    %v2495 = vrot.slane %v1227, %v2494
    %v2496 = vlaneseq
    %v2497 = vshrl.u32 %v2496, 7
    %v2498 = vsub.s32 7, %v2497
    %v2499 = vrot.slane %v1227, %v2498
    %v2500 = vlaneseq
    %v2501 = vshrl.u32 %v2500, 7
    %v2502 = vsub.s32 0, %v2501
    %v2503 = vrot.slane %v1228, %v2502
    %v2504 = vlaneseq
    %v2505 = vshrl.u32 %v2504, 7
    %v2506 = vsub.s32 1, %v2505
    %v2507 = vrot.slane %v1228, %v2506
    %v2508 = vlaneseq
    %v2509 = vshrl.u32 %v2508, 7
    %v2510 = vsub.s32 2, %v2509
    %v2511 = vrot.slane %v1228, %v2510
    %v2512 = vlaneseq
    %v2513 = vshrl.u32 %v2512, 7
    %v2514 = vsub.s32 3, %v2513
    %v2515 = vrot.slane %v1228, %v2514
    %v2516 = vlaneseq
    %v2517 = vshrl.u32 %v2516, 7
    %v2518 = vsub.s32 4, %v2517
    %v2519 = vrot.slane %v1228, %v2518
    %v2520 = vlaneseq
    %v2521 = vshrl.u32 %v2520, 7
    %v2522 = vsub.s32 5, %v2521
    %v2523 = vrot.slane %v1228, %v2522
    %v2524 = vlaneseq
    %v2525 = vshrl.u32 %v2524, 7
    %v2526 = vsub.s32 6, %v2525
    %v2527 = vrot.slane %v1228, %v2526
    %v2528 = vlaneseq
    %v2529 = vshrl.u32 %v2528, 7
    %v2530 = vsub.s32 7, %v2529
    %v2531 = vrot.slane %v1228, %v2530
    %v2676 = vunpack.c.l.b16 %v1099
    %v2677 = vunpack.c.h.b16 %v1099
    %v2678 = vunpack.c.l.b16 %v1100
    %v2679 = vunpack.c.h.b16 %v1100
    %v2680 = vunpack.c.l.b16 %v1101
    %v2681 = vunpack.c.h.b16 %v1101
    %v2682 = vunpack.c.l.b16 %v1102
    %v2683 = vunpack.c.h.b16 %v1102
    %v2684 = vunpack.c.l.b16 %v1103
    %v2685 = vunpack.c.h.b16 %v1103
    %v2686 = vunpack.c.l.b16 %v1104
    %v2687 = vunpack.c.h.b16 %v1104
    %v2688 = vunpack.c.l.b16 %v1105
    %v2689 = vunpack.c.h.b16 %v1105
    %v2690 = vunpack.c.l.b16 %v1106
    %v2691 = vunpack.c.h.b16 %v1106
    %v2692 = vunpack.c.l.b16 %v1107
    %v2693 = vunpack.c.h.b16 %v1107
    %v2694 = vunpack.c.l.b16 %v1108
    %v2695 = vunpack.c.h.b16 %v1108
    %v2696 = vunpack.c.l.b16 %v1109
    %v2697 = vunpack.c.h.b16 %v1109
    %v2698 = vunpack.c.l.b16 %v1110
    %v2699 = vunpack.c.h.b16 %v1110
    %v2700 = vunpack.c.l.b16 %v1111
    %v2701 = vunpack.c.h.b16 %v1111
    %v2702 = vunpack.c.l.b16 %v1112
    %v2703 = vunpack.c.h.b16 %v1112
    %v2704 = vunpack.c.l.b16 %v1113
    %v2705 = vunpack.c.h.b16 %v1113
    %v2706 = vunpack.c.l.b16 %v1114
    %v2707 = vunpack.c.h.b16 %v1114
    %v2708 = vunpack.c.l.b16 %v1115
    %v2709 = vunpack.c.h.b16 %v1115
    %v2710 = vunpack.c.l.b16 %v1116
    %v2711 = vunpack.c.h.b16 %v1116
    %v2712 = vunpack.c.l.b16 %v1117
    %v2713 = vunpack.c.h.b16 %v1117
    %v2714 = vunpack.c.l.b16 %v1118
    %v2715 = vunpack.c.h.b16 %v1118
    %v2716 = vunpack.c.l.b16 %v1119
    %v2717 = vunpack.c.h.b16 %v1119
    %v2718 = vunpack.c.l.b16 %v1120
    %v2719 = vunpack.c.h.b16 %v1120
    %v2720 = vunpack.c.l.b16 %v1121
    %v2721 = vunpack.c.h.b16 %v1121
    %v2722 = vunpack.c.l.b16 %v1122
    %v2723 = vunpack.c.h.b16 %v1122
    %v2724 = vunpack.c.l.b16 %v1123
    %v2725 = vunpack.c.h.b16 %v1123
    %v2726 = vunpack.c.l.b16 %v1124
    %v2727 = vunpack.c.h.b16 %v1124
    %v2728 = vunpack.c.l.b16 %v1125
    %v2729 = vunpack.c.h.b16 %v1125
    %v2730 = vunpack.c.l.b16 %v1126
    %v2731 = vunpack.c.h.b16 %v1126
    %v2732 = vunpack.c.l.b16 %v1127
    %v2733 = vunpack.c.h.b16 %v1127
    %v2734 = vunpack.c.l.b16 %v1128
    %v2735 = vunpack.c.h.b16 %v1128
    %v2736 = vunpack.c.l.b16 %v1129
    %v2737 = vunpack.c.h.b16 %v1129
    %v2738 = vunpack.c.l.b16 %v1130
    %v2739 = vunpack.c.h.b16 %v1130
    %v2740 = vunpack.c.l.b16 %v1131
    %v2741 = vunpack.c.h.b16 %v1131
    %v2742 = vunpack.c.l.b16 %v1132
    %v2743 = vunpack.c.h.b16 %v1132
    %v2744 = vunpack.c.l.b16 %v1133
    %v2745 = vunpack.c.h.b16 %v1133
    %v2746 = vunpack.c.l.b16 %v1134
    %v2747 = vunpack.c.h.b16 %v1134
    %v2748 = vunpack.c.l.b16 %v1135
    %v2749 = vunpack.c.h.b16 %v1135
    %v2750 = vunpack.c.l.b16 %v1136
    %v2751 = vunpack.c.h.b16 %v1136
    %v2752 = vunpack.c.l.b16 %v1137
    %v2753 = vunpack.c.h.b16 %v1137
    %v2754 = vunpack.c.l.b16 %v1138
    %v2755 = vunpack.c.h.b16 %v1138
    %v2756 = vunpack.c.l.b16 %v1139
    %v2757 = vunpack.c.h.b16 %v1139
    %v2758 = vunpack.c.l.b16 %v1140
    %v2759 = vunpack.c.h.b16 %v1140
    %v2760 = vunpack.c.l.b16 %v1141
    %v2761 = vunpack.c.h.b16 %v1141
    %v2762 = vunpack.c.l.b16 %v1142
    %v2763 = vunpack.c.h.b16 %v1142
    %v2764 = vunpack.c.l.b16 %v1143
    %v2765 = vunpack.c.h.b16 %v1143
    %v2766 = vunpack.c.l.b16 %v1144
    %v2767 = vunpack.c.h.b16 %v1144
    %v2768 = vunpack.c.l.b16 %v1145
    %v2769 = vunpack.c.h.b16 %v1145
    %v2770 = vunpack.c.l.b16 %v1146
    %v2771 = vunpack.c.h.b16 %v1146
    %v2772 = vunpack.c.l.b16 %v1147
    %v2773 = vunpack.c.h.b16 %v1147
    %v2774 = vunpack.c.l.b16 %v1148
    %v2775 = vunpack.c.h.b16 %v1148
    %v2776 = vunpack.c.l.b16 %v1149
    %v2777 = vunpack.c.h.b16 %v1149
    %v2778 = vunpack.c.l.b16 %v1150
    %v2779 = vunpack.c.h.b16 %v1150
    %v2780 = vunpack.c.l.b16 %v1151
    %v2781 = vunpack.c.h.b16 %v1151
    %v2782 = vunpack.c.l.b16 %v1152
    %v2783 = vunpack.c.h.b16 %v1152
    %v2784 = vunpack.c.l.b16 %v1153
    %v2785 = vunpack.c.h.b16 %v1153
    %v2786 = vunpack.c.l.b16 %v1154
    %v2787 = vunpack.c.h.b16 %v1154
    %v2788 = vunpack.c.l.b16 %v1155
    %v2789 = vunpack.c.h.b16 %v1155
    %v2790 = vunpack.c.l.b16 %v1156
    %v2791 = vunpack.c.h.b16 %v1156
    %v2792 = vunpack.c.l.b16 %v1157
    %v2793 = vunpack.c.h.b16 %v1157
    %v2794 = vunpack.c.l.b16 %v1158
    %v2795 = vunpack.c.h.b16 %v1158
    %v2796 = vunpack.c.l.b16 %v1159
    %v2797 = vunpack.c.h.b16 %v1159
    %v2798 = vunpack.c.l.b16 %v1160
    %v2799 = vunpack.c.h.b16 %v1160
    %v2800 = vunpack.c.l.b16 %v1161
    %v2801 = vunpack.c.h.b16 %v1161
    %v2802 = vunpack.c.l.b16 %v1162
    %v2803 = vunpack.c.h.b16 %v1162
    %v2804 = vunpack.c.l.b16 %v1163
    %v2805 = vunpack.c.h.b16 %v1163
    %v2806 = vunpack.c.l.b16 %v1164
    %v2807 = vunpack.c.h.b16 %v1164
    %v2808 = vunpack.c.l.b16 %v1165
    %v2809 = vunpack.c.h.b16 %v1165
    %v2810 = vunpack.c.l.b16 %v1166
    %v2811 = vunpack.c.h.b16 %v1166
    %v2812 = vunpack.c.l.b16 %v1167
    %v2813 = vunpack.c.h.b16 %v1167
    %v2814 = vunpack.c.l.b16 %v1168
    %v2815 = vunpack.c.h.b16 %v1168
    %v2816 = vunpack.c.l.b16 %v1169
    %v2817 = vunpack.c.h.b16 %v1169
    %v2818 = vunpack.c.l.b16 %v1170
    %v2819 = vunpack.c.h.b16 %v1170
    %v2820 = vunpack.c.l.b16 %v1171
    %v2821 = vunpack.c.h.b16 %v1171
    %v2822 = vunpack.c.l.b16 %v1172
    %v2823 = vunpack.c.h.b16 %v1172
    %v2824 = vunpack.c.l.b16 %v1173
    %v2825 = vunpack.c.h.b16 %v1173
    %v2826 = vunpack.c.l.b16 %v1174
    %v2827 = vunpack.c.h.b16 %v1174
    %v2828 = vunpack.c.l.b16 %v1175
    %v2829 = vunpack.c.h.b16 %v1175
    %v2830 = vunpack.c.l.b16 %v1176
    %v2831 = vunpack.c.h.b16 %v1176
    %v2832 = vunpack.c.l.b16 %v1177
    %v2833 = vunpack.c.h.b16 %v1177
    %v2834 = vunpack.c.l.b16 %v1178
    %v2835 = vunpack.c.h.b16 %v1178
    %v2836 = vunpack.c.l.b16 %v1179
    %v2837 = vunpack.c.h.b16 %v1179
    %v2838 = vunpack.c.l.b16 %v1180
    %v2839 = vunpack.c.h.b16 %v1180
    %v2840 = vunpack.c.l.b16 %v1181
    %v2841 = vunpack.c.h.b16 %v1181
    %v2842 = vunpack.c.l.b16 %v1182
    %v2843 = vunpack.c.h.b16 %v1182
    %v2844 = vunpack.c.l.b16 %v1183
    %v2845 = vunpack.c.h.b16 %v1183
    %v2846 = vunpack.c.l.b16 %v1184
    %v2847 = vunpack.c.h.b16 %v1184
    %v2848 = vunpack.c.l.b16 %v1185
    %v2849 = vunpack.c.h.b16 %v1185
    %v2850 = vunpack.c.l.b16 %v1186
    %v2851 = vunpack.c.h.b16 %v1186
    %v2852 = vunpack.c.l.b16 %v1187
    %v2853 = vunpack.c.h.b16 %v1187
    %v2854 = vunpack.c.l.b16 %v1188
    %v2855 = vunpack.c.h.b16 %v1188
    %v2856 = vunpack.c.l.b16 %v1189
    %v2857 = vunpack.c.h.b16 %v1189
    %v2858 = vunpack.c.l.b16 %v1190
    %v2859 = vunpack.c.h.b16 %v1190
    %v2860 = vunpack.c.l.b16 %v1191
    %v2861 = vunpack.c.h.b16 %v1191
    %v2862 = vunpack.c.l.b16 %v1192
    %v2863 = vunpack.c.h.b16 %v1192
    %v2864 = vunpack.c.l.b16 %v1193
    %v2865 = vunpack.c.h.b16 %v1193
    %v2866 = vunpack.c.l.b16 %v1194
    %v2867 = vunpack.c.h.b16 %v1194
    %v2868 = vunpack.c.l.b16 %v1195
    %v2869 = vunpack.c.h.b16 %v1195
    %v2870 = vunpack.c.l.b16 %v1196
    %v2871 = vunpack.c.h.b16 %v1196
    %v2872 = vunpack.c.l.b16 %v1197
    %v2873 = vunpack.c.h.b16 %v1197
    %v2874 = vunpack.c.l.b16 %v1198
    %v2875 = vunpack.c.h.b16 %v1198
    %v2876 = vunpack.c.l.b16 %v1199
    %v2877 = vunpack.c.h.b16 %v1199
    %v2878 = vunpack.c.l.b16 %v1200
    %v2879 = vunpack.c.h.b16 %v1200
    %v2880 = vunpack.c.l.b16 %v1201
    %v2881 = vunpack.c.h.b16 %v1201
    %v2882 = vunpack.c.l.b16 %v1202
    %v2883 = vunpack.c.h.b16 %v1202
    %v2884 = vunpack.c.l.b16 %v1203
    %v2885 = vunpack.c.h.b16 %v1203
    %v2886 = vunpack.c.l.b16 %v1204
    %v2887 = vunpack.c.h.b16 %v1204
    %v2888 = vunpack.c.l.b16 %v1205
    %v2889 = vunpack.c.h.b16 %v1205
    %v2890 = vunpack.c.l.b16 %v1206
    %v2891 = vunpack.c.h.b16 %v1206
    %v2892 = vunpack.c.l.b16 %v1207
    %v2893 = vunpack.c.h.b16 %v1207
    %v2894 = vunpack.c.l.b16 %v1208
    %v2895 = vunpack.c.h.b16 %v1208
    %v2896 = vunpack.c.l.b16 %v1209
    %v2897 = vunpack.c.h.b16 %v1209
    %v2898 = vunpack.c.l.b16 %v1210
    %v2899 = vunpack.c.h.b16 %v1210
    %v2900 = vunpack.c.l.b16 %v1211
    %v2901 = vunpack.c.h.b16 %v1211
    %v2902 = vunpack.c.l.b16 %v1212
    %v2903 = vunpack.c.h.b16 %v1212
    %v2904 = vunpack.c.l.b16 %v1213
    %v2905 = vunpack.c.h.b16 %v1213
    %v2906 = vunpack.c.l.b16 %v1214
    %v2907 = vunpack.c.h.b16 %v1214
    %v2908 = vunpack.c.l.b16 %v1215
    %v2909 = vunpack.c.h.b16 %v1215
    %v2910 = vunpack.c.l.b16 %v1216
    %v2911 = vunpack.c.h.b16 %v1216
    %v2912 = vunpack.c.l.b16 %v1217
    %v2913 = vunpack.c.h.b16 %v1217
    %v2914 = vunpack.c.l.b16 %v1218
    %v2915 = vunpack.c.h.b16 %v1218
    %v2916 = vunpack.c.l.b16 %v1219
    %v2917 = vunpack.c.h.b16 %v1219
    %v2918 = vunpack.c.l.b16 %v1220
    %v2919 = vunpack.c.h.b16 %v1220
    %v2920 = vunpack.c.l.b16 %v1221
    %v2921 = vunpack.c.h.b16 %v1221
    %v2922 = vunpack.c.l.b16 %v1222
    %v2923 = vunpack.c.h.b16 %v1222
    %v2924 = vunpack.c.l.b16 %v1223
    %v2925 = vunpack.c.h.b16 %v1223
    %v2926 = vunpack.c.l.b16 %v1224
    %v2927 = vunpack.c.h.b16 %v1224
    %v2928 = vunpack.c.l.b16 %v1225
    %v2929 = vunpack.c.h.b16 %v1225
    %v2930 = vunpack.c.l.b16 %v1226
    %v2931 = vunpack.c.h.b16 %v1226
    %v2932 = vpack.c.b16 %v2692, %v2676
    %v2933 = vpack.c.b16 %v2693, %v2677
    %v2934 = vpack.c.b16 %v2694, %v2678
    %v2935 = vpack.c.b16 %v2695, %v2679
    %v2936 = vpack.c.b16 %v2696, %v2680
    %v2937 = vpack.c.b16 %v2697, %v2681
    %v2938 = vpack.c.b16 %v2698, %v2682
    %v2939 = vpack.c.b16 %v2699, %v2683
    %v2940 = vpack.c.b16 %v2700, %v2684
    %v2941 = vpack.c.b16 %v2701, %v2685
    %v2942 = vpack.c.b16 %v2702, %v2686
    %v2943 = vpack.c.b16 %v2703, %v2687
    %v2944 = vpack.c.b16 %v2704, %v2688
    %v2945 = vpack.c.b16 %v2705, %v2689
    %v2946 = vpack.c.b16 %v2706, %v2690
    %v2947 = vpack.c.b16 %v2707, %v2691
    %v2948 = vpack.c.b16 %v2724, %v2708
    %v2949 = vpack.c.b16 %v2725, %v2709
    %v2950 = vpack.c.b16 %v2726, %v2710
    %v2951 = vpack.c.b16 %v2727, %v2711
    %v2952 = vpack.c.b16 %v2728, %v2712
    %v2953 = vpack.c.b16 %v2729, %v2713
    %v2954 = vpack.c.b16 %v2730, %v2714
    %v2955 = vpack.c.b16 %v2731, %v2715
    %v2956 = vpack.c.b16 %v2732, %v2716
    %v2957 = vpack.c.b16 %v2733, %v2717
    %v2958 = vpack.c.b16 %v2734, %v2718
    %v2959 = vpack.c.b16 %v2735, %v2719
    %v2960 = vpack.c.b16 %v2736, %v2720
    %v2961 = vpack.c.b16 %v2737, %v2721
    %v2962 = vpack.c.b16 %v2738, %v2722
    %v2963 = vpack.c.b16 %v2739, %v2723
    %v2964 = vpack.c.b16 %v2756, %v2740
    %v2965 = vpack.c.b16 %v2757, %v2741
    %v2966 = vpack.c.b16 %v2758, %v2742
    %v2967 = vpack.c.b16 %v2759, %v2743
    %v2968 = vpack.c.b16 %v2760, %v2744
    %v2969 = vpack.c.b16 %v2761, %v2745
    %v2970 = vpack.c.b16 %v2762, %v2746
    %v2971 = vpack.c.b16 %v2763, %v2747
    %v2972 = vpack.c.b16 %v2764, %v2748
    %v2973 = vpack.c.b16 %v2765, %v2749
    %v2974 = vpack.c.b16 %v2766, %v2750
    %v2975 = vpack.c.b16 %v2767, %v2751
    %v2976 = vpack.c.b16 %v2768, %v2752
    %v2977 = vpack.c.b16 %v2769, %v2753
    %v2978 = vpack.c.b16 %v2770, %v2754
    %v2979 = vpack.c.b16 %v2771, %v2755
    %v2980 = vpack.c.b16 %v2788, %v2772
    %v2981 = vpack.c.b16 %v2789, %v2773
    %v2982 = vpack.c.b16 %v2790, %v2774
    %v2983 = vpack.c.b16 %v2791, %v2775
    %v2984 = vpack.c.b16 %v2792, %v2776
    %v2985 = vpack.c.b16 %v2793, %v2777
    %v2986 = vpack.c.b16 %v2794, %v2778
    %v2987 = vpack.c.b16 %v2795, %v2779
    %v2988 = vpack.c.b16 %v2796, %v2780
    %v2989 = vpack.c.b16 %v2797, %v2781
    %v2990 = vpack.c.b16 %v2798, %v2782
    %v2991 = vpack.c.b16 %v2799, %v2783
    %v2992 = vpack.c.b16 %v2800, %v2784
    %v2993 = vpack.c.b16 %v2801, %v2785
    %v2994 = vpack.c.b16 %v2802, %v2786
    %v2995 = vpack.c.b16 %v2803, %v2787
    %v2996 = vpack.c.b16 %v2820, %v2804
    %v2997 = vpack.c.b16 %v2821, %v2805
    %v2998 = vpack.c.b16 %v2822, %v2806
    %v2999 = vpack.c.b16 %v2823, %v2807
    %v3000 = vpack.c.b16 %v2824, %v2808
    %v3001 = vpack.c.b16 %v2825, %v2809
    %v3002 = vpack.c.b16 %v2826, %v2810
    %v3003 = vpack.c.b16 %v2827, %v2811
    %v3004 = vpack.c.b16 %v2828, %v2812
    %v3005 = vpack.c.b16 %v2829, %v2813
    %v3006 = vpack.c.b16 %v2830, %v2814
    %v3007 = vpack.c.b16 %v2831, %v2815
    %v3008 = vpack.c.b16 %v2832, %v2816
    %v3009 = vpack.c.b16 %v2833, %v2817
    %v3010 = vpack.c.b16 %v2834, %v2818
    %v3011 = vpack.c.b16 %v2835, %v2819
    %v3012 = vpack.c.b16 %v2852, %v2836
    %v3013 = vpack.c.b16 %v2853, %v2837
    %v3014 = vpack.c.b16 %v2854, %v2838
    %v3015 = vpack.c.b16 %v2855, %v2839
    %v3016 = vpack.c.b16 %v2856, %v2840
    %v3017 = vpack.c.b16 %v2857, %v2841
    %v3018 = vpack.c.b16 %v2858, %v2842
    %v3019 = vpack.c.b16 %v2859, %v2843
    %v3020 = vpack.c.b16 %v2860, %v2844
    %v3021 = vpack.c.b16 %v2861, %v2845
    %v3022 = vpack.c.b16 %v2862, %v2846
    %v3023 = vpack.c.b16 %v2863, %v2847
    %v3024 = vpack.c.b16 %v2864, %v2848
    %v3025 = vpack.c.b16 %v2865, %v2849
    %v3026 = vpack.c.b16 %v2866, %v2850
    %v3027 = vpack.c.b16 %v2867, %v2851
    %v3028 = vpack.c.b16 %v2884, %v2868
    %v3029 = vpack.c.b16 %v2885, %v2869
    %v3030 = vpack.c.b16 %v2886, %v2870
    %v3031 = vpack.c.b16 %v2887, %v2871
    %v3032 = vpack.c.b16 %v2888, %v2872
    %v3033 = vpack.c.b16 %v2889, %v2873
    %v3034 = vpack.c.b16 %v2890, %v2874
    %v3035 = vpack.c.b16 %v2891, %v2875
    %v3036 = vpack.c.b16 %v2892, %v2876
    %v3037 = vpack.c.b16 %v2893, %v2877
    %v3038 = vpack.c.b16 %v2894, %v2878
    %v3039 = vpack.c.b16 %v2895, %v2879
    %v3040 = vpack.c.b16 %v2896, %v2880
    %v3041 = vpack.c.b16 %v2897, %v2881
    %v3042 = vpack.c.b16 %v2898, %v2882
    %v3043 = vpack.c.b16 %v2899, %v2883
    %v3044 = vpack.c.b16 %v2916, %v2900
    %v3045 = vpack.c.b16 %v2917, %v2901
    %v3046 = vpack.c.b16 %v2918, %v2902
    %v3047 = vpack.c.b16 %v2919, %v2903
    %v3048 = vpack.c.b16 %v2920, %v2904
    %v3049 = vpack.c.b16 %v2921, %v2905
    %v3050 = vpack.c.b16 %v2922, %v2906
    %v3051 = vpack.c.b16 %v2923, %v2907
    %v3052 = vpack.c.b16 %v2924, %v2908
    %v3053 = vpack.c.b16 %v2925, %v2909
    %v3054 = vpack.c.b16 %v2926, %v2910
    %v3055 = vpack.c.b16 %v2927, %v2911
    %v3056 = vpack.c.b16 %v2928, %v2912
    %v3057 = vpack.c.b16 %v2929, %v2913
    %v3058 = vpack.c.b16 %v2930, %v2914
    %v3059 = vpack.c.b16 %v2931, %v2915
    %3188 = vmatprep.subr.bf16.mxu0 %v2933
    %3189 = vmatpush1.bf16.msra.mxu0 %v2932
    %3190 = vmatprep.subr.bf16.mxu0 %v2949
    %3191 = vmatpush1.bf16.msra.mxu0 %v2948
    %3192 = vmatprep.subr.bf16.mxu0 %v2965
    %3193 = vmatpush1.bf16.msra.mxu0 %v2964
    %3194 = vmatprep.subr.bf16.mxu0 %v2981
    %3195 = vmatpush1.bf16.msra.mxu0 %v2980
    %3196 = vmatprep.subr.bf16.mxu0 %v2997
    %3197 = vmatpush1.bf16.msra.mxu0 %v2996
    %3198 = vmatprep.subr.bf16.mxu0 %v3013
    %3199 = vmatpush1.bf16.msra.mxu0 %v3012
    %3200 = vmatprep.subr.bf16.mxu0 %v3029
    %3201 = vmatpush1.bf16.msra.mxu0 %v3028
    %3202 = vmatprep.subr.bf16.mxu0 %v3045
    %3203 = vmatpush1.bf16.msra.mxu0 %v3044
    %3204 = vmatprep.subr.bf16.mxu0 0
    %3205 = vmatpush1.bf16.msra.mxu0 0
    %3206 = vmatprep.subr.bf16.mxu0 0
    %3207 = vmatpush1.bf16.msra.mxu0 0
    %3208 = vmatprep.subr.bf16.mxu0 0
    %3209 = vmatpush1.bf16.msra.mxu0 0
    %3210 = vmatprep.subr.bf16.mxu0 0
    %3211 = vmatpush1.bf16.msra.mxu0 0
    %3212 = vmatprep.subr.bf16.mxu0 0
    %3213 = vmatpush1.bf16.msra.mxu0 0
    %3214 = vmatprep.subr.bf16.mxu0 0
    %3215 = vmatpush1.bf16.msra.mxu0 0
    %3216 = vmatprep.subr.bf16.mxu0 0
    %3217 = vmatpush1.bf16.msra.mxu0 0
    %3218 = vmatprep.subr.bf16.mxu0 0
    %3219 = vmatpush1.bf16.msra.mxu0 0
    %3220 = vmatprep.mubr.bf16.mxu0 0
    %3221 = vmatmul.mubr.bf16.gmra.mrb[0].mxu0 %v2465
    %v3222 = vpop.f32.mrb[0].mxu0
    %v3223 = vadd.f32 %v2471, %v3222
    %v3224 = vpop.f32.mrb[0].mxu0
    %v3225 = vadd.f32 %v2475, %v3224
    %v3226 = vpop.f32.mrb[0].mxu0
    %v3227 = vpop.f32.mrb[0].mxu0
    %3228 = vdwg.mxu0
    %3229 = vmatprep.subr.bf16.mxu0 %v2935
    %3230 = vmatpush1.bf16.msra.mxu0 %v2934
    %3231 = vmatprep.subr.bf16.mxu0 %v2951
    %3232 = vmatpush1.bf16.msra.mxu0 %v2950
    %3233 = vmatprep.subr.bf16.mxu0 %v2967
    %3234 = vmatpush1.bf16.msra.mxu0 %v2966
    %3235 = vmatprep.subr.bf16.mxu0 %v2983
    %3236 = vmatpush1.bf16.msra.mxu0 %v2982
    %3237 = vmatprep.subr.bf16.mxu0 %v2999
    %3238 = vmatpush1.bf16.msra.mxu0 %v2998
    %3239 = vmatprep.subr.bf16.mxu0 %v3015
    %3240 = vmatpush1.bf16.msra.mxu0 %v3014
    %3241 = vmatprep.subr.bf16.mxu0 %v3031
    %3242 = vmatpush1.bf16.msra.mxu0 %v3030
    %3243 = vmatprep.subr.bf16.mxu0 %v3047
    %3244 = vmatpush1.bf16.msra.mxu0 %v3046
    %3245 = vmatprep.subr.bf16.mxu0 0
    %3246 = vmatpush1.bf16.msra.mxu0 0
    %3247 = vmatprep.subr.bf16.mxu0 0
    %3248 = vmatpush1.bf16.msra.mxu0 0
    %3249 = vmatprep.subr.bf16.mxu0 0
    %3250 = vmatpush1.bf16.msra.mxu0 0
    %3251 = vmatprep.subr.bf16.mxu0 0
    %3252 = vmatpush1.bf16.msra.mxu0 0
    %3253 = vmatprep.subr.bf16.mxu0 0
    %3254 = vmatpush1.bf16.msra.mxu0 0
    %3255 = vmatprep.subr.bf16.mxu0 0
    %3256 = vmatpush1.bf16.msra.mxu0 0
    %3257 = vmatprep.subr.bf16.mxu0 0
    %3258 = vmatpush1.bf16.msra.mxu0 0
    %3259 = vmatprep.subr.bf16.mxu0 0
    %3260 = vmatpush1.bf16.msra.mxu0 0
    %3261 = vmatprep.mubr.bf16.mxu0 0
    %3262 = vmatmul.mubr.bf16.gmra.mrb[0].mxu0 %v2465
    %v3263 = vpop.f32.mrb[0].mxu0
    %v3264 = vadd.f32 %v2479, %v3263
    %v3265 = vpop.f32.mrb[0].mxu0
    %v3266 = vadd.f32 %v2483, %v3265
    %v3267 = vpop.f32.mrb[0].mxu0
    %v3268 = vpop.f32.mrb[0].mxu0
    %3269 = vdwg.mxu0
    %3270 = vmatprep.subr.bf16.mxu0 %v2937
    %3271 = vmatpush1.bf16.msra.mxu0 %v2936
    %3272 = vmatprep.subr.bf16.mxu0 %v2953
    %3273 = vmatpush1.bf16.msra.mxu0 %v2952
    %3274 = vmatprep.subr.bf16.mxu0 %v2969
    %3275 = vmatpush1.bf16.msra.mxu0 %v2968
    %3276 = vmatprep.subr.bf16.mxu0 %v2985
    %3277 = vmatpush1.bf16.msra.mxu0 %v2984
    %3278 = vmatprep.subr.bf16.mxu0 %v3001
    %3279 = vmatpush1.bf16.msra.mxu0 %v3000
    %3280 = vmatprep.subr.bf16.mxu0 %v3017
    %3281 = vmatpush1.bf16.msra.mxu0 %v3016
    %3282 = vmatprep.subr.bf16.mxu0 %v3033
    %3283 = vmatpush1.bf16.msra.mxu0 %v3032
    %3284 = vmatprep.subr.bf16.mxu0 %v3049
    %3285 = vmatpush1.bf16.msra.mxu0 %v3048
    %3286 = vmatprep.subr.bf16.mxu0 0
    %3287 = vmatpush1.bf16.msra.mxu0 0
    %3288 = vmatprep.subr.bf16.mxu0 0
    %3289 = vmatpush1.bf16.msra.mxu0 0
    %3290 = vmatprep.subr.bf16.mxu0 0
    %3291 = vmatpush1.bf16.msra.mxu0 0
    %3292 = vmatprep.subr.bf16.mxu0 0
    %3293 = vmatpush1.bf16.msra.mxu0 0
    %3294 = vmatprep.subr.bf16.mxu0 0
    %3295 = vmatpush1.bf16.msra.mxu0 0
    %3296 = vmatprep.subr.bf16.mxu0 0
    %3297 = vmatpush1.bf16.msra.mxu0 0
    %3298 = vmatprep.subr.bf16.mxu0 0
    %3299 = vmatpush1.bf16.msra.mxu0 0
    %3300 = vmatprep.subr.bf16.mxu0 0
    %3301 = vmatpush1.bf16.msra.mxu0 0
    %3302 = vmatprep.mubr.bf16.mxu0 0
    %3303 = vmatmul.mubr.bf16.gmra.mrb[0].mxu0 %v2465
    %v3304 = vpop.f32.mrb[0].mxu0
    %v3305 = vadd.f32 %v2487, %v3304
    %v3306 = vpop.f32.mrb[0].mxu0
    %v3307 = vadd.f32 %v2491, %v3306
    %v3308 = vpop.f32.mrb[0].mxu0
    %v3309 = vpop.f32.mrb[0].mxu0
    %3310 = vdwg.mxu0
    %3311 = vmatprep.subr.bf16.mxu0 %v2939
    %3312 = vmatpush1.bf16.msra.mxu0 %v2938
    %3313 = vmatprep.subr.bf16.mxu0 %v2955
    %3314 = vmatpush1.bf16.msra.mxu0 %v2954
    %3315 = vmatprep.subr.bf16.mxu0 %v2971
    %3316 = vmatpush1.bf16.msra.mxu0 %v2970
    %3317 = vmatprep.subr.bf16.mxu0 %v2987
    %3318 = vmatpush1.bf16.msra.mxu0 %v2986
    %3319 = vmatprep.subr.bf16.mxu0 %v3003
    %3320 = vmatpush1.bf16.msra.mxu0 %v3002
    %3321 = vmatprep.subr.bf16.mxu0 %v3019
    %3322 = vmatpush1.bf16.msra.mxu0 %v3018
    %3323 = vmatprep.subr.bf16.mxu0 %v3035
    %3324 = vmatpush1.bf16.msra.mxu0 %v3034
    %3325 = vmatprep.subr.bf16.mxu0 %v3051
    %3326 = vmatpush1.bf16.msra.mxu0 %v3050
    %3327 = vmatprep.subr.bf16.mxu0 0
    %3328 = vmatpush1.bf16.msra.mxu0 0
    %3329 = vmatprep.subr.bf16.mxu0 0
    %3330 = vmatpush1.bf16.msra.mxu0 0
    %3331 = vmatprep.subr.bf16.mxu0 0
    %3332 = vmatpush1.bf16.msra.mxu0 0
    %3333 = vmatprep.subr.bf16.mxu0 0
    %3334 = vmatpush1.bf16.msra.mxu0 0
    %3335 = vmatprep.subr.bf16.mxu0 0
    %3336 = vmatpush1.bf16.msra.mxu0 0
    %3337 = vmatprep.subr.bf16.mxu0 0
    %3338 = vmatpush1.bf16.msra.mxu0 0
    %3339 = vmatprep.subr.bf16.mxu0 0
    %3340 = vmatpush1.bf16.msra.mxu0 0
    %3341 = vmatprep.subr.bf16.mxu0 0
    %3342 = vmatpush1.bf16.msra.mxu0 0
    %3343 = vmatprep.mubr.bf16.mxu0 0
    %3344 = vmatmul.mubr.bf16.gmra.mrb[0].mxu0 %v2465
    %v3345 = vpop.f32.mrb[0].mxu0
    %v3346 = vadd.f32 %v2495, %v3345
    %v3347 = vpop.f32.mrb[0].mxu0
    %v3348 = vadd.f32 %v2499, %v3347
    %v3349 = vpop.f32.mrb[0].mxu0
    %v3350 = vpop.f32.mrb[0].mxu0
    %3351 = vdwg.mxu0
    %3352 = vmatprep.subr.bf16.mxu0 %v2941
    %3353 = vmatpush1.bf16.msra.mxu0 %v2940
    %3354 = vmatprep.subr.bf16.mxu0 %v2957
    %3355 = vmatpush1.bf16.msra.mxu0 %v2956
    %3356 = vmatprep.subr.bf16.mxu0 %v2973
    %3357 = vmatpush1.bf16.msra.mxu0 %v2972
    %3358 = vmatprep.subr.bf16.mxu0 %v2989
    %3359 = vmatpush1.bf16.msra.mxu0 %v2988
    %3360 = vmatprep.subr.bf16.mxu0 %v3005
    %3361 = vmatpush1.bf16.msra.mxu0 %v3004
    %3362 = vmatprep.subr.bf16.mxu0 %v3021
    %3363 = vmatpush1.bf16.msra.mxu0 %v3020
    %3364 = vmatprep.subr.bf16.mxu0 %v3037
    %3365 = vmatpush1.bf16.msra.mxu0 %v3036
    %3366 = vmatprep.subr.bf16.mxu0 %v3053
    %3367 = vmatpush1.bf16.msra.mxu0 %v3052
    %3368 = vmatprep.subr.bf16.mxu0 0
    %3369 = vmatpush1.bf16.msra.mxu0 0
    %3370 = vmatprep.subr.bf16.mxu0 0
    %3371 = vmatpush1.bf16.msra.mxu0 0
    %3372 = vmatprep.subr.bf16.mxu0 0
    %3373 = vmatpush1.bf16.msra.mxu0 0
    %3374 = vmatprep.subr.bf16.mxu0 0
    %3375 = vmatpush1.bf16.msra.mxu0 0
    %3376 = vmatprep.subr.bf16.mxu0 0
    %3377 = vmatpush1.bf16.msra.mxu0 0
    %3378 = vmatprep.subr.bf16.mxu0 0
    %3379 = vmatpush1.bf16.msra.mxu0 0
    %3380 = vmatprep.subr.bf16.mxu0 0
    %3381 = vmatpush1.bf16.msra.mxu0 0
    %3382 = vmatprep.subr.bf16.mxu0 0
    %3383 = vmatpush1.bf16.msra.mxu0 0
    %3384 = vmatprep.mubr.bf16.mxu0 0
    %3385 = vmatmul.mubr.bf16.gmra.mrb[0].mxu0 %v2465
    %v3386 = vpop.f32.mrb[0].mxu0
    %v3387 = vadd.f32 %v2503, %v3386
    %v3388 = vpop.f32.mrb[0].mxu0
    %v3389 = vadd.f32 %v2507, %v3388
    %v3390 = vpop.f32.mrb[0].mxu0
    %v3391 = vpop.f32.mrb[0].mxu0
    %3392 = vdwg.mxu0
    %3393 = vmatprep.subr.bf16.mxu0 %v2943
    %3394 = vmatpush1.bf16.msra.mxu0 %v2942
    %3395 = vmatprep.subr.bf16.mxu0 %v2959
    %3396 = vmatpush1.bf16.msra.mxu0 %v2958
    %3397 = vmatprep.subr.bf16.mxu0 %v2975
    %3398 = vmatpush1.bf16.msra.mxu0 %v2974
    %3399 = vmatprep.subr.bf16.mxu0 %v2991
    %3400 = vmatpush1.bf16.msra.mxu0 %v2990
    %3401 = vmatprep.subr.bf16.mxu0 %v3007
    %3402 = vmatpush1.bf16.msra.mxu0 %v3006
    %3403 = vmatprep.subr.bf16.mxu0 %v3023
    %3404 = vmatpush1.bf16.msra.mxu0 %v3022
    %3405 = vmatprep.subr.bf16.mxu0 %v3039
    %3406 = vmatpush1.bf16.msra.mxu0 %v3038
    %3407 = vmatprep.subr.bf16.mxu0 %v3055
    %3408 = vmatpush1.bf16.msra.mxu0 %v3054
    %3409 = vmatprep.subr.bf16.mxu0 0
    %3410 = vmatpush1.bf16.msra.mxu0 0
    %3411 = vmatprep.subr.bf16.mxu0 0
    %3412 = vmatpush1.bf16.msra.mxu0 0
    %3413 = vmatprep.subr.bf16.mxu0 0
    %3414 = vmatpush1.bf16.msra.mxu0 0
    %3415 = vmatprep.subr.bf16.mxu0 0
    %3416 = vmatpush1.bf16.msra.mxu0 0
    %3417 = vmatprep.subr.bf16.mxu0 0
    %3418 = vmatpush1.bf16.msra.mxu0 0
    %3419 = vmatprep.subr.bf16.mxu0 0
    %3420 = vmatpush1.bf16.msra.mxu0 0
    %3421 = vmatprep.subr.bf16.mxu0 0
    %3422 = vmatpush1.bf16.msra.mxu0 0
    %3423 = vmatprep.subr.bf16.mxu0 0
    %3424 = vmatpush1.bf16.msra.mxu0 0
    %3425 = vmatprep.mubr.bf16.mxu0 0
    %3426 = vmatmul.mubr.bf16.gmra.mrb[0].mxu0 %v2465
    %v3427 = vpop.f32.mrb[0].mxu0
    %v3428 = vadd.f32 %v2511, %v3427
    %v3429 = vpop.f32.mrb[0].mxu0
    %v3430 = vadd.f32 %v2515, %v3429
    %v3431 = vpop.f32.mrb[0].mxu0
    %v3432 = vpop.f32.mrb[0].mxu0
    %3433 = vdwg.mxu0
    %3434 = vmatprep.subr.bf16.mxu0 %v2945
    %3435 = vmatpush1.bf16.msra.mxu0 %v2944
    %3436 = vmatprep.subr.bf16.mxu0 %v2961
    %3437 = vmatpush1.bf16.msra.mxu0 %v2960
    %3438 = vmatprep.subr.bf16.mxu0 %v2977
    %3439 = vmatpush1.bf16.msra.mxu0 %v2976
    %3440 = vmatprep.subr.bf16.mxu0 %v2993
    %3441 = vmatpush1.bf16.msra.mxu0 %v2992
    %3442 = vmatprep.subr.bf16.mxu0 %v3009
    %3443 = vmatpush1.bf16.msra.mxu0 %v3008
    %3444 = vmatprep.subr.bf16.mxu0 %v3025
    %3445 = vmatpush1.bf16.msra.mxu0 %v3024
    %3446 = vmatprep.subr.bf16.mxu0 %v3041
    %3447 = vmatpush1.bf16.msra.mxu0 %v3040
    %3448 = vmatprep.subr.bf16.mxu0 %v3057
    %3449 = vmatpush1.bf16.msra.mxu0 %v3056
    %3450 = vmatprep.subr.bf16.mxu0 0
    %3451 = vmatpush1.bf16.msra.mxu0 0
    %3452 = vmatprep.subr.bf16.mxu0 0
    %3453 = vmatpush1.bf16.msra.mxu0 0
    %3454 = vmatprep.subr.bf16.mxu0 0
    %3455 = vmatpush1.bf16.msra.mxu0 0
    %3456 = vmatprep.subr.bf16.mxu0 0
    %3457 = vmatpush1.bf16.msra.mxu0 0
    %3458 = vmatprep.subr.bf16.mxu0 0
    %3459 = vmatpush1.bf16.msra.mxu0 0
    %3460 = vmatprep.subr.bf16.mxu0 0
    %3461 = vmatpush1.bf16.msra.mxu0 0
    %3462 = vmatprep.subr.bf16.mxu0 0
    %3463 = vmatpush1.bf16.msra.mxu0 0
    %3464 = vmatprep.subr.bf16.mxu0 0
    %3465 = vmatpush1.bf16.msra.mxu0 0
    %3466 = vmatprep.mubr.bf16.mxu0 0
    %3467 = vmatmul.mubr.bf16.gmra.mrb[0].mxu0 %v2465
    %v3468 = vpop.f32.mrb[0].mxu0
    %v3469 = vadd.f32 %v2519, %v3468
    %v3470 = vpop.f32.mrb[0].mxu0
    %v3471 = vadd.f32 %v2523, %v3470
    %v3472 = vpop.f32.mrb[0].mxu0
    %v3473 = vpop.f32.mrb[0].mxu0
    %3474 = vdwg.mxu0
    %3475 = vmatprep.subr.bf16.mxu0 %v2947
    %3476 = vmatpush1.bf16.msra.mxu0 %v2946
    %3477 = vmatprep.subr.bf16.mxu0 %v2963
    %3478 = vmatpush1.bf16.msra.mxu0 %v2962
    %3479 = vmatprep.subr.bf16.mxu0 %v2979
    %3480 = vmatpush1.bf16.msra.mxu0 %v2978
    %3481 = vmatprep.subr.bf16.mxu0 %v2995
    %3482 = vmatpush1.bf16.msra.mxu0 %v2994
    %3483 = vmatprep.subr.bf16.mxu0 %v3011
    %3484 = vmatpush1.bf16.msra.mxu0 %v3010
    %3485 = vmatprep.subr.bf16.mxu0 %v3027
    %3486 = vmatpush1.bf16.msra.mxu0 %v3026
    %3487 = vmatprep.subr.bf16.mxu0 %v3043
    %3488 = vmatpush1.bf16.msra.mxu0 %v3042
    %3489 = vmatprep.subr.bf16.mxu0 %v3059
    %3490 = vmatpush1.bf16.msra.mxu0 %v3058
    %3491 = vmatprep.subr.bf16.mxu0 0
    %3492 = vmatpush1.bf16.msra.mxu0 0
    %3493 = vmatprep.subr.bf16.mxu0 0
    %3494 = vmatpush1.bf16.msra.mxu0 0
    %3495 = vmatprep.subr.bf16.mxu0 0
    %3496 = vmatpush1.bf16.msra.mxu0 0
    %3497 = vmatprep.subr.bf16.mxu0 0
    %3498 = vmatpush1.bf16.msra.mxu0 0
    %3499 = vmatprep.subr.bf16.mxu0 0
    %3500 = vmatpush1.bf16.msra.mxu0 0
    %3501 = vmatprep.subr.bf16.mxu0 0
    %3502 = vmatpush1.bf16.msra.mxu0 0
    %3503 = vmatprep.subr.bf16.mxu0 0
    %3504 = vmatpush1.bf16.msra.mxu0 0
    %3505 = vmatprep.subr.bf16.mxu0 0
    %3506 = vmatpush1.bf16.msra.mxu0 0
    %3507 = vmatprep.mubr.bf16.mxu0 0
    %3508 = vmatmul.mubr.bf16.gmra.mrb[0].mxu0 %v2465
    %v3509 = vpop.f32.mrb[0].mxu0
    %v3510 = vadd.f32 %v2527, %v3509
    %v3511 = vpop.f32.mrb[0].mxu0
    %v3512 = vadd.f32 %v2531, %v3511
    %v3513 = vpop.f32.mrb[0].mxu0
    %v3514 = vpop.f32.mrb[0].mxu0
    %3515 = vdwg.mxu0
    %v3516 = vmax.f32 %v3223, 0.0
    %v3517 = vmax.f32 %v3225, 0.0
    %v3518 = vmax.f32 %v3264, 0.0
    %v3519 = vmax.f32 %v3266, 0.0
    %v3520 = vmax.f32 %v3305, 0.0
    %v3521 = vmax.f32 %v3307, 0.0
    %v3522 = vmax.f32 %v3346, 0.0
    %v3523 = vmax.f32 %v3348, 0.0
    %v3524 = vmax.f32 %v3387, 0.0
    %v3525 = vmax.f32 %v3389, 0.0
    %v3526 = vmax.f32 %v3428, 0.0
    %v3527 = vmax.f32 %v3430, 0.0
    %v3528 = vmax.f32 %v3469, 0.0
    %v3529 = vmax.f32 %v3471, 0.0
    %v3530 = vmax.f32 %v3510, 0.0
    %v3531 = vmax.f32 %v3512, 0.0
    %v3532 = vpack.c.bf16 %v3516, %v3516
    %v3533 = vpack.c.bf16 %v3517, %v3517
    %v3534 = vpack.c.bf16 %v3518, %v3518
    %v3535 = vpack.c.bf16 %v3519, %v3519
    %v3536 = vpack.c.bf16 %v3520, %v3520
    %v3537 = vpack.c.bf16 %v3521, %v3521
    %v3538 = vpack.c.bf16 %v3522, %v3522
    %v3539 = vpack.c.bf16 %v3523, %v3523
    %v3540 = vpack.c.bf16 %v3524, %v3524
    %v3541 = vpack.c.bf16 %v3525, %v3525
    %v3542 = vpack.c.bf16 %v3526, %v3526
    %v3543 = vpack.c.bf16 %v3527, %v3527
    %v3544 = vpack.c.bf16 %v3528, %v3528
    %v3545 = vpack.c.bf16 %v3529, %v3529
    %v3546 = vpack.c.bf16 %v3530, %v3530
    %v3547 = vpack.c.bf16 %v3531, %v3531
    %v3549 = vlaneseq
    %v3550 = vshrl.u32 %v3549, 7
    %v3551 = vsub.s32 0, %v3550
    %v3552 = vrot.slane %v1485, %v3551
    %v3810 = vunpack.c.l.b16 %v1229
    %v3811 = vunpack.c.l.b16 %v1230
    %v3812 = vunpack.c.l.b16 %v1231
    %v3813 = vunpack.c.l.b16 %v1232
    %v3814 = vunpack.c.l.b16 %v1233
    %v3815 = vunpack.c.l.b16 %v1234
    %v3816 = vunpack.c.l.b16 %v1235
    %v3817 = vunpack.c.l.b16 %v1236
    %v3818 = vunpack.c.l.b16 %v1237
    %v3819 = vunpack.c.l.b16 %v1238
    %v3820 = vunpack.c.l.b16 %v1239
    %v3821 = vunpack.c.l.b16 %v1240
    %v3822 = vunpack.c.l.b16 %v1241
    %v3823 = vunpack.c.l.b16 %v1242
    %v3824 = vunpack.c.l.b16 %v1243
    %v3825 = vunpack.c.l.b16 %v1244
    %v3826 = vunpack.c.l.b16 %v1245
    %v3827 = vunpack.c.l.b16 %v1246
    %v3828 = vunpack.c.l.b16 %v1247
    %v3829 = vunpack.c.l.b16 %v1248
    %v3830 = vunpack.c.l.b16 %v1249
    %v3831 = vunpack.c.l.b16 %v1250
    %v3832 = vunpack.c.l.b16 %v1251
    %v3833 = vunpack.c.l.b16 %v1252
    %v3834 = vunpack.c.l.b16 %v1253
    %v3835 = vunpack.c.l.b16 %v1254
    %v3836 = vunpack.c.l.b16 %v1255
    %v3837 = vunpack.c.l.b16 %v1256
    %v3838 = vunpack.c.l.b16 %v1257
    %v3839 = vunpack.c.l.b16 %v1258
    %v3840 = vunpack.c.l.b16 %v1259
    %v3841 = vunpack.c.l.b16 %v1260
    %v3842 = vunpack.c.l.b16 %v1261
    %v3843 = vunpack.c.l.b16 %v1262
    %v3844 = vunpack.c.l.b16 %v1263
    %v3845 = vunpack.c.l.b16 %v1264
    %v3846 = vunpack.c.l.b16 %v1265
    %v3847 = vunpack.c.l.b16 %v1266
    %v3848 = vunpack.c.l.b16 %v1267
    %v3849 = vunpack.c.l.b16 %v1268
    %v3850 = vunpack.c.l.b16 %v1269
    %v3851 = vunpack.c.l.b16 %v1270
    %v3852 = vunpack.c.l.b16 %v1271
    %v3853 = vunpack.c.l.b16 %v1272
    %v3854 = vunpack.c.l.b16 %v1273
    %v3855 = vunpack.c.l.b16 %v1274
    %v3856 = vunpack.c.l.b16 %v1275
    %v3857 = vunpack.c.l.b16 %v1276
    %v3858 = vunpack.c.l.b16 %v1277
    %v3859 = vunpack.c.l.b16 %v1278
    %v3860 = vunpack.c.l.b16 %v1279
    %v3861 = vunpack.c.l.b16 %v1280
    %v3862 = vunpack.c.l.b16 %v1281
    %v3863 = vunpack.c.l.b16 %v1282
    %v3864 = vunpack.c.l.b16 %v1283
    %v3865 = vunpack.c.l.b16 %v1284
    %v3866 = vunpack.c.l.b16 %v1285
    %v3867 = vunpack.c.l.b16 %v1286
    %v3868 = vunpack.c.l.b16 %v1287
    %v3869 = vunpack.c.l.b16 %v1288
    %v3870 = vunpack.c.l.b16 %v1289
    %v3871 = vunpack.c.l.b16 %v1290
    %v3872 = vunpack.c.l.b16 %v1291
    %v3873 = vunpack.c.l.b16 %v1292
    %v3874 = vunpack.c.l.b16 %v1293
    %v3875 = vunpack.c.l.b16 %v1294
    %v3876 = vunpack.c.l.b16 %v1295
    %v3877 = vunpack.c.l.b16 %v1296
    %v3878 = vunpack.c.l.b16 %v1297
    %v3879 = vunpack.c.l.b16 %v1298
    %v3880 = vunpack.c.l.b16 %v1299
    %v3881 = vunpack.c.l.b16 %v1300
    %v3882 = vunpack.c.l.b16 %v1301
    %v3883 = vunpack.c.l.b16 %v1302
    %v3884 = vunpack.c.l.b16 %v1303
    %v3885 = vunpack.c.l.b16 %v1304
    %v3886 = vunpack.c.l.b16 %v1305
    %v3887 = vunpack.c.l.b16 %v1306
    %v3888 = vunpack.c.l.b16 %v1307
    %v3889 = vunpack.c.l.b16 %v1308
    %v3890 = vunpack.c.l.b16 %v1309
    %v3891 = vunpack.c.l.b16 %v1310
    %v3892 = vunpack.c.l.b16 %v1311
    %v3893 = vunpack.c.l.b16 %v1312
    %v3894 = vunpack.c.l.b16 %v1313
    %v3895 = vunpack.c.l.b16 %v1314
    %v3896 = vunpack.c.l.b16 %v1315
    %v3897 = vunpack.c.l.b16 %v1316
    %v3898 = vunpack.c.l.b16 %v1317
    %v3899 = vunpack.c.l.b16 %v1318
    %v3900 = vunpack.c.l.b16 %v1319
    %v3901 = vunpack.c.l.b16 %v1320
    %v3902 = vunpack.c.l.b16 %v1321
    %v3903 = vunpack.c.l.b16 %v1322
    %v3904 = vunpack.c.l.b16 %v1323
    %v3905 = vunpack.c.l.b16 %v1324
    %v3906 = vunpack.c.l.b16 %v1325
    %v3907 = vunpack.c.l.b16 %v1326
    %v3908 = vunpack.c.l.b16 %v1327
    %v3909 = vunpack.c.l.b16 %v1328
    %v3910 = vunpack.c.l.b16 %v1329
    %v3911 = vunpack.c.l.b16 %v1330
    %v3912 = vunpack.c.l.b16 %v1331
    %v3913 = vunpack.c.l.b16 %v1332
    %v3914 = vunpack.c.l.b16 %v1333
    %v3915 = vunpack.c.l.b16 %v1334
    %v3916 = vunpack.c.l.b16 %v1335
    %v3917 = vunpack.c.l.b16 %v1336
    %v3918 = vunpack.c.l.b16 %v1337
    %v3919 = vunpack.c.l.b16 %v1338
    %v3920 = vunpack.c.l.b16 %v1339
    %v3921 = vunpack.c.l.b16 %v1340
    %v3922 = vunpack.c.l.b16 %v1341
    %v3923 = vunpack.c.l.b16 %v1342
    %v3924 = vunpack.c.l.b16 %v1343
    %v3925 = vunpack.c.l.b16 %v1344
    %v3926 = vunpack.c.l.b16 %v1345
    %v3927 = vunpack.c.l.b16 %v1346
    %v3928 = vunpack.c.l.b16 %v1347
    %v3929 = vunpack.c.l.b16 %v1348
    %v3930 = vunpack.c.l.b16 %v1349
    %v3931 = vunpack.c.l.b16 %v1350
    %v3932 = vunpack.c.l.b16 %v1351
    %v3933 = vunpack.c.l.b16 %v1352
    %v3934 = vunpack.c.l.b16 %v1353
    %v3935 = vunpack.c.l.b16 %v1354
    %v3936 = vunpack.c.l.b16 %v1355
    %v3937 = vunpack.c.l.b16 %v1356
    %v3938 = vunpack.c.l.b16 %v1357
    %v3939 = vunpack.c.l.b16 %v1358
    %v3940 = vunpack.c.l.b16 %v1359
    %v3941 = vunpack.c.l.b16 %v1360
    %v3942 = vunpack.c.l.b16 %v1361
    %v3943 = vunpack.c.l.b16 %v1362
    %v3944 = vunpack.c.l.b16 %v1363
    %v3945 = vunpack.c.l.b16 %v1364
    %v3946 = vunpack.c.l.b16 %v1365
    %v3947 = vunpack.c.l.b16 %v1366
    %v3948 = vunpack.c.l.b16 %v1367
    %v3949 = vunpack.c.l.b16 %v1368
    %v3950 = vunpack.c.l.b16 %v1369
    %v3951 = vunpack.c.l.b16 %v1370
    %v3952 = vunpack.c.l.b16 %v1371
    %v3953 = vunpack.c.l.b16 %v1372
    %v3954 = vunpack.c.l.b16 %v1373
    %v3955 = vunpack.c.l.b16 %v1374
    %v3956 = vunpack.c.l.b16 %v1375
    %v3957 = vunpack.c.l.b16 %v1376
    %v3958 = vunpack.c.l.b16 %v1377
    %v3959 = vunpack.c.l.b16 %v1378
    %v3960 = vunpack.c.l.b16 %v1379
    %v3961 = vunpack.c.l.b16 %v1380
    %v3962 = vunpack.c.l.b16 %v1381
    %v3963 = vunpack.c.l.b16 %v1382
    %v3964 = vunpack.c.l.b16 %v1383
    %v3965 = vunpack.c.l.b16 %v1384
    %v3966 = vunpack.c.l.b16 %v1385
    %v3967 = vunpack.c.l.b16 %v1386
    %v3968 = vunpack.c.l.b16 %v1387
    %v3969 = vunpack.c.l.b16 %v1388
    %v3970 = vunpack.c.l.b16 %v1389
    %v3971 = vunpack.c.l.b16 %v1390
    %v3972 = vunpack.c.l.b16 %v1391
    %v3973 = vunpack.c.l.b16 %v1392
    %v3974 = vunpack.c.l.b16 %v1393
    %v3975 = vunpack.c.l.b16 %v1394
    %v3976 = vunpack.c.l.b16 %v1395
    %v3977 = vunpack.c.l.b16 %v1396
    %v3978 = vunpack.c.l.b16 %v1397
    %v3979 = vunpack.c.l.b16 %v1398
    %v3980 = vunpack.c.l.b16 %v1399
    %v3981 = vunpack.c.l.b16 %v1400
    %v3982 = vunpack.c.l.b16 %v1401
    %v3983 = vunpack.c.l.b16 %v1402
    %v3984 = vunpack.c.l.b16 %v1403
    %v3985 = vunpack.c.l.b16 %v1404
    %v3986 = vunpack.c.l.b16 %v1405
    %v3987 = vunpack.c.l.b16 %v1406
    %v3988 = vunpack.c.l.b16 %v1407
    %v3989 = vunpack.c.l.b16 %v1408
    %v3990 = vunpack.c.l.b16 %v1409
    %v3991 = vunpack.c.l.b16 %v1410
    %v3992 = vunpack.c.l.b16 %v1411
    %v3993 = vunpack.c.l.b16 %v1412
    %v3994 = vunpack.c.l.b16 %v1413
    %v3995 = vunpack.c.l.b16 %v1414
    %v3996 = vunpack.c.l.b16 %v1415
    %v3997 = vunpack.c.l.b16 %v1416
    %v3998 = vunpack.c.l.b16 %v1417
    %v3999 = vunpack.c.l.b16 %v1418
    %v4000 = vunpack.c.l.b16 %v1419
    %v4001 = vunpack.c.l.b16 %v1420
    %v4002 = vunpack.c.l.b16 %v1421
    %v4003 = vunpack.c.l.b16 %v1422
    %v4004 = vunpack.c.l.b16 %v1423
    %v4005 = vunpack.c.l.b16 %v1424
    %v4006 = vunpack.c.l.b16 %v1425
    %v4007 = vunpack.c.l.b16 %v1426
    %v4008 = vunpack.c.l.b16 %v1427
    %v4009 = vunpack.c.l.b16 %v1428
    %v4010 = vunpack.c.l.b16 %v1429
    %v4011 = vunpack.c.l.b16 %v1430
    %v4012 = vunpack.c.l.b16 %v1431
    %v4013 = vunpack.c.l.b16 %v1432
    %v4014 = vunpack.c.l.b16 %v1433
    %v4015 = vunpack.c.l.b16 %v1434
    %v4016 = vunpack.c.l.b16 %v1435
    %v4017 = vunpack.c.l.b16 %v1436
    %v4018 = vunpack.c.l.b16 %v1437
    %v4019 = vunpack.c.l.b16 %v1438
    %v4020 = vunpack.c.l.b16 %v1439
    %v4021 = vunpack.c.l.b16 %v1440
    %v4022 = vunpack.c.l.b16 %v1441
    %v4023 = vunpack.c.l.b16 %v1442
    %v4024 = vunpack.c.l.b16 %v1443
    %v4025 = vunpack.c.l.b16 %v1444
    %v4026 = vunpack.c.l.b16 %v1445
    %v4027 = vunpack.c.l.b16 %v1446
    %v4028 = vunpack.c.l.b16 %v1447
    %v4029 = vunpack.c.l.b16 %v1448
    %v4030 = vunpack.c.l.b16 %v1449
    %v4031 = vunpack.c.l.b16 %v1450
    %v4032 = vunpack.c.l.b16 %v1451
    %v4033 = vunpack.c.l.b16 %v1452
    %v4034 = vunpack.c.l.b16 %v1453
    %v4035 = vunpack.c.l.b16 %v1454
    %v4036 = vunpack.c.l.b16 %v1455
    %v4037 = vunpack.c.l.b16 %v1456
    %v4038 = vunpack.c.l.b16 %v1457
    %v4039 = vunpack.c.l.b16 %v1458
    %v4040 = vunpack.c.l.b16 %v1459
    %v4041 = vunpack.c.l.b16 %v1460
    %v4042 = vunpack.c.l.b16 %v1461
    %v4043 = vunpack.c.l.b16 %v1462
    %v4044 = vunpack.c.l.b16 %v1463
    %v4045 = vunpack.c.l.b16 %v1464
    %v4046 = vunpack.c.l.b16 %v1465
    %v4047 = vunpack.c.l.b16 %v1466
    %v4048 = vunpack.c.l.b16 %v1467
    %v4049 = vunpack.c.l.b16 %v1468
    %v4050 = vunpack.c.l.b16 %v1469
    %v4051 = vunpack.c.l.b16 %v1470
    %v4052 = vunpack.c.l.b16 %v1471
    %v4053 = vunpack.c.l.b16 %v1472
    %v4054 = vunpack.c.l.b16 %v1473
    %v4055 = vunpack.c.l.b16 %v1474
    %v4056 = vunpack.c.l.b16 %v1475
    %v4057 = vunpack.c.l.b16 %v1476
    %v4058 = vunpack.c.l.b16 %v1477
    %v4059 = vunpack.c.l.b16 %v1478
    %v4060 = vunpack.c.l.b16 %v1479
    %v4061 = vunpack.c.l.b16 %v1480
    %v4062 = vunpack.c.l.b16 %v1481
    %v4063 = vunpack.c.l.b16 %v1482
    %v4064 = vunpack.c.l.b16 %v1483
    %v4065 = vunpack.c.l.b16 %v1484
    %v4066 = vpack.c.b16 %v3811, %v3810
    %v4067 = vpack.c.b16 %v3813, %v3812
    %v4068 = vpack.c.b16 %v3815, %v3814
    %v4069 = vpack.c.b16 %v3817, %v3816
    %v4070 = vpack.c.b16 %v3819, %v3818
    %v4071 = vpack.c.b16 %v3821, %v3820
    %v4072 = vpack.c.b16 %v3823, %v3822
    %v4073 = vpack.c.b16 %v3825, %v3824
    %v4074 = vpack.c.b16 %v3827, %v3826
    %v4075 = vpack.c.b16 %v3829, %v3828
    %v4076 = vpack.c.b16 %v3831, %v3830
    %v4077 = vpack.c.b16 %v3833, %v3832
    %v4078 = vpack.c.b16 %v3835, %v3834
    %v4079 = vpack.c.b16 %v3837, %v3836
    %v4080 = vpack.c.b16 %v3839, %v3838
    %v4081 = vpack.c.b16 %v3841, %v3840
    %v4082 = vpack.c.b16 %v3843, %v3842
    %v4083 = vpack.c.b16 %v3845, %v3844
    %v4084 = vpack.c.b16 %v3847, %v3846
    %v4085 = vpack.c.b16 %v3849, %v3848
    %v4086 = vpack.c.b16 %v3851, %v3850
    %v4087 = vpack.c.b16 %v3853, %v3852
    %v4088 = vpack.c.b16 %v3855, %v3854
    %v4089 = vpack.c.b16 %v3857, %v3856
    %v4090 = vpack.c.b16 %v3859, %v3858
    %v4091 = vpack.c.b16 %v3861, %v3860
    %v4092 = vpack.c.b16 %v3863, %v3862
    %v4093 = vpack.c.b16 %v3865, %v3864
    %v4094 = vpack.c.b16 %v3867, %v3866
    %v4095 = vpack.c.b16 %v3869, %v3868
    %v4096 = vpack.c.b16 %v3871, %v3870
    %v4097 = vpack.c.b16 %v3873, %v3872
    %v4098 = vpack.c.b16 %v3875, %v3874
    %v4099 = vpack.c.b16 %v3877, %v3876
    %v4100 = vpack.c.b16 %v3879, %v3878
    %v4101 = vpack.c.b16 %v3881, %v3880
    %v4102 = vpack.c.b16 %v3883, %v3882
    %v4103 = vpack.c.b16 %v3885, %v3884
    %v4104 = vpack.c.b16 %v3887, %v3886
    %v4105 = vpack.c.b16 %v3889, %v3888
    %v4106 = vpack.c.b16 %v3891, %v3890
    %v4107 = vpack.c.b16 %v3893, %v3892
    %v4108 = vpack.c.b16 %v3895, %v3894
    %v4109 = vpack.c.b16 %v3897, %v3896
    %v4110 = vpack.c.b16 %v3899, %v3898
    %v4111 = vpack.c.b16 %v3901, %v3900
    %v4112 = vpack.c.b16 %v3903, %v3902
    %v4113 = vpack.c.b16 %v3905, %v3904
    %v4114 = vpack.c.b16 %v3907, %v3906
    %v4115 = vpack.c.b16 %v3909, %v3908
    %v4116 = vpack.c.b16 %v3911, %v3910
    %v4117 = vpack.c.b16 %v3913, %v3912
    %v4118 = vpack.c.b16 %v3915, %v3914
    %v4119 = vpack.c.b16 %v3917, %v3916
    %v4120 = vpack.c.b16 %v3919, %v3918
    %v4121 = vpack.c.b16 %v3921, %v3920
    %v4122 = vpack.c.b16 %v3923, %v3922
    %v4123 = vpack.c.b16 %v3925, %v3924
    %v4124 = vpack.c.b16 %v3927, %v3926
    %v4125 = vpack.c.b16 %v3929, %v3928
    %v4126 = vpack.c.b16 %v3931, %v3930
    %v4127 = vpack.c.b16 %v3933, %v3932
    %v4128 = vpack.c.b16 %v3935, %v3934
    %v4129 = vpack.c.b16 %v3937, %v3936
    %v4130 = vpack.c.b16 %v3939, %v3938
    %v4131 = vpack.c.b16 %v3941, %v3940
    %v4132 = vpack.c.b16 %v3943, %v3942
    %v4133 = vpack.c.b16 %v3945, %v3944
    %v4134 = vpack.c.b16 %v3947, %v3946
    %v4135 = vpack.c.b16 %v3949, %v3948
    %v4136 = vpack.c.b16 %v3951, %v3950
    %v4137 = vpack.c.b16 %v3953, %v3952
    %v4138 = vpack.c.b16 %v3955, %v3954
    %v4139 = vpack.c.b16 %v3957, %v3956
    %v4140 = vpack.c.b16 %v3959, %v3958
    %v4141 = vpack.c.b16 %v3961, %v3960
    %v4142 = vpack.c.b16 %v3963, %v3962
    %v4143 = vpack.c.b16 %v3965, %v3964
    %v4144 = vpack.c.b16 %v3967, %v3966
    %v4145 = vpack.c.b16 %v3969, %v3968
    %v4146 = vpack.c.b16 %v3971, %v3970
    %v4147 = vpack.c.b16 %v3973, %v3972
    %v4148 = vpack.c.b16 %v3975, %v3974
    %v4149 = vpack.c.b16 %v3977, %v3976
    %v4150 = vpack.c.b16 %v3979, %v3978
    %v4151 = vpack.c.b16 %v3981, %v3980
    %v4152 = vpack.c.b16 %v3983, %v3982
    %v4153 = vpack.c.b16 %v3985, %v3984
    %v4154 = vpack.c.b16 %v3987, %v3986
    %v4155 = vpack.c.b16 %v3989, %v3988
    %v4156 = vpack.c.b16 %v3991, %v3990
    %v4157 = vpack.c.b16 %v3993, %v3992
    %v4158 = vpack.c.b16 %v3995, %v3994
    %v4159 = vpack.c.b16 %v3997, %v3996
    %v4160 = vpack.c.b16 %v3999, %v3998
    %v4161 = vpack.c.b16 %v4001, %v4000
    %v4162 = vpack.c.b16 %v4003, %v4002
    %v4163 = vpack.c.b16 %v4005, %v4004
    %v4164 = vpack.c.b16 %v4007, %v4006
    %v4165 = vpack.c.b16 %v4009, %v4008
    %v4166 = vpack.c.b16 %v4011, %v4010
    %v4167 = vpack.c.b16 %v4013, %v4012
    %v4168 = vpack.c.b16 %v4015, %v4014
    %v4169 = vpack.c.b16 %v4017, %v4016
    %v4170 = vpack.c.b16 %v4019, %v4018
    %v4171 = vpack.c.b16 %v4021, %v4020
    %v4172 = vpack.c.b16 %v4023, %v4022
    %v4173 = vpack.c.b16 %v4025, %v4024
    %v4174 = vpack.c.b16 %v4027, %v4026
    %v4175 = vpack.c.b16 %v4029, %v4028
    %v4176 = vpack.c.b16 %v4031, %v4030
    %v4177 = vpack.c.b16 %v4033, %v4032
    %v4178 = vpack.c.b16 %v4035, %v4034
    %v4179 = vpack.c.b16 %v4037, %v4036
    %v4180 = vpack.c.b16 %v4039, %v4038
    %v4181 = vpack.c.b16 %v4041, %v4040
    %v4182 = vpack.c.b16 %v4043, %v4042
    %v4183 = vpack.c.b16 %v4045, %v4044
    %v4184 = vpack.c.b16 %v4047, %v4046
    %v4185 = vpack.c.b16 %v4049, %v4048
    %v4186 = vpack.c.b16 %v4051, %v4050
    %v4187 = vpack.c.b16 %v4053, %v4052
    %v4188 = vpack.c.b16 %v4055, %v4054
    %v4189 = vpack.c.b16 %v4057, %v4056
    %v4190 = vpack.c.b16 %v4059, %v4058
    %v4191 = vpack.c.b16 %v4061, %v4060
    %v4192 = vpack.c.b16 %v4063, %v4062
    %v4193 = vpack.c.b16 %v4065, %v4064
    %4322 = vmatprep.subr.bf16.mxu0 0
    %4323 = vmatpush1.bf16.msra.mxu0 %v4066
    %4324 = vmatprep.subr.bf16.mxu0 0
    %4325 = vmatpush1.bf16.msra.mxu0 %v4067
    %4326 = vmatprep.subr.bf16.mxu0 0
    %4327 = vmatpush1.bf16.msra.mxu0 %v4068
    %4328 = vmatprep.subr.bf16.mxu0 0
    %4329 = vmatpush1.bf16.msra.mxu0 %v4069
    %4330 = vmatprep.subr.bf16.mxu0 0
    %4331 = vmatpush1.bf16.msra.mxu0 %v4070
    %4332 = vmatprep.subr.bf16.mxu0 0
    %4333 = vmatpush1.bf16.msra.mxu0 %v4071
    %4334 = vmatprep.subr.bf16.mxu0 0
    %4335 = vmatpush1.bf16.msra.mxu0 %v4072
    %4336 = vmatprep.subr.bf16.mxu0 0
    %4337 = vmatpush1.bf16.msra.mxu0 %v4073
    %4338 = vmatprep.subr.bf16.mxu0 0
    %4339 = vmatpush1.bf16.msra.mxu0 %v4074
    %4340 = vmatprep.subr.bf16.mxu0 0
    %4341 = vmatpush1.bf16.msra.mxu0 %v4075
    %4342 = vmatprep.subr.bf16.mxu0 0
    %4343 = vmatpush1.bf16.msra.mxu0 %v4076
    %4344 = vmatprep.subr.bf16.mxu0 0
    %4345 = vmatpush1.bf16.msra.mxu0 %v4077
    %4346 = vmatprep.subr.bf16.mxu0 0
    %4347 = vmatpush1.bf16.msra.mxu0 %v4078
    %4348 = vmatprep.subr.bf16.mxu0 0
    %4349 = vmatpush1.bf16.msra.mxu0 %v4079
    %4350 = vmatprep.subr.bf16.mxu0 0
    %4351 = vmatpush1.bf16.msra.mxu0 %v4080
    %4352 = vmatprep.subr.bf16.mxu0 0
    %4353 = vmatpush1.bf16.msra.mxu0 %v4081
    %4354 = vmatprep.mubr.bf16.mxu0 %v3533
    %4355 = vmatmul.mubr.bf16.gmra.mrb[0].mxu0 %v3532
    %v4356 = vpop.f32.mrb[0].mxu0
    %v4357 = vadd.f32 %v3552, %v4356
    %v4358 = vpop.f32.mrb[0].mxu0
    %v4359 = vpop.f32.mrb[0].mxu0
    %v4360 = vpop.f32.mrb[0].mxu0
    %4361 = vdwg.mxu0
    %4362 = vmatprep.subr.bf16.mxu0 0
    %4363 = vmatpush1.bf16.msra.mxu0 %v4082
    %4364 = vmatprep.subr.bf16.mxu0 0
    %4365 = vmatpush1.bf16.msra.mxu0 %v4083
    %4366 = vmatprep.subr.bf16.mxu0 0
    %4367 = vmatpush1.bf16.msra.mxu0 %v4084
    %4368 = vmatprep.subr.bf16.mxu0 0
    %4369 = vmatpush1.bf16.msra.mxu0 %v4085
    %4370 = vmatprep.subr.bf16.mxu0 0
    %4371 = vmatpush1.bf16.msra.mxu0 %v4086
    %4372 = vmatprep.subr.bf16.mxu0 0
    %4373 = vmatpush1.bf16.msra.mxu0 %v4087
    %4374 = vmatprep.subr.bf16.mxu0 0
    %4375 = vmatpush1.bf16.msra.mxu0 %v4088
    %4376 = vmatprep.subr.bf16.mxu0 0
    %4377 = vmatpush1.bf16.msra.mxu0 %v4089
    %4378 = vmatprep.subr.bf16.mxu0 0
    %4379 = vmatpush1.bf16.msra.mxu0 %v4090
    %4380 = vmatprep.subr.bf16.mxu0 0
    %4381 = vmatpush1.bf16.msra.mxu0 %v4091
    %4382 = vmatprep.subr.bf16.mxu0 0
    %4383 = vmatpush1.bf16.msra.mxu0 %v4092
    %4384 = vmatprep.subr.bf16.mxu0 0
    %4385 = vmatpush1.bf16.msra.mxu0 %v4093
    %4386 = vmatprep.subr.bf16.mxu0 0
    %4387 = vmatpush1.bf16.msra.mxu0 %v4094
    %4388 = vmatprep.subr.bf16.mxu0 0
    %4389 = vmatpush1.bf16.msra.mxu0 %v4095
    %4390 = vmatprep.subr.bf16.mxu0 0
    %4391 = vmatpush1.bf16.msra.mxu0 %v4096
    %4392 = vmatprep.subr.bf16.mxu0 0
    %4393 = vmatpush1.bf16.msra.mxu0 %v4097
    %4394 = vmatprep.mubr.bf16.mxu0 %v3535
    %4395 = vmatmul.mubr.bf16.gmra.mrb[0].mxu0 %v3534
    %v4396 = vpop.f32.mrb[0].mxu0
    %v4397 = vadd.f32 %v4357, %v4396
    %v4398 = vpop.f32.mrb[0].mxu0
    %v4399 = vpop.f32.mrb[0].mxu0
    %v4400 = vpop.f32.mrb[0].mxu0
    %4401 = vdwg.mxu0
    %4402 = vmatprep.subr.bf16.mxu0 0
    %4403 = vmatpush1.bf16.msra.mxu0 %v4098
    %4404 = vmatprep.subr.bf16.mxu0 0
    %4405 = vmatpush1.bf16.msra.mxu0 %v4099
    %4406 = vmatprep.subr.bf16.mxu0 0
    %4407 = vmatpush1.bf16.msra.mxu0 %v4100
    %4408 = vmatprep.subr.bf16.mxu0 0
    %4409 = vmatpush1.bf16.msra.mxu0 %v4101
    %4410 = vmatprep.subr.bf16.mxu0 0
    %4411 = vmatpush1.bf16.msra.mxu0 %v4102
    %4412 = vmatprep.subr.bf16.mxu0 0
    %4413 = vmatpush1.bf16.msra.mxu0 %v4103
    %4414 = vmatprep.subr.bf16.mxu0 0
    %4415 = vmatpush1.bf16.msra.mxu0 %v4104
    %4416 = vmatprep.subr.bf16.mxu0 0
    %4417 = vmatpush1.bf16.msra.mxu0 %v4105
    %4418 = vmatprep.subr.bf16.mxu0 0
    %4419 = vmatpush1.bf16.msra.mxu0 %v4106
    %4420 = vmatprep.subr.bf16.mxu0 0
    %4421 = vmatpush1.bf16.msra.mxu0 %v4107
    %4422 = vmatprep.subr.bf16.mxu0 0
    %4423 = vmatpush1.bf16.msra.mxu0 %v4108
    %4424 = vmatprep.subr.bf16.mxu0 0
    %4425 = vmatpush1.bf16.msra.mxu0 %v4109
    %4426 = vmatprep.subr.bf16.mxu0 0
    %4427 = vmatpush1.bf16.msra.mxu0 %v4110
    %4428 = vmatprep.subr.bf16.mxu0 0
    %4429 = vmatpush1.bf16.msra.mxu0 %v4111
    %4430 = vmatprep.subr.bf16.mxu0 0
    %4431 = vmatpush1.bf16.msra.mxu0 %v4112
    %4432 = vmatprep.subr.bf16.mxu0 0
    %4433 = vmatpush1.bf16.msra.mxu0 %v4113
    %4434 = vmatprep.mubr.bf16.mxu0 %v3537
    %4435 = vmatmul.mubr.bf16.gmra.mrb[0].mxu0 %v3536
    %v4436 = vpop.f32.mrb[0].mxu0
    %v4437 = vadd.f32 %v4397, %v4436
    %v4438 = vpop.f32.mrb[0].mxu0
    %v4439 = vpop.f32.mrb[0].mxu0
    %v4440 = vpop.f32.mrb[0].mxu0
    %4441 = vdwg.mxu0
    %4442 = vmatprep.subr.bf16.mxu0 0
    %4443 = vmatpush1.bf16.msra.mxu0 %v4114
    %4444 = vmatprep.subr.bf16.mxu0 0
    %4445 = vmatpush1.bf16.msra.mxu0 %v4115
    %4446 = vmatprep.subr.bf16.mxu0 0
    %4447 = vmatpush1.bf16.msra.mxu0 %v4116
    %4448 = vmatprep.subr.bf16.mxu0 0
    %4449 = vmatpush1.bf16.msra.mxu0 %v4117
    %4450 = vmatprep.subr.bf16.mxu0 0
    %4451 = vmatpush1.bf16.msra.mxu0 %v4118
    %4452 = vmatprep.subr.bf16.mxu0 0
    %4453 = vmatpush1.bf16.msra.mxu0 %v4119
    %4454 = vmatprep.subr.bf16.mxu0 0
    %4455 = vmatpush1.bf16.msra.mxu0 %v4120
    %4456 = vmatprep.subr.bf16.mxu0 0
    %4457 = vmatpush1.bf16.msra.mxu0 %v4121
    %4458 = vmatprep.subr.bf16.mxu0 0
    %4459 = vmatpush1.bf16.msra.mxu0 %v4122
    %4460 = vmatprep.subr.bf16.mxu0 0
    %4461 = vmatpush1.bf16.msra.mxu0 %v4123
    %4462 = vmatprep.subr.bf16.mxu0 0
    %4463 = vmatpush1.bf16.msra.mxu0 %v4124
    %4464 = vmatprep.subr.bf16.mxu0 0
    %4465 = vmatpush1.bf16.msra.mxu0 %v4125
    %4466 = vmatprep.subr.bf16.mxu0 0
    %4467 = vmatpush1.bf16.msra.mxu0 %v4126
    %4468 = vmatprep.subr.bf16.mxu0 0
    %4469 = vmatpush1.bf16.msra.mxu0 %v4127
    %4470 = vmatprep.subr.bf16.mxu0 0
    %4471 = vmatpush1.bf16.msra.mxu0 %v4128
    %4472 = vmatprep.subr.bf16.mxu0 0
    %4473 = vmatpush1.bf16.msra.mxu0 %v4129
    %4474 = vmatprep.mubr.bf16.mxu0 %v3539
    %4475 = vmatmul.mubr.bf16.gmra.mrb[0].mxu0 %v3538
    %v4476 = vpop.f32.mrb[0].mxu0
    %v4477 = vadd.f32 %v4437, %v4476
    %v4478 = vpop.f32.mrb[0].mxu0
    %v4479 = vpop.f32.mrb[0].mxu0
    %v4480 = vpop.f32.mrb[0].mxu0
    %4481 = vdwg.mxu0
    %4482 = vmatprep.subr.bf16.mxu0 0
    %4483 = vmatpush1.bf16.msra.mxu0 %v4130
    %4484 = vmatprep.subr.bf16.mxu0 0
    %4485 = vmatpush1.bf16.msra.mxu0 %v4131
    %4486 = vmatprep.subr.bf16.mxu0 0
    %4487 = vmatpush1.bf16.msra.mxu0 %v4132
    %4488 = vmatprep.subr.bf16.mxu0 0
    %4489 = vmatpush1.bf16.msra.mxu0 %v4133
    %4490 = vmatprep.subr.bf16.mxu0 0
    %4491 = vmatpush1.bf16.msra.mxu0 %v4134
    %4492 = vmatprep.subr.bf16.mxu0 0
    %4493 = vmatpush1.bf16.msra.mxu0 %v4135
    %4494 = vmatprep.subr.bf16.mxu0 0
    %4495 = vmatpush1.bf16.msra.mxu0 %v4136
    %4496 = vmatprep.subr.bf16.mxu0 0
    %4497 = vmatpush1.bf16.msra.mxu0 %v4137
    %4498 = vmatprep.subr.bf16.mxu0 0
    %4499 = vmatpush1.bf16.msra.mxu0 %v4138
    %4500 = vmatprep.subr.bf16.mxu0 0
    %4501 = vmatpush1.bf16.msra.mxu0 %v4139
    %4502 = vmatprep.subr.bf16.mxu0 0
    %4503 = vmatpush1.bf16.msra.mxu0 %v4140
    %4504 = vmatprep.subr.bf16.mxu0 0
    %4505 = vmatpush1.bf16.msra.mxu0 %v4141
    %4506 = vmatprep.subr.bf16.mxu0 0
    %4507 = vmatpush1.bf16.msra.mxu0 %v4142
    %4508 = vmatprep.subr.bf16.mxu0 0
    %4509 = vmatpush1.bf16.msra.mxu0 %v4143
    %4510 = vmatprep.subr.bf16.mxu0 0
    %4511 = vmatpush1.bf16.msra.mxu0 %v4144
    %4512 = vmatprep.subr.bf16.mxu0 0
    %4513 = vmatpush1.bf16.msra.mxu0 %v4145
    %4514 = vmatprep.mubr.bf16.mxu0 %v3541
    %4515 = vmatmul.mubr.bf16.gmra.mrb[0].mxu0 %v3540
    %v4516 = vpop.f32.mrb[0].mxu0
    %v4517 = vadd.f32 %v4477, %v4516
    %v4518 = vpop.f32.mrb[0].mxu0
    %v4519 = vpop.f32.mrb[0].mxu0
    %v4520 = vpop.f32.mrb[0].mxu0
    %4521 = vdwg.mxu0
    %4522 = vmatprep.subr.bf16.mxu0 0
    %4523 = vmatpush1.bf16.msra.mxu0 %v4146
    %4524 = vmatprep.subr.bf16.mxu0 0
    %4525 = vmatpush1.bf16.msra.mxu0 %v4147
    %4526 = vmatprep.subr.bf16.mxu0 0
    %4527 = vmatpush1.bf16.msra.mxu0 %v4148
    %4528 = vmatprep.subr.bf16.mxu0 0
    %4529 = vmatpush1.bf16.msra.mxu0 %v4149
    %4530 = vmatprep.subr.bf16.mxu0 0
    %4531 = vmatpush1.bf16.msra.mxu0 %v4150
    %4532 = vmatprep.subr.bf16.mxu0 0
    %4533 = vmatpush1.bf16.msra.mxu0 %v4151
    %4534 = vmatprep.subr.bf16.mxu0 0
    %4535 = vmatpush1.bf16.msra.mxu0 %v4152
    %4536 = vmatprep.subr.bf16.mxu0 0
    %4537 = vmatpush1.bf16.msra.mxu0 %v4153
    %4538 = vmatprep.subr.bf16.mxu0 0
    %4539 = vmatpush1.bf16.msra.mxu0 %v4154
    %4540 = vmatprep.subr.bf16.mxu0 0
    %4541 = vmatpush1.bf16.msra.mxu0 %v4155
    %4542 = vmatprep.subr.bf16.mxu0 0
    %4543 = vmatpush1.bf16.msra.mxu0 %v4156
    %4544 = vmatprep.subr.bf16.mxu0 0
    %4545 = vmatpush1.bf16.msra.mxu0 %v4157
    %4546 = vmatprep.subr.bf16.mxu0 0
    %4547 = vmatpush1.bf16.msra.mxu0 %v4158
    %4548 = vmatprep.subr.bf16.mxu0 0
    %4549 = vmatpush1.bf16.msra.mxu0 %v4159
    %4550 = vmatprep.subr.bf16.mxu0 0
    %4551 = vmatpush1.bf16.msra.mxu0 %v4160
    %4552 = vmatprep.subr.bf16.mxu0 0
    %4553 = vmatpush1.bf16.msra.mxu0 %v4161
    %4554 = vmatprep.mubr.bf16.mxu0 %v3543
    %4555 = vmatmul.mubr.bf16.gmra.mrb[0].mxu0 %v3542
    %v4556 = vpop.f32.mrb[0].mxu0
    %v4557 = vadd.f32 %v4517, %v4556
    %v4558 = vpop.f32.mrb[0].mxu0
    %v4559 = vpop.f32.mrb[0].mxu0
    %v4560 = vpop.f32.mrb[0].mxu0
    %4561 = vdwg.mxu0
    %4562 = vmatprep.subr.bf16.mxu0 0
    %4563 = vmatpush1.bf16.msra.mxu0 %v4162
    %4564 = vmatprep.subr.bf16.mxu0 0
    %4565 = vmatpush1.bf16.msra.mxu0 %v4163
    %4566 = vmatprep.subr.bf16.mxu0 0
    %4567 = vmatpush1.bf16.msra.mxu0 %v4164
    %4568 = vmatprep.subr.bf16.mxu0 0
    %4569 = vmatpush1.bf16.msra.mxu0 %v4165
    %4570 = vmatprep.subr.bf16.mxu0 0
    %4571 = vmatpush1.bf16.msra.mxu0 %v4166
    %4572 = vmatprep.subr.bf16.mxu0 0
    %4573 = vmatpush1.bf16.msra.mxu0 %v4167
    %4574 = vmatprep.subr.bf16.mxu0 0
    %4575 = vmatpush1.bf16.msra.mxu0 %v4168
    %4576 = vmatprep.subr.bf16.mxu0 0
    %4577 = vmatpush1.bf16.msra.mxu0 %v4169
    %4578 = vmatprep.subr.bf16.mxu0 0
    %4579 = vmatpush1.bf16.msra.mxu0 %v4170
    %4580 = vmatprep.subr.bf16.mxu0 0
    %4581 = vmatpush1.bf16.msra.mxu0 %v4171
    %4582 = vmatprep.subr.bf16.mxu0 0
    %4583 = vmatpush1.bf16.msra.mxu0 %v4172
    %4584 = vmatprep.subr.bf16.mxu0 0
    %4585 = vmatpush1.bf16.msra.mxu0 %v4173
    %4586 = vmatprep.subr.bf16.mxu0 0
    %4587 = vmatpush1.bf16.msra.mxu0 %v4174
    %4588 = vmatprep.subr.bf16.mxu0 0
    %4589 = vmatpush1.bf16.msra.mxu0 %v4175
    %4590 = vmatprep.subr.bf16.mxu0 0
    %4591 = vmatpush1.bf16.msra.mxu0 %v4176
    %4592 = vmatprep.subr.bf16.mxu0 0
    %4593 = vmatpush1.bf16.msra.mxu0 %v4177
    %4594 = vmatprep.mubr.bf16.mxu0 %v3545
    %4595 = vmatmul.mubr.bf16.gmra.mrb[0].mxu0 %v3544
    %v4596 = vpop.f32.mrb[0].mxu0
    %v4597 = vadd.f32 %v4557, %v4596
    %v4598 = vpop.f32.mrb[0].mxu0
    %v4599 = vpop.f32.mrb[0].mxu0
    %v4600 = vpop.f32.mrb[0].mxu0
    %4601 = vdwg.mxu0
    %4602 = vmatprep.subr.bf16.mxu0 0
    %4603 = vmatpush1.bf16.msra.mxu0 %v4178
    %4604 = vmatprep.subr.bf16.mxu0 0
    %4605 = vmatpush1.bf16.msra.mxu0 %v4179
    %4606 = vmatprep.subr.bf16.mxu0 0
    %4607 = vmatpush1.bf16.msra.mxu0 %v4180
    %4608 = vmatprep.subr.bf16.mxu0 0
    %4609 = vmatpush1.bf16.msra.mxu0 %v4181
    %4610 = vmatprep.subr.bf16.mxu0 0
    %4611 = vmatpush1.bf16.msra.mxu0 %v4182
    %4612 = vmatprep.subr.bf16.mxu0 0
    %4613 = vmatpush1.bf16.msra.mxu0 %v4183
    %4614 = vmatprep.subr.bf16.mxu0 0
    %4615 = vmatpush1.bf16.msra.mxu0 %v4184
    %4616 = vmatprep.subr.bf16.mxu0 0
    %4617 = vmatpush1.bf16.msra.mxu0 %v4185
    %4618 = vmatprep.subr.bf16.mxu0 0
    %4619 = vmatpush1.bf16.msra.mxu0 %v4186
    %4620 = vmatprep.subr.bf16.mxu0 0
    %4621 = vmatpush1.bf16.msra.mxu0 %v4187
    %4622 = vmatprep.subr.bf16.mxu0 0
    %4623 = vmatpush1.bf16.msra.mxu0 %v4188
    %4624 = vmatprep.subr.bf16.mxu0 0
    %4625 = vmatpush1.bf16.msra.mxu0 %v4189
    %4626 = vmatprep.subr.bf16.mxu0 0
    %4627 = vmatpush1.bf16.msra.mxu0 %v4190
    %4628 = vmatprep.subr.bf16.mxu0 0
    %4629 = vmatpush1.bf16.msra.mxu0 %v4191
    %4630 = vmatprep.subr.bf16.mxu0 0
    %4631 = vmatpush1.bf16.msra.mxu0 %v4192
    %4632 = vmatprep.subr.bf16.mxu0 0
    %4633 = vmatpush1.bf16.msra.mxu0 %v4193
    %4634 = vmatprep.mubr.bf16.mxu0 %v3547
    %4635 = vmatmul.mubr.bf16.gmra.mrb[0].mxu0 %v3546
    %v4636 = vpop.f32.mrb[0].mxu0
    %v4637 = vadd.f32 %v4597, %v4636
    %v4638 = vpop.f32.mrb[0].mxu0
    %v4639 = vpop.f32.mrb[0].mxu0
    %v4640 = vpop.f32.mrb[0].mxu0
    %4641 = vdwg.mxu0
    %v4642 = vadd.f32 %v2464, %v4637
    %4643 = vadd.xlane.f32.xlu0 %v4642
    %v4644 = vpop.xlane.xlu0 %4643
    %v4645 = vmul.f32 %v4644, 0.03125
    %v4646 = vsub.f32 %v4642, %v4645
    %v4647 = vsel %vm2442, %v4646, 0.0
    %v4648 = vmul.f32 %v4647, %v4647
    %4649 = vadd.xlane.f32.xlu0 %v4648
    %v4650 = vpop.xlane.xlu0 %4649
    %v4651 = vmul.f32 %v4650, 0.03125
    %v4652 = vadd.f32 %v4651, 1e-05
    %v4653 = vrsqrt.pop %v4652
    %v4654 = vmul.f32 %v4647, %v4653
    %v4656 = vlaneseq
    %v4657 = vshrl.u32 %v4656, 7
    %v4658 = vsub.s32 0, %v4657
    %v4659 = vrot.slane %v1488, %v4658
    %v4661 = vmul.f32 %v4654, %v4659
    %v4663 = vlaneseq
    %v4664 = vshrl.u32 %v4663, 7
    %v4665 = vsub.s32 0, %v4664
    %v4666 = vrot.slane %v1489, %v4665
    %v4668 = vadd.f32 %v4661, %v4666
    %v4669 = vpack.c.bf16 %v4668, %v4668
    %s4670 = scalar_lea.vmem [#allocation11], 512
    %v4671 = vld [vmem:[%s4670] sm:$0xff]
    %v4672 = vld [vmem:[%s4670 + $0x8] sm:$0xff]
    %v4673 = vld [vmem:[%s4670 + $0x10] sm:$0xff]
    %v4674 = vld [vmem:[%s4670 + $0x18] sm:$0xff]
    %v4675 = vld [vmem:[%s4670 + $0x20] sm:$0xff]
    %v4676 = vld [vmem:[%s4670 + $0x28] sm:$0xff]
    %v4677 = vld [vmem:[%s4670 + $0x30] sm:$0xff]
    %v4678 = vld [vmem:[%s4670 + $0x38] sm:$0xff]
    %v4679 = vld [vmem:[%s4670 + $0x40] sm:$0xff]
    %v4680 = vld [vmem:[%s4670 + $0x48] sm:$0xff]
    %v4681 = vld [vmem:[%s4670 + $0x50] sm:$0xff]
    %v4682 = vld [vmem:[%s4670 + $0x58] sm:$0xff]
    %v4683 = vld [vmem:[%s4670 + $0x60] sm:$0xff]
    %v4684 = vld [vmem:[%s4670 + $0x68] sm:$0xff]
    %v4685 = vld [vmem:[%s4670 + $0x70] sm:$0xff]
    %v4686 = vld [vmem:[%s4670 + $0x78] sm:$0xff]
    %v4687 = vld [vmem:[%s4670 + $0x80] sm:$0xff]
    %v4688 = vld [vmem:[%s4670 + $0x88] sm:$0xff]
    %v4689 = vld [vmem:[%s4670 + $0x90] sm:$0xff]
    %v4690 = vld [vmem:[%s4670 + $0x98] sm:$0xff]
    %v4691 = vld [vmem:[%s4670 + $0xa0] sm:$0xff]
    %v4692 = vld [vmem:[%s4670 + $0xa8] sm:$0xff]
    %v4693 = vld [vmem:[%s4670 + $0xb0] sm:$0xff]
    %v4694 = vld [vmem:[%s4670 + $0xb8] sm:$0xff]
    %v4695 = vld [vmem:[%s4670 + $0xc0] sm:$0xff]
    %v4696 = vld [vmem:[%s4670 + $0xc8] sm:$0xff]
    %v4697 = vld [vmem:[%s4670 + $0xd0] sm:$0xff]
    %v4698 = vld [vmem:[%s4670 + $0xd8] sm:$0xff]
    %v4699 = vld [vmem:[%s4670 + $0xe0] sm:$0xff]
    %v4700 = vld [vmem:[%s4670 + $0xe8] sm:$0xff]
    %v4701 = vld [vmem:[%s4670 + $0xf0] sm:$0xff]
    %v4702 = vld [vmem:[%s4670 + $0xf8] sm:$0xff]
    %v4703 = vld [vmem:[%s4670 + $0x100] sm:$0xff]
    %v4704 = vld [vmem:[%s4670 + $0x108] sm:$0xff]
    %v4705 = vld [vmem:[%s4670 + $0x110] sm:$0xff]
    %v4706 = vld [vmem:[%s4670 + $0x118] sm:$0xff]
    %v4707 = vld [vmem:[%s4670 + $0x120] sm:$0xff]
    %v4708 = vld [vmem:[%s4670 + $0x128] sm:$0xff]
    %v4709 = vld [vmem:[%s4670 + $0x130] sm:$0xff]
    %v4710 = vld [vmem:[%s4670 + $0x138] sm:$0xff]
    %v4711 = vld [vmem:[%s4670 + $0x140] sm:$0xff]
    %v4712 = vld [vmem:[%s4670 + $0x148] sm:$0xff]
    %v4713 = vld [vmem:[%s4670 + $0x150] sm:$0xff]
    %v4714 = vld [vmem:[%s4670 + $0x158] sm:$0xff]
    %v4715 = vld [vmem:[%s4670 + $0x160] sm:$0xff]
    %v4716 = vld [vmem:[%s4670 + $0x168] sm:$0xff]
    %v4717 = vld [vmem:[%s4670 + $0x170] sm:$0xff]
    %v4718 = vld [vmem:[%s4670 + $0x178] sm:$0xff]
    %v4719 = vld [vmem:[%s4670 + $0x180] sm:$0xff]
    %v4720 = vld [vmem:[%s4670 + $0x188] sm:$0xff]
    %v4721 = vld [vmem:[%s4670 + $0x190] sm:$0xff]
    %v4722 = vld [vmem:[%s4670 + $0x198] sm:$0xff]
    %v4723 = vld [vmem:[%s4670 + $0x1a0] sm:$0xff]
    %v4724 = vld [vmem:[%s4670 + $0x1a8] sm:$0xff]
    %v4725 = vld [vmem:[%s4670 + $0x1b0] sm:$0xff]
    %v4726 = vld [vmem:[%s4670 + $0x1b8] sm:$0xff]
    %v4727 = vld [vmem:[%s4670 + $0x1c0] sm:$0xff]
    %v4728 = vld [vmem:[%s4670 + $0x1c8] sm:$0xff]
    %v4729 = vld [vmem:[%s4670 + $0x1d0] sm:$0xff]
    %v4730 = vld [vmem:[%s4670 + $0x1d8] sm:$0xff]
    %v4731 = vld [vmem:[%s4670 + $0x1e0] sm:$0xff]
    %v4732 = vld [vmem:[%s4670 + $0x1e8] sm:$0xff]
    %v4733 = vld [vmem:[%s4670 + $0x1f0] sm:$0xff]
    %v4734 = vld [vmem:[%s4670 + $0x1f8] sm:$0xff]
    %s4735 = scalar_lea.vmem [#allocation13], 8
    %v4736 = vld [vmem:[%s4735] sm:$0xff]
    %v4738 = vlaneseq
    %v4739 = vshrl.u32 %v4738, 7
    %v4740 = vsub.s32 0, %v4739
    %v4741 = vrot.slane %v4736, %v4740
    %v4742 = vlaneseq
    %v4743 = vshrl.u32 %v4742, 7
    %v4744 = vsub.s32 1, %v4743
    %v4745 = vrot.slane %v4736, %v4744
    %v4746 = vlaneseq
    %v4747 = vshrl.u32 %v4746, 7
    %v4748 = vsub.s32 2, %v4747
    %v4749 = vrot.slane %v4736, %v4748
    %v4750 = vlaneseq
    %v4751 = vshrl.u32 %v4750, 7
    %v4752 = vsub.s32 3, %v4751
    %v4753 = vrot.slane %v4736, %v4752
    %v4754 = vlaneseq
    %v4755 = vshrl.u32 %v4754, 7
    %v4756 = vsub.s32 4, %v4755
    %v4757 = vrot.slane %v4736, %v4756
    %v4758 = vlaneseq
    %v4759 = vshrl.u32 %v4758, 7
    %v4760 = vsub.s32 5, %v4759
    %v4761 = vrot.slane %v4736, %v4760
    %v4762 = vlaneseq
    %v4763 = vshrl.u32 %v4762, 7
    %v4764 = vsub.s32 6, %v4763
    %v4765 = vrot.slane %v4736, %v4764
    %v4766 = vlaneseq
    %v4767 = vshrl.u32 %v4766, 7
    %v4768 = vsub.s32 7, %v4767
    %v4769 = vrot.slane %v4736, %v4768
    %v4842 = vunpack.c.l.b16 %v4671
    %v4843 = vunpack.c.h.b16 %v4671
    %v4844 = vunpack.c.l.b16 %v4672
    %v4845 = vunpack.c.h.b16 %v4672
    %v4846 = vunpack.c.l.b16 %v4673
    %v4847 = vunpack.c.h.b16 %v4673
    %v4848 = vunpack.c.l.b16 %v4674
    %v4849 = vunpack.c.h.b16 %v4674
    %v4850 = vunpack.c.l.b16 %v4675
    %v4851 = vunpack.c.h.b16 %v4675
    %v4852 = vunpack.c.l.b16 %v4676
    %v4853 = vunpack.c.h.b16 %v4676
    %v4854 = vunpack.c.l.b16 %v4677
    %v4855 = vunpack.c.h.b16 %v4677
    %v4856 = vunpack.c.l.b16 %v4678
    %v4857 = vunpack.c.h.b16 %v4678
    %v4858 = vunpack.c.l.b16 %v4679
    %v4859 = vunpack.c.h.b16 %v4679
    %v4860 = vunpack.c.l.b16 %v4680
    %v4861 = vunpack.c.h.b16 %v4680
    %v4862 = vunpack.c.l.b16 %v4681
    %v4863 = vunpack.c.h.b16 %v4681
    %v4864 = vunpack.c.l.b16 %v4682
    %v4865 = vunpack.c.h.b16 %v4682
    %v4866 = vunpack.c.l.b16 %v4683
    %v4867 = vunpack.c.h.b16 %v4683
    %v4868 = vunpack.c.l.b16 %v4684
    %v4869 = vunpack.c.h.b16 %v4684
    %v4870 = vunpack.c.l.b16 %v4685
    %v4871 = vunpack.c.h.b16 %v4685
    %v4872 = vunpack.c.l.b16 %v4686
    %v4873 = vunpack.c.h.b16 %v4686
    %v4874 = vunpack.c.l.b16 %v4687
    %v4875 = vunpack.c.h.b16 %v4687
    %v4876 = vunpack.c.l.b16 %v4688
    %v4877 = vunpack.c.h.b16 %v4688
    %v4878 = vunpack.c.l.b16 %v4689
    %v4879 = vunpack.c.h.b16 %v4689
    %v4880 = vunpack.c.l.b16 %v4690
    %v4881 = vunpack.c.h.b16 %v4690
    %v4882 = vunpack.c.l.b16 %v4691
    %v4883 = vunpack.c.h.b16 %v4691
    %v4884 = vunpack.c.l.b16 %v4692
    %v4885 = vunpack.c.h.b16 %v4692
    %v4886 = vunpack.c.l.b16 %v4693
    %v4887 = vunpack.c.h.b16 %v4693
    %v4888 = vunpack.c.l.b16 %v4694
    %v4889 = vunpack.c.h.b16 %v4694
    %v4890 = vunpack.c.l.b16 %v4695
    %v4891 = vunpack.c.h.b16 %v4695
    %v4892 = vunpack.c.l.b16 %v4696
    %v4893 = vunpack.c.h.b16 %v4696
    %v4894 = vunpack.c.l.b16 %v4697
    %v4895 = vunpack.c.h.b16 %v4697
    %v4896 = vunpack.c.l.b16 %v4698
    %v4897 = vunpack.c.h.b16 %v4698
    %v4898 = vunpack.c.l.b16 %v4699
    %v4899 = vunpack.c.h.b16 %v4699
    %v4900 = vunpack.c.l.b16 %v4700
    %v4901 = vunpack.c.h.b16 %v4700
    %v4902 = vunpack.c.l.b16 %v4701
    %v4903 = vunpack.c.h.b16 %v4701
    %v4904 = vunpack.c.l.b16 %v4702
    %v4905 = vunpack.c.h.b16 %v4702
    %v4906 = vunpack.c.l.b16 %v4703
    %v4907 = vunpack.c.h.b16 %v4703
    %v4908 = vunpack.c.l.b16 %v4704
    %v4909 = vunpack.c.h.b16 %v4704
    %v4910 = vunpack.c.l.b16 %v4705
    %v4911 = vunpack.c.h.b16 %v4705
    %v4912 = vunpack.c.l.b16 %v4706
    %v4913 = vunpack.c.h.b16 %v4706
    %v4914 = vunpack.c.l.b16 %v4707
    %v4915 = vunpack.c.h.b16 %v4707
    %v4916 = vunpack.c.l.b16 %v4708
    %v4917 = vunpack.c.h.b16 %v4708
    %v4918 = vunpack.c.l.b16 %v4709
    %v4919 = vunpack.c.h.b16 %v4709
    %v4920 = vunpack.c.l.b16 %v4710
    %v4921 = vunpack.c.h.b16 %v4710
    %v4922 = vunpack.c.l.b16 %v4711
    %v4923 = vunpack.c.h.b16 %v4711
    %v4924 = vunpack.c.l.b16 %v4712
    %v4925 = vunpack.c.h.b16 %v4712
    %v4926 = vunpack.c.l.b16 %v4713
    %v4927 = vunpack.c.h.b16 %v4713
    %v4928 = vunpack.c.l.b16 %v4714
    %v4929 = vunpack.c.h.b16 %v4714
    %v4930 = vunpack.c.l.b16 %v4715
    %v4931 = vunpack.c.h.b16 %v4715
    %v4932 = vunpack.c.l.b16 %v4716
    %v4933 = vunpack.c.h.b16 %v4716
    %v4934 = vunpack.c.l.b16 %v4717
    %v4935 = vunpack.c.h.b16 %v4717
    %v4936 = vunpack.c.l.b16 %v4718
    %v4937 = vunpack.c.h.b16 %v4718
    %v4938 = vunpack.c.l.b16 %v4719
    %v4939 = vunpack.c.h.b16 %v4719
    %v4940 = vunpack.c.l.b16 %v4720
    %v4941 = vunpack.c.h.b16 %v4720
    %v4942 = vunpack.c.l.b16 %v4721
    %v4943 = vunpack.c.h.b16 %v4721
    %v4944 = vunpack.c.l.b16 %v4722
    %v4945 = vunpack.c.h.b16 %v4722
    %v4946 = vunpack.c.l.b16 %v4723
    %v4947 = vunpack.c.h.b16 %v4723
    %v4948 = vunpack.c.l.b16 %v4724
    %v4949 = vunpack.c.h.b16 %v4724
    %v4950 = vunpack.c.l.b16 %v4725
    %v4951 = vunpack.c.h.b16 %v4725
    %v4952 = vunpack.c.l.b16 %v4726
    %v4953 = vunpack.c.h.b16 %v4726
    %v4954 = vunpack.c.l.b16 %v4727
    %v4955 = vunpack.c.h.b16 %v4727
    %v4956 = vunpack.c.l.b16 %v4728
    %v4957 = vunpack.c.h.b16 %v4728
    %v4958 = vunpack.c.l.b16 %v4729
    %v4959 = vunpack.c.h.b16 %v4729
    %v4960 = vunpack.c.l.b16 %v4730
    %v4961 = vunpack.c.h.b16 %v4730
    %v4962 = vunpack.c.l.b16 %v4731
    %v4963 = vunpack.c.h.b16 %v4731
    %v4964 = vunpack.c.l.b16 %v4732
    %v4965 = vunpack.c.h.b16 %v4732
    %v4966 = vunpack.c.l.b16 %v4733
    %v4967 = vunpack.c.h.b16 %v4733
    %v4968 = vunpack.c.l.b16 %v4734
    %v4969 = vunpack.c.h.b16 %v4734
    %v4970 = vpack.c.b16 %v4850, %v4842
    %v4971 = vpack.c.b16 %v4851, %v4843
    %v4972 = vpack.c.b16 %v4852, %v4844
    %v4973 = vpack.c.b16 %v4853, %v4845
    %v4974 = vpack.c.b16 %v4854, %v4846
    %v4975 = vpack.c.b16 %v4855, %v4847
    %v4976 = vpack.c.b16 %v4856, %v4848
    %v4977 = vpack.c.b16 %v4857, %v4849
    %v4978 = vpack.c.b16 %v4866, %v4858
    %v4979 = vpack.c.b16 %v4867, %v4859
    %v4980 = vpack.c.b16 %v4868, %v4860
    %v4981 = vpack.c.b16 %v4869, %v4861
    %v4982 = vpack.c.b16 %v4870, %v4862
    %v4983 = vpack.c.b16 %v4871, %v4863
    %v4984 = vpack.c.b16 %v4872, %v4864
    %v4985 = vpack.c.b16 %v4873, %v4865
    %v4986 = vpack.c.b16 %v4882, %v4874
    %v4987 = vpack.c.b16 %v4883, %v4875
    %v4988 = vpack.c.b16 %v4884, %v4876
    %v4989 = vpack.c.b16 %v4885, %v4877
    %v4990 = vpack.c.b16 %v4886, %v4878
    %v4991 = vpack.c.b16 %v4887, %v4879
    %v4992 = vpack.c.b16 %v4888, %v4880
    %v4993 = vpack.c.b16 %v4889, %v4881
    %v4994 = vpack.c.b16 %v4898, %v4890
    %v4995 = vpack.c.b16 %v4899, %v4891
    %v4996 = vpack.c.b16 %v4900, %v4892
    %v4997 = vpack.c.b16 %v4901, %v4893
    %v4998 = vpack.c.b16 %v4902, %v4894
    %v4999 = vpack.c.b16 %v4903, %v4895
    %v5000 = vpack.c.b16 %v4904, %v4896
    %v5001 = vpack.c.b16 %v4905, %v4897
    %v5002 = vpack.c.b16 %v4914, %v4906
    %v5003 = vpack.c.b16 %v4915, %v4907
    %v5004 = vpack.c.b16 %v4916, %v4908
    %v5005 = vpack.c.b16 %v4917, %v4909
    %v5006 = vpack.c.b16 %v4918, %v4910
    %v5007 = vpack.c.b16 %v4919, %v4911
    %v5008 = vpack.c.b16 %v4920, %v4912
    %v5009 = vpack.c.b16 %v4921, %v4913
    %v5010 = vpack.c.b16 %v4930, %v4922
    %v5011 = vpack.c.b16 %v4931, %v4923
    %v5012 = vpack.c.b16 %v4932, %v4924
    %v5013 = vpack.c.b16 %v4933, %v4925
    %v5014 = vpack.c.b16 %v4934, %v4926
    %v5015 = vpack.c.b16 %v4935, %v4927
    %v5016 = vpack.c.b16 %v4936, %v4928
    %v5017 = vpack.c.b16 %v4937, %v4929
    %v5018 = vpack.c.b16 %v4946, %v4938
    %v5019 = vpack.c.b16 %v4947, %v4939
    %v5020 = vpack.c.b16 %v4948, %v4940
    %v5021 = vpack.c.b16 %v4949, %v4941
    %v5022 = vpack.c.b16 %v4950, %v4942
    %v5023 = vpack.c.b16 %v4951, %v4943
    %v5024 = vpack.c.b16 %v4952, %v4944
    %v5025 = vpack.c.b16 %v4953, %v4945
    %v5026 = vpack.c.b16 %v4962, %v4954
    %v5027 = vpack.c.b16 %v4963, %v4955
    %v5028 = vpack.c.b16 %v4964, %v4956
    %v5029 = vpack.c.b16 %v4965, %v4957
    %v5030 = vpack.c.b16 %v4966, %v4958
    %v5031 = vpack.c.b16 %v4967, %v4959
    %v5032 = vpack.c.b16 %v4968, %v4960
    %v5033 = vpack.c.b16 %v4969, %v4961
    %5098 = vmatprep.subr.bf16.mxu0 %v4971
    %5099 = vmatpush1.bf16.msra.mxu0 %v4970
    %5100 = vmatprep.subr.bf16.mxu0 %v4979
    %5101 = vmatpush1.bf16.msra.mxu0 %v4978
    %5102 = vmatprep.subr.bf16.mxu0 %v4987
    %5103 = vmatpush1.bf16.msra.mxu0 %v4986
    %5104 = vmatprep.subr.bf16.mxu0 %v4995
    %5105 = vmatpush1.bf16.msra.mxu0 %v4994
    %5106 = vmatprep.subr.bf16.mxu0 %v5003
    %5107 = vmatpush1.bf16.msra.mxu0 %v5002
    %5108 = vmatprep.subr.bf16.mxu0 %v5011
    %5109 = vmatpush1.bf16.msra.mxu0 %v5010
    %5110 = vmatprep.subr.bf16.mxu0 %v5019
    %5111 = vmatpush1.bf16.msra.mxu0 %v5018
    %5112 = vmatprep.subr.bf16.mxu0 %v5027
    %5113 = vmatpush1.bf16.msra.mxu0 %v5026
    %5114 = vmatprep.subr.bf16.mxu0 0
    %5115 = vmatpush1.bf16.msra.mxu0 0
    %5116 = vmatprep.subr.bf16.mxu0 0
    %5117 = vmatpush1.bf16.msra.mxu0 0
    %5118 = vmatprep.subr.bf16.mxu0 0
    %5119 = vmatpush1.bf16.msra.mxu0 0
    %5120 = vmatprep.subr.bf16.mxu0 0
    %5121 = vmatpush1.bf16.msra.mxu0 0
    %5122 = vmatprep.subr.bf16.mxu0 0
    %5123 = vmatpush1.bf16.msra.mxu0 0
    %5124 = vmatprep.subr.bf16.mxu0 0
    %5125 = vmatpush1.bf16.msra.mxu0 0
    %5126 = vmatprep.subr.bf16.mxu0 0
    %5127 = vmatpush1.bf16.msra.mxu0 0
    %5128 = vmatprep.subr.bf16.mxu0 0
    %5129 = vmatpush1.bf16.msra.mxu0 0
    %5130 = vmatprep.mubr.bf16.mxu0 0
    %5131 = vmatmul.mubr.bf16.gmra.mrb[0].mxu0 %v4669
    %v5132 = vpop.f32.mrb[0].mxu0
    %v5133 = vadd.f32 %v4741, %v5132
    %v5134 = vpop.f32.mrb[0].mxu0
    %v5135 = vadd.f32 %v4745, %v5134
    %v5136 = vpop.f32.mrb[0].mxu0
    %v5137 = vpop.f32.mrb[0].mxu0
    %5138 = vdwg.mxu0
    %5139 = vmatprep.subr.bf16.mxu0 %v4973
    %5140 = vmatpush1.bf16.msra.mxu0 %v4972
    %5141 = vmatprep.subr.bf16.mxu0 %v4981
    %5142 = vmatpush1.bf16.msra.mxu0 %v4980
    %5143 = vmatprep.subr.bf16.mxu0 %v4989
    %5144 = vmatpush1.bf16.msra.mxu0 %v4988
    %5145 = vmatprep.subr.bf16.mxu0 %v4997
    %5146 = vmatpush1.bf16.msra.mxu0 %v4996
    %5147 = vmatprep.subr.bf16.mxu0 %v5005
    %5148 = vmatpush1.bf16.msra.mxu0 %v5004
    %5149 = vmatprep.subr.bf16.mxu0 %v5013
    %5150 = vmatpush1.bf16.msra.mxu0 %v5012
    %5151 = vmatprep.subr.bf16.mxu0 %v5021
    %5152 = vmatpush1.bf16.msra.mxu0 %v5020
    %5153 = vmatprep.subr.bf16.mxu0 %v5029
    %5154 = vmatpush1.bf16.msra.mxu0 %v5028
    %5155 = vmatprep.subr.bf16.mxu0 0
    %5156 = vmatpush1.bf16.msra.mxu0 0
    %5157 = vmatprep.subr.bf16.mxu0 0
    %5158 = vmatpush1.bf16.msra.mxu0 0
    %5159 = vmatprep.subr.bf16.mxu0 0
    %5160 = vmatpush1.bf16.msra.mxu0 0
    %5161 = vmatprep.subr.bf16.mxu0 0
    %5162 = vmatpush1.bf16.msra.mxu0 0
    %5163 = vmatprep.subr.bf16.mxu0 0
    %5164 = vmatpush1.bf16.msra.mxu0 0
    %5165 = vmatprep.subr.bf16.mxu0 0
    %5166 = vmatpush1.bf16.msra.mxu0 0
    %5167 = vmatprep.subr.bf16.mxu0 0
    %5168 = vmatpush1.bf16.msra.mxu0 0
    %5169 = vmatprep.subr.bf16.mxu0 0
    %5170 = vmatpush1.bf16.msra.mxu0 0
    %5171 = vmatprep.mubr.bf16.mxu0 0
    %5172 = vmatmul.mubr.bf16.gmra.mrb[0].mxu0 %v4669
    %v5173 = vpop.f32.mrb[0].mxu0
    %v5174 = vadd.f32 %v4749, %v5173
    %v5175 = vpop.f32.mrb[0].mxu0
    %v5176 = vadd.f32 %v4753, %v5175
    %v5177 = vpop.f32.mrb[0].mxu0
    %v5178 = vpop.f32.mrb[0].mxu0
    %5179 = vdwg.mxu0
    %5180 = vmatprep.subr.bf16.mxu0 %v4975
    %5181 = vmatpush1.bf16.msra.mxu0 %v4974
    %5182 = vmatprep.subr.bf16.mxu0 %v4983
    %5183 = vmatpush1.bf16.msra.mxu0 %v4982
    %5184 = vmatprep.subr.bf16.mxu0 %v4991
    %5185 = vmatpush1.bf16.msra.mxu0 %v4990
    %5186 = vmatprep.subr.bf16.mxu0 %v4999
    %5187 = vmatpush1.bf16.msra.mxu0 %v4998
    %5188 = vmatprep.subr.bf16.mxu0 %v5007
    %5189 = vmatpush1.bf16.msra.mxu0 %v5006
    %5190 = vmatprep.subr.bf16.mxu0 %v5015
    %5191 = vmatpush1.bf16.msra.mxu0 %v5014
    %5192 = vmatprep.subr.bf16.mxu0 %v5023
    %5193 = vmatpush1.bf16.msra.mxu0 %v5022
    %5194 = vmatprep.subr.bf16.mxu0 %v5031
    %5195 = vmatpush1.bf16.msra.mxu0 %v5030
    %5196 = vmatprep.subr.bf16.mxu0 0
    %5197 = vmatpush1.bf16.msra.mxu0 0
    %5198 = vmatprep.subr.bf16.mxu0 0
    %5199 = vmatpush1.bf16.msra.mxu0 0
    %5200 = vmatprep.subr.bf16.mxu0 0
    %5201 = vmatpush1.bf16.msra.mxu0 0
    %5202 = vmatprep.subr.bf16.mxu0 0
    %5203 = vmatpush1.bf16.msra.mxu0 0
    %5204 = vmatprep.subr.bf16.mxu0 0
    %5205 = vmatpush1.bf16.msra.mxu0 0
    %5206 = vmatprep.subr.bf16.mxu0 0
    %5207 = vmatpush1.bf16.msra.mxu0 0
    %5208 = vmatprep.subr.bf16.mxu0 0
    %5209 = vmatpush1.bf16.msra.mxu0 0
    %5210 = vmatprep.subr.bf16.mxu0 0
    %5211 = vmatpush1.bf16.msra.mxu0 0
    %5212 = vmatprep.mubr.bf16.mxu0 0
    %5213 = vmatmul.mubr.bf16.gmra.mrb[0].mxu0 %v4669
    %v5214 = vpop.f32.mrb[0].mxu0
    %v5215 = vadd.f32 %v4757, %v5214
    %v5216 = vpop.f32.mrb[0].mxu0
    %v5217 = vadd.f32 %v4761, %v5216
    %v5218 = vpop.f32.mrb[0].mxu0
    %v5219 = vpop.f32.mrb[0].mxu0
    %5220 = vdwg.mxu0
    %5221 = vmatprep.subr.bf16.mxu0 %v4977
    %5222 = vmatpush1.bf16.msra.mxu0 %v4976
    %5223 = vmatprep.subr.bf16.mxu0 %v4985
    %5224 = vmatpush1.bf16.msra.mxu0 %v4984
    %5225 = vmatprep.subr.bf16.mxu0 %v4993
    %5226 = vmatpush1.bf16.msra.mxu0 %v4992
    %5227 = vmatprep.subr.bf16.mxu0 %v5001
    %5228 = vmatpush1.bf16.msra.mxu0 %v5000
    %5229 = vmatprep.subr.bf16.mxu0 %v5009
    %5230 = vmatpush1.bf16.msra.mxu0 %v5008
    %5231 = vmatprep.subr.bf16.mxu0 %v5017
    %5232 = vmatpush1.bf16.msra.mxu0 %v5016
    %5233 = vmatprep.subr.bf16.mxu0 %v5025
    %5234 = vmatpush1.bf16.msra.mxu0 %v5024
    %5235 = vmatprep.subr.bf16.mxu0 %v5033
    %5236 = vmatpush1.bf16.msra.mxu0 %v5032
    %5237 = vmatprep.subr.bf16.mxu0 0
    %5238 = vmatpush1.bf16.msra.mxu0 0
    %5239 = vmatprep.subr.bf16.mxu0 0
    %5240 = vmatpush1.bf16.msra.mxu0 0
    %5241 = vmatprep.subr.bf16.mxu0 0
    %5242 = vmatpush1.bf16.msra.mxu0 0
    %5243 = vmatprep.subr.bf16.mxu0 0
    %5244 = vmatpush1.bf16.msra.mxu0 0
    %5245 = vmatprep.subr.bf16.mxu0 0
    %5246 = vmatpush1.bf16.msra.mxu0 0
    %5247 = vmatprep.subr.bf16.mxu0 0
    %5248 = vmatpush1.bf16.msra.mxu0 0
    %5249 = vmatprep.subr.bf16.mxu0 0
    %5250 = vmatpush1.bf16.msra.mxu0 0
    %5251 = vmatprep.subr.bf16.mxu0 0
    %5252 = vmatpush1.bf16.msra.mxu0 0
    %5253 = vmatprep.mubr.bf16.mxu0 0
    %5254 = vmatmul.mubr.bf16.gmra.mrb[0].mxu0 %v4669
    %v5255 = vpop.f32.mrb[0].mxu0
    %v5256 = vadd.f32 %v4765, %v5255
    %v5257 = vpop.f32.mrb[0].mxu0
    %v5258 = vadd.f32 %v4769, %v5257
    %v5259 = vpop.f32.mrb[0].mxu0
    %v5260 = vpop.f32.mrb[0].mxu0
    %5261 = vdwg.mxu0
    %v5262 = vpack.c.bf16 %v5133, %v5133
    %v5263 = vpack.c.bf16 %v5135, %v5135
    %v5264 = vpack.c.bf16 %v5174, %v5174
    %v5265 = vpack.c.bf16 %v5176, %v5176
    %v5266 = vpack.c.bf16 %v5215, %v5215
    %v5267 = vpack.c.bf16 %v5217, %v5217
    %v5268 = vpack.c.bf16 %v5256, %v5256
    %v5269 = vpack.c.bf16 %v5258, %v5258
    %s5270 = scalar_lea.vmem [#allocation8], 256
    %v5271 = vld [vmem:[%s5270] sm:$0xff]
    %v5272 = vld [vmem:[%s5270 + $0x8] sm:$0xff]
    %v5273 = vld [vmem:[%s5270 + $0x10] sm:$0xff]
    %v5274 = vld [vmem:[%s5270 + $0x18] sm:$0xff]
    %v5275 = vld [vmem:[%s5270 + $0x20] sm:$0xff]
    %v5276 = vld [vmem:[%s5270 + $0x28] sm:$0xff]
    %v5277 = vld [vmem:[%s5270 + $0x30] sm:$0xff]
    %v5278 = vld [vmem:[%s5270 + $0x38] sm:$0xff]
    %v5279 = vld [vmem:[%s5270 + $0x40] sm:$0xff]
    %v5280 = vld [vmem:[%s5270 + $0x48] sm:$0xff]
    %v5281 = vld [vmem:[%s5270 + $0x50] sm:$0xff]
    %v5282 = vld [vmem:[%s5270 + $0x58] sm:$0xff]
    %v5283 = vld [vmem:[%s5270 + $0x60] sm:$0xff]
    %v5284 = vld [vmem:[%s5270 + $0x68] sm:$0xff]
    %v5285 = vld [vmem:[%s5270 + $0x70] sm:$0xff]
    %v5286 = vld [vmem:[%s5270 + $0x78] sm:$0xff]
    %v5287 = vld [vmem:[%s5270 + $0x80] sm:$0xff]
    %v5288 = vld [vmem:[%s5270 + $0x88] sm:$0xff]
    %v5289 = vld [vmem:[%s5270 + $0x90] sm:$0xff]
    %v5290 = vld [vmem:[%s5270 + $0x98] sm:$0xff]
    %v5291 = vld [vmem:[%s5270 + $0xa0] sm:$0xff]
    %v5292 = vld [vmem:[%s5270 + $0xa8] sm:$0xff]
    %v5293 = vld [vmem:[%s5270 + $0xb0] sm:$0xff]
    %v5294 = vld [vmem:[%s5270 + $0xb8] sm:$0xff]
    %v5295 = vld [vmem:[%s5270 + $0xc0] sm:$0xff]
    %v5296 = vld [vmem:[%s5270 + $0xc8] sm:$0xff]
    %v5297 = vld [vmem:[%s5270 + $0xd0] sm:$0xff]
    %v5298 = vld [vmem:[%s5270 + $0xd8] sm:$0xff]
    %v5299 = vld [vmem:[%s5270 + $0xe0] sm:$0xff]
    %v5300 = vld [vmem:[%s5270 + $0xe8] sm:$0xff]
    %v5301 = vld [vmem:[%s5270 + $0xf0] sm:$0xff]
    %v5302 = vld [vmem:[%s5270 + $0xf8] sm:$0xff]
    %s5303 = scalar_lea.vmem [#allocation10], 4
    %v5304 = vld [vmem:[%s5303] sm:$0xf]
    %s5305 = scalar_lea.vmem [#allocation14], 256
    %v5306 = vld [vmem:[%s5305] sm:$0xf]
    %v5307 = vld [vmem:[%s5305 + $0x4] sm:$0xf]
    %v5308 = vld [vmem:[%s5305 + $0x8] sm:$0xf]
    %v5309 = vld [vmem:[%s5305 + $0xc] sm:$0xf]
    %v5310 = vld [vmem:[%s5305 + $0x10] sm:$0xf]
    %v5311 = vld [vmem:[%s5305 + $0x14] sm:$0xf]
    %v5312 = vld [vmem:[%s5305 + $0x18] sm:$0xf]
    %v5313 = vld [vmem:[%s5305 + $0x1c] sm:$0xf]
    %v5314 = vld [vmem:[%s5305 + $0x20] sm:$0xf]
    %v5315 = vld [vmem:[%s5305 + $0x24] sm:$0xf]
    %v5316 = vld [vmem:[%s5305 + $0x28] sm:$0xf]
    %v5317 = vld [vmem:[%s5305 + $0x2c] sm:$0xf]
    %v5318 = vld [vmem:[%s5305 + $0x30] sm:$0xf]
    %v5319 = vld [vmem:[%s5305 + $0x34] sm:$0xf]
    %v5320 = vld [vmem:[%s5305 + $0x38] sm:$0xf]
    %v5321 = vld [vmem:[%s5305 + $0x3c] sm:$0xf]
    %v5322 = vld [vmem:[%s5305 + $0x40] sm:$0xf]
    %v5323 = vld [vmem:[%s5305 + $0x44] sm:$0xf]
    %v5324 = vld [vmem:[%s5305 + $0x48] sm:$0xf]
    %v5325 = vld [vmem:[%s5305 + $0x4c] sm:$0xf]
    %v5326 = vld [vmem:[%s5305 + $0x50] sm:$0xf]
    %v5327 = vld [vmem:[%s5305 + $0x54] sm:$0xf]
    %v5328 = vld [vmem:[%s5305 + $0x58] sm:$0xf]
    %v5329 = vld [vmem:[%s5305 + $0x5c] sm:$0xf]
    %v5330 = vld [vmem:[%s5305 + $0x60] sm:$0xf]
    %v5331 = vld [vmem:[%s5305 + $0x64] sm:$0xf]
    %v5332 = vld [vmem:[%s5305 + $0x68] sm:$0xf]
    %v5333 = vld [vmem:[%s5305 + $0x6c] sm:$0xf]
    %v5334 = vld [vmem:[%s5305 + $0x70] sm:$0xf]
    %v5335 = vld [vmem:[%s5305 + $0x74] sm:$0xf]
    %v5336 = vld [vmem:[%s5305 + $0x78] sm:$0xf]
    %v5337 = vld [vmem:[%s5305 + $0x7c] sm:$0xf]
    %v5338 = vld [vmem:[%s5305 + $0x80] sm:$0xf]
    %v5339 = vld [vmem:[%s5305 + $0x84] sm:$0xf]
    %v5340 = vld [vmem:[%s5305 + $0x88] sm:$0xf]
    %v5341 = vld [vmem:[%s5305 + $0x8c] sm:$0xf]
    %v5342 = vld [vmem:[%s5305 + $0x90] sm:$0xf]
    %v5343 = vld [vmem:[%s5305 + $0x94] sm:$0xf]
    %v5344 = vld [vmem:[%s5305 + $0x98] sm:$0xf]
    %v5345 = vld [vmem:[%s5305 + $0x9c] sm:$0xf]
    %v5346 = vld [vmem:[%s5305 + $0xa0] sm:$0xf]
    %v5347 = vld [vmem:[%s5305 + $0xa4] sm:$0xf]
    %v5348 = vld [vmem:[%s5305 + $0xa8] sm:$0xf]
    %v5349 = vld [vmem:[%s5305 + $0xac] sm:$0xf]
    %v5350 = vld [vmem:[%s5305 + $0xb0] sm:$0xf]
    %v5351 = vld [vmem:[%s5305 + $0xb4] sm:$0xf]
    %v5352 = vld [vmem:[%s5305 + $0xb8] sm:$0xf]
    %v5353 = vld [vmem:[%s5305 + $0xbc] sm:$0xf]
    %v5354 = vld [vmem:[%s5305 + $0xc0] sm:$0xf]
    %v5355 = vld [vmem:[%s5305 + $0xc4] sm:$0xf]
    %v5356 = vld [vmem:[%s5305 + $0xc8] sm:$0xf]
    %v5357 = vld [vmem:[%s5305 + $0xcc] sm:$0xf]
    %v5358 = vld [vmem:[%s5305 + $0xd0] sm:$0xf]
    %v5359 = vld [vmem:[%s5305 + $0xd4] sm:$0xf]
    %v5360 = vld [vmem:[%s5305 + $0xd8] sm:$0xf]
    %v5361 = vld [vmem:[%s5305 + $0xdc] sm:$0xf]
    %v5362 = vld [vmem:[%s5305 + $0xe0] sm:$0xf]
    %v5363 = vld [vmem:[%s5305 + $0xe4] sm:$0xf]
    %v5364 = vld [vmem:[%s5305 + $0xe8] sm:$0xf]
    %v5365 = vld [vmem:[%s5305 + $0xec] sm:$0xf]
    %v5366 = vld [vmem:[%s5305 + $0xf0] sm:$0xf]
    %v5367 = vld [vmem:[%s5305 + $0xf4] sm:$0xf]
    %v5368 = vld [vmem:[%s5305 + $0xf8] sm:$0xf]
    %v5369 = vld [vmem:[%s5305 + $0xfc] sm:$0xf]
    %s5370 = scalar_lea.vmem [#allocation16], 1
    %v5371 = vld [vmem:[%s5370] sm:$0x1]
    %s5372 = scalar_lea.vmem [#allocation17], 1024
    %v5373 = vld [vmem:[%s5372] sm:$0xff]
    %v5374 = vld [vmem:[%s5372 + $0x8] sm:$0xff]
    %v5375 = vld [vmem:[%s5372 + $0x10] sm:$0xff]
    %v5376 = vld [vmem:[%s5372 + $0x18] sm:$0xff]
    %v5377 = vld [vmem:[%s5372 + $0x20] sm:$0xff]
    %v5378 = vld [vmem:[%s5372 + $0x28] sm:$0xff]
    %v5379 = vld [vmem:[%s5372 + $0x30] sm:$0xff]
    %v5380 = vld [vmem:[%s5372 + $0x38] sm:$0xff]
    %v5381 = vld [vmem:[%s5372 + $0x40] sm:$0xff]
    %v5382 = vld [vmem:[%s5372 + $0x48] sm:$0xff]
    %v5383 = vld [vmem:[%s5372 + $0x50] sm:$0xff]
    %v5384 = vld [vmem:[%s5372 + $0x58] sm:$0xff]
    %v5385 = vld [vmem:[%s5372 + $0x60] sm:$0xff]
    %v5386 = vld [vmem:[%s5372 + $0x68] sm:$0xff]
    %v5387 = vld [vmem:[%s5372 + $0x70] sm:$0xff]
    %v5388 = vld [vmem:[%s5372 + $0x78] sm:$0xff]
    %v5389 = vld [vmem:[%s5372 + $0x80] sm:$0xff]
    %v5390 = vld [vmem:[%s5372 + $0x88] sm:$0xff]
    %v5391 = vld [vmem:[%s5372 + $0x90] sm:$0xff]
    %v5392 = vld [vmem:[%s5372 + $0x98] sm:$0xff]
    %v5393 = vld [vmem:[%s5372 + $0xa0] sm:$0xff]
    %v5394 = vld [vmem:[%s5372 + $0xa8] sm:$0xff]
    %v5395 = vld [vmem:[%s5372 + $0xb0] sm:$0xff]
    %v5396 = vld [vmem:[%s5372 + $0xb8] sm:$0xff]
    %v5397 = vld [vmem:[%s5372 + $0xc0] sm:$0xff]
    %v5398 = vld [vmem:[%s5372 + $0xc8] sm:$0xff]
    %v5399 = vld [vmem:[%s5372 + $0xd0] sm:$0xff]
    %v5400 = vld [vmem:[%s5372 + $0xd8] sm:$0xff]
    %v5401 = vld [vmem:[%s5372 + $0xe0] sm:$0xff]
    %v5402 = vld [vmem:[%s5372 + $0xe8] sm:$0xff]
    %v5403 = vld [vmem:[%s5372 + $0xf0] sm:$0xff]
    %v5404 = vld [vmem:[%s5372 + $0xf8] sm:$0xff]
    %v5405 = vld [vmem:[%s5372 + $0x100] sm:$0xff]
    %v5406 = vld [vmem:[%s5372 + $0x108] sm:$0xff]
    %v5407 = vld [vmem:[%s5372 + $0x110] sm:$0xff]
    %v5408 = vld [vmem:[%s5372 + $0x118] sm:$0xff]
    %v5409 = vld [vmem:[%s5372 + $0x120] sm:$0xff]
    %v5410 = vld [vmem:[%s5372 + $0x128] sm:$0xff]
    %v5411 = vld [vmem:[%s5372 + $0x130] sm:$0xff]
    %v5412 = vld [vmem:[%s5372 + $0x138] sm:$0xff]
    %v5413 = vld [vmem:[%s5372 + $0x140] sm:$0xff]
    %v5414 = vld [vmem:[%s5372 + $0x148] sm:$0xff]
    %v5415 = vld [vmem:[%s5372 + $0x150] sm:$0xff]
    %v5416 = vld [vmem:[%s5372 + $0x158] sm:$0xff]
    %v5417 = vld [vmem:[%s5372 + $0x160] sm:$0xff]
    %v5418 = vld [vmem:[%s5372 + $0x168] sm:$0xff]
    %v5419 = vld [vmem:[%s5372 + $0x170] sm:$0xff]
    %v5420 = vld [vmem:[%s5372 + $0x178] sm:$0xff]
    %v5421 = vld [vmem:[%s5372 + $0x180] sm:$0xff]
    %v5422 = vld [vmem:[%s5372 + $0x188] sm:$0xff]
    %v5423 = vld [vmem:[%s5372 + $0x190] sm:$0xff]
    %v5424 = vld [vmem:[%s5372 + $0x198] sm:$0xff]
    %v5425 = vld [vmem:[%s5372 + $0x1a0] sm:$0xff]
    %v5426 = vld [vmem:[%s5372 + $0x1a8] sm:$0xff]
    %v5427 = vld [vmem:[%s5372 + $0x1b0] sm:$0xff]
    %v5428 = vld [vmem:[%s5372 + $0x1b8] sm:$0xff]
    %v5429 = vld [vmem:[%s5372 + $0x1c0] sm:$0xff]
    %v5430 = vld [vmem:[%s5372 + $0x1c8] sm:$0xff]
    %v5431 = vld [vmem:[%s5372 + $0x1d0] sm:$0xff]
    %v5432 = vld [vmem:[%s5372 + $0x1d8] sm:$0xff]
    %v5433 = vld [vmem:[%s5372 + $0x1e0] sm:$0xff]
    %v5434 = vld [vmem:[%s5372 + $0x1e8] sm:$0xff]
    %v5435 = vld [vmem:[%s5372 + $0x1f0] sm:$0xff]
    %v5436 = vld [vmem:[%s5372 + $0x1f8] sm:$0xff]
    %v5437 = vld [vmem:[%s5372 + $0x200] sm:$0xff]
    %v5438 = vld [vmem:[%s5372 + $0x208] sm:$0xff]
    %v5439 = vld [vmem:[%s5372 + $0x210] sm:$0xff]
    %v5440 = vld [vmem:[%s5372 + $0x218] sm:$0xff]
    %v5441 = vld [vmem:[%s5372 + $0x220] sm:$0xff]
    %v5442 = vld [vmem:[%s5372 + $0x228] sm:$0xff]
    %v5443 = vld [vmem:[%s5372 + $0x230] sm:$0xff]
    %v5444 = vld [vmem:[%s5372 + $0x238] sm:$0xff]
    %v5445 = vld [vmem:[%s5372 + $0x240] sm:$0xff]
    %v5446 = vld [vmem:[%s5372 + $0x248] sm:$0xff]
    %v5447 = vld [vmem:[%s5372 + $0x250] sm:$0xff]
    %v5448 = vld [vmem:[%s5372 + $0x258] sm:$0xff]
    %v5449 = vld [vmem:[%s5372 + $0x260] sm:$0xff]
    %v5450 = vld [vmem:[%s5372 + $0x268] sm:$0xff]
    %v5451 = vld [vmem:[%s5372 + $0x270] sm:$0xff]
    %v5452 = vld [vmem:[%s5372 + $0x278] sm:$0xff]
    %v5453 = vld [vmem:[%s5372 + $0x280] sm:$0xff]
    %v5454 = vld [vmem:[%s5372 + $0x288] sm:$0xff]
    %v5455 = vld [vmem:[%s5372 + $0x290] sm:$0xff]
    %v5456 = vld [vmem:[%s5372 + $0x298] sm:$0xff]
    %v5457 = vld [vmem:[%s5372 + $0x2a0] sm:$0xff]
    %v5458 = vld [vmem:[%s5372 + $0x2a8] sm:$0xff]
    %v5459 = vld [vmem:[%s5372 + $0x2b0] sm:$0xff]
    %v5460 = vld [vmem:[%s5372 + $0x2b8] sm:$0xff]
    %v5461 = vld [vmem:[%s5372 + $0x2c0] sm:$0xff]
    %v5462 = vld [vmem:[%s5372 + $0x2c8] sm:$0xff]
    %v5463 = vld [vmem:[%s5372 + $0x2d0] sm:$0xff]
    %v5464 = vld [vmem:[%s5372 + $0x2d8] sm:$0xff]
    %v5465 = vld [vmem:[%s5372 + $0x2e0] sm:$0xff]
    %v5466 = vld [vmem:[%s5372 + $0x2e8] sm:$0xff]
    %v5467 = vld [vmem:[%s5372 + $0x2f0] sm:$0xff]
    %v5468 = vld [vmem:[%s5372 + $0x2f8] sm:$0xff]
    %v5469 = vld [vmem:[%s5372 + $0x300] sm:$0xff]
    %v5470 = vld [vmem:[%s5372 + $0x308] sm:$0xff]
    %v5471 = vld [vmem:[%s5372 + $0x310] sm:$0xff]
    %v5472 = vld [vmem:[%s5372 + $0x318] sm:$0xff]
    %v5473 = vld [vmem:[%s5372 + $0x320] sm:$0xff]
    %v5474 = vld [vmem:[%s5372 + $0x328] sm:$0xff]
    %v5475 = vld [vmem:[%s5372 + $0x330] sm:$0xff]
    %v5476 = vld [vmem:[%s5372 + $0x338] sm:$0xff]
    %v5477 = vld [vmem:[%s5372 + $0x340] sm:$0xff]
    %v5478 = vld [vmem:[%s5372 + $0x348] sm:$0xff]
    %v5479 = vld [vmem:[%s5372 + $0x350] sm:$0xff]
    %v5480 = vld [vmem:[%s5372 + $0x358] sm:$0xff]
    %v5481 = vld [vmem:[%s5372 + $0x360] sm:$0xff]
    %v5482 = vld [vmem:[%s5372 + $0x368] sm:$0xff]
    %v5483 = vld [vmem:[%s5372 + $0x370] sm:$0xff]
    %v5484 = vld [vmem:[%s5372 + $0x378] sm:$0xff]
    %v5485 = vld [vmem:[%s5372 + $0x380] sm:$0xff]
    %v5486 = vld [vmem:[%s5372 + $0x388] sm:$0xff]
    %v5487 = vld [vmem:[%s5372 + $0x390] sm:$0xff]
    %v5488 = vld [vmem:[%s5372 + $0x398] sm:$0xff]
    %v5489 = vld [vmem:[%s5372 + $0x3a0] sm:$0xff]
    %v5490 = vld [vmem:[%s5372 + $0x3a8] sm:$0xff]
    %v5491 = vld [vmem:[%s5372 + $0x3b0] sm:$0xff]
    %v5492 = vld [vmem:[%s5372 + $0x3b8] sm:$0xff]
    %v5493 = vld [vmem:[%s5372 + $0x3c0] sm:$0xff]
    %v5494 = vld [vmem:[%s5372 + $0x3c8] sm:$0xff]
    %v5495 = vld [vmem:[%s5372 + $0x3d0] sm:$0xff]
    %v5496 = vld [vmem:[%s5372 + $0x3d8] sm:$0xff]
    %v5497 = vld [vmem:[%s5372 + $0x3e0] sm:$0xff]
    %v5498 = vld [vmem:[%s5372 + $0x3e8] sm:$0xff]
    %v5499 = vld [vmem:[%s5372 + $0x3f0] sm:$0xff]
    %v5500 = vld [vmem:[%s5372 + $0x3f8] sm:$0xff]
    %s5501 = scalar_lea.vmem [#allocation19], 16
    %v5502 = vld [vmem:[%s5501] sm:$0xff]
    %v5503 = vld [vmem:[%s5501 + $0x8] sm:$0xff]
    %s5504 = scalar_lea.vmem [#allocation20], 1024
    %v5505 = vld [vmem:[%s5504] sm:$0xf]
    %v5506 = vld [vmem:[%s5504 + $0x4] sm:$0xf]
    %v5507 = vld [vmem:[%s5504 + $0x8] sm:$0xf]
    %v5508 = vld [vmem:[%s5504 + $0xc] sm:$0xf]
    %v5509 = vld [vmem:[%s5504 + $0x10] sm:$0xf]
    %v5510 = vld [vmem:[%s5504 + $0x14] sm:$0xf]
    %v5511 = vld [vmem:[%s5504 + $0x18] sm:$0xf]
    %v5512 = vld [vmem:[%s5504 + $0x1c] sm:$0xf]
    %v5513 = vld [vmem:[%s5504 + $0x20] sm:$0xf]
    %v5514 = vld [vmem:[%s5504 + $0x24] sm:$0xf]
    %v5515 = vld [vmem:[%s5504 + $0x28] sm:$0xf]
    %v5516 = vld [vmem:[%s5504 + $0x2c] sm:$0xf]
    %v5517 = vld [vmem:[%s5504 + $0x30] sm:$0xf]
    %v5518 = vld [vmem:[%s5504 + $0x34] sm:$0xf]
    %v5519 = vld [vmem:[%s5504 + $0x38] sm:$0xf]
    %v5520 = vld [vmem:[%s5504 + $0x3c] sm:$0xf]
    %v5521 = vld [vmem:[%s5504 + $0x40] sm:$0xf]
    %v5522 = vld [vmem:[%s5504 + $0x44] sm:$0xf]
    %v5523 = vld [vmem:[%s5504 + $0x48] sm:$0xf]
    %v5524 = vld [vmem:[%s5504 + $0x4c] sm:$0xf]
    %v5525 = vld [vmem:[%s5504 + $0x50] sm:$0xf]
    %v5526 = vld [vmem:[%s5504 + $0x54] sm:$0xf]
    %v5527 = vld [vmem:[%s5504 + $0x58] sm:$0xf]
    %v5528 = vld [vmem:[%s5504 + $0x5c] sm:$0xf]
    %v5529 = vld [vmem:[%s5504 + $0x60] sm:$0xf]
    %v5530 = vld [vmem:[%s5504 + $0x64] sm:$0xf]
    %v5531 = vld [vmem:[%s5504 + $0x68] sm:$0xf]
    %v5532 = vld [vmem:[%s5504 + $0x6c] sm:$0xf]
    %v5533 = vld [vmem:[%s5504 + $0x70] sm:$0xf]
    %v5534 = vld [vmem:[%s5504 + $0x74] sm:$0xf]
    %v5535 = vld [vmem:[%s5504 + $0x78] sm:$0xf]
    %v5536 = vld [vmem:[%s5504 + $0x7c] sm:$0xf]
    %v5537 = vld [vmem:[%s5504 + $0x80] sm:$0xf]
    %v5538 = vld [vmem:[%s5504 + $0x84] sm:$0xf]
    %v5539 = vld [vmem:[%s5504 + $0x88] sm:$0xf]
    %v5540 = vld [vmem:[%s5504 + $0x8c] sm:$0xf]
    %v5541 = vld [vmem:[%s5504 + $0x90] sm:$0xf]
    %v5542 = vld [vmem:[%s5504 + $0x94] sm:$0xf]
    %v5543 = vld [vmem:[%s5504 + $0x98] sm:$0xf]
    %v5544 = vld [vmem:[%s5504 + $0x9c] sm:$0xf]
    %v5545 = vld [vmem:[%s5504 + $0xa0] sm:$0xf]
    %v5546 = vld [vmem:[%s5504 + $0xa4] sm:$0xf]
    %v5547 = vld [vmem:[%s5504 + $0xa8] sm:$0xf]
    %v5548 = vld [vmem:[%s5504 + $0xac] sm:$0xf]
    %v5549 = vld [vmem:[%s5504 + $0xb0] sm:$0xf]
    %v5550 = vld [vmem:[%s5504 + $0xb4] sm:$0xf]
    %v5551 = vld [vmem:[%s5504 + $0xb8] sm:$0xf]
    %v5552 = vld [vmem:[%s5504 + $0xbc] sm:$0xf]
    %v5553 = vld [vmem:[%s5504 + $0xc0] sm:$0xf]
    %v5554 = vld [vmem:[%s5504 + $0xc4] sm:$0xf]
    %v5555 = vld [vmem:[%s5504 + $0xc8] sm:$0xf]
    %v5556 = vld [vmem:[%s5504 + $0xcc] sm:$0xf]
    %v5557 = vld [vmem:[%s5504 + $0xd0] sm:$0xf]
    %v5558 = vld [vmem:[%s5504 + $0xd4] sm:$0xf]
    %v5559 = vld [vmem:[%s5504 + $0xd8] sm:$0xf]
    %v5560 = vld [vmem:[%s5504 + $0xdc] sm:$0xf]
    %v5561 = vld [vmem:[%s5504 + $0xe0] sm:$0xf]
    %v5562 = vld [vmem:[%s5504 + $0xe4] sm:$0xf]
    %v5563 = vld [vmem:[%s5504 + $0xe8] sm:$0xf]
    %v5564 = vld [vmem:[%s5504 + $0xec] sm:$0xf]
    %v5565 = vld [vmem:[%s5504 + $0xf0] sm:$0xf]
    %v5566 = vld [vmem:[%s5504 + $0xf4] sm:$0xf]
    %v5567 = vld [vmem:[%s5504 + $0xf8] sm:$0xf]
    %v5568 = vld [vmem:[%s5504 + $0xfc] sm:$0xf]
    %v5569 = vld [vmem:[%s5504 + $0x100] sm:$0xf]
    %v5570 = vld [vmem:[%s5504 + $0x104] sm:$0xf]
    %v5571 = vld [vmem:[%s5504 + $0x108] sm:$0xf]
    %v5572 = vld [vmem:[%s5504 + $0x10c] sm:$0xf]
    %v5573 = vld [vmem:[%s5504 + $0x110] sm:$0xf]
    %v5574 = vld [vmem:[%s5504 + $0x114] sm:$0xf]
    %v5575 = vld [vmem:[%s5504 + $0x118] sm:$0xf]
    %v5576 = vld [vmem:[%s5504 + $0x11c] sm:$0xf]
    %v5577 = vld [vmem:[%s5504 + $0x120] sm:$0xf]
    %v5578 = vld [vmem:[%s5504 + $0x124] sm:$0xf]
    %v5579 = vld [vmem:[%s5504 + $0x128] sm:$0xf]
    %v5580 = vld [vmem:[%s5504 + $0x12c] sm:$0xf]
    %v5581 = vld [vmem:[%s5504 + $0x130] sm:$0xf]
    %v5582 = vld [vmem:[%s5504 + $0x134] sm:$0xf]
    %v5583 = vld [vmem:[%s5504 + $0x138] sm:$0xf]
    %v5584 = vld [vmem:[%s5504 + $0x13c] sm:$0xf]
    %v5585 = vld [vmem:[%s5504 + $0x140] sm:$0xf]
    %v5586 = vld [vmem:[%s5504 + $0x144] sm:$0xf]
    %v5587 = vld [vmem:[%s5504 + $0x148] sm:$0xf]
    %v5588 = vld [vmem:[%s5504 + $0x14c] sm:$0xf]
    %v5589 = vld [vmem:[%s5504 + $0x150] sm:$0xf]
    %v5590 = vld [vmem:[%s5504 + $0x154] sm:$0xf]
    %v5591 = vld [vmem:[%s5504 + $0x158] sm:$0xf]
    %v5592 = vld [vmem:[%s5504 + $0x15c] sm:$0xf]
    %v5593 = vld [vmem:[%s5504 + $0x160] sm:$0xf]
    %v5594 = vld [vmem:[%s5504 + $0x164] sm:$0xf]
    %v5595 = vld [vmem:[%s5504 + $0x168] sm:$0xf]
    %v5596 = vld [vmem:[%s5504 + $0x16c] sm:$0xf]
    %v5597 = vld [vmem:[%s5504 + $0x170] sm:$0xf]
    %v5598 = vld [vmem:[%s5504 + $0x174] sm:$0xf]
    %v5599 = vld [vmem:[%s5504 + $0x178] sm:$0xf]
    %v5600 = vld [vmem:[%s5504 + $0x17c] sm:$0xf]
    %v5601 = vld [vmem:[%s5504 + $0x180] sm:$0xf]
    %v5602 = vld [vmem:[%s5504 + $0x184] sm:$0xf]
    %v5603 = vld [vmem:[%s5504 + $0x188] sm:$0xf]
    %v5604 = vld [vmem:[%s5504 + $0x18c] sm:$0xf]
    %v5605 = vld [vmem:[%s5504 + $0x190] sm:$0xf]
    %v5606 = vld [vmem:[%s5504 + $0x194] sm:$0xf]
    %v5607 = vld [vmem:[%s5504 + $0x198] sm:$0xf]
    %v5608 = vld [vmem:[%s5504 + $0x19c] sm:$0xf]
    %v5609 = vld [vmem:[%s5504 + $0x1a0] sm:$0xf]
    %v5610 = vld [vmem:[%s5504 + $0x1a4] sm:$0xf]
    %v5611 = vld [vmem:[%s5504 + $0x1a8] sm:$0xf]
    %v5612 = vld [vmem:[%s5504 + $0x1ac] sm:$0xf]
    %v5613 = vld [vmem:[%s5504 + $0x1b0] sm:$0xf]
    %v5614 = vld [vmem:[%s5504 + $0x1b4] sm:$0xf]
    %v5615 = vld [vmem:[%s5504 + $0x1b8] sm:$0xf]
    %v5616 = vld [vmem:[%s5504 + $0x1bc] sm:$0xf]
    %v5617 = vld [vmem:[%s5504 + $0x1c0] sm:$0xf]
    %v5618 = vld [vmem:[%s5504 + $0x1c4] sm:$0xf]
    %v5619 = vld [vmem:[%s5504 + $0x1c8] sm:$0xf]
    %v5620 = vld [vmem:[%s5504 + $0x1cc] sm:$0xf]
    %v5621 = vld [vmem:[%s5504 + $0x1d0] sm:$0xf]
    %v5622 = vld [vmem:[%s5504 + $0x1d4] sm:$0xf]
    %v5623 = vld [vmem:[%s5504 + $0x1d8] sm:$0xf]
    %v5624 = vld [vmem:[%s5504 + $0x1dc] sm:$0xf]
    %v5625 = vld [vmem:[%s5504 + $0x1e0] sm:$0xf]
    %v5626 = vld [vmem:[%s5504 + $0x1e4] sm:$0xf]
    %v5627 = vld [vmem:[%s5504 + $0x1e8] sm:$0xf]
    %v5628 = vld [vmem:[%s5504 + $0x1ec] sm:$0xf]
    %v5629 = vld [vmem:[%s5504 + $0x1f0] sm:$0xf]
    %v5630 = vld [vmem:[%s5504 + $0x1f4] sm:$0xf]
    %v5631 = vld [vmem:[%s5504 + $0x1f8] sm:$0xf]
    %v5632 = vld [vmem:[%s5504 + $0x1fc] sm:$0xf]
    %v5633 = vld [vmem:[%s5504 + $0x200] sm:$0xf]
    %v5634 = vld [vmem:[%s5504 + $0x204] sm:$0xf]
    %v5635 = vld [vmem:[%s5504 + $0x208] sm:$0xf]
    %v5636 = vld [vmem:[%s5504 + $0x20c] sm:$0xf]
    %v5637 = vld [vmem:[%s5504 + $0x210] sm:$0xf]
    %v5638 = vld [vmem:[%s5504 + $0x214] sm:$0xf]
    %v5639 = vld [vmem:[%s5504 + $0x218] sm:$0xf]
    %v5640 = vld [vmem:[%s5504 + $0x21c] sm:$0xf]
    %v5641 = vld [vmem:[%s5504 + $0x220] sm:$0xf]
    %v5642 = vld [vmem:[%s5504 + $0x224] sm:$0xf]
    %v5643 = vld [vmem:[%s5504 + $0x228] sm:$0xf]
    %v5644 = vld [vmem:[%s5504 + $0x22c] sm:$0xf]
    %v5645 = vld [vmem:[%s5504 + $0x230] sm:$0xf]
    %v5646 = vld [vmem:[%s5504 + $0x234] sm:$0xf]
    %v5647 = vld [vmem:[%s5504 + $0x238] sm:$0xf]
    %v5648 = vld [vmem:[%s5504 + $0x23c] sm:$0xf]
    %v5649 = vld [vmem:[%s5504 + $0x240] sm:$0xf]
    %v5650 = vld [vmem:[%s5504 + $0x244] sm:$0xf]
    %v5651 = vld [vmem:[%s5504 + $0x248] sm:$0xf]
    %v5652 = vld [vmem:[%s5504 + $0x24c] sm:$0xf]
    %v5653 = vld [vmem:[%s5504 + $0x250] sm:$0xf]
    %v5654 = vld [vmem:[%s5504 + $0x254] sm:$0xf]
    %v5655 = vld [vmem:[%s5504 + $0x258] sm:$0xf]
    %v5656 = vld [vmem:[%s5504 + $0x25c] sm:$0xf]
    %v5657 = vld [vmem:[%s5504 + $0x260] sm:$0xf]
    %v5658 = vld [vmem:[%s5504 + $0x264] sm:$0xf]
    %v5659 = vld [vmem:[%s5504 + $0x268] sm:$0xf]
    %v5660 = vld [vmem:[%s5504 + $0x26c] sm:$0xf]
    %v5661 = vld [vmem:[%s5504 + $0x270] sm:$0xf]
    %v5662 = vld [vmem:[%s5504 + $0x274] sm:$0xf]
    %v5663 = vld [vmem:[%s5504 + $0x278] sm:$0xf]
    %v5664 = vld [vmem:[%s5504 + $0x27c] sm:$0xf]
    %v5665 = vld [vmem:[%s5504 + $0x280] sm:$0xf]
    %v5666 = vld [vmem:[%s5504 + $0x284] sm:$0xf]
    %v5667 = vld [vmem:[%s5504 + $0x288] sm:$0xf]
    %v5668 = vld [vmem:[%s5504 + $0x28c] sm:$0xf]
    %v5669 = vld [vmem:[%s5504 + $0x290] sm:$0xf]
    %v5670 = vld [vmem:[%s5504 + $0x294] sm:$0xf]
    %v5671 = vld [vmem:[%s5504 + $0x298] sm:$0xf]
    %v5672 = vld [vmem:[%s5504 + $0x29c] sm:$0xf]
    %v5673 = vld [vmem:[%s5504 + $0x2a0] sm:$0xf]
    %v5674 = vld [vmem:[%s5504 + $0x2a4] sm:$0xf]
    %v5675 = vld [vmem:[%s5504 + $0x2a8] sm:$0xf]
    %v5676 = vld [vmem:[%s5504 + $0x2ac] sm:$0xf]
    %v5677 = vld [vmem:[%s5504 + $0x2b0] sm:$0xf]
    %v5678 = vld [vmem:[%s5504 + $0x2b4] sm:$0xf]
    %v5679 = vld [vmem:[%s5504 + $0x2b8] sm:$0xf]
    %v5680 = vld [vmem:[%s5504 + $0x2bc] sm:$0xf]
    %v5681 = vld [vmem:[%s5504 + $0x2c0] sm:$0xf]
    %v5682 = vld [vmem:[%s5504 + $0x2c4] sm:$0xf]
    %v5683 = vld [vmem:[%s5504 + $0x2c8] sm:$0xf]
    %v5684 = vld [vmem:[%s5504 + $0x2cc] sm:$0xf]
    %v5685 = vld [vmem:[%s5504 + $0x2d0] sm:$0xf]
    %v5686 = vld [vmem:[%s5504 + $0x2d4] sm:$0xf]
    %v5687 = vld [vmem:[%s5504 + $0x2d8] sm:$0xf]
    %v5688 = vld [vmem:[%s5504 + $0x2dc] sm:$0xf]
    %v5689 = vld [vmem:[%s5504 + $0x2e0] sm:$0xf]
    %v5690 = vld [vmem:[%s5504 + $0x2e4] sm:$0xf]
    %v5691 = vld [vmem:[%s5504 + $0x2e8] sm:$0xf]
    %v5692 = vld [vmem:[%s5504 + $0x2ec] sm:$0xf]
    %v5693 = vld [vmem:[%s5504 + $0x2f0] sm:$0xf]
    %v5694 = vld [vmem:[%s5504 + $0x2f4] sm:$0xf]
    %v5695 = vld [vmem:[%s5504 + $0x2f8] sm:$0xf]
    %v5696 = vld [vmem:[%s5504 + $0x2fc] sm:$0xf]
    %v5697 = vld [vmem:[%s5504 + $0x300] sm:$0xf]
    %v5698 = vld [vmem:[%s5504 + $0x304] sm:$0xf]
    %v5699 = vld [vmem:[%s5504 + $0x308] sm:$0xf]
    %v5700 = vld [vmem:[%s5504 + $0x30c] sm:$0xf]
    %v5701 = vld [vmem:[%s5504 + $0x310] sm:$0xf]
    %v5702 = vld [vmem:[%s5504 + $0x314] sm:$0xf]
    %v5703 = vld [vmem:[%s5504 + $0x318] sm:$0xf]
    %v5704 = vld [vmem:[%s5504 + $0x31c] sm:$0xf]
    %v5705 = vld [vmem:[%s5504 + $0x320] sm:$0xf]
    %v5706 = vld [vmem:[%s5504 + $0x324] sm:$0xf]
    %v5707 = vld [vmem:[%s5504 + $0x328] sm:$0xf]
    %v5708 = vld [vmem:[%s5504 + $0x32c] sm:$0xf]
    %v5709 = vld [vmem:[%s5504 + $0x330] sm:$0xf]
    %v5710 = vld [vmem:[%s5504 + $0x334] sm:$0xf]
    %v5711 = vld [vmem:[%s5504 + $0x338] sm:$0xf]
    %v5712 = vld [vmem:[%s5504 + $0x33c] sm:$0xf]
    %v5713 = vld [vmem:[%s5504 + $0x340] sm:$0xf]
    %v5714 = vld [vmem:[%s5504 + $0x344] sm:$0xf]
    %v5715 = vld [vmem:[%s5504 + $0x348] sm:$0xf]
    %v5716 = vld [vmem:[%s5504 + $0x34c] sm:$0xf]
    %v5717 = vld [vmem:[%s5504 + $0x350] sm:$0xf]
    %v5718 = vld [vmem:[%s5504 + $0x354] sm:$0xf]
    %v5719 = vld [vmem:[%s5504 + $0x358] sm:$0xf]
    %v5720 = vld [vmem:[%s5504 + $0x35c] sm:$0xf]
    %v5721 = vld [vmem:[%s5504 + $0x360] sm:$0xf]
    %v5722 = vld [vmem:[%s5504 + $0x364] sm:$0xf]
    %v5723 = vld [vmem:[%s5504 + $0x368] sm:$0xf]
    %v5724 = vld [vmem:[%s5504 + $0x36c] sm:$0xf]
    %v5725 = vld [vmem:[%s5504 + $0x370] sm:$0xf]
    %v5726 = vld [vmem:[%s5504 + $0x374] sm:$0xf]
    %v5727 = vld [vmem:[%s5504 + $0x378] sm:$0xf]
    %v5728 = vld [vmem:[%s5504 + $0x37c] sm:$0xf]
    %v5729 = vld [vmem:[%s5504 + $0x380] sm:$0xf]
    %v5730 = vld [vmem:[%s5504 + $0x384] sm:$0xf]
    %v5731 = vld [vmem:[%s5504 + $0x388] sm:$0xf]
    %v5732 = vld [vmem:[%s5504 + $0x38c] sm:$0xf]
    %v5733 = vld [vmem:[%s5504 + $0x390] sm:$0xf]
    %v5734 = vld [vmem:[%s5504 + $0x394] sm:$0xf]
    %v5735 = vld [vmem:[%s5504 + $0x398] sm:$0xf]
    %v5736 = vld [vmem:[%s5504 + $0x39c] sm:$0xf]
    %v5737 = vld [vmem:[%s5504 + $0x3a0] sm:$0xf]
    %v5738 = vld [vmem:[%s5504 + $0x3a4] sm:$0xf]
    %v5739 = vld [vmem:[%s5504 + $0x3a8] sm:$0xf]
    %v5740 = vld [vmem:[%s5504 + $0x3ac] sm:$0xf]
    %v5741 = vld [vmem:[%s5504 + $0x3b0] sm:$0xf]
    %v5742 = vld [vmem:[%s5504 + $0x3b4] sm:$0xf]
    %v5743 = vld [vmem:[%s5504 + $0x3b8] sm:$0xf]
    %v5744 = vld [vmem:[%s5504 + $0x3bc] sm:$0xf]
    %v5745 = vld [vmem:[%s5504 + $0x3c0] sm:$0xf]
    %v5746 = vld [vmem:[%s5504 + $0x3c4] sm:$0xf]
    %v5747 = vld [vmem:[%s5504 + $0x3c8] sm:$0xf]
    %v5748 = vld [vmem:[%s5504 + $0x3cc] sm:$0xf]
    %v5749 = vld [vmem:[%s5504 + $0x3d0] sm:$0xf]
    %v5750 = vld [vmem:[%s5504 + $0x3d4] sm:$0xf]
    %v5751 = vld [vmem:[%s5504 + $0x3d8] sm:$0xf]
    %v5752 = vld [vmem:[%s5504 + $0x3dc] sm:$0xf]
    %v5753 = vld [vmem:[%s5504 + $0x3e0] sm:$0xf]
    %v5754 = vld [vmem:[%s5504 + $0x3e4] sm:$0xf]
    %v5755 = vld [vmem:[%s5504 + $0x3e8] sm:$0xf]
    %v5756 = vld [vmem:[%s5504 + $0x3ec] sm:$0xf]
    %v5757 = vld [vmem:[%s5504 + $0x3f0] sm:$0xf]
    %v5758 = vld [vmem:[%s5504 + $0x3f4] sm:$0xf]
    %v5759 = vld [vmem:[%s5504 + $0x3f8] sm:$0xf]
    %v5760 = vld [vmem:[%s5504 + $0x3fc] sm:$0xf]
    %s5761 = scalar_lea.vmem [#allocation22], 1
    %v5762 = vld [vmem:[%s5761] sm:$0x1]
    %s5763 = scalar_lea.vmem [#allocation23], 1
    %v5764 = vld [vmem:[%s5763] sm:$0x1]
    %s5765 = scalar_lea.vmem [#allocation25], 1
    %v5766 = vld [vmem:[%s5765] sm:$0x1]
    %s5767 = scalar_lea.vmem [#allocation26], 1
    %v5768 = vld [vmem:[%s5767] sm:$0x1]
    %s5769 = scalar_lea.vmem [#allocation28], 1
    %v5770 = vld [vmem:[%s5769] sm:$0x1]
    %v5772 = vlaneseq
    %v5773 = vshrl.u32 %v5772, 7
    %v5774 = vsub.s32 0, %v5773
    %v5775 = vrot.slane %v5304, %v5774
    %v5776 = vlaneseq
    %v5777 = vshrl.u32 %v5776, 7
    %v5778 = vsub.s32 1, %v5777
    %v5779 = vrot.slane %v5304, %v5778
    %v5780 = vlaneseq
    %v5781 = vshrl.u32 %v5780, 7
    %v5782 = vsub.s32 2, %v5781
    %v5783 = vrot.slane %v5304, %v5782
    %v5784 = vlaneseq
    %v5785 = vshrl.u32 %v5784, 7
    %v5786 = vsub.s32 3, %v5785
    %v5787 = vrot.slane %v5304, %v5786
    %v5824 = vunpack.c.l.b16 %v5271
    %v5825 = vunpack.c.h.b16 %v5271
    %v5826 = vunpack.c.l.b16 %v5272
    %v5827 = vunpack.c.h.b16 %v5272
    %v5828 = vunpack.c.l.b16 %v5273
    %v5829 = vunpack.c.h.b16 %v5273
    %v5830 = vunpack.c.l.b16 %v5274
    %v5831 = vunpack.c.h.b16 %v5274
    %v5832 = vunpack.c.l.b16 %v5275
    %v5833 = vunpack.c.h.b16 %v5275
    %v5834 = vunpack.c.l.b16 %v5276
    %v5835 = vunpack.c.h.b16 %v5276
    %v5836 = vunpack.c.l.b16 %v5277
    %v5837 = vunpack.c.h.b16 %v5277
    %v5838 = vunpack.c.l.b16 %v5278
    %v5839 = vunpack.c.h.b16 %v5278
    %v5840 = vunpack.c.l.b16 %v5279
    %v5841 = vunpack.c.h.b16 %v5279
    %v5842 = vunpack.c.l.b16 %v5280
    %v5843 = vunpack.c.h.b16 %v5280
    %v5844 = vunpack.c.l.b16 %v5281
    %v5845 = vunpack.c.h.b16 %v5281
    %v5846 = vunpack.c.l.b16 %v5282
    %v5847 = vunpack.c.h.b16 %v5282
    %v5848 = vunpack.c.l.b16 %v5283
    %v5849 = vunpack.c.h.b16 %v5283
    %v5850 = vunpack.c.l.b16 %v5284
    %v5851 = vunpack.c.h.b16 %v5284
    %v5852 = vunpack.c.l.b16 %v5285
    %v5853 = vunpack.c.h.b16 %v5285
    %v5854 = vunpack.c.l.b16 %v5286
    %v5855 = vunpack.c.h.b16 %v5286
    %v5856 = vunpack.c.l.b16 %v5287
    %v5857 = vunpack.c.h.b16 %v5287
    %v5858 = vunpack.c.l.b16 %v5288
    %v5859 = vunpack.c.h.b16 %v5288
    %v5860 = vunpack.c.l.b16 %v5289
    %v5861 = vunpack.c.h.b16 %v5289
    %v5862 = vunpack.c.l.b16 %v5290
    %v5863 = vunpack.c.h.b16 %v5290
    %v5864 = vunpack.c.l.b16 %v5291
    %v5865 = vunpack.c.h.b16 %v5291
    %v5866 = vunpack.c.l.b16 %v5292
    %v5867 = vunpack.c.h.b16 %v5292
    %v5868 = vunpack.c.l.b16 %v5293
    %v5869 = vunpack.c.h.b16 %v5293
    %v5870 = vunpack.c.l.b16 %v5294
    %v5871 = vunpack.c.h.b16 %v5294
    %v5872 = vunpack.c.l.b16 %v5295
    %v5873 = vunpack.c.h.b16 %v5295
    %v5874 = vunpack.c.l.b16 %v5296
    %v5875 = vunpack.c.h.b16 %v5296
    %v5876 = vunpack.c.l.b16 %v5297
    %v5877 = vunpack.c.h.b16 %v5297
    %v5878 = vunpack.c.l.b16 %v5298
    %v5879 = vunpack.c.h.b16 %v5298
    %v5880 = vunpack.c.l.b16 %v5299
    %v5881 = vunpack.c.h.b16 %v5299
    %v5882 = vunpack.c.l.b16 %v5300
    %v5883 = vunpack.c.h.b16 %v5300
    %v5884 = vunpack.c.l.b16 %v5301
    %v5885 = vunpack.c.h.b16 %v5301
    %v5886 = vunpack.c.l.b16 %v5302
    %v5887 = vunpack.c.h.b16 %v5302
    %v5888 = vpack.c.b16 %v5828, %v5824
    %v5889 = vpack.c.b16 %v5829, %v5825
    %v5890 = vpack.c.b16 %v5830, %v5826
    %v5891 = vpack.c.b16 %v5831, %v5827
    %v5892 = vpack.c.b16 %v5836, %v5832
    %v5893 = vpack.c.b16 %v5837, %v5833
    %v5894 = vpack.c.b16 %v5838, %v5834
    %v5895 = vpack.c.b16 %v5839, %v5835
    %v5896 = vpack.c.b16 %v5844, %v5840
    %v5897 = vpack.c.b16 %v5845, %v5841
    %v5898 = vpack.c.b16 %v5846, %v5842
    %v5899 = vpack.c.b16 %v5847, %v5843
    %v5900 = vpack.c.b16 %v5852, %v5848
    %v5901 = vpack.c.b16 %v5853, %v5849
    %v5902 = vpack.c.b16 %v5854, %v5850
    %v5903 = vpack.c.b16 %v5855, %v5851
    %v5904 = vpack.c.b16 %v5860, %v5856
    %v5905 = vpack.c.b16 %v5861, %v5857
    %v5906 = vpack.c.b16 %v5862, %v5858
    %v5907 = vpack.c.b16 %v5863, %v5859
    %v5908 = vpack.c.b16 %v5868, %v5864
    %v5909 = vpack.c.b16 %v5869, %v5865
    %v5910 = vpack.c.b16 %v5870, %v5866
    %v5911 = vpack.c.b16 %v5871, %v5867
    %v5912 = vpack.c.b16 %v5876, %v5872
    %v5913 = vpack.c.b16 %v5877, %v5873
    %v5914 = vpack.c.b16 %v5878, %v5874
    %v5915 = vpack.c.b16 %v5879, %v5875
    %v5916 = vpack.c.b16 %v5884, %v5880
    %v5917 = vpack.c.b16 %v5885, %v5881
    %v5918 = vpack.c.b16 %v5886, %v5882
    %v5919 = vpack.c.b16 %v5887, %v5883
    %5952 = vmatprep.subr.bf16.mxu0 %v5889
    %5953 = vmatpush1.bf16.msra.mxu0 %v5888
    %5954 = vmatprep.subr.bf16.mxu0 %v5893
    %5955 = vmatpush1.bf16.msra.mxu0 %v5892
    %5956 = vmatprep.subr.bf16.mxu0 %v5897
    %5957 = vmatpush1.bf16.msra.mxu0 %v5896
    %5958 = vmatprep.subr.bf16.mxu0 %v5901
    %5959 = vmatpush1.bf16.msra.mxu0 %v5900
    %5960 = vmatprep.subr.bf16.mxu0 %v5905
    %5961 = vmatpush1.bf16.msra.mxu0 %v5904
    %5962 = vmatprep.subr.bf16.mxu0 %v5909
    %5963 = vmatpush1.bf16.msra.mxu0 %v5908
    %5964 = vmatprep.subr.bf16.mxu0 %v5913
    %5965 = vmatpush1.bf16.msra.mxu0 %v5912
    %5966 = vmatprep.subr.bf16.mxu0 %v5917
    %5967 = vmatpush1.bf16.msra.mxu0 %v5916
    %5968 = vmatprep.subr.bf16.mxu0 0
    %5969 = vmatpush1.bf16.msra.mxu0 0
    %5970 = vmatprep.subr.bf16.mxu0 0
    %5971 = vmatpush1.bf16.msra.mxu0 0
    %5972 = vmatprep.subr.bf16.mxu0 0
    %5973 = vmatpush1.bf16.msra.mxu0 0
    %5974 = vmatprep.subr.bf16.mxu0 0
    %5975 = vmatpush1.bf16.msra.mxu0 0
    %5976 = vmatprep.subr.bf16.mxu0 0
    %5977 = vmatpush1.bf16.msra.mxu0 0
    %5978 = vmatprep.subr.bf16.mxu0 0
    %5979 = vmatpush1.bf16.msra.mxu0 0
    %5980 = vmatprep.subr.bf16.mxu0 0
    %5981 = vmatpush1.bf16.msra.mxu0 0
    %5982 = vmatprep.subr.bf16.mxu0 0
    %5983 = vmatpush1.bf16.msra.mxu0 0
    %5984 = vmatprep.mubr.bf16.mxu0 0
    %5985 = vmatmul.mubr.bf16.gmra.mrb[0].mxu0 %v4669
    %v5986 = vpop.f32.mrb[0].mxu0
    %v5987 = vadd.f32 %v5775, %v5986
    %v5988 = vpop.f32.mrb[0].mxu0
    %v5989 = vadd.f32 %v5779, %v5988
    %v5990 = vpop.f32.mrb[0].mxu0
    %v5991 = vpop.f32.mrb[0].mxu0
    %5992 = vdwg.mxu0
    %5993 = vmatprep.subr.bf16.mxu0 %v5891
    %5994 = vmatpush1.bf16.msra.mxu0 %v5890
    %5995 = vmatprep.subr.bf16.mxu0 %v5895
    %5996 = vmatpush1.bf16.msra.mxu0 %v5894
    %5997 = vmatprep.subr.bf16.mxu0 %v5899
    %5998 = vmatpush1.bf16.msra.mxu0 %v5898
    %5999 = vmatprep.subr.bf16.mxu0 %v5903
    %6000 = vmatpush1.bf16.msra.mxu0 %v5902
    %6001 = vmatprep.subr.bf16.mxu0 %v5907
    %6002 = vmatpush1.bf16.msra.mxu0 %v5906
    %6003 = vmatprep.subr.bf16.mxu0 %v5911
    %6004 = vmatpush1.bf16.msra.mxu0 %v5910
    %6005 = vmatprep.subr.bf16.mxu0 %v5915
    %6006 = vmatpush1.bf16.msra.mxu0 %v5914
    %6007 = vmatprep.subr.bf16.mxu0 %v5919
    %6008 = vmatpush1.bf16.msra.mxu0 %v5918
    %6009 = vmatprep.subr.bf16.mxu0 0
    %6010 = vmatpush1.bf16.msra.mxu0 0
    %6011 = vmatprep.subr.bf16.mxu0 0
    %6012 = vmatpush1.bf16.msra.mxu0 0
    %6013 = vmatprep.subr.bf16.mxu0 0
    %6014 = vmatpush1.bf16.msra.mxu0 0
    %6015 = vmatprep.subr.bf16.mxu0 0
    %6016 = vmatpush1.bf16.msra.mxu0 0
    %6017 = vmatprep.subr.bf16.mxu0 0
    %6018 = vmatpush1.bf16.msra.mxu0 0
    %6019 = vmatprep.subr.bf16.mxu0 0
    %6020 = vmatpush1.bf16.msra.mxu0 0
    %6021 = vmatprep.subr.bf16.mxu0 0
    %6022 = vmatpush1.bf16.msra.mxu0 0
    %6023 = vmatprep.subr.bf16.mxu0 0
    %6024 = vmatpush1.bf16.msra.mxu0 0
    %6025 = vmatprep.mubr.bf16.mxu0 0
    %6026 = vmatmul.mubr.bf16.gmra.mrb[0].mxu0 %v4669
    %v6027 = vpop.f32.mrb[0].mxu0
    %v6028 = vadd.f32 %v5783, %v6027
    %v6029 = vpop.f32.mrb[0].mxu0
    %v6030 = vadd.f32 %v5787, %v6029
    %v6031 = vpop.f32.mrb[0].mxu0
    %v6032 = vpop.f32.mrb[0].mxu0
    %6033 = vdwg.mxu0
    %v6034 = vpack.c.bf16 %v5987, %v5987
    %6035 = vmatprep.subr.bf16.mxu0 0
    %6036 = vmatpush1.bf16.xpose.msra.mxu0 %v5262
    %6037 = vmatprep.subr.bf16.mxu0 0
    %6038 = vmatpush1.bf16.xpose.msra.mxu0 0
    %6039 = vmatprep.subr.bf16.mxu0 0
    %6040 = vmatpush1.bf16.xpose.msra.mxu0 0
    %6041 = vmatprep.subr.bf16.mxu0 0
    %6042 = vmatpush1.bf16.xpose.msra.mxu0 0
    %6043 = vmatprep.subr.bf16.mxu0 0
    %6044 = vmatpush1.bf16.xpose.msra.mxu0 0
    %6045 = vmatprep.subr.bf16.mxu0 0
    %6046 = vmatpush1.bf16.xpose.msra.mxu0 0
    %6047 = vmatprep.subr.bf16.mxu0 0
    %6048 = vmatpush1.bf16.xpose.msra.mxu0 0
    %6049 = vmatprep.subr.bf16.mxu0 0
    %6050 = vmatpush1.bf16.xpose.msra.mxu0 0
    %6051 = vmatprep.subr.bf16.mxu0 0
    %6052 = vmatpush1.bf16.xpose.msra.mxu0 0
    %6053 = vmatprep.subr.bf16.mxu0 0
    %6054 = vmatpush1.bf16.xpose.msra.mxu0 0
    %6055 = vmatprep.subr.bf16.mxu0 0
    %6056 = vmatpush1.bf16.xpose.msra.mxu0 0
    %6057 = vmatprep.subr.bf16.mxu0 0
    %6058 = vmatpush1.bf16.xpose.msra.mxu0 0
    %6059 = vmatprep.subr.bf16.mxu0 0
    %6060 = vmatpush1.bf16.xpose.msra.mxu0 0
    %6061 = vmatprep.subr.bf16.mxu0 0
    %6062 = vmatpush1.bf16.xpose.msra.mxu0 0
    %6063 = vmatprep.subr.bf16.mxu0 0
    %6064 = vmatpush1.bf16.xpose.msra.mxu0 0
    %6065 = vmatprep.subr.bf16.mxu0 0
    %6066 = vmatpush1.bf16.xpose.msra.mxu0 0
    %6067 = vmatprep.mubr.bf16.mxu0 0
    %6068 = vmatmul.mubr.bf16.gmra.mrb[0].mxu0 %v6034
    %v6069 = vpop.f32.mrb[0].mxu0
    %v6070 = vadd.f32 0.0, %v6069
    %v6071 = vpop.f32.mrb[0].mxu0
    %v6072 = vpop.f32.mrb[0].mxu0
    %v6073 = vpop.f32.mrb[0].mxu0
    %6074 = vdwg.mxu0
    %v6075 = vsel %vm1797, %v6070, -inf
    %6076 = vmax.xlane.f32.xlu0 %v6075
    %v6077 = vpop.xlane.xlu0 %6076
    %v6078 = vsub.f32 %v6070, %v6077
    %v6079 = vmul.f32 %v6078, 1.442695
    %v6080 = vpow.pop %v6079
    %v6081 = vsel %vm1797, %v6080, 0.0
    %6082 = vadd.xlane.f32.xlu0 %v6081
    %v6083 = vpop.xlane.xlu0 %6082
    %v6084 = vrcp.pop %v6083
    %v6085 = vmul.f32 %v6080, %v6084
    %v6086 = vpack.c.bf16 %v6085, %v6085
    %v6088 = vsel %vm1797, %v6086, 0
    %v6091 = vsel %vm1813, %v5266, 0
    %6093 = vmatprep.subr.bf16.mxu0 0
    %6094 = vmatpush1.bf16.msra.mxu0 %v6091
    %6095 = vmatprep.subr.bf16.mxu0 0
    %6096 = vmatpush1.bf16.msra.mxu0 0
    %6097 = vmatprep.subr.bf16.mxu0 0
    %6098 = vmatpush1.bf16.msra.mxu0 0
    %6099 = vmatprep.subr.bf16.mxu0 0
    %6100 = vmatpush1.bf16.msra.mxu0 0
    %6101 = vmatprep.subr.bf16.mxu0 0
    %6102 = vmatpush1.bf16.msra.mxu0 0
    %6103 = vmatprep.subr.bf16.mxu0 0
    %6104 = vmatpush1.bf16.msra.mxu0 0
    %6105 = vmatprep.subr.bf16.mxu0 0
    %6106 = vmatpush1.bf16.msra.mxu0 0
    %6107 = vmatprep.subr.bf16.mxu0 0
    %6108 = vmatpush1.bf16.msra.mxu0 0
    %6109 = vmatprep.subr.bf16.mxu0 0
    %6110 = vmatpush1.bf16.msra.mxu0 0
    %6111 = vmatprep.subr.bf16.mxu0 0
    %6112 = vmatpush1.bf16.msra.mxu0 0
    %6113 = vmatprep.subr.bf16.mxu0 0
    %6114 = vmatpush1.bf16.msra.mxu0 0
    %6115 = vmatprep.subr.bf16.mxu0 0
    %6116 = vmatpush1.bf16.msra.mxu0 0
    %6117 = vmatprep.subr.bf16.mxu0 0
    %6118 = vmatpush1.bf16.msra.mxu0 0
    %6119 = vmatprep.subr.bf16.mxu0 0
    %6120 = vmatpush1.bf16.msra.mxu0 0
    %6121 = vmatprep.subr.bf16.mxu0 0
    %6122 = vmatpush1.bf16.msra.mxu0 0
    %6123 = vmatprep.subr.bf16.mxu0 0
    %6124 = vmatpush1.bf16.msra.mxu0 0
    %6125 = vmatprep.mubr.bf16.mxu0 0
    %6126 = vmatmul.mubr.bf16.gmra.mrb[0].mxu0 %v6088
    %v6127 = vpop.f32.mrb[0].mxu0
    %v6128 = vadd.f32 0.0, %v6127
    %v6129 = vpop.f32.mrb[0].mxu0
    %v6130 = vpop.f32.mrb[0].mxu0
    %v6131 = vpop.f32.mrb[0].mxu0
    %6132 = vdwg.mxu0
    %v6133 = vpack.c.bf16 %v5989, %v5989
    %6134 = vmatprep.subr.bf16.mxu0 0
    %6135 = vmatpush1.bf16.xpose.msra.mxu0 %v5263
    %6136 = vmatprep.subr.bf16.mxu0 0
    %6137 = vmatpush1.bf16.xpose.msra.mxu0 0
    %6138 = vmatprep.subr.bf16.mxu0 0
    %6139 = vmatpush1.bf16.xpose.msra.mxu0 0
    %6140 = vmatprep.subr.bf16.mxu0 0
    %6141 = vmatpush1.bf16.xpose.msra.mxu0 0
    %6142 = vmatprep.subr.bf16.mxu0 0
    %6143 = vmatpush1.bf16.xpose.msra.mxu0 0
    %6144 = vmatprep.subr.bf16.mxu0 0
    %6145 = vmatpush1.bf16.xpose.msra.mxu0 0
    %6146 = vmatprep.subr.bf16.mxu0 0
    %6147 = vmatpush1.bf16.xpose.msra.mxu0 0
    %6148 = vmatprep.subr.bf16.mxu0 0
    %6149 = vmatpush1.bf16.xpose.msra.mxu0 0
    %6150 = vmatprep.subr.bf16.mxu0 0
    %6151 = vmatpush1.bf16.xpose.msra.mxu0 0
    %6152 = vmatprep.subr.bf16.mxu0 0
    %6153 = vmatpush1.bf16.xpose.msra.mxu0 0
    %6154 = vmatprep.subr.bf16.mxu0 0
    %6155 = vmatpush1.bf16.xpose.msra.mxu0 0
    %6156 = vmatprep.subr.bf16.mxu0 0
    %6157 = vmatpush1.bf16.xpose.msra.mxu0 0
    %6158 = vmatprep.subr.bf16.mxu0 0
    %6159 = vmatpush1.bf16.xpose.msra.mxu0 0
    %6160 = vmatprep.subr.bf16.mxu0 0
    %6161 = vmatpush1.bf16.xpose.msra.mxu0 0
    %6162 = vmatprep.subr.bf16.mxu0 0
    %6163 = vmatpush1.bf16.xpose.msra.mxu0 0
    %6164 = vmatprep.subr.bf16.mxu0 0
    %6165 = vmatpush1.bf16.xpose.msra.mxu0 0
    %6166 = vmatprep.mubr.bf16.mxu0 0
    %6167 = vmatmul.mubr.bf16.gmra.mrb[0].mxu0 %v6133
    %v6168 = vpop.f32.mrb[0].mxu0
    %v6169 = vadd.f32 0.0, %v6168
    %v6170 = vpop.f32.mrb[0].mxu0
    %v6171 = vpop.f32.mrb[0].mxu0
    %v6172 = vpop.f32.mrb[0].mxu0
    %6173 = vdwg.mxu0
    %v6174 = vsel %vm1797, %v6169, -inf
    %6175 = vmax.xlane.f32.xlu0 %v6174
    %v6176 = vpop.xlane.xlu0 %6175
    %v6177 = vsub.f32 %v6169, %v6176
    %v6178 = vmul.f32 %v6177, 1.442695
    %v6179 = vpow.pop %v6178
    %v6180 = vsel %vm1797, %v6179, 0.0
    %6181 = vadd.xlane.f32.xlu0 %v6180
    %v6182 = vpop.xlane.xlu0 %6181
    %v6183 = vrcp.pop %v6182
    %v6184 = vmul.f32 %v6179, %v6183
    %v6185 = vpack.c.bf16 %v6184, %v6184
    %v6187 = vsel %vm1797, %v6185, 0
    %v6190 = vsel %vm1813, %v5267, 0
    %6192 = vmatprep.subr.bf16.mxu0 0
    %6193 = vmatpush1.bf16.msra.mxu0 %v6190
    %6194 = vmatprep.subr.bf16.mxu0 0
    %6195 = vmatpush1.bf16.msra.mxu0 0
    %6196 = vmatprep.subr.bf16.mxu0 0
    %6197 = vmatpush1.bf16.msra.mxu0 0
    %6198 = vmatprep.subr.bf16.mxu0 0
    %6199 = vmatpush1.bf16.msra.mxu0 0
    %6200 = vmatprep.subr.bf16.mxu0 0
    %6201 = vmatpush1.bf16.msra.mxu0 0
    %6202 = vmatprep.subr.bf16.mxu0 0
    %6203 = vmatpush1.bf16.msra.mxu0 0
    %6204 = vmatprep.subr.bf16.mxu0 0
    %6205 = vmatpush1.bf16.msra.mxu0 0
    %6206 = vmatprep.subr.bf16.mxu0 0
    %6207 = vmatpush1.bf16.msra.mxu0 0
    %6208 = vmatprep.subr.bf16.mxu0 0
    %6209 = vmatpush1.bf16.msra.mxu0 0
    %6210 = vmatprep.subr.bf16.mxu0 0
    %6211 = vmatpush1.bf16.msra.mxu0 0
    %6212 = vmatprep.subr.bf16.mxu0 0
    %6213 = vmatpush1.bf16.msra.mxu0 0
    %6214 = vmatprep.subr.bf16.mxu0 0
    %6215 = vmatpush1.bf16.msra.mxu0 0
    %6216 = vmatprep.subr.bf16.mxu0 0
    %6217 = vmatpush1.bf16.msra.mxu0 0
    %6218 = vmatprep.subr.bf16.mxu0 0
    %6219 = vmatpush1.bf16.msra.mxu0 0
    %6220 = vmatprep.subr.bf16.mxu0 0
    %6221 = vmatpush1.bf16.msra.mxu0 0
    %6222 = vmatprep.subr.bf16.mxu0 0
    %6223 = vmatpush1.bf16.msra.mxu0 0
    %6224 = vmatprep.mubr.bf16.mxu0 0
    %6225 = vmatmul.mubr.bf16.gmra.mrb[0].mxu0 %v6187
    %v6226 = vpop.f32.mrb[0].mxu0
    %v6227 = vadd.f32 0.0, %v6226
    %v6228 = vpop.f32.mrb[0].mxu0
    %v6229 = vpop.f32.mrb[0].mxu0
    %v6230 = vpop.f32.mrb[0].mxu0
    %6231 = vdwg.mxu0
    %v6232 = vpack.c.bf16 %v6028, %v6028
    %6233 = vmatprep.subr.bf16.mxu0 0
    %6234 = vmatpush1.bf16.xpose.msra.mxu0 %v5264
    %6235 = vmatprep.subr.bf16.mxu0 0
    %6236 = vmatpush1.bf16.xpose.msra.mxu0 0
    %6237 = vmatprep.subr.bf16.mxu0 0
    %6238 = vmatpush1.bf16.xpose.msra.mxu0 0
    %6239 = vmatprep.subr.bf16.mxu0 0
    %6240 = vmatpush1.bf16.xpose.msra.mxu0 0
    %6241 = vmatprep.subr.bf16.mxu0 0
    %6242 = vmatpush1.bf16.xpose.msra.mxu0 0
    %6243 = vmatprep.subr.bf16.mxu0 0
    %6244 = vmatpush1.bf16.xpose.msra.mxu0 0
    %6245 = vmatprep.subr.bf16.mxu0 0
    %6246 = vmatpush1.bf16.xpose.msra.mxu0 0
    %6247 = vmatprep.subr.bf16.mxu0 0
    %6248 = vmatpush1.bf16.xpose.msra.mxu0 0
    %6249 = vmatprep.subr.bf16.mxu0 0
    %6250 = vmatpush1.bf16.xpose.msra.mxu0 0
    %6251 = vmatprep.subr.bf16.mxu0 0
    %6252 = vmatpush1.bf16.xpose.msra.mxu0 0
    %6253 = vmatprep.subr.bf16.mxu0 0
    %6254 = vmatpush1.bf16.xpose.msra.mxu0 0
    %6255 = vmatprep.subr.bf16.mxu0 0
    %6256 = vmatpush1.bf16.xpose.msra.mxu0 0
    %6257 = vmatprep.subr.bf16.mxu0 0
    %6258 = vmatpush1.bf16.xpose.msra.mxu0 0
    %6259 = vmatprep.subr.bf16.mxu0 0
    %6260 = vmatpush1.bf16.xpose.msra.mxu0 0
    %6261 = vmatprep.subr.bf16.mxu0 0
    %6262 = vmatpush1.bf16.xpose.msra.mxu0 0
    %6263 = vmatprep.subr.bf16.mxu0 0
    %6264 = vmatpush1.bf16.xpose.msra.mxu0 0
    %6265 = vmatprep.mubr.bf16.mxu0 0
    %6266 = vmatmul.mubr.bf16.gmra.mrb[0].mxu0 %v6232
    %v6267 = vpop.f32.mrb[0].mxu0
    %v6268 = vadd.f32 0.0, %v6267
    %v6269 = vpop.f32.mrb[0].mxu0
    %v6270 = vpop.f32.mrb[0].mxu0
    %v6271 = vpop.f32.mrb[0].mxu0
    %6272 = vdwg.mxu0
    %v6273 = vsel %vm1797, %v6268, -inf
    %6274 = vmax.xlane.f32.xlu0 %v6273
    %v6275 = vpop.xlane.xlu0 %6274
    %v6276 = vsub.f32 %v6268, %v6275
    %v6277 = vmul.f32 %v6276, 1.442695
    %v6278 = vpow.pop %v6277
    %v6279 = vsel %vm1797, %v6278, 0.0
    %6280 = vadd.xlane.f32.xlu0 %v6279
    %v6281 = vpop.xlane.xlu0 %6280
    %v6282 = vrcp.pop %v6281
    %v6283 = vmul.f32 %v6278, %v6282
    %v6284 = vpack.c.bf16 %v6283, %v6283
    %v6286 = vsel %vm1797, %v6284, 0
    %v6289 = vsel %vm1813, %v5268, 0
    %6291 = vmatprep.subr.bf16.mxu0 0
    %6292 = vmatpush1.bf16.msra.mxu0 %v6289
    %6293 = vmatprep.subr.bf16.mxu0 0
    %6294 = vmatpush1.bf16.msra.mxu0 0
    %6295 = vmatprep.subr.bf16.mxu0 0
    %6296 = vmatpush1.bf16.msra.mxu0 0
    %6297 = vmatprep.subr.bf16.mxu0 0
    %6298 = vmatpush1.bf16.msra.mxu0 0
    %6299 = vmatprep.subr.bf16.mxu0 0
    %6300 = vmatpush1.bf16.msra.mxu0 0
    %6301 = vmatprep.subr.bf16.mxu0 0
    %6302 = vmatpush1.bf16.msra.mxu0 0
    %6303 = vmatprep.subr.bf16.mxu0 0
    %6304 = vmatpush1.bf16.msra.mxu0 0
    %6305 = vmatprep.subr.bf16.mxu0 0
    %6306 = vmatpush1.bf16.msra.mxu0 0
    %6307 = vmatprep.subr.bf16.mxu0 0
    %6308 = vmatpush1.bf16.msra.mxu0 0
    %6309 = vmatprep.subr.bf16.mxu0 0
    %6310 = vmatpush1.bf16.msra.mxu0 0
    %6311 = vmatprep.subr.bf16.mxu0 0
    %6312 = vmatpush1.bf16.msra.mxu0 0
    %6313 = vmatprep.subr.bf16.mxu0 0
    %6314 = vmatpush1.bf16.msra.mxu0 0
    %6315 = vmatprep.subr.bf16.mxu0 0
    %6316 = vmatpush1.bf16.msra.mxu0 0
    %6317 = vmatprep.subr.bf16.mxu0 0
    %6318 = vmatpush1.bf16.msra.mxu0 0
    %6319 = vmatprep.subr.bf16.mxu0 0
    %6320 = vmatpush1.bf16.msra.mxu0 0
    %6321 = vmatprep.subr.bf16.mxu0 0
    %6322 = vmatpush1.bf16.msra.mxu0 0
    %6323 = vmatprep.mubr.bf16.mxu0 0
    %6324 = vmatmul.mubr.bf16.gmra.mrb[0].mxu0 %v6286
    %v6325 = vpop.f32.mrb[0].mxu0
    %v6326 = vadd.f32 0.0, %v6325
    %v6327 = vpop.f32.mrb[0].mxu0
    %v6328 = vpop.f32.mrb[0].mxu0
    %v6329 = vpop.f32.mrb[0].mxu0
    %6330 = vdwg.mxu0
    %v6331 = vpack.c.bf16 %v6030, %v6030
    %6332 = vmatprep.subr.bf16.mxu0 0
    %6333 = vmatpush1.bf16.xpose.msra.mxu0 %v5265
    %6334 = vmatprep.subr.bf16.mxu0 0
    %6335 = vmatpush1.bf16.xpose.msra.mxu0 0
    %6336 = vmatprep.subr.bf16.mxu0 0
    %6337 = vmatpush1.bf16.xpose.msra.mxu0 0
    %6338 = vmatprep.subr.bf16.mxu0 0
    %6339 = vmatpush1.bf16.xpose.msra.mxu0 0
    %6340 = vmatprep.subr.bf16.mxu0 0
    %6341 = vmatpush1.bf16.xpose.msra.mxu0 0
    %6342 = vmatprep.subr.bf16.mxu0 0
    %6343 = vmatpush1.bf16.xpose.msra.mxu0 0
    %6344 = vmatprep.subr.bf16.mxu0 0
    %6345 = vmatpush1.bf16.xpose.msra.mxu0 0
    %6346 = vmatprep.subr.bf16.mxu0 0
    %6347 = vmatpush1.bf16.xpose.msra.mxu0 0
    %6348 = vmatprep.subr.bf16.mxu0 0
    %6349 = vmatpush1.bf16.xpose.msra.mxu0 0
    %6350 = vmatprep.subr.bf16.mxu0 0
    %6351 = vmatpush1.bf16.xpose.msra.mxu0 0
    %6352 = vmatprep.subr.bf16.mxu0 0
    %6353 = vmatpush1.bf16.xpose.msra.mxu0 0
    %6354 = vmatprep.subr.bf16.mxu0 0
    %6355 = vmatpush1.bf16.xpose.msra.mxu0 0
    %6356 = vmatprep.subr.bf16.mxu0 0
    %6357 = vmatpush1.bf16.xpose.msra.mxu0 0
    %6358 = vmatprep.subr.bf16.mxu0 0
    %6359 = vmatpush1.bf16.xpose.msra.mxu0 0
    %6360 = vmatprep.subr.bf16.mxu0 0
    %6361 = vmatpush1.bf16.xpose.msra.mxu0 0
    %6362 = vmatprep.subr.bf16.mxu0 0
    %6363 = vmatpush1.bf16.xpose.msra.mxu0 0
    %6364 = vmatprep.mubr.bf16.mxu0 0
    %6365 = vmatmul.mubr.bf16.gmra.mrb[0].mxu0 %v6331
    %v6366 = vpop.f32.mrb[0].mxu0
    %v6367 = vadd.f32 0.0, %v6366
    %v6368 = vpop.f32.mrb[0].mxu0
    %v6369 = vpop.f32.mrb[0].mxu0
    %v6370 = vpop.f32.mrb[0].mxu0
    %6371 = vdwg.mxu0
    %v6372 = vsel %vm1797, %v6367, -inf
    %6373 = vmax.xlane.f32.xlu0 %v6372
    %v6374 = vpop.xlane.xlu0 %6373
    %v6375 = vsub.f32 %v6367, %v6374
    %v6376 = vmul.f32 %v6375, 1.442695
    %v6377 = vpow.pop %v6376
    %v6378 = vsel %vm1797, %v6377, 0.0
    %6379 = vadd.xlane.f32.xlu0 %v6378
    %v6380 = vpop.xlane.xlu0 %6379
    %v6381 = vrcp.pop %v6380
    %v6382 = vmul.f32 %v6377, %v6381
    %v6383 = vpack.c.bf16 %v6382, %v6382
    %v6385 = vsel %vm1797, %v6383, 0
    %v6388 = vsel %vm1813, %v5269, 0
    %6390 = vmatprep.subr.bf16.mxu0 0
    %6391 = vmatpush1.bf16.msra.mxu0 %v6388
    %6392 = vmatprep.subr.bf16.mxu0 0
    %6393 = vmatpush1.bf16.msra.mxu0 0
    %6394 = vmatprep.subr.bf16.mxu0 0
    %6395 = vmatpush1.bf16.msra.mxu0 0
    %6396 = vmatprep.subr.bf16.mxu0 0
    %6397 = vmatpush1.bf16.msra.mxu0 0
    %6398 = vmatprep.subr.bf16.mxu0 0
    %6399 = vmatpush1.bf16.msra.mxu0 0
    %6400 = vmatprep.subr.bf16.mxu0 0
    %6401 = vmatpush1.bf16.msra.mxu0 0
    %6402 = vmatprep.subr.bf16.mxu0 0
    %6403 = vmatpush1.bf16.msra.mxu0 0
    %6404 = vmatprep.subr.bf16.mxu0 0
    %6405 = vmatpush1.bf16.msra.mxu0 0
    %6406 = vmatprep.subr.bf16.mxu0 0
    %6407 = vmatpush1.bf16.msra.mxu0 0
    %6408 = vmatprep.subr.bf16.mxu0 0
    %6409 = vmatpush1.bf16.msra.mxu0 0
    %6410 = vmatprep.subr.bf16.mxu0 0
    %6411 = vmatpush1.bf16.msra.mxu0 0
    %6412 = vmatprep.subr.bf16.mxu0 0
    %6413 = vmatpush1.bf16.msra.mxu0 0
    %6414 = vmatprep.subr.bf16.mxu0 0
    %6415 = vmatpush1.bf16.msra.mxu0 0
    %6416 = vmatprep.subr.bf16.mxu0 0
    %6417 = vmatpush1.bf16.msra.mxu0 0
    %6418 = vmatprep.subr.bf16.mxu0 0
    %6419 = vmatpush1.bf16.msra.mxu0 0
    %6420 = vmatprep.subr.bf16.mxu0 0
    %6421 = vmatpush1.bf16.msra.mxu0 0
    %6422 = vmatprep.mubr.bf16.mxu0 0
    %6423 = vmatmul.mubr.bf16.gmra.mrb[0].mxu0 %v6385
    %v6424 = vpop.f32.mrb[0].mxu0
    %v6425 = vadd.f32 0.0, %v6424
    %v6426 = vpop.f32.mrb[0].mxu0
    %v6427 = vpop.f32.mrb[0].mxu0
    %v6428 = vpop.f32.mrb[0].mxu0
    %6429 = vdwg.mxu0
    %v6430 = vpack.c.bf16 %v6128, %v6128
    %v6431 = vpack.c.bf16 %v6227, %v6227
    %v6432 = vpack.c.bf16 %v6326, %v6326
    %v6433 = vpack.c.bf16 %v6425, %v6425
    %v6435 = vlaneseq
    %v6436 = vshrl.u32 %v6435, 7
    %v6437 = vsub.s32 0, %v6436
    %v6438 = vrot.slane %v5371, %v6437
    %v6504 = vunpack.c.l.b16 %v5306
    %v6505 = vunpack.c.l.b16 %v5307
    %v6506 = vunpack.c.l.b16 %v5308
    %v6507 = vunpack.c.l.b16 %v5309
    %v6508 = vunpack.c.l.b16 %v5310
    %v6509 = vunpack.c.l.b16 %v5311
    %v6510 = vunpack.c.l.b16 %v5312
    %v6511 = vunpack.c.l.b16 %v5313
    %v6512 = vunpack.c.l.b16 %v5314
    %v6513 = vunpack.c.l.b16 %v5315
    %v6514 = vunpack.c.l.b16 %v5316
    %v6515 = vunpack.c.l.b16 %v5317
    %v6516 = vunpack.c.l.b16 %v5318
    %v6517 = vunpack.c.l.b16 %v5319
    %v6518 = vunpack.c.l.b16 %v5320
    %v6519 = vunpack.c.l.b16 %v5321
    %v6520 = vunpack.c.l.b16 %v5322
    %v6521 = vunpack.c.l.b16 %v5323
    %v6522 = vunpack.c.l.b16 %v5324
    %v6523 = vunpack.c.l.b16 %v5325
    %v6524 = vunpack.c.l.b16 %v5326
    %v6525 = vunpack.c.l.b16 %v5327
    %v6526 = vunpack.c.l.b16 %v5328
    %v6527 = vunpack.c.l.b16 %v5329
    %v6528 = vunpack.c.l.b16 %v5330
    %v6529 = vunpack.c.l.b16 %v5331
    %v6530 = vunpack.c.l.b16 %v5332
    %v6531 = vunpack.c.l.b16 %v5333
    %v6532 = vunpack.c.l.b16 %v5334
    %v6533 = vunpack.c.l.b16 %v5335
    %v6534 = vunpack.c.l.b16 %v5336
    %v6535 = vunpack.c.l.b16 %v5337
    %v6536 = vunpack.c.l.b16 %v5338
    %v6537 = vunpack.c.l.b16 %v5339
    %v6538 = vunpack.c.l.b16 %v5340
    %v6539 = vunpack.c.l.b16 %v5341
    %v6540 = vunpack.c.l.b16 %v5342
    %v6541 = vunpack.c.l.b16 %v5343
    %v6542 = vunpack.c.l.b16 %v5344
    %v6543 = vunpack.c.l.b16 %v5345
    %v6544 = vunpack.c.l.b16 %v5346
    %v6545 = vunpack.c.l.b16 %v5347
    %v6546 = vunpack.c.l.b16 %v5348
    %v6547 = vunpack.c.l.b16 %v5349
    %v6548 = vunpack.c.l.b16 %v5350
    %v6549 = vunpack.c.l.b16 %v5351
    %v6550 = vunpack.c.l.b16 %v5352
    %v6551 = vunpack.c.l.b16 %v5353
    %v6552 = vunpack.c.l.b16 %v5354
    %v6553 = vunpack.c.l.b16 %v5355
    %v6554 = vunpack.c.l.b16 %v5356
    %v6555 = vunpack.c.l.b16 %v5357
    %v6556 = vunpack.c.l.b16 %v5358
    %v6557 = vunpack.c.l.b16 %v5359
    %v6558 = vunpack.c.l.b16 %v5360
    %v6559 = vunpack.c.l.b16 %v5361
    %v6560 = vunpack.c.l.b16 %v5362
    %v6561 = vunpack.c.l.b16 %v5363
    %v6562 = vunpack.c.l.b16 %v5364
    %v6563 = vunpack.c.l.b16 %v5365
    %v6564 = vunpack.c.l.b16 %v5366
    %v6565 = vunpack.c.l.b16 %v5367
    %v6566 = vunpack.c.l.b16 %v5368
    %v6567 = vunpack.c.l.b16 %v5369
    %v6568 = vpack.c.b16 %v6505, %v6504
    %v6569 = vpack.c.b16 %v6507, %v6506
    %v6570 = vpack.c.b16 %v6509, %v6508
    %v6571 = vpack.c.b16 %v6511, %v6510
    %v6572 = vpack.c.b16 %v6513, %v6512
    %v6573 = vpack.c.b16 %v6515, %v6514
    %v6574 = vpack.c.b16 %v6517, %v6516
    %v6575 = vpack.c.b16 %v6519, %v6518
    %v6576 = vpack.c.b16 %v6521, %v6520
    %v6577 = vpack.c.b16 %v6523, %v6522
    %v6578 = vpack.c.b16 %v6525, %v6524
    %v6579 = vpack.c.b16 %v6527, %v6526
    %v6580 = vpack.c.b16 %v6529, %v6528
    %v6581 = vpack.c.b16 %v6531, %v6530
    %v6582 = vpack.c.b16 %v6533, %v6532
    %v6583 = vpack.c.b16 %v6535, %v6534
    %v6584 = vpack.c.b16 %v6537, %v6536
    %v6585 = vpack.c.b16 %v6539, %v6538
    %v6586 = vpack.c.b16 %v6541, %v6540
    %v6587 = vpack.c.b16 %v6543, %v6542
    %v6588 = vpack.c.b16 %v6545, %v6544
    %v6589 = vpack.c.b16 %v6547, %v6546
    %v6590 = vpack.c.b16 %v6549, %v6548
    %v6591 = vpack.c.b16 %v6551, %v6550
    %v6592 = vpack.c.b16 %v6553, %v6552
    %v6593 = vpack.c.b16 %v6555, %v6554
    %v6594 = vpack.c.b16 %v6557, %v6556
    %v6595 = vpack.c.b16 %v6559, %v6558
    %v6596 = vpack.c.b16 %v6561, %v6560
    %v6597 = vpack.c.b16 %v6563, %v6562
    %v6598 = vpack.c.b16 %v6565, %v6564
    %v6599 = vpack.c.b16 %v6567, %v6566
    %6632 = vmatprep.subr.bf16.mxu0 0
    %6633 = vmatpush1.bf16.msra.mxu0 %v6568
    %6634 = vmatprep.subr.bf16.mxu0 0
    %6635 = vmatpush1.bf16.msra.mxu0 %v6569
    %6636 = vmatprep.subr.bf16.mxu0 0
    %6637 = vmatpush1.bf16.msra.mxu0 %v6570
    %6638 = vmatprep.subr.bf16.mxu0 0
    %6639 = vmatpush1.bf16.msra.mxu0 %v6571
    %6640 = vmatprep.subr.bf16.mxu0 0
    %6641 = vmatpush1.bf16.msra.mxu0 %v6572
    %6642 = vmatprep.subr.bf16.mxu0 0
    %6643 = vmatpush1.bf16.msra.mxu0 %v6573
    %6644 = vmatprep.subr.bf16.mxu0 0
    %6645 = vmatpush1.bf16.msra.mxu0 %v6574
    %6646 = vmatprep.subr.bf16.mxu0 0
    %6647 = vmatpush1.bf16.msra.mxu0 %v6575
    %6648 = vmatprep.subr.bf16.mxu0 0
    %6649 = vmatpush1.bf16.msra.mxu0 %v6576
    %6650 = vmatprep.subr.bf16.mxu0 0
    %6651 = vmatpush1.bf16.msra.mxu0 %v6577
    %6652 = vmatprep.subr.bf16.mxu0 0
    %6653 = vmatpush1.bf16.msra.mxu0 %v6578
    %6654 = vmatprep.subr.bf16.mxu0 0
    %6655 = vmatpush1.bf16.msra.mxu0 %v6579
    %6656 = vmatprep.subr.bf16.mxu0 0
    %6657 = vmatpush1.bf16.msra.mxu0 %v6580
    %6658 = vmatprep.subr.bf16.mxu0 0
    %6659 = vmatpush1.bf16.msra.mxu0 %v6581
    %6660 = vmatprep.subr.bf16.mxu0 0
    %6661 = vmatpush1.bf16.msra.mxu0 %v6582
    %6662 = vmatprep.subr.bf16.mxu0 0
    %6663 = vmatpush1.bf16.msra.mxu0 %v6583
    %6664 = vmatprep.mubr.bf16.mxu0 %v6431
    %6665 = vmatmul.mubr.bf16.gmra.mrb[0].mxu0 %v6430
    %v6666 = vpop.f32.mrb[0].mxu0
    %v6667 = vadd.f32 %v6438, %v6666
    %v6668 = vpop.f32.mrb[0].mxu0
    %v6669 = vpop.f32.mrb[0].mxu0
    %v6670 = vpop.f32.mrb[0].mxu0
    %6671 = vdwg.mxu0
    %6672 = vmatprep.subr.bf16.mxu0 0
    %6673 = vmatpush1.bf16.msra.mxu0 %v6584
    %6674 = vmatprep.subr.bf16.mxu0 0
    %6675 = vmatpush1.bf16.msra.mxu0 %v6585
    %6676 = vmatprep.subr.bf16.mxu0 0
    %6677 = vmatpush1.bf16.msra.mxu0 %v6586
    %6678 = vmatprep.subr.bf16.mxu0 0
    %6679 = vmatpush1.bf16.msra.mxu0 %v6587
    %6680 = vmatprep.subr.bf16.mxu0 0
    %6681 = vmatpush1.bf16.msra.mxu0 %v6588
    %6682 = vmatprep.subr.bf16.mxu0 0
    %6683 = vmatpush1.bf16.msra.mxu0 %v6589
    %6684 = vmatprep.subr.bf16.mxu0 0
    %6685 = vmatpush1.bf16.msra.mxu0 %v6590
    %6686 = vmatprep.subr.bf16.mxu0 0
    %6687 = vmatpush1.bf16.msra.mxu0 %v6591
    %6688 = vmatprep.subr.bf16.mxu0 0
    %6689 = vmatpush1.bf16.msra.mxu0 %v6592
    %6690 = vmatprep.subr.bf16.mxu0 0
    %6691 = vmatpush1.bf16.msra.mxu0 %v6593
    %6692 = vmatprep.subr.bf16.mxu0 0
    %6693 = vmatpush1.bf16.msra.mxu0 %v6594
    %6694 = vmatprep.subr.bf16.mxu0 0
    %6695 = vmatpush1.bf16.msra.mxu0 %v6595
    %6696 = vmatprep.subr.bf16.mxu0 0
    %6697 = vmatpush1.bf16.msra.mxu0 %v6596
    %6698 = vmatprep.subr.bf16.mxu0 0
    %6699 = vmatpush1.bf16.msra.mxu0 %v6597
    %6700 = vmatprep.subr.bf16.mxu0 0
    %6701 = vmatpush1.bf16.msra.mxu0 %v6598
    %6702 = vmatprep.subr.bf16.mxu0 0
    %6703 = vmatpush1.bf16.msra.mxu0 %v6599
    %6704 = vmatprep.mubr.bf16.mxu0 %v6433
    %6705 = vmatmul.mubr.bf16.gmra.mrb[0].mxu0 %v6432
    %v6706 = vpop.f32.mrb[0].mxu0
    %v6707 = vadd.f32 %v6667, %v6706
    %v6708 = vpop.f32.mrb[0].mxu0
    %v6709 = vpop.f32.mrb[0].mxu0
    %v6710 = vpop.f32.mrb[0].mxu0
    %6711 = vdwg.mxu0
    %v6712 = vadd.f32 %v4668, %v6707
    %6713 = vadd.xlane.f32.xlu0 %v6712
    %v6714 = vpop.xlane.xlu0 %6713
    %v6715 = vmul.f32 %v6714, 0.03125
    %v6716 = vsub.f32 %v6712, %v6715
    %v6717 = vsel %vm2442, %v6716, 0.0
    %v6718 = vmul.f32 %v6717, %v6717
    %6719 = vadd.xlane.f32.xlu0 %v6718
    %v6720 = vpop.xlane.xlu0 %6719
    %v6721 = vmul.f32 %v6720, 0.03125
    %v6722 = vadd.f32 %v6721, 1e-05
    %v6723 = vrsqrt.pop %v6722
    %v6724 = vmul.f32 %v6717, %v6723
    %v6726 = vlaneseq
    %v6727 = vshrl.u32 %v6726, 7
    %v6728 = vsub.s32 0, %v6727
    %v6729 = vrot.slane %v5764, %v6728
    %v6731 = vmul.f32 %v6724, %v6729
    %v6733 = vlaneseq
    %v6734 = vshrl.u32 %v6733, 7
    %v6735 = vsub.s32 0, %v6734
    %v6736 = vrot.slane %v5766, %v6735
    %v6738 = vadd.f32 %v6731, %v6736
    %v6739 = vpack.c.bf16 %v6738, %v6738
    %v6742 = vlaneseq
    %v6743 = vshrl.u32 %v6742, 7
    %v6744 = vsub.s32 0, %v6743
    %v6745 = vrot.slane %v5502, %v6744
    %v6746 = vlaneseq
    %v6747 = vshrl.u32 %v6746, 7
    %v6748 = vsub.s32 1, %v6747
    %v6749 = vrot.slane %v5502, %v6748
    %v6750 = vlaneseq
    %v6751 = vshrl.u32 %v6750, 7
    %v6752 = vsub.s32 2, %v6751
    %v6753 = vrot.slane %v5502, %v6752
    %v6754 = vlaneseq
    %v6755 = vshrl.u32 %v6754, 7
    %v6756 = vsub.s32 3, %v6755
    %v6757 = vrot.slane %v5502, %v6756
    %v6758 = vlaneseq
    %v6759 = vshrl.u32 %v6758, 7
    %v6760 = vsub.s32 4, %v6759
    %v6761 = vrot.slane %v5502, %v6760
    %v6762 = vlaneseq
    %v6763 = vshrl.u32 %v6762, 7
    %v6764 = vsub.s32 5, %v6763
    %v6765 = vrot.slane %v5502, %v6764
    %v6766 = vlaneseq
    %v6767 = vshrl.u32 %v6766, 7
    %v6768 = vsub.s32 6, %v6767
    %v6769 = vrot.slane %v5502, %v6768
    %v6770 = vlaneseq
    %v6771 = vshrl.u32 %v6770, 7
    %v6772 = vsub.s32 7, %v6771
    %v6773 = vrot.slane %v5502, %v6772
    %v6774 = vlaneseq
    %v6775 = vshrl.u32 %v6774, 7
    %v6776 = vsub.s32 0, %v6775
    %v6777 = vrot.slane %v5503, %v6776
    %v6778 = vlaneseq
    %v6779 = vshrl.u32 %v6778, 7
    %v6780 = vsub.s32 1, %v6779
    %v6781 = vrot.slane %v5503, %v6780
    %v6782 = vlaneseq
    %v6783 = vshrl.u32 %v6782, 7
    %v6784 = vsub.s32 2, %v6783
    %v6785 = vrot.slane %v5503, %v6784
    %v6786 = vlaneseq
    %v6787 = vshrl.u32 %v6786, 7
    %v6788 = vsub.s32 3, %v6787
    %v6789 = vrot.slane %v5503, %v6788
    %v6790 = vlaneseq
    %v6791 = vshrl.u32 %v6790, 7
    %v6792 = vsub.s32 4, %v6791
    %v6793 = vrot.slane %v5503, %v6792
    %v6794 = vlaneseq
    %v6795 = vshrl.u32 %v6794, 7
    %v6796 = vsub.s32 5, %v6795
    %v6797 = vrot.slane %v5503, %v6796
    %v6798 = vlaneseq
    %v6799 = vshrl.u32 %v6798, 7
    %v6800 = vsub.s32 6, %v6799
    %v6801 = vrot.slane %v5503, %v6800
    %v6802 = vlaneseq
    %v6803 = vshrl.u32 %v6802, 7
    %v6804 = vsub.s32 7, %v6803
    %v6805 = vrot.slane %v5503, %v6804
    %v6950 = vunpack.c.l.b16 %v5373
    %v6951 = vunpack.c.h.b16 %v5373
    %v6952 = vunpack.c.l.b16 %v5374
    %v6953 = vunpack.c.h.b16 %v5374
    %v6954 = vunpack.c.l.b16 %v5375
    %v6955 = vunpack.c.h.b16 %v5375
    %v6956 = vunpack.c.l.b16 %v5376
    %v6957 = vunpack.c.h.b16 %v5376
    %v6958 = vunpack.c.l.b16 %v5377
    %v6959 = vunpack.c.h.b16 %v5377
    %v6960 = vunpack.c.l.b16 %v5378
    %v6961 = vunpack.c.h.b16 %v5378
    %v6962 = vunpack.c.l.b16 %v5379
    %v6963 = vunpack.c.h.b16 %v5379
    %v6964 = vunpack.c.l.b16 %v5380
    %v6965 = vunpack.c.h.b16 %v5380
    %v6966 = vunpack.c.l.b16 %v5381
    %v6967 = vunpack.c.h.b16 %v5381
    %v6968 = vunpack.c.l.b16 %v5382
    %v6969 = vunpack.c.h.b16 %v5382
    %v6970 = vunpack.c.l.b16 %v5383
    %v6971 = vunpack.c.h.b16 %v5383
    %v6972 = vunpack.c.l.b16 %v5384
    %v6973 = vunpack.c.h.b16 %v5384
    %v6974 = vunpack.c.l.b16 %v5385
    %v6975 = vunpack.c.h.b16 %v5385
    %v6976 = vunpack.c.l.b16 %v5386
    %v6977 = vunpack.c.h.b16 %v5386
    %v6978 = vunpack.c.l.b16 %v5387
    %v6979 = vunpack.c.h.b16 %v5387
    %v6980 = vunpack.c.l.b16 %v5388
    %v6981 = vunpack.c.h.b16 %v5388
    %v6982 = vunpack.c.l.b16 %v5389
    %v6983 = vunpack.c.h.b16 %v5389
    %v6984 = vunpack.c.l.b16 %v5390
    %v6985 = vunpack.c.h.b16 %v5390
    %v6986 = vunpack.c.l.b16 %v5391
    %v6987 = vunpack.c.h.b16 %v5391
    %v6988 = vunpack.c.l.b16 %v5392
    %v6989 = vunpack.c.h.b16 %v5392
    %v6990 = vunpack.c.l.b16 %v5393
    %v6991 = vunpack.c.h.b16 %v5393
    %v6992 = vunpack.c.l.b16 %v5394
    %v6993 = vunpack.c.h.b16 %v5394
    %v6994 = vunpack.c.l.b16 %v5395
    %v6995 = vunpack.c.h.b16 %v5395
    %v6996 = vunpack.c.l.b16 %v5396
    %v6997 = vunpack.c.h.b16 %v5396
    %v6998 = vunpack.c.l.b16 %v5397
    %v6999 = vunpack.c.h.b16 %v5397
    %v7000 = vunpack.c.l.b16 %v5398
    %v7001 = vunpack.c.h.b16 %v5398
    %v7002 = vunpack.c.l.b16 %v5399
    %v7003 = vunpack.c.h.b16 %v5399
    %v7004 = vunpack.c.l.b16 %v5400
    %v7005 = vunpack.c.h.b16 %v5400
    %v7006 = vunpack.c.l.b16 %v5401
    %v7007 = vunpack.c.h.b16 %v5401
    %v7008 = vunpack.c.l.b16 %v5402
    %v7009 = vunpack.c.h.b16 %v5402
    %v7010 = vunpack.c.l.b16 %v5403
    %v7011 = vunpack.c.h.b16 %v5403
    %v7012 = vunpack.c.l.b16 %v5404
    %v7013 = vunpack.c.h.b16 %v5404
    %v7014 = vunpack.c.l.b16 %v5405
    %v7015 = vunpack.c.h.b16 %v5405
    %v7016 = vunpack.c.l.b16 %v5406
    %v7017 = vunpack.c.h.b16 %v5406
    %v7018 = vunpack.c.l.b16 %v5407
    %v7019 = vunpack.c.h.b16 %v5407
    %v7020 = vunpack.c.l.b16 %v5408
    %v7021 = vunpack.c.h.b16 %v5408
    %v7022 = vunpack.c.l.b16 %v5409
    %v7023 = vunpack.c.h.b16 %v5409
    %v7024 = vunpack.c.l.b16 %v5410
    %v7025 = vunpack.c.h.b16 %v5410
    %v7026 = vunpack.c.l.b16 %v5411
    %v7027 = vunpack.c.h.b16 %v5411
    %v7028 = vunpack.c.l.b16 %v5412
    %v7029 = vunpack.c.h.b16 %v5412
    %v7030 = vunpack.c.l.b16 %v5413
    %v7031 = vunpack.c.h.b16 %v5413
    %v7032 = vunpack.c.l.b16 %v5414
    %v7033 = vunpack.c.h.b16 %v5414
    %v7034 = vunpack.c.l.b16 %v5415
    %v7035 = vunpack.c.h.b16 %v5415
    %v7036 = vunpack.c.l.b16 %v5416
    %v7037 = vunpack.c.h.b16 %v5416
    %v7038 = vunpack.c.l.b16 %v5417
    %v7039 = vunpack.c.h.b16 %v5417
    %v7040 = vunpack.c.l.b16 %v5418
    %v7041 = vunpack.c.h.b16 %v5418
    %v7042 = vunpack.c.l.b16 %v5419
    %v7043 = vunpack.c.h.b16 %v5419
    %v7044 = vunpack.c.l.b16 %v5420
    %v7045 = vunpack.c.h.b16 %v5420
    %v7046 = vunpack.c.l.b16 %v5421
    %v7047 = vunpack.c.h.b16 %v5421
    %v7048 = vunpack.c.l.b16 %v5422
    %v7049 = vunpack.c.h.b16 %v5422
    %v7050 = vunpack.c.l.b16 %v5423
    %v7051 = vunpack.c.h.b16 %v5423
    %v7052 = vunpack.c.l.b16 %v5424
    %v7053 = vunpack.c.h.b16 %v5424
    %v7054 = vunpack.c.l.b16 %v5425
    %v7055 = vunpack.c.h.b16 %v5425
    %v7056 = vunpack.c.l.b16 %v5426
    %v7057 = vunpack.c.h.b16 %v5426
    %v7058 = vunpack.c.l.b16 %v5427
    %v7059 = vunpack.c.h.b16 %v5427
    %v7060 = vunpack.c.l.b16 %v5428
    %v7061 = vunpack.c.h.b16 %v5428
    %v7062 = vunpack.c.l.b16 %v5429
    %v7063 = vunpack.c.h.b16 %v5429
    %v7064 = vunpack.c.l.b16 %v5430
    %v7065 = vunpack.c.h.b16 %v5430
    %v7066 = vunpack.c.l.b16 %v5431
    %v7067 = vunpack.c.h.b16 %v5431
    %v7068 = vunpack.c.l.b16 %v5432
    %v7069 = vunpack.c.h.b16 %v5432
    %v7070 = vunpack.c.l.b16 %v5433
    %v7071 = vunpack.c.h.b16 %v5433
    %v7072 = vunpack.c.l.b16 %v5434
    %v7073 = vunpack.c.h.b16 %v5434
    %v7074 = vunpack.c.l.b16 %v5435
    %v7075 = vunpack.c.h.b16 %v5435
    %v7076 = vunpack.c.l.b16 %v5436
    %v7077 = vunpack.c.h.b16 %v5436
    %v7078 = vunpack.c.l.b16 %v5437
    %v7079 = vunpack.c.h.b16 %v5437
    %v7080 = vunpack.c.l.b16 %v5438
    %v7081 = vunpack.c.h.b16 %v5438
    %v7082 = vunpack.c.l.b16 %v5439
    %v7083 = vunpack.c.h.b16 %v5439
    %v7084 = vunpack.c.l.b16 %v5440
    %v7085 = vunpack.c.h.b16 %v5440
    %v7086 = vunpack.c.l.b16 %v5441
    %v7087 = vunpack.c.h.b16 %v5441
    %v7088 = vunpack.c.l.b16 %v5442
    %v7089 = vunpack.c.h.b16 %v5442
    %v7090 = vunpack.c.l.b16 %v5443
    %v7091 = vunpack.c.h.b16 %v5443
    %v7092 = vunpack.c.l.b16 %v5444
    %v7093 = vunpack.c.h.b16 %v5444
    %v7094 = vunpack.c.l.b16 %v5445
    %v7095 = vunpack.c.h.b16 %v5445
    %v7096 = vunpack.c.l.b16 %v5446
    %v7097 = vunpack.c.h.b16 %v5446
    %v7098 = vunpack.c.l.b16 %v5447
    %v7099 = vunpack.c.h.b16 %v5447
    %v7100 = vunpack.c.l.b16 %v5448
    %v7101 = vunpack.c.h.b16 %v5448
    %v7102 = vunpack.c.l.b16 %v5449
    %v7103 = vunpack.c.h.b16 %v5449
    %v7104 = vunpack.c.l.b16 %v5450
    %v7105 = vunpack.c.h.b16 %v5450
    %v7106 = vunpack.c.l.b16 %v5451
    %v7107 = vunpack.c.h.b16 %v5451
    %v7108 = vunpack.c.l.b16 %v5452
    %v7109 = vunpack.c.h.b16 %v5452
    %v7110 = vunpack.c.l.b16 %v5453
    %v7111 = vunpack.c.h.b16 %v5453
    %v7112 = vunpack.c.l.b16 %v5454
    %v7113 = vunpack.c.h.b16 %v5454
    %v7114 = vunpack.c.l.b16 %v5455
    %v7115 = vunpack.c.h.b16 %v5455
    %v7116 = vunpack.c.l.b16 %v5456
    %v7117 = vunpack.c.h.b16 %v5456
    %v7118 = vunpack.c.l.b16 %v5457
    %v7119 = vunpack.c.h.b16 %v5457
    %v7120 = vunpack.c.l.b16 %v5458
    %v7121 = vunpack.c.h.b16 %v5458
    %v7122 = vunpack.c.l.b16 %v5459
    %v7123 = vunpack.c.h.b16 %v5459
    %v7124 = vunpack.c.l.b16 %v5460
    %v7125 = vunpack.c.h.b16 %v5460
    %v7126 = vunpack.c.l.b16 %v5461
    %v7127 = vunpack.c.h.b16 %v5461
    %v7128 = vunpack.c.l.b16 %v5462
    %v7129 = vunpack.c.h.b16 %v5462
    %v7130 = vunpack.c.l.b16 %v5463
    %v7131 = vunpack.c.h.b16 %v5463
    %v7132 = vunpack.c.l.b16 %v5464
    %v7133 = vunpack.c.h.b16 %v5464
    %v7134 = vunpack.c.l.b16 %v5465
    %v7135 = vunpack.c.h.b16 %v5465
    %v7136 = vunpack.c.l.b16 %v5466
    %v7137 = vunpack.c.h.b16 %v5466
    %v7138 = vunpack.c.l.b16 %v5467
    %v7139 = vunpack.c.h.b16 %v5467
    %v7140 = vunpack.c.l.b16 %v5468
    %v7141 = vunpack.c.h.b16 %v5468
    %v7142 = vunpack.c.l.b16 %v5469
    %v7143 = vunpack.c.h.b16 %v5469
    %v7144 = vunpack.c.l.b16 %v5470
    %v7145 = vunpack.c.h.b16 %v5470
    %v7146 = vunpack.c.l.b16 %v5471
    %v7147 = vunpack.c.h.b16 %v5471
    %v7148 = vunpack.c.l.b16 %v5472
    %v7149 = vunpack.c.h.b16 %v5472
    %v7150 = vunpack.c.l.b16 %v5473
    %v7151 = vunpack.c.h.b16 %v5473
    %v7152 = vunpack.c.l.b16 %v5474
    %v7153 = vunpack.c.h.b16 %v5474
    %v7154 = vunpack.c.l.b16 %v5475
    %v7155 = vunpack.c.h.b16 %v5475
    %v7156 = vunpack.c.l.b16 %v5476
    %v7157 = vunpack.c.h.b16 %v5476
    %v7158 = vunpack.c.l.b16 %v5477
    %v7159 = vunpack.c.h.b16 %v5477
    %v7160 = vunpack.c.l.b16 %v5478
    %v7161 = vunpack.c.h.b16 %v5478
    %v7162 = vunpack.c.l.b16 %v5479
    %v7163 = vunpack.c.h.b16 %v5479
    %v7164 = vunpack.c.l.b16 %v5480
    %v7165 = vunpack.c.h.b16 %v5480
    %v7166 = vunpack.c.l.b16 %v5481
    %v7167 = vunpack.c.h.b16 %v5481
    %v7168 = vunpack.c.l.b16 %v5482
    %v7169 = vunpack.c.h.b16 %v5482
    %v7170 = vunpack.c.l.b16 %v5483
    %v7171 = vunpack.c.h.b16 %v5483
    %v7172 = vunpack.c.l.b16 %v5484
    %v7173 = vunpack.c.h.b16 %v5484
    %v7174 = vunpack.c.l.b16 %v5485
    %v7175 = vunpack.c.h.b16 %v5485
    %v7176 = vunpack.c.l.b16 %v5486
    %v7177 = vunpack.c.h.b16 %v5486
    %v7178 = vunpack.c.l.b16 %v5487
    %v7179 = vunpack.c.h.b16 %v5487
    %v7180 = vunpack.c.l.b16 %v5488
    %v7181 = vunpack.c.h.b16 %v5488
    %v7182 = vunpack.c.l.b16 %v5489
    %v7183 = vunpack.c.h.b16 %v5489
    %v7184 = vunpack.c.l.b16 %v5490
    %v7185 = vunpack.c.h.b16 %v5490
    %v7186 = vunpack.c.l.b16 %v5491
    %v7187 = vunpack.c.h.b16 %v5491
    %v7188 = vunpack.c.l.b16 %v5492
    %v7189 = vunpack.c.h.b16 %v5492
    %v7190 = vunpack.c.l.b16 %v5493
    %v7191 = vunpack.c.h.b16 %v5493
    %v7192 = vunpack.c.l.b16 %v5494
    %v7193 = vunpack.c.h.b16 %v5494
    %v7194 = vunpack.c.l.b16 %v5495
    %v7195 = vunpack.c.h.b16 %v5495
    %v7196 = vunpack.c.l.b16 %v5496
    %v7197 = vunpack.c.h.b16 %v5496
    %v7198 = vunpack.c.l.b16 %v5497
    %v7199 = vunpack.c.h.b16 %v5497
    %v7200 = vunpack.c.l.b16 %v5498
    %v7201 = vunpack.c.h.b16 %v5498
    %v7202 = vunpack.c.l.b16 %v5499
    %v7203 = vunpack.c.h.b16 %v5499
    %v7204 = vunpack.c.l.b16 %v5500
    %v7205 = vunpack.c.h.b16 %v5500
    %v7206 = vpack.c.b16 %v6966, %v6950
    %v7207 = vpack.c.b16 %v6967, %v6951
    %v7208 = vpack.c.b16 %v6968, %v6952
    %v7209 = vpack.c.b16 %v6969, %v6953
    %v7210 = vpack.c.b16 %v6970, %v6954
    %v7211 = vpack.c.b16 %v6971, %v6955
    %v7212 = vpack.c.b16 %v6972, %v6956
    %v7213 = vpack.c.b16 %v6973, %v6957
    %v7214 = vpack.c.b16 %v6974, %v6958
    %v7215 = vpack.c.b16 %v6975, %v6959
    %v7216 = vpack.c.b16 %v6976, %v6960
    %v7217 = vpack.c.b16 %v6977, %v6961
    %v7218 = vpack.c.b16 %v6978, %v6962
    %v7219 = vpack.c.b16 %v6979, %v6963
    %v7220 = vpack.c.b16 %v6980, %v6964
    %v7221 = vpack.c.b16 %v6981, %v6965
    %v7222 = vpack.c.b16 %v6998, %v6982
    %v7223 = vpack.c.b16 %v6999, %v6983
    %v7224 = vpack.c.b16 %v7000, %v6984
    %v7225 = vpack.c.b16 %v7001, %v6985
    %v7226 = vpack.c.b16 %v7002, %v6986
    %v7227 = vpack.c.b16 %v7003, %v6987
    %v7228 = vpack.c.b16 %v7004, %v6988
    %v7229 = vpack.c.b16 %v7005, %v6989
    %v7230 = vpack.c.b16 %v7006, %v6990
    %v7231 = vpack.c.b16 %v7007, %v6991
    %v7232 = vpack.c.b16 %v7008, %v6992
    %v7233 = vpack.c.b16 %v7009, %v6993
    %v7234 = vpack.c.b16 %v7010, %v6994
    %v7235 = vpack.c.b16 %v7011, %v6995
    %v7236 = vpack.c.b16 %v7012, %v6996
    %v7237 = vpack.c.b16 %v7013, %v6997
    %v7238 = vpack.c.b16 %v7030, %v7014
    %v7239 = vpack.c.b16 %v7031, %v7015
    %v7240 = vpack.c.b16 %v7032, %v7016
    %v7241 = vpack.c.b16 %v7033, %v7017
    %v7242 = vpack.c.b16 %v7034, %v7018
    %v7243 = vpack.c.b16 %v7035, %v7019
    %v7244 = vpack.c.b16 %v7036, %v7020
    %v7245 = vpack.c.b16 %v7037, %v7021
    %v7246 = vpack.c.b16 %v7038, %v7022
    %v7247 = vpack.c.b16 %v7039, %v7023
    %v7248 = vpack.c.b16 %v7040, %v7024
    %v7249 = vpack.c.b16 %v7041, %v7025
    %v7250 = vpack.c.b16 %v7042, %v7026
    %v7251 = vpack.c.b16 %v7043, %v7027
    %v7252 = vpack.c.b16 %v7044, %v7028
    %v7253 = vpack.c.b16 %v7045, %v7029
    %v7254 = vpack.c.b16 %v7062, %v7046
    %v7255 = vpack.c.b16 %v7063, %v7047
    %v7256 = vpack.c.b16 %v7064, %v7048
    %v7257 = vpack.c.b16 %v7065, %v7049
    %v7258 = vpack.c.b16 %v7066, %v7050
    %v7259 = vpack.c.b16 %v7067, %v7051
    %v7260 = vpack.c.b16 %v7068, %v7052
    %v7261 = vpack.c.b16 %v7069, %v7053
    %v7262 = vpack.c.b16 %v7070, %v7054
    %v7263 = vpack.c.b16 %v7071, %v7055
    %v7264 = vpack.c.b16 %v7072, %v7056
    %v7265 = vpack.c.b16 %v7073, %v7057
    %v7266 = vpack.c.b16 %v7074, %v7058
    %v7267 = vpack.c.b16 %v7075, %v7059
    %v7268 = vpack.c.b16 %v7076, %v7060
    %v7269 = vpack.c.b16 %v7077, %v7061
    %v7270 = vpack.c.b16 %v7094, %v7078
    %v7271 = vpack.c.b16 %v7095, %v7079
    %v7272 = vpack.c.b16 %v7096, %v7080
    %v7273 = vpack.c.b16 %v7097, %v7081
    %v7274 = vpack.c.b16 %v7098, %v7082
    %v7275 = vpack.c.b16 %v7099, %v7083
    %v7276 = vpack.c.b16 %v7100, %v7084
    %v7277 = vpack.c.b16 %v7101, %v7085
    %v7278 = vpack.c.b16 %v7102, %v7086
    %v7279 = vpack.c.b16 %v7103, %v7087
    %v7280 = vpack.c.b16 %v7104, %v7088
    %v7281 = vpack.c.b16 %v7105, %v7089
    %v7282 = vpack.c.b16 %v7106, %v7090
    %v7283 = vpack.c.b16 %v7107, %v7091
    %v7284 = vpack.c.b16 %v7108, %v7092
    %v7285 = vpack.c.b16 %v7109, %v7093
    %v7286 = vpack.c.b16 %v7126, %v7110
    %v7287 = vpack.c.b16 %v7127, %v7111
    %v7288 = vpack.c.b16 %v7128, %v7112
    %v7289 = vpack.c.b16 %v7129, %v7113
    %v7290 = vpack.c.b16 %v7130, %v7114
    %v7291 = vpack.c.b16 %v7131, %v7115
    %v7292 = vpack.c.b16 %v7132, %v7116
    %v7293 = vpack.c.b16 %v7133, %v7117
    %v7294 = vpack.c.b16 %v7134, %v7118
    %v7295 = vpack.c.b16 %v7135, %v7119
    %v7296 = vpack.c.b16 %v7136, %v7120
    %v7297 = vpack.c.b16 %v7137, %v7121
    %v7298 = vpack.c.b16 %v7138, %v7122
    %v7299 = vpack.c.b16 %v7139, %v7123
    %v7300 = vpack.c.b16 %v7140, %v7124
    %v7301 = vpack.c.b16 %v7141, %v7125
    %v7302 = vpack.c.b16 %v7158, %v7142
    %v7303 = vpack.c.b16 %v7159, %v7143
    %v7304 = vpack.c.b16 %v7160, %v7144
    %v7305 = vpack.c.b16 %v7161, %v7145
    %v7306 = vpack.c.b16 %v7162, %v7146
    %v7307 = vpack.c.b16 %v7163, %v7147
    %v7308 = vpack.c.b16 %v7164, %v7148
    %v7309 = vpack.c.b16 %v7165, %v7149
    %v7310 = vpack.c.b16 %v7166, %v7150
    %v7311 = vpack.c.b16 %v7167, %v7151
    %v7312 = vpack.c.b16 %v7168, %v7152
    %v7313 = vpack.c.b16 %v7169, %v7153
    %v7314 = vpack.c.b16 %v7170, %v7154
    %v7315 = vpack.c.b16 %v7171, %v7155
    %v7316 = vpack.c.b16 %v7172, %v7156
    %v7317 = vpack.c.b16 %v7173, %v7157
    %v7318 = vpack.c.b16 %v7190, %v7174
    %v7319 = vpack.c.b16 %v7191, %v7175
    %v7320 = vpack.c.b16 %v7192, %v7176
    %v7321 = vpack.c.b16 %v7193, %v7177
    %v7322 = vpack.c.b16 %v7194, %v7178
    %v7323 = vpack.c.b16 %v7195, %v7179
    %v7324 = vpack.c.b16 %v7196, %v7180
    %v7325 = vpack.c.b16 %v7197, %v7181
    %v7326 = vpack.c.b16 %v7198, %v7182
    %v7327 = vpack.c.b16 %v7199, %v7183
    %v7328 = vpack.c.b16 %v7200, %v7184
    %v7329 = vpack.c.b16 %v7201, %v7185
    %v7330 = vpack.c.b16 %v7202, %v7186
    %v7331 = vpack.c.b16 %v7203, %v7187
    %v7332 = vpack.c.b16 %v7204, %v7188
    %v7333 = vpack.c.b16 %v7205, %v7189
    %7462 = vmatprep.subr.bf16.mxu0 %v7207
    %7463 = vmatpush1.bf16.msra.mxu0 %v7206
    %7464 = vmatprep.subr.bf16.mxu0 %v7223
    %7465 = vmatpush1.bf16.msra.mxu0 %v7222
    %7466 = vmatprep.subr.bf16.mxu0 %v7239
    %7467 = vmatpush1.bf16.msra.mxu0 %v7238
    %7468 = vmatprep.subr.bf16.mxu0 %v7255
    %7469 = vmatpush1.bf16.msra.mxu0 %v7254
    %7470 = vmatprep.subr.bf16.mxu0 %v7271
    %7471 = vmatpush1.bf16.msra.mxu0 %v7270
    %7472 = vmatprep.subr.bf16.mxu0 %v7287
    %7473 = vmatpush1.bf16.msra.mxu0 %v7286
    %7474 = vmatprep.subr.bf16.mxu0 %v7303
    %7475 = vmatpush1.bf16.msra.mxu0 %v7302
    %7476 = vmatprep.subr.bf16.mxu0 %v7319
    %7477 = vmatpush1.bf16.msra.mxu0 %v7318
    %7478 = vmatprep.subr.bf16.mxu0 0
    %7479 = vmatpush1.bf16.msra.mxu0 0
    %7480 = vmatprep.subr.bf16.mxu0 0
    %7481 = vmatpush1.bf16.msra.mxu0 0
    %7482 = vmatprep.subr.bf16.mxu0 0
    %7483 = vmatpush1.bf16.msra.mxu0 0
    %7484 = vmatprep.subr.bf16.mxu0 0
    %7485 = vmatpush1.bf16.msra.mxu0 0
    %7486 = vmatprep.subr.bf16.mxu0 0
    %7487 = vmatpush1.bf16.msra.mxu0 0
    %7488 = vmatprep.subr.bf16.mxu0 0
    %7489 = vmatpush1.bf16.msra.mxu0 0
    %7490 = vmatprep.subr.bf16.mxu0 0
    %7491 = vmatpush1.bf16.msra.mxu0 0
    %7492 = vmatprep.subr.bf16.mxu0 0
    %7493 = vmatpush1.bf16.msra.mxu0 0
    %7494 = vmatprep.mubr.bf16.mxu0 0
    %7495 = vmatmul.mubr.bf16.gmra.mrb[0].mxu0 %v6739
    %v7496 = vpop.f32.mrb[0].mxu0
    %v7497 = vadd.f32 %v6745, %v7496
    %v7498 = vpop.f32.mrb[0].mxu0
    %v7499 = vadd.f32 %v6749, %v7498
    %v7500 = vpop.f32.mrb[0].mxu0
    %v7501 = vpop.f32.mrb[0].mxu0
    %7502 = vdwg.mxu0
    %7503 = vmatprep.subr.bf16.mxu0 %v7209
    %7504 = vmatpush1.bf16.msra.mxu0 %v7208
    %7505 = vmatprep.subr.bf16.mxu0 %v7225
    %7506 = vmatpush1.bf16.msra.mxu0 %v7224
    %7507 = vmatprep.subr.bf16.mxu0 %v7241
    %7508 = vmatpush1.bf16.msra.mxu0 %v7240
    %7509 = vmatprep.subr.bf16.mxu0 %v7257
    %7510 = vmatpush1.bf16.msra.mxu0 %v7256
    %7511 = vmatprep.subr.bf16.mxu0 %v7273
    %7512 = vmatpush1.bf16.msra.mxu0 %v7272
    %7513 = vmatprep.subr.bf16.mxu0 %v7289
    %7514 = vmatpush1.bf16.msra.mxu0 %v7288
    %7515 = vmatprep.subr.bf16.mxu0 %v7305
    %7516 = vmatpush1.bf16.msra.mxu0 %v7304
    %7517 = vmatprep.subr.bf16.mxu0 %v7321
    %7518 = vmatpush1.bf16.msra.mxu0 %v7320
    %7519 = vmatprep.subr.bf16.mxu0 0
    %7520 = vmatpush1.bf16.msra.mxu0 0
    %7521 = vmatprep.subr.bf16.mxu0 0
    %7522 = vmatpush1.bf16.msra.mxu0 0
    %7523 = vmatprep.subr.bf16.mxu0 0
    %7524 = vmatpush1.bf16.msra.mxu0 0
    %7525 = vmatprep.subr.bf16.mxu0 0
    %7526 = vmatpush1.bf16.msra.mxu0 0
    %7527 = vmatprep.subr.bf16.mxu0 0
    %7528 = vmatpush1.bf16.msra.mxu0 0
    %7529 = vmatprep.subr.bf16.mxu0 0
    %7530 = vmatpush1.bf16.msra.mxu0 0
    %7531 = vmatprep.subr.bf16.mxu0 0
    %7532 = vmatpush1.bf16.msra.mxu0 0
    %7533 = vmatprep.subr.bf16.mxu0 0
    %7534 = vmatpush1.bf16.msra.mxu0 0
    %7535 = vmatprep.mubr.bf16.mxu0 0
    %7536 = vmatmul.mubr.bf16.gmra.mrb[0].mxu0 %v6739
    %v7537 = vpop.f32.mrb[0].mxu0
    %v7538 = vadd.f32 %v6753, %v7537
    %v7539 = vpop.f32.mrb[0].mxu0
    %v7540 = vadd.f32 %v6757, %v7539
    %v7541 = vpop.f32.mrb[0].mxu0
    %v7542 = vpop.f32.mrb[0].mxu0
    %7543 = vdwg.mxu0
    %7544 = vmatprep.subr.bf16.mxu0 %v7211
    %7545 = vmatpush1.bf16.msra.mxu0 %v7210
    %7546 = vmatprep.subr.bf16.mxu0 %v7227
    %7547 = vmatpush1.bf16.msra.mxu0 %v7226
    %7548 = vmatprep.subr.bf16.mxu0 %v7243
    %7549 = vmatpush1.bf16.msra.mxu0 %v7242
    %7550 = vmatprep.subr.bf16.mxu0 %v7259
    %7551 = vmatpush1.bf16.msra.mxu0 %v7258
    %7552 = vmatprep.subr.bf16.mxu0 %v7275
    %7553 = vmatpush1.bf16.msra.mxu0 %v7274
    %7554 = vmatprep.subr.bf16.mxu0 %v7291
    %7555 = vmatpush1.bf16.msra.mxu0 %v7290
    %7556 = vmatprep.subr.bf16.mxu0 %v7307
    %7557 = vmatpush1.bf16.msra.mxu0 %v7306
    %7558 = vmatprep.subr.bf16.mxu0 %v7323
    %7559 = vmatpush1.bf16.msra.mxu0 %v7322
    %7560 = vmatprep.subr.bf16.mxu0 0
    %7561 = vmatpush1.bf16.msra.mxu0 0
    %7562 = vmatprep.subr.bf16.mxu0 0
    %7563 = vmatpush1.bf16.msra.mxu0 0
    %7564 = vmatprep.subr.bf16.mxu0 0
    %7565 = vmatpush1.bf16.msra.mxu0 0
    %7566 = vmatprep.subr.bf16.mxu0 0
    %7567 = vmatpush1.bf16.msra.mxu0 0
    %7568 = vmatprep.subr.bf16.mxu0 0
    %7569 = vmatpush1.bf16.msra.mxu0 0
    %7570 = vmatprep.subr.bf16.mxu0 0
    %7571 = vmatpush1.bf16.msra.mxu0 0
    %7572 = vmatprep.subr.bf16.mxu0 0
    %7573 = vmatpush1.bf16.msra.mxu0 0
    %7574 = vmatprep.subr.bf16.mxu0 0
    %7575 = vmatpush1.bf16.msra.mxu0 0
    %7576 = vmatprep.mubr.bf16.mxu0 0
    %7577 = vmatmul.mubr.bf16.gmra.mrb[0].mxu0 %v6739
    %v7578 = vpop.f32.mrb[0].mxu0
    %v7579 = vadd.f32 %v6761, %v7578
    %v7580 = vpop.f32.mrb[0].mxu0
    %v7581 = vadd.f32 %v6765, %v7580
    %v7582 = vpop.f32.mrb[0].mxu0
    %v7583 = vpop.f32.mrb[0].mxu0
    %7584 = vdwg.mxu0
    %7585 = vmatprep.subr.bf16.mxu0 %v7213
    %7586 = vmatpush1.bf16.msra.mxu0 %v7212
    %7587 = vmatprep.subr.bf16.mxu0 %v7229
    %7588 = vmatpush1.bf16.msra.mxu0 %v7228
    %7589 = vmatprep.subr.bf16.mxu0 %v7245
    %7590 = vmatpush1.bf16.msra.mxu0 %v7244
    %7591 = vmatprep.subr.bf16.mxu0 %v7261
    %7592 = vmatpush1.bf16.msra.mxu0 %v7260
    %7593 = vmatprep.subr.bf16.mxu0 %v7277
    %7594 = vmatpush1.bf16.msra.mxu0 %v7276
    %7595 = vmatprep.subr.bf16.mxu0 %v7293
    %7596 = vmatpush1.bf16.msra.mxu0 %v7292
    %7597 = vmatprep.subr.bf16.mxu0 %v7309
    %7598 = vmatpush1.bf16.msra.mxu0 %v7308
    %7599 = vmatprep.subr.bf16.mxu0 %v7325
    %7600 = vmatpush1.bf16.msra.mxu0 %v7324
    %7601 = vmatprep.subr.bf16.mxu0 0
    %7602 = vmatpush1.bf16.msra.mxu0 0
    %7603 = vmatprep.subr.bf16.mxu0 0
    %7604 = vmatpush1.bf16.msra.mxu0 0
    %7605 = vmatprep.subr.bf16.mxu0 0
    %7606 = vmatpush1.bf16.msra.mxu0 0
    %7607 = vmatprep.subr.bf16.mxu0 0
    %7608 = vmatpush1.bf16.msra.mxu0 0
    %7609 = vmatprep.subr.bf16.mxu0 0
    %7610 = vmatpush1.bf16.msra.mxu0 0
    %7611 = vmatprep.subr.bf16.mxu0 0
    %7612 = vmatpush1.bf16.msra.mxu0 0
    %7613 = vmatprep.subr.bf16.mxu0 0
    %7614 = vmatpush1.bf16.msra.mxu0 0
    %7615 = vmatprep.subr.bf16.mxu0 0
    %7616 = vmatpush1.bf16.msra.mxu0 0
    %7617 = vmatprep.mubr.bf16.mxu0 0
    %7618 = vmatmul.mubr.bf16.gmra.mrb[0].mxu0 %v6739
    %v7619 = vpop.f32.mrb[0].mxu0
    %v7620 = vadd.f32 %v6769, %v7619
    %v7621 = vpop.f32.mrb[0].mxu0
    %v7622 = vadd.f32 %v6773, %v7621
    %v7623 = vpop.f32.mrb[0].mxu0
    %v7624 = vpop.f32.mrb[0].mxu0
    %7625 = vdwg.mxu0
    %7626 = vmatprep.subr.bf16.mxu0 %v7215
    %7627 = vmatpush1.bf16.msra.mxu0 %v7214
    %7628 = vmatprep.subr.bf16.mxu0 %v7231
    %7629 = vmatpush1.bf16.msra.mxu0 %v7230
    %7630 = vmatprep.subr.bf16.mxu0 %v7247
    %7631 = vmatpush1.bf16.msra.mxu0 %v7246
    %7632 = vmatprep.subr.bf16.mxu0 %v7263
    %7633 = vmatpush1.bf16.msra.mxu0 %v7262
    %7634 = vmatprep.subr.bf16.mxu0 %v7279
    %7635 = vmatpush1.bf16.msra.mxu0 %v7278
    %7636 = vmatprep.subr.bf16.mxu0 %v7295
    %7637 = vmatpush1.bf16.msra.mxu0 %v7294
    %7638 = vmatprep.subr.bf16.mxu0 %v7311
    %7639 = vmatpush1.bf16.msra.mxu0 %v7310
    %7640 = vmatprep.subr.bf16.mxu0 %v7327
    %7641 = vmatpush1.bf16.msra.mxu0 %v7326
    %7642 = vmatprep.subr.bf16.mxu0 0
    %7643 = vmatpush1.bf16.msra.mxu0 0
    %7644 = vmatprep.subr.bf16.mxu0 0
    %7645 = vmatpush1.bf16.msra.mxu0 0
    %7646 = vmatprep.subr.bf16.mxu0 0
    %7647 = vmatpush1.bf16.msra.mxu0 0
    %7648 = vmatprep.subr.bf16.mxu0 0
    %7649 = vmatpush1.bf16.msra.mxu0 0
    %7650 = vmatprep.subr.bf16.mxu0 0
    %7651 = vmatpush1.bf16.msra.mxu0 0
    %7652 = vmatprep.subr.bf16.mxu0 0
    %7653 = vmatpush1.bf16.msra.mxu0 0
    %7654 = vmatprep.subr.bf16.mxu0 0
    %7655 = vmatpush1.bf16.msra.mxu0 0
    %7656 = vmatprep.subr.bf16.mxu0 0
    %7657 = vmatpush1.bf16.msra.mxu0 0
    %7658 = vmatprep.mubr.bf16.mxu0 0
    %7659 = vmatmul.mubr.bf16.gmra.mrb[0].mxu0 %v6739
    %v7660 = vpop.f32.mrb[0].mxu0
    %v7661 = vadd.f32 %v6777, %v7660
    %v7662 = vpop.f32.mrb[0].mxu0
    %v7663 = vadd.f32 %v6781, %v7662
    %v7664 = vpop.f32.mrb[0].mxu0
    %v7665 = vpop.f32.mrb[0].mxu0
    %7666 = vdwg.mxu0
    %7667 = vmatprep.subr.bf16.mxu0 %v7217
    %7668 = vmatpush1.bf16.msra.mxu0 %v7216
    %7669 = vmatprep.subr.bf16.mxu0 %v7233
    %7670 = vmatpush1.bf16.msra.mxu0 %v7232
    %7671 = vmatprep.subr.bf16.mxu0 %v7249
    %7672 = vmatpush1.bf16.msra.mxu0 %v7248
    %7673 = vmatprep.subr.bf16.mxu0 %v7265
    %7674 = vmatpush1.bf16.msra.mxu0 %v7264
    %7675 = vmatprep.subr.bf16.mxu0 %v7281
    %7676 = vmatpush1.bf16.msra.mxu0 %v7280
    %7677 = vmatprep.subr.bf16.mxu0 %v7297
    %7678 = vmatpush1.bf16.msra.mxu0 %v7296
    %7679 = vmatprep.subr.bf16.mxu0 %v7313
    %7680 = vmatpush1.bf16.msra.mxu0 %v7312
    %7681 = vmatprep.subr.bf16.mxu0 %v7329
    %7682 = vmatpush1.bf16.msra.mxu0 %v7328
    %7683 = vmatprep.subr.bf16.mxu0 0
    %7684 = vmatpush1.bf16.msra.mxu0 0
    %7685 = vmatprep.subr.bf16.mxu0 0
    %7686 = vmatpush1.bf16.msra.mxu0 0
    %7687 = vmatprep.subr.bf16.mxu0 0
    %7688 = vmatpush1.bf16.msra.mxu0 0
    %7689 = vmatprep.subr.bf16.mxu0 0
    %7690 = vmatpush1.bf16.msra.mxu0 0
    %7691 = vmatprep.subr.bf16.mxu0 0
    %7692 = vmatpush1.bf16.msra.mxu0 0
    %7693 = vmatprep.subr.bf16.mxu0 0
    %7694 = vmatpush1.bf16.msra.mxu0 0
    %7695 = vmatprep.subr.bf16.mxu0 0
    %7696 = vmatpush1.bf16.msra.mxu0 0
    %7697 = vmatprep.subr.bf16.mxu0 0
    %7698 = vmatpush1.bf16.msra.mxu0 0
    %7699 = vmatprep.mubr.bf16.mxu0 0
    %7700 = vmatmul.mubr.bf16.gmra.mrb[0].mxu0 %v6739
    %v7701 = vpop.f32.mrb[0].mxu0
    %v7702 = vadd.f32 %v6785, %v7701
    %v7703 = vpop.f32.mrb[0].mxu0
    %v7704 = vadd.f32 %v6789, %v7703
    %v7705 = vpop.f32.mrb[0].mxu0
    %v7706 = vpop.f32.mrb[0].mxu0
    %7707 = vdwg.mxu0
    %7708 = vmatprep.subr.bf16.mxu0 %v7219
    %7709 = vmatpush1.bf16.msra.mxu0 %v7218
    %7710 = vmatprep.subr.bf16.mxu0 %v7235
    %7711 = vmatpush1.bf16.msra.mxu0 %v7234
    %7712 = vmatprep.subr.bf16.mxu0 %v7251
    %7713 = vmatpush1.bf16.msra.mxu0 %v7250
    %7714 = vmatprep.subr.bf16.mxu0 %v7267
    %7715 = vmatpush1.bf16.msra.mxu0 %v7266
    %7716 = vmatprep.subr.bf16.mxu0 %v7283
    %7717 = vmatpush1.bf16.msra.mxu0 %v7282
    %7718 = vmatprep.subr.bf16.mxu0 %v7299
    %7719 = vmatpush1.bf16.msra.mxu0 %v7298
    %7720 = vmatprep.subr.bf16.mxu0 %v7315
    %7721 = vmatpush1.bf16.msra.mxu0 %v7314
    %7722 = vmatprep.subr.bf16.mxu0 %v7331
    %7723 = vmatpush1.bf16.msra.mxu0 %v7330
    %7724 = vmatprep.subr.bf16.mxu0 0
    %7725 = vmatpush1.bf16.msra.mxu0 0
    %7726 = vmatprep.subr.bf16.mxu0 0
    %7727 = vmatpush1.bf16.msra.mxu0 0
    %7728 = vmatprep.subr.bf16.mxu0 0
    %7729 = vmatpush1.bf16.msra.mxu0 0
    %7730 = vmatprep.subr.bf16.mxu0 0
    %7731 = vmatpush1.bf16.msra.mxu0 0
    %7732 = vmatprep.subr.bf16.mxu0 0
    %7733 = vmatpush1.bf16.msra.mxu0 0
    %7734 = vmatprep.subr.bf16.mxu0 0
    %7735 = vmatpush1.bf16.msra.mxu0 0
    %7736 = vmatprep.subr.bf16.mxu0 0
    %7737 = vmatpush1.bf16.msra.mxu0 0
    %7738 = vmatprep.subr.bf16.mxu0 0
    %7739 = vmatpush1.bf16.msra.mxu0 0
    %7740 = vmatprep.mubr.bf16.mxu0 0
    %7741 = vmatmul.mubr.bf16.gmra.mrb[0].mxu0 %v6739
    %v7742 = vpop.f32.mrb[0].mxu0
    %v7743 = vadd.f32 %v6793, %v7742
    %v7744 = vpop.f32.mrb[0].mxu0
    %v7745 = vadd.f32 %v6797, %v7744
    %v7746 = vpop.f32.mrb[0].mxu0
    %v7747 = vpop.f32.mrb[0].mxu0
    %7748 = vdwg.mxu0
    %7749 = vmatprep.subr.bf16.mxu0 %v7221
    %7750 = vmatpush1.bf16.msra.mxu0 %v7220
    %7751 = vmatprep.subr.bf16.mxu0 %v7237
    %7752 = vmatpush1.bf16.msra.mxu0 %v7236
    %7753 = vmatprep.subr.bf16.mxu0 %v7253
    %7754 = vmatpush1.bf16.msra.mxu0 %v7252
    %7755 = vmatprep.subr.bf16.mxu0 %v7269
    %7756 = vmatpush1.bf16.msra.mxu0 %v7268
    %7757 = vmatprep.subr.bf16.mxu0 %v7285
    %7758 = vmatpush1.bf16.msra.mxu0 %v7284
    %7759 = vmatprep.subr.bf16.mxu0 %v7301
    %7760 = vmatpush1.bf16.msra.mxu0 %v7300
    %7761 = vmatprep.subr.bf16.mxu0 %v7317
    %7762 = vmatpush1.bf16.msra.mxu0 %v7316
    %7763 = vmatprep.subr.bf16.mxu0 %v7333
    %7764 = vmatpush1.bf16.msra.mxu0 %v7332
    %7765 = vmatprep.subr.bf16.mxu0 0
    %7766 = vmatpush1.bf16.msra.mxu0 0
    %7767 = vmatprep.subr.bf16.mxu0 0
    %7768 = vmatpush1.bf16.msra.mxu0 0
    %7769 = vmatprep.subr.bf16.mxu0 0
    %7770 = vmatpush1.bf16.msra.mxu0 0
    %7771 = vmatprep.subr.bf16.mxu0 0
    %7772 = vmatpush1.bf16.msra.mxu0 0
    %7773 = vmatprep.subr.bf16.mxu0 0
    %7774 = vmatpush1.bf16.msra.mxu0 0
    %7775 = vmatprep.subr.bf16.mxu0 0
    %7776 = vmatpush1.bf16.msra.mxu0 0
    %7777 = vmatprep.subr.bf16.mxu0 0
    %7778 = vmatpush1.bf16.msra.mxu0 0
    %7779 = vmatprep.subr.bf16.mxu0 0
    %7780 = vmatpush1.bf16.msra.mxu0 0
    %7781 = vmatprep.mubr.bf16.mxu0 0
    %7782 = vmatmul.mubr.bf16.gmra.mrb[0].mxu0 %v6739
    %v7783 = vpop.f32.mrb[0].mxu0
    %v7784 = vadd.f32 %v6801, %v7783
    %v7785 = vpop.f32.mrb[0].mxu0
    %v7786 = vadd.f32 %v6805, %v7785
    %v7787 = vpop.f32.mrb[0].mxu0
    %v7788 = vpop.f32.mrb[0].mxu0
    %7789 = vdwg.mxu0
    %v7790 = vmax.f32 %v7497, 0.0
    %v7791 = vmax.f32 %v7499, 0.0
    %v7792 = vmax.f32 %v7538, 0.0
    %v7793 = vmax.f32 %v7540, 0.0
    %v7794 = vmax.f32 %v7579, 0.0
    %v7795 = vmax.f32 %v7581, 0.0
    %v7796 = vmax.f32 %v7620, 0.0
    %v7797 = vmax.f32 %v7622, 0.0
    %v7798 = vmax.f32 %v7661, 0.0
    %v7799 = vmax.f32 %v7663, 0.0
    %v7800 = vmax.f32 %v7702, 0.0
    %v7801 = vmax.f32 %v7704, 0.0
    %v7802 = vmax.f32 %v7743, 0.0
    %v7803 = vmax.f32 %v7745, 0.0
    %v7804 = vmax.f32 %v7784, 0.0
    %v7805 = vmax.f32 %v7786, 0.0
    %v7806 = vpack.c.bf16 %v7790, %v7790
    %v7807 = vpack.c.bf16 %v7791, %v7791
    %v7808 = vpack.c.bf16 %v7792, %v7792
    %v7809 = vpack.c.bf16 %v7793, %v7793
    %v7810 = vpack.c.bf16 %v7794, %v7794
    %v7811 = vpack.c.bf16 %v7795, %v7795
    %v7812 = vpack.c.bf16 %v7796, %v7796
    %v7813 = vpack.c.bf16 %v7797, %v7797
    %v7814 = vpack.c.bf16 %v7798, %v7798
    %v7815 = vpack.c.bf16 %v7799, %v7799
    %v7816 = vpack.c.bf16 %v7800, %v7800
    %v7817 = vpack.c.bf16 %v7801, %v7801
    %v7818 = vpack.c.bf16 %v7802, %v7802
    %v7819 = vpack.c.bf16 %v7803, %v7803
    %v7820 = vpack.c.bf16 %v7804, %v7804
    %v7821 = vpack.c.bf16 %v7805, %v7805
    %v7823 = vlaneseq
    %v7824 = vshrl.u32 %v7823, 7
    %v7825 = vsub.s32 0, %v7824
    %v7826 = vrot.slane %v5762, %v7825
    %v8084 = vunpack.c.l.b16 %v5505
    %v8085 = vunpack.c.l.b16 %v5506
    %v8086 = vunpack.c.l.b16 %v5507
    %v8087 = vunpack.c.l.b16 %v5508
    %v8088 = vunpack.c.l.b16 %v5509
    %v8089 = vunpack.c.l.b16 %v5510
    %v8090 = vunpack.c.l.b16 %v5511
    %v8091 = vunpack.c.l.b16 %v5512
    %v8092 = vunpack.c.l.b16 %v5513
    %v8093 = vunpack.c.l.b16 %v5514
    %v8094 = vunpack.c.l.b16 %v5515
    %v8095 = vunpack.c.l.b16 %v5516
    %v8096 = vunpack.c.l.b16 %v5517
    %v8097 = vunpack.c.l.b16 %v5518
    %v8098 = vunpack.c.l.b16 %v5519
    %v8099 = vunpack.c.l.b16 %v5520
    %v8100 = vunpack.c.l.b16 %v5521
    %v8101 = vunpack.c.l.b16 %v5522
    %v8102 = vunpack.c.l.b16 %v5523
    %v8103 = vunpack.c.l.b16 %v5524
    %v8104 = vunpack.c.l.b16 %v5525
    %v8105 = vunpack.c.l.b16 %v5526
    %v8106 = vunpack.c.l.b16 %v5527
    %v8107 = vunpack.c.l.b16 %v5528
    %v8108 = vunpack.c.l.b16 %v5529
    %v8109 = vunpack.c.l.b16 %v5530
    %v8110 = vunpack.c.l.b16 %v5531
    %v8111 = vunpack.c.l.b16 %v5532
    %v8112 = vunpack.c.l.b16 %v5533
    %v8113 = vunpack.c.l.b16 %v5534
    %v8114 = vunpack.c.l.b16 %v5535
    %v8115 = vunpack.c.l.b16 %v5536
    %v8116 = vunpack.c.l.b16 %v5537
    %v8117 = vunpack.c.l.b16 %v5538
    %v8118 = vunpack.c.l.b16 %v5539
    %v8119 = vunpack.c.l.b16 %v5540
    %v8120 = vunpack.c.l.b16 %v5541
    %v8121 = vunpack.c.l.b16 %v5542
    %v8122 = vunpack.c.l.b16 %v5543
    %v8123 = vunpack.c.l.b16 %v5544
    %v8124 = vunpack.c.l.b16 %v5545
    %v8125 = vunpack.c.l.b16 %v5546
    %v8126 = vunpack.c.l.b16 %v5547
    %v8127 = vunpack.c.l.b16 %v5548
    %v8128 = vunpack.c.l.b16 %v5549
    %v8129 = vunpack.c.l.b16 %v5550
    %v8130 = vunpack.c.l.b16 %v5551
    %v8131 = vunpack.c.l.b16 %v5552
    %v8132 = vunpack.c.l.b16 %v5553
    %v8133 = vunpack.c.l.b16 %v5554
    %v8134 = vunpack.c.l.b16 %v5555
    %v8135 = vunpack.c.l.b16 %v5556
    %v8136 = vunpack.c.l.b16 %v5557
    %v8137 = vunpack.c.l.b16 %v5558
    %v8138 = vunpack.c.l.b16 %v5559
    %v8139 = vunpack.c.l.b16 %v5560
    %v8140 = vunpack.c.l.b16 %v5561
    %v8141 = vunpack.c.l.b16 %v5562
    %v8142 = vunpack.c.l.b16 %v5563
    %v8143 = vunpack.c.l.b16 %v5564
    %v8144 = vunpack.c.l.b16 %v5565
    %v8145 = vunpack.c.l.b16 %v5566
    %v8146 = vunpack.c.l.b16 %v5567
    %v8147 = vunpack.c.l.b16 %v5568
    %v8148 = vunpack.c.l.b16 %v5569
    %v8149 = vunpack.c.l.b16 %v5570
    %v8150 = vunpack.c.l.b16 %v5571
    %v8151 = vunpack.c.l.b16 %v5572
    %v8152 = vunpack.c.l.b16 %v5573
    %v8153 = vunpack.c.l.b16 %v5574
    %v8154 = vunpack.c.l.b16 %v5575
    %v8155 = vunpack.c.l.b16 %v5576
    %v8156 = vunpack.c.l.b16 %v5577
    %v8157 = vunpack.c.l.b16 %v5578
    %v8158 = vunpack.c.l.b16 %v5579
    %v8159 = vunpack.c.l.b16 %v5580
    %v8160 = vunpack.c.l.b16 %v5581
    %v8161 = vunpack.c.l.b16 %v5582
    %v8162 = vunpack.c.l.b16 %v5583
    %v8163 = vunpack.c.l.b16 %v5584
    %v8164 = vunpack.c.l.b16 %v5585
    %v8165 = vunpack.c.l.b16 %v5586
    %v8166 = vunpack.c.l.b16 %v5587
    %v8167 = vunpack.c.l.b16 %v5588
    %v8168 = vunpack.c.l.b16 %v5589
    %v8169 = vunpack.c.l.b16 %v5590
    %v8170 = vunpack.c.l.b16 %v5591
    %v8171 = vunpack.c.l.b16 %v5592
    %v8172 = vunpack.c.l.b16 %v5593
    %v8173 = vunpack.c.l.b16 %v5594
    %v8174 = vunpack.c.l.b16 %v5595
    %v8175 = vunpack.c.l.b16 %v5596
    %v8176 = vunpack.c.l.b16 %v5597
    %v8177 = vunpack.c.l.b16 %v5598
    %v8178 = vunpack.c.l.b16 %v5599
    %v8179 = vunpack.c.l.b16 %v5600
    %v8180 = vunpack.c.l.b16 %v5601
    %v8181 = vunpack.c.l.b16 %v5602
    %v8182 = vunpack.c.l.b16 %v5603
    %v8183 = vunpack.c.l.b16 %v5604
    %v8184 = vunpack.c.l.b16 %v5605
    %v8185 = vunpack.c.l.b16 %v5606
    %v8186 = vunpack.c.l.b16 %v5607
    %v8187 = vunpack.c.l.b16 %v5608
    %v8188 = vunpack.c.l.b16 %v5609
    %v8189 = vunpack.c.l.b16 %v5610
    %v8190 = vunpack.c.l.b16 %v5611
    %v8191 = vunpack.c.l.b16 %v5612
    %v8192 = vunpack.c.l.b16 %v5613
    %v8193 = vunpack.c.l.b16 %v5614
    %v8194 = vunpack.c.l.b16 %v5615
    %v8195 = vunpack.c.l.b16 %v5616
    %v8196 = vunpack.c.l.b16 %v5617
    %v8197 = vunpack.c.l.b16 %v5618
    %v8198 = vunpack.c.l.b16 %v5619
    %v8199 = vunpack.c.l.b16 %v5620
    %v8200 = vunpack.c.l.b16 %v5621
    %v8201 = vunpack.c.l.b16 %v5622
    %v8202 = vunpack.c.l.b16 %v5623
    %v8203 = vunpack.c.l.b16 %v5624
    %v8204 = vunpack.c.l.b16 %v5625
    %v8205 = vunpack.c.l.b16 %v5626
    %v8206 = vunpack.c.l.b16 %v5627
    %v8207 = vunpack.c.l.b16 %v5628
    %v8208 = vunpack.c.l.b16 %v5629
    %v8209 = vunpack.c.l.b16 %v5630
    %v8210 = vunpack.c.l.b16 %v5631
    %v8211 = vunpack.c.l.b16 %v5632
    %v8212 = vunpack.c.l.b16 %v5633
    %v8213 = vunpack.c.l.b16 %v5634
    %v8214 = vunpack.c.l.b16 %v5635
    %v8215 = vunpack.c.l.b16 %v5636
    %v8216 = vunpack.c.l.b16 %v5637
    %v8217 = vunpack.c.l.b16 %v5638
    %v8218 = vunpack.c.l.b16 %v5639
    %v8219 = vunpack.c.l.b16 %v5640
    %v8220 = vunpack.c.l.b16 %v5641
    %v8221 = vunpack.c.l.b16 %v5642
    %v8222 = vunpack.c.l.b16 %v5643
    %v8223 = vunpack.c.l.b16 %v5644
    %v8224 = vunpack.c.l.b16 %v5645
    %v8225 = vunpack.c.l.b16 %v5646
    %v8226 = vunpack.c.l.b16 %v5647
    %v8227 = vunpack.c.l.b16 %v5648
    %v8228 = vunpack.c.l.b16 %v5649
    %v8229 = vunpack.c.l.b16 %v5650
    %v8230 = vunpack.c.l.b16 %v5651
    %v8231 = vunpack.c.l.b16 %v5652
    %v8232 = vunpack.c.l.b16 %v5653
    %v8233 = vunpack.c.l.b16 %v5654
    %v8234 = vunpack.c.l.b16 %v5655
    %v8235 = vunpack.c.l.b16 %v5656
    %v8236 = vunpack.c.l.b16 %v5657
    %v8237 = vunpack.c.l.b16 %v5658
    %v8238 = vunpack.c.l.b16 %v5659
    %v8239 = vunpack.c.l.b16 %v5660
    %v8240 = vunpack.c.l.b16 %v5661
    %v8241 = vunpack.c.l.b16 %v5662
    %v8242 = vunpack.c.l.b16 %v5663
    %v8243 = vunpack.c.l.b16 %v5664
    %v8244 = vunpack.c.l.b16 %v5665
    %v8245 = vunpack.c.l.b16 %v5666
    %v8246 = vunpack.c.l.b16 %v5667
    %v8247 = vunpack.c.l.b16 %v5668
    %v8248 = vunpack.c.l.b16 %v5669
    %v8249 = vunpack.c.l.b16 %v5670
    %v8250 = vunpack.c.l.b16 %v5671
    %v8251 = vunpack.c.l.b16 %v5672
    %v8252 = vunpack.c.l.b16 %v5673
    %v8253 = vunpack.c.l.b16 %v5674
    %v8254 = vunpack.c.l.b16 %v5675
    %v8255 = vunpack.c.l.b16 %v5676
    %v8256 = vunpack.c.l.b16 %v5677
    %v8257 = vunpack.c.l.b16 %v5678
    %v8258 = vunpack.c.l.b16 %v5679
    %v8259 = vunpack.c.l.b16 %v5680
    %v8260 = vunpack.c.l.b16 %v5681
    %v8261 = vunpack.c.l.b16 %v5682
    %v8262 = vunpack.c.l.b16 %v5683
    %v8263 = vunpack.c.l.b16 %v5684
    %v8264 = vunpack.c.l.b16 %v5685
    %v8265 = vunpack.c.l.b16 %v5686
    %v8266 = vunpack.c.l.b16 %v5687
    %v8267 = vunpack.c.l.b16 %v5688
    %v8268 = vunpack.c.l.b16 %v5689
    %v8269 = vunpack.c.l.b16 %v5690
    %v8270 = vunpack.c.l.b16 %v5691
    %v8271 = vunpack.c.l.b16 %v5692
    %v8272 = vunpack.c.l.b16 %v5693
    %v8273 = vunpack.c.l.b16 %v5694
    %v8274 = vunpack.c.l.b16 %v5695
    %v8275 = vunpack.c.l.b16 %v5696
    %v8276 = vunpack.c.l.b16 %v5697
    %v8277 = vunpack.c.l.b16 %v5698
    %v8278 = vunpack.c.l.b16 %v5699
    %v8279 = vunpack.c.l.b16 %v5700
    %v8280 = vunpack.c.l.b16 %v5701
    %v8281 = vunpack.c.l.b16 %v5702
    %v8282 = vunpack.c.l.b16 %v5703
    %v8283 = vunpack.c.l.b16 %v5704
    %v8284 = vunpack.c.l.b16 %v5705
    %v8285 = vunpack.c.l.b16 %v5706
    %v8286 = vunpack.c.l.b16 %v5707
    %v8287 = vunpack.c.l.b16 %v5708
    %v8288 = vunpack.c.l.b16 %v5709
    %v8289 = vunpack.c.l.b16 %v5710
    %v8290 = vunpack.c.l.b16 %v5711
    %v8291 = vunpack.c.l.b16 %v5712
    %v8292 = vunpack.c.l.b16 %v5713
    %v8293 = vunpack.c.l.b16 %v5714
    %v8294 = vunpack.c.l.b16 %v5715
    %v8295 = vunpack.c.l.b16 %v5716
    %v8296 = vunpack.c.l.b16 %v5717
    %v8297 = vunpack.c.l.b16 %v5718
    %v8298 = vunpack.c.l.b16 %v5719
    %v8299 = vunpack.c.l.b16 %v5720
    %v8300 = vunpack.c.l.b16 %v5721
    %v8301 = vunpack.c.l.b16 %v5722
    %v8302 = vunpack.c.l.b16 %v5723
    %v8303 = vunpack.c.l.b16 %v5724
    %v8304 = vunpack.c.l.b16 %v5725
    %v8305 = vunpack.c.l.b16 %v5726
    %v8306 = vunpack.c.l.b16 %v5727
    %v8307 = vunpack.c.l.b16 %v5728
    %v8308 = vunpack.c.l.b16 %v5729
    %v8309 = vunpack.c.l.b16 %v5730
    %v8310 = vunpack.c.l.b16 %v5731
    %v8311 = vunpack.c.l.b16 %v5732
    %v8312 = vunpack.c.l.b16 %v5733
    %v8313 = vunpack.c.l.b16 %v5734
    %v8314 = vunpack.c.l.b16 %v5735
    %v8315 = vunpack.c.l.b16 %v5736
    %v8316 = vunpack.c.l.b16 %v5737
    %v8317 = vunpack.c.l.b16 %v5738
    %v8318 = vunpack.c.l.b16 %v5739
    %v8319 = vunpack.c.l.b16 %v5740
    %v8320 = vunpack.c.l.b16 %v5741
    %v8321 = vunpack.c.l.b16 %v5742
    %v8322 = vunpack.c.l.b16 %v5743
    %v8323 = vunpack.c.l.b16 %v5744
    %v8324 = vunpack.c.l.b16 %v5745
    %v8325 = vunpack.c.l.b16 %v5746
    %v8326 = vunpack.c.l.b16 %v5747
    %v8327 = vunpack.c.l.b16 %v5748
    %v8328 = vunpack.c.l.b16 %v5749
    %v8329 = vunpack.c.l.b16 %v5750
    %v8330 = vunpack.c.l.b16 %v5751
    %v8331 = vunpack.c.l.b16 %v5752
    %v8332 = vunpack.c.l.b16 %v5753
    %v8333 = vunpack.c.l.b16 %v5754
    %v8334 = vunpack.c.l.b16 %v5755
    %v8335 = vunpack.c.l.b16 %v5756
    %v8336 = vunpack.c.l.b16 %v5757
    %v8337 = vunpack.c.l.b16 %v5758
    %v8338 = vunpack.c.l.b16 %v5759
    %v8339 = vunpack.c.l.b16 %v5760
    %v8340 = vpack.c.b16 %v8085, %v8084
    %v8341 = vpack.c.b16 %v8087, %v8086
    %v8342 = vpack.c.b16 %v8089, %v8088
    %v8343 = vpack.c.b16 %v8091, %v8090
    %v8344 = vpack.c.b16 %v8093, %v8092
    %v8345 = vpack.c.b16 %v8095, %v8094
    %v8346 = vpack.c.b16 %v8097, %v8096
    %v8347 = vpack.c.b16 %v8099, %v8098
    %v8348 = vpack.c.b16 %v8101, %v8100
    %v8349 = vpack.c.b16 %v8103, %v8102
    %v8350 = vpack.c.b16 %v8105, %v8104
    %v8351 = vpack.c.b16 %v8107, %v8106
    %v8352 = vpack.c.b16 %v8109, %v8108
    %v8353 = vpack.c.b16 %v8111, %v8110
    %v8354 = vpack.c.b16 %v8113, %v8112
    %v8355 = vpack.c.b16 %v8115, %v8114
    %v8356 = vpack.c.b16 %v8117, %v8116
    %v8357 = vpack.c.b16 %v8119, %v8118
    %v8358 = vpack.c.b16 %v8121, %v8120
    %v8359 = vpack.c.b16 %v8123, %v8122
    %v8360 = vpack.c.b16 %v8125, %v8124
    %v8361 = vpack.c.b16 %v8127, %v8126
    %v8362 = vpack.c.b16 %v8129, %v8128
    %v8363 = vpack.c.b16 %v8131, %v8130
    %v8364 = vpack.c.b16 %v8133, %v8132
    %v8365 = vpack.c.b16 %v8135, %v8134
    %v8366 = vpack.c.b16 %v8137, %v8136
    %v8367 = vpack.c.b16 %v8139, %v8138
    %v8368 = vpack.c.b16 %v8141, %v8140
    %v8369 = vpack.c.b16 %v8143, %v8142
    %v8370 = vpack.c.b16 %v8145, %v8144
    %v8371 = vpack.c.b16 %v8147, %v8146
    %v8372 = vpack.c.b16 %v8149, %v8148
    %v8373 = vpack.c.b16 %v8151, %v8150
    %v8374 = vpack.c.b16 %v8153, %v8152
    %v8375 = vpack.c.b16 %v8155, %v8154
    %v8376 = vpack.c.b16 %v8157, %v8156
    %v8377 = vpack.c.b16 %v8159, %v8158
    %v8378 = vpack.c.b16 %v8161, %v8160
    %v8379 = vpack.c.b16 %v8163, %v8162
    %v8380 = vpack.c.b16 %v8165, %v8164
    %v8381 = vpack.c.b16 %v8167, %v8166
    %v8382 = vpack.c.b16 %v8169, %v8168
    %v8383 = vpack.c.b16 %v8171, %v8170
    %v8384 = vpack.c.b16 %v8173, %v8172
    %v8385 = vpack.c.b16 %v8175, %v8174
    %v8386 = vpack.c.b16 %v8177, %v8176
    %v8387 = vpack.c.b16 %v8179, %v8178
    %v8388 = vpack.c.b16 %v8181, %v8180
    %v8389 = vpack.c.b16 %v8183, %v8182
    %v8390 = vpack.c.b16 %v8185, %v8184
    %v8391 = vpack.c.b16 %v8187, %v8186
    %v8392 = vpack.c.b16 %v8189, %v8188
    %v8393 = vpack.c.b16 %v8191, %v8190
    %v8394 = vpack.c.b16 %v8193, %v8192
    %v8395 = vpack.c.b16 %v8195, %v8194
    %v8396 = vpack.c.b16 %v8197, %v8196
    %v8397 = vpack.c.b16 %v8199, %v8198
    %v8398 = vpack.c.b16 %v8201, %v8200
    %v8399 = vpack.c.b16 %v8203, %v8202
    %v8400 = vpack.c.b16 %v8205, %v8204
    %v8401 = vpack.c.b16 %v8207, %v8206
    %v8402 = vpack.c.b16 %v8209, %v8208
    %v8403 = vpack.c.b16 %v8211, %v8210
    %v8404 = vpack.c.b16 %v8213, %v8212
    %v8405 = vpack.c.b16 %v8215, %v8214
    %v8406 = vpack.c.b16 %v8217, %v8216
    %v8407 = vpack.c.b16 %v8219, %v8218
    %v8408 = vpack.c.b16 %v8221, %v8220
    %v8409 = vpack.c.b16 %v8223, %v8222
    %v8410 = vpack.c.b16 %v8225, %v8224
    %v8411 = vpack.c.b16 %v8227, %v8226
    %v8412 = vpack.c.b16 %v8229, %v8228
    %v8413 = vpack.c.b16 %v8231, %v8230
    %v8414 = vpack.c.b16 %v8233, %v8232
    %v8415 = vpack.c.b16 %v8235, %v8234
    %v8416 = vpack.c.b16 %v8237, %v8236
    %v8417 = vpack.c.b16 %v8239, %v8238
    %v8418 = vpack.c.b16 %v8241, %v8240
    %v8419 = vpack.c.b16 %v8243, %v8242
    %v8420 = vpack.c.b16 %v8245, %v8244
    %v8421 = vpack.c.b16 %v8247, %v8246
    %v8422 = vpack.c.b16 %v8249, %v8248
    %v8423 = vpack.c.b16 %v8251, %v8250
    %v8424 = vpack.c.b16 %v8253, %v8252
    %v8425 = vpack.c.b16 %v8255, %v8254
    %v8426 = vpack.c.b16 %v8257, %v8256
    %v8427 = vpack.c.b16 %v8259, %v8258
    %v8428 = vpack.c.b16 %v8261, %v8260
    %v8429 = vpack.c.b16 %v8263, %v8262
    %v8430 = vpack.c.b16 %v8265, %v8264
    %v8431 = vpack.c.b16 %v8267, %v8266
    %v8432 = vpack.c.b16 %v8269, %v8268
    %v8433 = vpack.c.b16 %v8271, %v8270
    %v8434 = vpack.c.b16 %v8273, %v8272
    %v8435 = vpack.c.b16 %v8275, %v8274
    %v8436 = vpack.c.b16 %v8277, %v8276
    %v8437 = vpack.c.b16 %v8279, %v8278
    %v8438 = vpack.c.b16 %v8281, %v8280
    %v8439 = vpack.c.b16 %v8283, %v8282
    %v8440 = vpack.c.b16 %v8285, %v8284
    %v8441 = vpack.c.b16 %v8287, %v8286
    %v8442 = vpack.c.b16 %v8289, %v8288
    %v8443 = vpack.c.b16 %v8291, %v8290
    %v8444 = vpack.c.b16 %v8293, %v8292
    %v8445 = vpack.c.b16 %v8295, %v8294
    %v8446 = vpack.c.b16 %v8297, %v8296
    %v8447 = vpack.c.b16 %v8299, %v8298
    %v8448 = vpack.c.b16 %v8301, %v8300
    %v8449 = vpack.c.b16 %v8303, %v8302
    %v8450 = vpack.c.b16 %v8305, %v8304
    %v8451 = vpack.c.b16 %v8307, %v8306
    %v8452 = vpack.c.b16 %v8309, %v8308
    %v8453 = vpack.c.b16 %v8311, %v8310
    %v8454 = vpack.c.b16 %v8313, %v8312
    %v8455 = vpack.c.b16 %v8315, %v8314
    %v8456 = vpack.c.b16 %v8317, %v8316
    %v8457 = vpack.c.b16 %v8319, %v8318
    %v8458 = vpack.c.b16 %v8321, %v8320
    %v8459 = vpack.c.b16 %v8323, %v8322
    %v8460 = vpack.c.b16 %v8325, %v8324
    %v8461 = vpack.c.b16 %v8327, %v8326
    %v8462 = vpack.c.b16 %v8329, %v8328
    %v8463 = vpack.c.b16 %v8331, %v8330
    %v8464 = vpack.c.b16 %v8333, %v8332
    %v8465 = vpack.c.b16 %v8335, %v8334
    %v8466 = vpack.c.b16 %v8337, %v8336
    %v8467 = vpack.c.b16 %v8339, %v8338
    %8596 = vmatprep.subr.bf16.mxu0 0
    %8597 = vmatpush1.bf16.msra.mxu0 %v8340
    %8598 = vmatprep.subr.bf16.mxu0 0
    %8599 = vmatpush1.bf16.msra.mxu0 %v8341
    %8600 = vmatprep.subr.bf16.mxu0 0
    %8601 = vmatpush1.bf16.msra.mxu0 %v8342
    %8602 = vmatprep.subr.bf16.mxu0 0
    %8603 = vmatpush1.bf16.msra.mxu0 %v8343
    %8604 = vmatprep.subr.bf16.mxu0 0
    %8605 = vmatpush1.bf16.msra.mxu0 %v8344
    %8606 = vmatprep.subr.bf16.mxu0 0
    %8607 = vmatpush1.bf16.msra.mxu0 %v8345
    %8608 = vmatprep.subr.bf16.mxu0 0
    %8609 = vmatpush1.bf16.msra.mxu0 %v8346
    %8610 = vmatprep.subr.bf16.mxu0 0
    %8611 = vmatpush1.bf16.msra.mxu0 %v8347
    %8612 = vmatprep.subr.bf16.mxu0 0
    %8613 = vmatpush1.bf16.msra.mxu0 %v8348
    %8614 = vmatprep.subr.bf16.mxu0 0
    %8615 = vmatpush1.bf16.msra.mxu0 %v8349
    %8616 = vmatprep.subr.bf16.mxu0 0
    %8617 = vmatpush1.bf16.msra.mxu0 %v8350
    %8618 = vmatprep.subr.bf16.mxu0 0
    %8619 = vmatpush1.bf16.msra.mxu0 %v8351
    %8620 = vmatprep.subr.bf16.mxu0 0
    %8621 = vmatpush1.bf16.msra.mxu0 %v8352
    %8622 = vmatprep.subr.bf16.mxu0 0
    %8623 = vmatpush1.bf16.msra.mxu0 %v8353
    %8624 = vmatprep.subr.bf16.mxu0 0
    %8625 = vmatpush1.bf16.msra.mxu0 %v8354
    %8626 = vmatprep.subr.bf16.mxu0 0
    %8627 = vmatpush1.bf16.msra.mxu0 %v8355
    %8628 = vmatprep.mubr.bf16.mxu0 %v7807
    %8629 = vmatmul.mubr.bf16.gmra.mrb[0].mxu0 %v7806
    %v8630 = vpop.f32.mrb[0].mxu0
    %v8631 = vadd.f32 %v7826, %v8630
    %v8632 = vpop.f32.mrb[0].mxu0
    %v8633 = vpop.f32.mrb[0].mxu0
    %v8634 = vpop.f32.mrb[0].mxu0
    %8635 = vdwg.mxu0
    %8636 = vmatprep.subr.bf16.mxu0 0
    %8637 = vmatpush1.bf16.msra.mxu0 %v8356
    %8638 = vmatprep.subr.bf16.mxu0 0
    %8639 = vmatpush1.bf16.msra.mxu0 %v8357
    %8640 = vmatprep.subr.bf16.mxu0 0
    %8641 = vmatpush1.bf16.msra.mxu0 %v8358
    %8642 = vmatprep.subr.bf16.mxu0 0
    %8643 = vmatpush1.bf16.msra.mxu0 %v8359
    %8644 = vmatprep.subr.bf16.mxu0 0
    %8645 = vmatpush1.bf16.msra.mxu0 %v8360
    %8646 = vmatprep.subr.bf16.mxu0 0
    %8647 = vmatpush1.bf16.msra.mxu0 %v8361
    %8648 = vmatprep.subr.bf16.mxu0 0
    %8649 = vmatpush1.bf16.msra.mxu0 %v8362
    %8650 = vmatprep.subr.bf16.mxu0 0
    %8651 = vmatpush1.bf16.msra.mxu0 %v8363
    %8652 = vmatprep.subr.bf16.mxu0 0
    %8653 = vmatpush1.bf16.msra.mxu0 %v8364
    %8654 = vmatprep.subr.bf16.mxu0 0
    %8655 = vmatpush1.bf16.msra.mxu0 %v8365
    %8656 = vmatprep.subr.bf16.mxu0 0
    %8657 = vmatpush1.bf16.msra.mxu0 %v8366
    %8658 = vmatprep.subr.bf16.mxu0 0
    %8659 = vmatpush1.bf16.msra.mxu0 %v8367
    %8660 = vmatprep.subr.bf16.mxu0 0
    %8661 = vmatpush1.bf16.msra.mxu0 %v8368
    %8662 = vmatprep.subr.bf16.mxu0 0
    %8663 = vmatpush1.bf16.msra.mxu0 %v8369
    %8664 = vmatprep.subr.bf16.mxu0 0
    %8665 = vmatpush1.bf16.msra.mxu0 %v8370
    %8666 = vmatprep.subr.bf16.mxu0 0
    %8667 = vmatpush1.bf16.msra.mxu0 %v8371
    %8668 = vmatprep.mubr.bf16.mxu0 %v7809
    %8669 = vmatmul.mubr.bf16.gmra.mrb[0].mxu0 %v7808
    %v8670 = vpop.f32.mrb[0].mxu0
    %v8671 = vadd.f32 %v8631, %v8670
    %v8672 = vpop.f32.mrb[0].mxu0
    %v8673 = vpop.f32.mrb[0].mxu0
    %v8674 = vpop.f32.mrb[0].mxu0
    %8675 = vdwg.mxu0
    %8676 = vmatprep.subr.bf16.mxu0 0
    %8677 = vmatpush1.bf16.msra.mxu0 %v8372
    %8678 = vmatprep.subr.bf16.mxu0 0
    %8679 = vmatpush1.bf16.msra.mxu0 %v8373
    %8680 = vmatprep.subr.bf16.mxu0 0
    %8681 = vmatpush1.bf16.msra.mxu0 %v8374
    %8682 = vmatprep.subr.bf16.mxu0 0
    %8683 = vmatpush1.bf16.msra.mxu0 %v8375
    %8684 = vmatprep.subr.bf16.mxu0 0
    %8685 = vmatpush1.bf16.msra.mxu0 %v8376
    %8686 = vmatprep.subr.bf16.mxu0 0
    %8687 = vmatpush1.bf16.msra.mxu0 %v8377
    %8688 = vmatprep.subr.bf16.mxu0 0
    %8689 = vmatpush1.bf16.msra.mxu0 %v8378
    %8690 = vmatprep.subr.bf16.mxu0 0
    %8691 = vmatpush1.bf16.msra.mxu0 %v8379
    %8692 = vmatprep.subr.bf16.mxu0 0
    %8693 = vmatpush1.bf16.msra.mxu0 %v8380
    %8694 = vmatprep.subr.bf16.mxu0 0
    %8695 = vmatpush1.bf16.msra.mxu0 %v8381
    %8696 = vmatprep.subr.bf16.mxu0 0
    %8697 = vmatpush1.bf16.msra.mxu0 %v8382
    %8698 = vmatprep.subr.bf16.mxu0 0
    %8699 = vmatpush1.bf16.msra.mxu0 %v8383
    %8700 = vmatprep.subr.bf16.mxu0 0
    %8701 = vmatpush1.bf16.msra.mxu0 %v8384
    %8702 = vmatprep.subr.bf16.mxu0 0
    %8703 = vmatpush1.bf16.msra.mxu0 %v8385
    %8704 = vmatprep.subr.bf16.mxu0 0
    %8705 = vmatpush1.bf16.msra.mxu0 %v8386
    %8706 = vmatprep.subr.bf16.mxu0 0
    %8707 = vmatpush1.bf16.msra.mxu0 %v8387
    %8708 = vmatprep.mubr.bf16.mxu0 %v7811
    %8709 = vmatmul.mubr.bf16.gmra.mrb[0].mxu0 %v7810
    %v8710 = vpop.f32.mrb[0].mxu0
    %v8711 = vadd.f32 %v8671, %v8710
    %v8712 = vpop.f32.mrb[0].mxu0
    %v8713 = vpop.f32.mrb[0].mxu0
    %v8714 = vpop.f32.mrb[0].mxu0
    %8715 = vdwg.mxu0
    %8716 = vmatprep.subr.bf16.mxu0 0
    %8717 = vmatpush1.bf16.msra.mxu0 %v8388
    %8718 = vmatprep.subr.bf16.mxu0 0
    %8719 = vmatpush1.bf16.msra.mxu0 %v8389
    %8720 = vmatprep.subr.bf16.mxu0 0
    %8721 = vmatpush1.bf16.msra.mxu0 %v8390
    %8722 = vmatprep.subr.bf16.mxu0 0
    %8723 = vmatpush1.bf16.msra.mxu0 %v8391
    %8724 = vmatprep.subr.bf16.mxu0 0
    %8725 = vmatpush1.bf16.msra.mxu0 %v8392
    %8726 = vmatprep.subr.bf16.mxu0 0
    %8727 = vmatpush1.bf16.msra.mxu0 %v8393
    %8728 = vmatprep.subr.bf16.mxu0 0
    %8729 = vmatpush1.bf16.msra.mxu0 %v8394
    %8730 = vmatprep.subr.bf16.mxu0 0
    %8731 = vmatpush1.bf16.msra.mxu0 %v8395
    %8732 = vmatprep.subr.bf16.mxu0 0
    %8733 = vmatpush1.bf16.msra.mxu0 %v8396
    %8734 = vmatprep.subr.bf16.mxu0 0
    %8735 = vmatpush1.bf16.msra.mxu0 %v8397
    %8736 = vmatprep.subr.bf16.mxu0 0
    %8737 = vmatpush1.bf16.msra.mxu0 %v8398
    %8738 = vmatprep.subr.bf16.mxu0 0
    %8739 = vmatpush1.bf16.msra.mxu0 %v8399
    %8740 = vmatprep.subr.bf16.mxu0 0
    %8741 = vmatpush1.bf16.msra.mxu0 %v8400
    %8742 = vmatprep.subr.bf16.mxu0 0
    %8743 = vmatpush1.bf16.msra.mxu0 %v8401
    %8744 = vmatprep.subr.bf16.mxu0 0
    %8745 = vmatpush1.bf16.msra.mxu0 %v8402
    %8746 = vmatprep.subr.bf16.mxu0 0
    %8747 = vmatpush1.bf16.msra.mxu0 %v8403
    %8748 = vmatprep.mubr.bf16.mxu0 %v7813
    %8749 = vmatmul.mubr.bf16.gmra.mrb[0].mxu0 %v7812
    %v8750 = vpop.f32.mrb[0].mxu0
    %v8751 = vadd.f32 %v8711, %v8750
    %v8752 = vpop.f32.mrb[0].mxu0
    %v8753 = vpop.f32.mrb[0].mxu0
    %v8754 = vpop.f32.mrb[0].mxu0
    %8755 = vdwg.mxu0
    %8756 = vmatprep.subr.bf16.mxu0 0
    %8757 = vmatpush1.bf16.msra.mxu0 %v8404
    %8758 = vmatprep.subr.bf16.mxu0 0
    %8759 = vmatpush1.bf16.msra.mxu0 %v8405
    %8760 = vmatprep.subr.bf16.mxu0 0
    %8761 = vmatpush1.bf16.msra.mxu0 %v8406
    %8762 = vmatprep.subr.bf16.mxu0 0
    %8763 = vmatpush1.bf16.msra.mxu0 %v8407
    %8764 = vmatprep.subr.bf16.mxu0 0
    %8765 = vmatpush1.bf16.msra.mxu0 %v8408
    %8766 = vmatprep.subr.bf16.mxu0 0
    %8767 = vmatpush1.bf16.msra.mxu0 %v8409
    %8768 = vmatprep.subr.bf16.mxu0 0
    %8769 = vmatpush1.bf16.msra.mxu0 %v8410
    %8770 = vmatprep.subr.bf16.mxu0 0
    %8771 = vmatpush1.bf16.msra.mxu0 %v8411
    %8772 = vmatprep.subr.bf16.mxu0 0
    %8773 = vmatpush1.bf16.msra.mxu0 %v8412
    %8774 = vmatprep.subr.bf16.mxu0 0
    %8775 = vmatpush1.bf16.msra.mxu0 %v8413
    %8776 = vmatprep.subr.bf16.mxu0 0
    %8777 = vmatpush1.bf16.msra.mxu0 %v8414
    %8778 = vmatprep.subr.bf16.mxu0 0
    %8779 = vmatpush1.bf16.msra.mxu0 %v8415
    %8780 = vmatprep.subr.bf16.mxu0 0
    %8781 = vmatpush1.bf16.msra.mxu0 %v8416
    %8782 = vmatprep.subr.bf16.mxu0 0
    %8783 = vmatpush1.bf16.msra.mxu0 %v8417
    %8784 = vmatprep.subr.bf16.mxu0 0
    %8785 = vmatpush1.bf16.msra.mxu0 %v8418
    %8786 = vmatprep.subr.bf16.mxu0 0
    %8787 = vmatpush1.bf16.msra.mxu0 %v8419
    %8788 = vmatprep.mubr.bf16.mxu0 %v7815
    %8789 = vmatmul.mubr.bf16.gmra.mrb[0].mxu0 %v7814
    %v8790 = vpop.f32.mrb[0].mxu0
    %v8791 = vadd.f32 %v8751, %v8790
    %v8792 = vpop.f32.mrb[0].mxu0
    %v8793 = vpop.f32.mrb[0].mxu0
    %v8794 = vpop.f32.mrb[0].mxu0
    %8795 = vdwg.mxu0
    %8796 = vmatprep.subr.bf16.mxu0 0
    %8797 = vmatpush1.bf16.msra.mxu0 %v8420
    %8798 = vmatprep.subr.bf16.mxu0 0
    %8799 = vmatpush1.bf16.msra.mxu0 %v8421
    %8800 = vmatprep.subr.bf16.mxu0 0
    %8801 = vmatpush1.bf16.msra.mxu0 %v8422
    %8802 = vmatprep.subr.bf16.mxu0 0
    %8803 = vmatpush1.bf16.msra.mxu0 %v8423
    %8804 = vmatprep.subr.bf16.mxu0 0
    %8805 = vmatpush1.bf16.msra.mxu0 %v8424
    %8806 = vmatprep.subr.bf16.mxu0 0
    %8807 = vmatpush1.bf16.msra.mxu0 %v8425
    %8808 = vmatprep.subr.bf16.mxu0 0
    %8809 = vmatpush1.bf16.msra.mxu0 %v8426
    %8810 = vmatprep.subr.bf16.mxu0 0
    %8811 = vmatpush1.bf16.msra.mxu0 %v8427
    %8812 = vmatprep.subr.bf16.mxu0 0
    %8813 = vmatpush1.bf16.msra.mxu0 %v8428
    %8814 = vmatprep.subr.bf16.mxu0 0
    %8815 = vmatpush1.bf16.msra.mxu0 %v8429
    %8816 = vmatprep.subr.bf16.mxu0 0
    %8817 = vmatpush1.bf16.msra.mxu0 %v8430
    %8818 = vmatprep.subr.bf16.mxu0 0
    %8819 = vmatpush1.bf16.msra.mxu0 %v8431
    %8820 = vmatprep.subr.bf16.mxu0 0
    %8821 = vmatpush1.bf16.msra.mxu0 %v8432
    %8822 = vmatprep.subr.bf16.mxu0 0
    %8823 = vmatpush1.bf16.msra.mxu0 %v8433
    %8824 = vmatprep.subr.bf16.mxu0 0
    %8825 = vmatpush1.bf16.msra.mxu0 %v8434
    %8826 = vmatprep.subr.bf16.mxu0 0
    %8827 = vmatpush1.bf16.msra.mxu0 %v8435
    %8828 = vmatprep.mubr.bf16.mxu0 %v7817
    %8829 = vmatmul.mubr.bf16.gmra.mrb[0].mxu0 %v7816
    %v8830 = vpop.f32.mrb[0].mxu0
    %v8831 = vadd.f32 %v8791, %v8830
    %v8832 = vpop.f32.mrb[0].mxu0
    %v8833 = vpop.f32.mrb[0].mxu0
    %v8834 = vpop.f32.mrb[0].mxu0
    %8835 = vdwg.mxu0
    %8836 = vmatprep.subr.bf16.mxu0 0
    %8837 = vmatpush1.bf16.msra.mxu0 %v8436
    %8838 = vmatprep.subr.bf16.mxu0 0
    %8839 = vmatpush1.bf16.msra.mxu0 %v8437
    %8840 = vmatprep.subr.bf16.mxu0 0
    %8841 = vmatpush1.bf16.msra.mxu0 %v8438
    %8842 = vmatprep.subr.bf16.mxu0 0
    %8843 = vmatpush1.bf16.msra.mxu0 %v8439
    %8844 = vmatprep.subr.bf16.mxu0 0
    %8845 = vmatpush1.bf16.msra.mxu0 %v8440
    %8846 = vmatprep.subr.bf16.mxu0 0
    %8847 = vmatpush1.bf16.msra.mxu0 %v8441
    %8848 = vmatprep.subr.bf16.mxu0 0
    %8849 = vmatpush1.bf16.msra.mxu0 %v8442
    %8850 = vmatprep.subr.bf16.mxu0 0
    %8851 = vmatpush1.bf16.msra.mxu0 %v8443
    %8852 = vmatprep.subr.bf16.mxu0 0
    %8853 = vmatpush1.bf16.msra.mxu0 %v8444
    %8854 = vmatprep.subr.bf16.mxu0 0
    %8855 = vmatpush1.bf16.msra.mxu0 %v8445
    %8856 = vmatprep.subr.bf16.mxu0 0
    %8857 = vmatpush1.bf16.msra.mxu0 %v8446
    %8858 = vmatprep.subr.bf16.mxu0 0
    %8859 = vmatpush1.bf16.msra.mxu0 %v8447
    %8860 = vmatprep.subr.bf16.mxu0 0
    %8861 = vmatpush1.bf16.msra.mxu0 %v8448
    %8862 = vmatprep.subr.bf16.mxu0 0
    %8863 = vmatpush1.bf16.msra.mxu0 %v8449
    %8864 = vmatprep.subr.bf16.mxu0 0
    %8865 = vmatpush1.bf16.msra.mxu0 %v8450
    %8866 = vmatprep.subr.bf16.mxu0 0
    %8867 = vmatpush1.bf16.msra.mxu0 %v8451
    %8868 = vmatprep.mubr.bf16.mxu0 %v7819
    %8869 = vmatmul.mubr.bf16.gmra.mrb[0].mxu0 %v7818
    %v8870 = vpop.f32.mrb[0].mxu0
    %v8871 = vadd.f32 %v8831, %v8870
    %v8872 = vpop.f32.mrb[0].mxu0
    %v8873 = vpop.f32.mrb[0].mxu0
    %v8874 = vpop.f32.mrb[0].mxu0
    %8875 = vdwg.mxu0
    %8876 = vmatprep.subr.bf16.mxu0 0
    %8877 = vmatpush1.bf16.msra.mxu0 %v8452
    %8878 = vmatprep.subr.bf16.mxu0 0
    %8879 = vmatpush1.bf16.msra.mxu0 %v8453
    %8880 = vmatprep.subr.bf16.mxu0 0
    %8881 = vmatpush1.bf16.msra.mxu0 %v8454
    %8882 = vmatprep.subr.bf16.mxu0 0
    %8883 = vmatpush1.bf16.msra.mxu0 %v8455
    %8884 = vmatprep.subr.bf16.mxu0 0
    %8885 = vmatpush1.bf16.msra.mxu0 %v8456
    %8886 = vmatprep.subr.bf16.mxu0 0
    %8887 = vmatpush1.bf16.msra.mxu0 %v8457
    %8888 = vmatprep.subr.bf16.mxu0 0
    %8889 = vmatpush1.bf16.msra.mxu0 %v8458
    %8890 = vmatprep.subr.bf16.mxu0 0
    %8891 = vmatpush1.bf16.msra.mxu0 %v8459
    %8892 = vmatprep.subr.bf16.mxu0 0
    %8893 = vmatpush1.bf16.msra.mxu0 %v8460
    %8894 = vmatprep.subr.bf16.mxu0 0
    %8895 = vmatpush1.bf16.msra.mxu0 %v8461
    %8896 = vmatprep.subr.bf16.mxu0 0
    %8897 = vmatpush1.bf16.msra.mxu0 %v8462
    %8898 = vmatprep.subr.bf16.mxu0 0
    %8899 = vmatpush1.bf16.msra.mxu0 %v8463
    %8900 = vmatprep.subr.bf16.mxu0 0
    %8901 = vmatpush1.bf16.msra.mxu0 %v8464
    %8902 = vmatprep.subr.bf16.mxu0 0
    %8903 = vmatpush1.bf16.msra.mxu0 %v8465
    %8904 = vmatprep.subr.bf16.mxu0 0
    %8905 = vmatpush1.bf16.msra.mxu0 %v8466
    %8906 = vmatprep.subr.bf16.mxu0 0
    %8907 = vmatpush1.bf16.msra.mxu0 %v8467
    %8908 = vmatprep.mubr.bf16.mxu0 %v7821
    %8909 = vmatmul.mubr.bf16.gmra.mrb[0].mxu0 %v7820
    %v8910 = vpop.f32.mrb[0].mxu0
    %v8911 = vadd.f32 %v8871, %v8910
    %v8912 = vpop.f32.mrb[0].mxu0
    %v8913 = vpop.f32.mrb[0].mxu0
    %v8914 = vpop.f32.mrb[0].mxu0
    %8915 = vdwg.mxu0
    %v8916 = vadd.f32 %v6738, %v8911
    %8917 = vadd.xlane.f32.xlu0 %v8916
    %v8918 = vpop.xlane.xlu0 %8917
    %v8919 = vmul.f32 %v8918, 0.03125
    %v8920 = vsub.f32 %v8916, %v8919
    %v8921 = vsel %vm2442, %v8920, 0.0
    %v8922 = vmul.f32 %v8921, %v8921
    %8923 = vadd.xlane.f32.xlu0 %v8922
    %v8924 = vpop.xlane.xlu0 %8923
    %v8925 = vmul.f32 %v8924, 0.03125
    %v8926 = vadd.f32 %v8925, 1e-05
    %v8927 = vrsqrt.pop %v8926
    %v8928 = vmul.f32 %v8921, %v8927
    %v8930 = vlaneseq
    %v8931 = vshrl.u32 %v8930, 7
    %v8932 = vsub.s32 0, %v8931
    %v8933 = vrot.slane %v5768, %v8932
    %v8935 = vmul.f32 %v8928, %v8933
    %v8937 = vlaneseq
    %v8938 = vshrl.u32 %v8937, 7
    %v8939 = vsub.s32 0, %v8938
    %v8940 = vrot.slane %v5770, %v8939
    %v8942 = vadd.f32 %v8935, %v8940
    %v8943 = vpack.c.bf16 %v8942, %v8942
    %v8944 = vld [vmem:[%s17] sm:$0xf]
    %v8945 = vld [vmem:[%s17 + $0x4] sm:$0xf]
    %v8946 = vld [vmem:[%s17 + $0x8] sm:$0xf]
    %v8947 = vld [vmem:[%s17 + $0xc] sm:$0xf]
    %v8948 = vld [vmem:[%s17 + $0x10] sm:$0xf]
    %v8949 = vld [vmem:[%s17 + $0x14] sm:$0xf]
    %v8950 = vld [vmem:[%s17 + $0x18] sm:$0xf]
    %v8951 = vld [vmem:[%s17 + $0x1c] sm:$0xf]
    %v8952 = vld [vmem:[%s17 + $0x20] sm:$0xf]
    %v8953 = vld [vmem:[%s17 + $0x24] sm:$0xf]
    %v8954 = vld [vmem:[%s17 + $0x28] sm:$0xf]
    %v8955 = vld [vmem:[%s17 + $0x2c] sm:$0xf]
    %v8956 = vld [vmem:[%s17 + $0x30] sm:$0xf]
    %v8957 = vld [vmem:[%s17 + $0x34] sm:$0xf]
    %v8958 = vld [vmem:[%s17 + $0x38] sm:$0xf]
    %v8959 = vld [vmem:[%s17 + $0x3c] sm:$0xf]
    %v8960 = vld [vmem:[%s18] sm:$0x1]
    %v8962 = vlaneseq
    %v8963 = vshrl.u32 %v8962, 7
    %v8964 = vsub.s32 0, %v8963
    %v8965 = vrot.slane %v8960, %v8964
    %v8983 = vunpack.c.l.b16 %v8944
    %v8984 = vunpack.c.l.b16 %v8945
    %v8985 = vunpack.c.l.b16 %v8946
    %v8986 = vunpack.c.l.b16 %v8947
    %v8987 = vunpack.c.l.b16 %v8948
    %v8988 = vunpack.c.l.b16 %v8949
    %v8989 = vunpack.c.l.b16 %v8950
    %v8990 = vunpack.c.l.b16 %v8951
    %v8991 = vunpack.c.l.b16 %v8952
    %v8992 = vunpack.c.l.b16 %v8953
    %v8993 = vunpack.c.l.b16 %v8954
    %v8994 = vunpack.c.l.b16 %v8955
    %v8995 = vunpack.c.l.b16 %v8956
    %v8996 = vunpack.c.l.b16 %v8957
    %v8997 = vunpack.c.l.b16 %v8958
    %v8998 = vunpack.c.l.b16 %v8959
    %v8999 = vpack.c.b16 %v8984, %v8983
    %v9000 = vpack.c.b16 %v8986, %v8985
    %v9001 = vpack.c.b16 %v8988, %v8987
    %v9002 = vpack.c.b16 %v8990, %v8989
    %v9003 = vpack.c.b16 %v8992, %v8991
    %v9004 = vpack.c.b16 %v8994, %v8993
    %v9005 = vpack.c.b16 %v8996, %v8995
    %v9006 = vpack.c.b16 %v8998, %v8997
    %9015 = vmatprep.subr.bf16.mxu0 0
    %9016 = vmatpush1.bf16.msra.mxu0 %v8999
    %9017 = vmatprep.subr.bf16.mxu0 0
    %9018 = vmatpush1.bf16.msra.mxu0 %v9000
    %9019 = vmatprep.subr.bf16.mxu0 0
    %9020 = vmatpush1.bf16.msra.mxu0 %v9001
    %9021 = vmatprep.subr.bf16.mxu0 0
    %9022 = vmatpush1.bf16.msra.mxu0 %v9002
    %9023 = vmatprep.subr.bf16.mxu0 0
    %9024 = vmatpush1.bf16.msra.mxu0 %v9003
    %9025 = vmatprep.subr.bf16.mxu0 0
    %9026 = vmatpush1.bf16.msra.mxu0 %v9004
    %9027 = vmatprep.subr.bf16.mxu0 0
    %9028 = vmatpush1.bf16.msra.mxu0 %v9005
    %9029 = vmatprep.subr.bf16.mxu0 0
    %9030 = vmatpush1.bf16.msra.mxu0 %v9006
    %9031 = vmatprep.subr.bf16.mxu0 0
    %9032 = vmatpush1.bf16.msra.mxu0 0
    %9033 = vmatprep.subr.bf16.mxu0 0
    %9034 = vmatpush1.bf16.msra.mxu0 0
    %9035 = vmatprep.subr.bf16.mxu0 0
    %9036 = vmatpush1.bf16.msra.mxu0 0
    %9037 = vmatprep.subr.bf16.mxu0 0
    %9038 = vmatpush1.bf16.msra.mxu0 0
    %9039 = vmatprep.subr.bf16.mxu0 0
    %9040 = vmatpush1.bf16.msra.mxu0 0
    %9041 = vmatprep.subr.bf16.mxu0 0
    %9042 = vmatpush1.bf16.msra.mxu0 0
    %9043 = vmatprep.subr.bf16.mxu0 0
    %9044 = vmatpush1.bf16.msra.mxu0 0
    %9045 = vmatprep.subr.bf16.mxu0 0
    %9046 = vmatpush1.bf16.msra.mxu0 0
    %9047 = vmatprep.mubr.bf16.mxu0 0
    %9048 = vmatmul.mubr.bf16.gmra.mrb[0].mxu0 %v8943
    %v9049 = vpop.f32.mrb[0].mxu0
    %v9050 = vadd.f32 %v8965, %v9049
    %v9051 = vpop.f32.mrb[0].mxu0
    %v9052 = vpop.f32.mrb[0].mxu0
    %v9053 = vpop.f32.mrb[0].mxu0
    %9054 = vdwg.mxu0
    %v9055 = vand.u32 2147483647, %v9050
    %v9056 = vsub.f32 0.0, %v9055
    %v9057 = vmul.f32 %v9056, 1.442695
    %v9058 = vpow.pop %v9057
    %v9059 = vadd.f32 %v9058, 1.0
    %v9060 = vrcp.pop %v9059
    %v9061 = vmul.f32 1.0, %v9060
    %vm9062 = vcmp.ge.f32.partialorder %v9050, 0.0
    %v9063 = vmul.f32 %v9058, %v9061
    %v9064 = vsel %vm9062, %v9061, %v9063
    %9065 = vst [vmem:[#allocation29] sm:$0xff] %v9064
    // Predicated region
    $region146: #{tpu_custom_call.1} parent=1 // pred_check
      _
    $region147: #{tpu_custom_call.1} parent=1 // pred_check_branch
      %9067 = sbr.rel (0) target = $region149
    $region148: #{tpu_custom_call.1} parent=1 // pred_region
      %s9069 = ssub.s32 128, 128
      %9070 = vsyncadd [#allocation4], %s9069
      %s9072 = sshll.u32 [#allocation29], 4
      %s9073 = int_to_ptr.vmem [resolvable:$true] %s9072
      %9075 = dma.vmem_to_hbm [thread:$0]  %s9073, 128, %s19, [#allocation4]
    $region149: #{tpu_custom_call.1} parent=1 // pred_fallthru
      _
    // Predicated region
    $region150: #{tpu_custom_call.1} parent=1 // pred_check
      _
    $region151: #{tpu_custom_call.1} parent=1 // pred_check_branch
      %9077 = sbr.rel (0) target = $region153
    $region152: #{tpu_custom_call.1} parent=1 // pred_region
      %9078 = dma.done [#allocation4], 128
    $region153: #{tpu_custom_call.1} parent=1 // pred_fallthru
      _
    %9079 = vsyncpa [#allocation3], 1
    %9080 = vsyncpa [#allocation6], 1
    %9081 = vsyncpa [#allocation9], 1
    %9082 = vsyncpa [#allocation12], 1
    %9083 = vsyncpa [#allocation15], 1
    %9084 = vsyncpa [#allocation18], 1
    %9085 = vsyncpa [#allocation21], 1
    %9086 = vsyncpa [#allocation24], 1
    %9087 = vsyncpa [#allocation27], 1
    %9088 = vsyncpa [#allocation4], 1

</llo_original>
